<compile_context>
chip_gen: v5e
topology: v5e:2x2
jax: 0.10.0
libtpu: 0.0.40
codegen_flags: <defaults>
</compile_context>

<pallas_src>
import numpy as np
import jax
import jax.numpy as jnp
from jax.experimental import pallas as pl
from jax.experimental.pallas import tpu as pltpu

# ---------------- small deterministic config ----------------
B = 2              # batch
SEQ_LEN = 64       # configs.seq_len
PRED_LEN = 16      # configs.pred_len
ENC_IN = 8         # configs.enc_in (= c_in)
TARGET_NUM = 4     # configs.target_num
D_MODEL = 32       # configs.d_model
E_LAYERS = 2       # configs.e_layers
D_MARK = 4         # number of time-mark features
KERNEL_SIZES = [48, 32, 24]
NUM_TRENDS = len(KERNEL_SIZES)
EPS_VAR = 1e-5
EPS_LN = 1e-5


# ---------------- packed parameter blob layouts (static) ----------------
def _ceil_to(x, m):
    return ((x + m - 1) // m) * m


def _build_w_layout():
    """Row layout of the bf16 MXU-weight blob (rows 16-aligned = bf16 sublane tile)."""
    off, r = {}, 0

    def slot(name, rows):
        nonlocal r
        off[name] = r
        r += _ceil_to(rows, 16)

    slot("dstack", NUM_TRENDS * SEQ_LEN)     # precomposed trend decomposition (3T, T)
    slot("wv", ENC_IN)                       # value embedding (C, D)
    slot("wt", D_MARK)                       # temporal embedding (DM, D)
    for l in range(E_LAYERS):
        slot(f"wg{l}", D_MODEL)              # gconv stand-in (D, D)
        slot(f"w0{l}", D_MODEL)              # linear0 (D, D)
    slot("wp", D_MODEL)                      # projection_trends sliced to target chans (D, TN)
    slot("wst", PRED_LEN)                    # seq2pred_trends (P, T)
    slot("wss", PRED_LEN)                    # seasonal head precomposed with R (P, T)
    return off, _ceil_to(r, 16)


def _build_v_layout():
    """Row layout of the f32 (VPU) parameter blob (rows 8-aligned = f32 sublane tile)."""
    off, r = {}, 0

    def slot(name, rows):
        nonlocal r
        off[name] = r
        r += _ceil_to(rows, 8)

    slot("pos", SEQ_LEN)                     # positional embedding (T, D)
    slot("vecs", 6 * E_LAYERS)               # per layer: bg, b0, g1, b1, g2, b2 (1 row each)
    slot("head_bias", PRED_LEN)              # folded head biases (P, TN)
    return off, _ceil_to(r, 8)


W_OFF, W_ROWS = _build_w_layout()            # (416, 128) bf16
V_OFF, V_ROWS = _build_v_layout()            # (96, 128) f32


# ---------------- host-side operator precomposition ----------------
def build_moving_avg_matrix(T, k):
    """T x T matrix M with (M @ x) == moving_avg(x, kernel=k, stride=1) using the
    replicate-padding scheme of `moving_avg` in the PyTorch reference."""
    pad = k // 2
    left = pad - 1 if k % 2 == 0 else pad
    M = np.zeros((T, T), dtype=np.float32)
    for t in range(T):
        for j in range(k):
            i = t + j                          # index into padded sequence
            s = min(max(i - left, 0), T - 1)
            M[t, s] += 1.0 / k
    return M


def build_decomp_operators(T, kernel_sizes):
    """Pre-compose the cascaded decomposition:
         moving_mean_i = M_i * prod_{j<i}(I - M_j) * x ,  res = prod_i (I - M_i) * x
    Returns (trend_stack (num_trends*T, T), R (T, T))."""
    I = np.eye(T, dtype=np.float32)
    R = I.copy()
    rows = []
    for k in kernel_sizes:
        M = build_moving_avg_matrix(T, k)
        rows.append(M @ R)
        R = (I - M) @ R
    return np.concatenate(rows, axis=0), R


def sinusoidal_pos(T, D):
    pos = np.arange(T)[:, None].astype(np.float32)
    i = np.arange(D)[None, :].astype(np.float32)
    angle = pos / np.power(10000.0, (2.0 * np.floor(i / 2.0)) / D)
    pe = np.where((np.arange(D)[None, :] % 2) == 0, np.sin(angle), np.cos(angle))
    return pe.astype(np.float32)


def init_params(key):
    ks = jax.random.split(key, 20)
    T, C, DM, D, P, TN, L, NT = (SEQ_LEN, ENC_IN, D_MARK, D_MODEL, PRED_LEN,
                                 TARGET_NUM, E_LAYERS, NUM_TRENDS)

    def lin(k, shape, fan_in):
        return np.asarray((1.0 / np.sqrt(fan_in)) * jax.random.normal(k, shape, jnp.float32))

    def small(k, shape):
        return 0.02 * np.asarray(jax.random.normal(k, shape, jnp.float32))

    # --- reference-structured raw parameters ---
    # TODO(synk): DataEmbedding internals not provided; linear value embedding +
    # linear temporal embedding + sinusoidal positions stand-in.
    w_value = lin(ks[0], (C, D), C)
    w_temporal = lin(ks[1], (DM, D), DM)
    pos = sinusoidal_pos(T, D)

    wg = [lin(ks[2 + l], (D, D), D) for l in range(L)]
    w0 = [lin(ks[4 + l], (D, D), D) for l in range(L)]
    bg = [small(ks[6 + l], (D,)) for l in range(L)]
    b0 = [small(ks[8 + l], (D,)) for l in range(L)]
    g1 = [np.ones((D,), np.float32) for _ in range(L)]
    b1 = [np.zeros((D,), np.float32) for _ in range(L)]
    g2 = [np.ones((D,), np.float32) for _ in range(L)]
    b2 = [np.zeros((D,), np.float32) for _ in range(L)]

    w_proj_t = lin(ks[10], (D, C), D)
    b_proj_t = small(ks[11], (C,))
    # TODO(synk): Predict module source not provided; shared Linear(seq_len->pred_len).
    w_seq_t = lin(ks[12], (P, T), T)
    b_seq_t = small(ks[13], (P,))
    # TODO(synk): Multi_Scale_Module (SeasonalBlock body) source not provided;
    # shared Linear(seq_len->pred_len) stand-in on the TARGET_NUM channels.
    w_seq_s = lin(ks[14], (P, T), T)
    b_seq_s = small(ks[15], (P,))

    # --- host-side precompositions ---
    dstack_trends, R = build_decomp_operators(T, KERNEL_SIZES)    # (3T, T), (T, T)
    wss_R = w_seq_s @ R                                           # seasonal head o residual op
    wp_tn = w_proj_t[:, C - TN:]                                  # trend head, target chans only
    bp_tn = b_proj_t[C - TN:]
    # All trend/seasonal head biases folded (heads are shared & linear, so summing
    # trend activations before the heads scales their biases by NUM_TRENDS):
    head_bias = (NT * (w_seq_t.sum(axis=1, keepdims=True) * bp_tn[None, :])
                 + NT * b_seq_t[:, None] + b_seq_s[:, None])      # (P, TN)

    # --- pack into two lane-padded blobs (one DMA each) ---
    wblob = np.zeros((W_ROWS, 128), np.float32)
    vblob = np.zeros((V_ROWS, 128), np.float32)

    def put(blob, row, arr):
        a = np.asarray(arr, np.float32)
        blob[row:row + a.shape[0], :a.shape[1]] = a

    put(wblob, W_OFF["dstack"], dstack_trends)
    put(wblob, W_OFF["wv"], w_value)
    put(wblob, W_OFF["wt"], w_temporal)
    for l in range(L):
        put(wblob, W_OFF[f"wg{l}"], wg[l])
        put(wblob, W_OFF[f"w0{l}"], w0[l])
    put(wblob, W_OFF["wp"], wp_tn)
    put(wblob, W_OFF["wst"], w_seq_t)
    put(wblob, W_OFF["wss"], wss_R)

    put(vblob, V_OFF["pos"], pos)
    vec_rows = []
    for l in range(L):
        vec_rows += [bg[l], b0[l], g1[l], b1[l], g2[l], b2[l]]
    put(vblob, V_OFF["vecs"], np.stack(vec_rows, axis=0))
    put(vblob, V_OFF["head_bias"], head_bias)

    return {"wblob": jnp.asarray(wblob, jnp.bfloat16),    # MXU weights (bf16)
            "vblob": jnp.asarray(vblob, jnp.float32)}     # VPU params (f32)


# ---------------- fused Pallas kernel ----------------
def _layernorm(x, gamma, beta):
    mu = jnp.mean(x, axis=-1, keepdims=True)
    var = jnp.mean((x - mu) ** 2, axis=-1, keepdims=True)
    return (x - mu) * jax.lax.rsqrt(var + EPS_LN) * gamma + beta


def make_msrnet_kernel(bpg):
    """bpg = batch elements processed per grid step (1 on multi-TC, B on single-TC)."""
    T, C, DM, D, P, TN, NT, L = (SEQ_LEN, ENC_IN, D_MARK, D_MODEL, PRED_LEN,
                                 TARGET_NUM, NUM_TRENDS, E_LAYERS)
    f32, bf16 = jnp.float32, jnp.bfloat16

    def kernel(x_ref, mark_ref, w_ref, v_ref, out_ref):
        # ---- static slices of the two packed parameter blobs ----
        dstack = w_ref[W_OFF["dstack"]:W_OFF["dstack"] + NT * T, :T]     # (3T, T) bf16
        wv = w_ref[W_OFF["wv"]:W_OFF["wv"] + C, :D]                      # (C, D)
        wt = w_ref[W_OFF["wt"]:W_OFF["wt"] + DM, :D]                     # (DM, D)
        wg = [w_ref[W_OFF[f"wg{l}"]:W_OFF[f"wg{l}"] + D, :D] for l in range(L)]
        w0 = [w_ref[W_OFF[f"w0{l}"]:W_OFF[f"w0{l}"] + D, :D] for l in range(L)]
        wptn = w_ref[W_OFF["wp"]:W_OFF["wp"] + D, :TN]                   # (D, TN)
        wst = w_ref[W_OFF["wst"]:W_OFF["wst"] + P, :T]                   # (P, T)
        wssr = w_ref[W_OFF["wss"]:W_OFF["wss"] + P, :T]                  # (P, T)

        pos = v_ref[V_OFF["pos"]:V_OFF["pos"] + T, :D]                   # (T, D) f32
        vt0 = V_OFF["vecs"]

        def vec(i):                                                       # (1, D) f32
            return v_ref[vt0 + i:vt0 + i + 1, :D]

        head_bias = v_ref[V_OFF["head_bias"]:V_OFF["head_bias"] + P, :TN]  # (P, TN)

        # ---- instance normalization over time (per batch element) ----
        x = x_ref[...]                                       # (bpg, T, C) f32
        mu = jnp.mean(x, axis=1, keepdims=True)              # (bpg, 1, C)
        xc = x - mu
        var = jnp.mean(xc * xc, axis=1, keepdims=True)       # unbiased=False
        rstd = jax.lax.rsqrt(var + EPS_VAR)
        std = jnp.sqrt(var + EPS_VAR)                        # for final de-normalization
        xn = xc * rstd                                       # (bpg, T, C)

        # ---- embeddings on flattened slabs (weights shared across batch/trends) ----
        xe = jnp.dot(xn.reshape(bpg * T, C).astype(bf16), wv,
                     preferred_element_type=f32)             # (bpg*T, D)
        te = jnp.dot(mark_ref[...].reshape(bpg * T, DM).astype(bf16), wt,
                     preferred_element_type=f32)             # (bpg*T, D)
        te3 = te.reshape(bpg, T, D) + pos[None]              # (bpg, T, D)
        xe3 = xe.reshape(bpg, T, D).astype(bf16)

        # ---- cascaded series_decomp, precomposed & reassociated:
        #      moving_means @ Wv == dstack @ (xn @ Wv)  (MXU N-dim = D, not C) ----
        slabs = []
        for b in range(bpg):
            mm = jnp.dot(dstack, xe3[b], preferred_element_type=f32)          # (3T, D)
            mm = (mm.reshape(NT, T, D) + te3[b][None]).reshape(NT * T, D)     # + time-mark emb
            slabs.append(mm)
        enc = slabs[0] if bpg == 1 else jnp.concatenate(slabs, axis=0)        # (bpg*3T, D)

        # ---- TrendBlock stack on the whole slab (activations stay resident) ----
        for l in range(L):
            bg, b0 = vec(6 * l + 0), vec(6 * l + 1)
            g1, b1 = vec(6 * l + 2), vec(6 * l + 3)
            g2, b2 = vec(6 * l + 4), vec(6 * l + 5)
            # TODO(synk): GraphBlock (gconv) source not provided; dense linear stand-in.
            h = jnp.dot(enc.astype(bf16), wg[l], preferred_element_type=f32) + bg
            h = jnp.dot(h.astype(bf16), w0[l], preferred_element_type=f32) + b0
            h = _layernorm(h, g1, b1)
            h = jax.nn.gelu(h)       # tanh approx; PyTorch nn.GELU is exact erf (small drift)
            h = h + enc              # TrendBlock residual
            enc = _layernorm(h, g2, b2)     # layer_norm_trends

        enc4 = enc.reshape(bpg, NT, T, D)

        # ---- heads (shared linear heads commute with the sum over trends; all
        #      biases are pre-folded into head_bias on the host) ----
        for b in range(bpg):
            enc_sum = enc4[b, 0]
            for t in range(1, NT):
                enc_sum = enc_sum + enc4[b, t]                               # (T, D)
            proj = jnp.dot(enc_sum.astype(bf16), wptn,
                           preferred_element_type=f32)                       # (T, TN)
            trend = jnp.dot(wst, proj.astype(bf16),
                            preferred_element_type=f32)                      # (P, TN)
            # seasonal head precomposed with the residual operator R on the host
            seas = jnp.dot(wssr, xn[b, :, C - TN:].astype(bf16),
                           preferred_element_type=f32)                       # (P, TN)
            y = trend + seas + head_bias
            out_ref[b] = y * std[b, :, C - TN:] + mu[b, :, C - TN:]

    return kernel


# ---------------- pallas_call wrapper ----------------
def _tensorcores_per_chip():
    """v7x has 2 TensorCores per chip; v5e/v6e have 1 (safe default)."""
    try:
        kind = jax.devices()[0].device_kind.lower()
    except Exception:
        return 1
    return 2 if ("v7" in kind or "7x" in kind) else 1


def model_forward(x_enc, x_mark_enc, x_dec, x_mark_dec, params, mask=None):
    del x_dec, x_mark_dec, mask  # unused by the reference forward pass
    Bsz = x_enc.shape[0]
    T, C, DM, D, P, TN, L, NT = (SEQ_LEN, ENC_IN, D_MARK, D_MODEL, PRED_LEN,
                                 TARGET_NUM, E_LAYERS, NUM_TRENDS)

    # grid selection: one batch element per TensorCore on multi-TC chips (v7x);
    # single grid step with the whole batch as one slab on single-TC chips.
    if _tensorcores_per_chip() >= 2 and Bsz > 1:
        grid, bpg = (Bsz,), 1
    else:
        grid, bpg = (1,), Bsz

    flops = 2 * Bsz * (NT * T * T * D                 # reassociated decomposition
                       + T * C * D + T * DM * D       # value / temporal embeddings
                       + L * 2 * NT * T * D * D       # TrendBlock stack
                       + T * D * TN + 2 * P * T * TN)  # trend + seasonal heads
    transcendentals = Bsz * (L * NT * T * D + 4 * T)
    bytes_accessed = (4 * Bsz * (T * C + T * DM + P * TN)
                      + 2 * W_ROWS * 128 + 4 * V_ROWS * 128)
    cost = pl.CostEstimate(flops=int(flops), transcendentals=int(transcendentals),
                           bytes_accessed=int(bytes_accessed))

    return pl.pallas_call(
        make_msrnet_kernel(bpg),
        out_shape=jax.ShapeDtypeStruct((Bsz, P, TN), jnp.float32),
        grid=grid,
        in_specs=[
            pl.BlockSpec((bpg, T, C), lambda g: (g, 0, 0)),      # x_enc
            pl.BlockSpec((bpg, T, DM), lambda g: (g, 0, 0)),     # x_mark_enc
            pl.BlockSpec((W_ROWS, 128), lambda g: (0, 0)),       # packed bf16 weight blob
            pl.BlockSpec((V_ROWS, 128), lambda g: (0, 0)),       # packed f32 param blob
        ],
        out_specs=pl.BlockSpec((bpg, P, TN), lambda g: (g, 0, 0)),
        compiler_params=pltpu.CompilerParams(
            dimension_semantics=("parallel",)),
        cost_estimate=cost,
    )(x_enc, x_mark_enc, params["wblob"], params["vblob"])


if __name__ == "__main__":
    key = jax.random.PRNGKey(0)
    k1, k2, kp = jax.random.split(key, 3)
    x_enc = jax.random.normal(k1, (B, SEQ_LEN, ENC_IN), jnp.float32)
    x_mark_enc = jax.random.normal(k2, (B, SEQ_LEN, D_MARK), jnp.float32)
    x_dec = jnp.zeros((B, PRED_LEN, ENC_IN), jnp.float32)       # unused by forward
    x_mark_dec = jnp.zeros((B, PRED_LEN, D_MARK), jnp.float32)  # unused by forward

    params = init_params(kp)
    fwd = jax.jit(model_forward)
    out = jax.block_until_ready(fwd(x_enc, x_mark_enc, x_dec, x_mark_dec, params))

    assert out.shape == (B, PRED_LEN, TARGET_NUM), out.shape
    assert bool(jnp.all(jnp.isfinite(out)))
    print("KERNEL_OK")
</pallas_src>

<mosaic_0001>
module attributes {stable_mosaic.version = 11 : i64} {
  func.func @kernel(%arg0: i32, %arg1: memref<2x64x8xf32, #tpu.memory_space<vmem>>, %arg2: memref<2x64x4xf32, #tpu.memory_space<vmem>>, %arg3: memref<416x128xbf16, #tpu.memory_space<vmem>>, %arg4: memref<96x128xf32, #tpu.memory_space<vmem>>, %arg5: memref<2x16x4xf32, #tpu.memory_space<vmem>>) attributes {dimension_semantics = [#tpu.dimension_semantics<parallel>], iteration_bounds = array<i64: 1>, scalar_prefetch = 0 : i64, scratch_operands = 0 : i64, tpu.core_type = #tpu.core_type<tc>, window_params = [{transform_indices = @transform_0, window_bounds = array<i64: 2, 64, 8>}, {transform_indices = @transform_1, window_bounds = array<i64: 2, 64, 4>}, {pipeline_mode = #tpu.pipeline_mode<synchronous>, transform_indices = @transform_2, window_bounds = array<i64: 416, 128>}, {pipeline_mode = #tpu.pipeline_mode<synchronous>, transform_indices = @transform_3, window_bounds = array<i64: 96, 128>}, {transform_indices = @transform_4, window_bounds = array<i64: 2, 16, 4>}]} {
    %c0 = arith.constant 0 : index
    %c0_0 = arith.constant 0 : index
    %0 = vector.load %arg3[%c0, %c0_0] : memref<416x128xbf16, #tpu.memory_space<vmem>>, vector<192x64xbf16>
    %c192 = arith.constant 192 : index
    %c0_1 = arith.constant 0 : index
    %1 = vector.load %arg3[%c192, %c0_1] : memref<416x128xbf16, #tpu.memory_space<vmem>>, vector<8x32xbf16>
    %c208 = arith.constant 208 : index
    %c0_2 = arith.constant 0 : index
    %2 = vector.load %arg3[%c208, %c0_2] : memref<416x128xbf16, #tpu.memory_space<vmem>>, vector<4x32xbf16>
    %c224 = arith.constant 224 : index
    %c0_3 = arith.constant 0 : index
    %3 = vector.load %arg3[%c224, %c0_3] : memref<416x128xbf16, #tpu.memory_space<vmem>>, vector<32x32xbf16>
    %c288 = arith.constant 288 : index
    %c0_4 = arith.constant 0 : index
    %4 = vector.load %arg3[%c288, %c0_4] : memref<416x128xbf16, #tpu.memory_space<vmem>>, vector<32x32xbf16>
    %c256 = arith.constant 256 : index
    %c0_5 = arith.constant 0 : index
    %5 = vector.load %arg3[%c256, %c0_5] : memref<416x128xbf16, #tpu.memory_space<vmem>>, vector<32x32xbf16>
    %c320 = arith.constant 320 : index
    %c0_6 = arith.constant 0 : index
    %6 = vector.load %arg3[%c320, %c0_6] : memref<416x128xbf16, #tpu.memory_space<vmem>>, vector<32x32xbf16>
    %c352 = arith.constant 352 : index
    %c0_7 = arith.constant 0 : index
    %7 = vector.load %arg3[%c352, %c0_7] : memref<416x128xbf16, #tpu.memory_space<vmem>>, vector<32x4xbf16>
    %c384 = arith.constant 384 : index
    %c0_8 = arith.constant 0 : index
    %8 = vector.load %arg3[%c384, %c0_8] : memref<416x128xbf16, #tpu.memory_space<vmem>>, vector<16x64xbf16>
    %c400 = arith.constant 400 : index
    %c0_9 = arith.constant 0 : index
    %9 = vector.load %arg3[%c400, %c0_9] : memref<416x128xbf16, #tpu.memory_space<vmem>>, vector<16x64xbf16>
    %c0_10 = arith.constant 0 : index
    %c0_11 = arith.constant 0 : index
    %10 = vector.load %arg4[%c0_10, %c0_11] : memref<96x128xf32, #tpu.memory_space<vmem>>, vector<64x32xf32>
    %c80 = arith.constant 80 : index
    %c0_12 = arith.constant 0 : index
    %11 = vector.load %arg4[%c80, %c0_12] : memref<96x128xf32, #tpu.memory_space<vmem>>, vector<16x4xf32>
    %c0_13 = arith.constant 0 : index
    %c0_14 = arith.constant 0 : index
    %c0_15 = arith.constant 0 : index
    %12 = vector.load %arg1[%c0_13, %c0_14, %c0_15] : memref<2x64x8xf32, #tpu.memory_space<vmem>>, vector<2x64x8xf32>
    %cst = arith.constant dense<0.000000e+00> : vector<2x8xf32>
    %13 = vector.multi_reduction <add>, %12, %cst [1] : vector<2x64x8xf32> to vector<2x8xf32>
    %14 = vector.shape_cast %13 : vector<2x8xf32> to vector<2x1x8xf32>
    %cst_16 = arith.constant 6.400000e+01 : f32
    %15 = vector.broadcast %cst_16 : f32 to vector<2x1x8xf32>
    %16 = arith.divf %14, %15 : vector<2x1x8xf32>
    %17 = vector.broadcast %16 : vector<2x1x8xf32> to vector<2x64x8xf32>
    %18 = arith.subf %12, %17 : vector<2x64x8xf32>
    %19 = arith.mulf %18, %18 : vector<2x64x8xf32>
    %cst_17 = arith.constant dense<0.000000e+00> : vector<2x8xf32>
    %20 = vector.multi_reduction <add>, %19, %cst_17 [1] : vector<2x64x8xf32> to vector<2x8xf32>
    %21 = vector.shape_cast %20 : vector<2x8xf32> to vector<2x1x8xf32>
    %cst_18 = arith.constant 6.400000e+01 : f32
    %22 = vector.broadcast %cst_18 : f32 to vector<2x1x8xf32>
    %23 = arith.divf %21, %22 : vector<2x1x8xf32>
    %cst_19 = arith.constant 9.99999974E-6 : f32
    %24 = vector.broadcast %cst_19 : f32 to vector<2x1x8xf32>
    %25 = arith.addf %23, %24 : vector<2x1x8xf32>
    %26 = math.rsqrt %25 : vector<2x1x8xf32>
    %cst_20 = arith.constant 9.99999974E-6 : f32
    %27 = vector.broadcast %cst_20 : f32 to vector<2x1x8xf32>
    %28 = arith.addf %23, %27 : vector<2x1x8xf32>
    %29 = math.sqrt %28 : vector<2x1x8xf32>
    %30 = vector.broadcast %26 : vector<2x1x8xf32> to vector<2x64x8xf32>
    %31 = arith.mulf %18, %30 : vector<2x64x8xf32>
    %32 = vector.shape_cast %31 : vector<2x64x8xf32> to vector<128x8xf32>
    %33 = arith.truncf %32 : vector<128x8xf32> to vector<128x8xbf16>
    %cst_21 = arith.constant dense<0.000000e+00> : vector<128x32xf32>
    %34 = tpu.matmul %33, %1, %cst_21 {dimension_numbers = #tpu.dot_dimension_numbers<[1], [0], [0], [1], [0, 0, 1, 1], [], []>} : vector<128x8xbf16>, vector<8x32xbf16>, vector<128x32xf32> -> vector<128x32xf32>
    %c0_22 = arith.constant 0 : index
    %c0_23 = arith.constant 0 : index
    %c0_24 = arith.constant 0 : index
    %35 = vector.load %arg2[%c0_22, %c0_23, %c0_24] : memref<2x64x4xf32, #tpu.memory_space<vmem>>, vector<2x64x4xf32>
    %36 = vector.shape_cast %35 : vector<2x64x4xf32> to vector<128x4xf32>
    %37 = arith.truncf %36 : vector<128x4xf32> to vector<128x4xbf16>
    %cst_25 = arith.constant dense<0.000000e+00> : vector<128x32xf32>
    %38 = tpu.matmul %37, %2, %cst_25 {dimension_numbers = #tpu.dot_dimension_numbers<[1], [0], [0], [1], [0, 0, 1, 1], [], []>} : vector<128x4xbf16>, vector<4x32xbf16>, vector<128x32xf32> -> vector<128x32xf32>
    %39 = vector.shape_cast %38 : vector<128x32xf32> to vector<2x64x32xf32>
    %40 = vector.shape_cast %10 : vector<64x32xf32> to vector<1x64x32xf32>
    %41 = vector.broadcast %40 : vector<1x64x32xf32> to vector<2x64x32xf32>
    %42 = arith.addf %39, %41 : vector<2x64x32xf32>
    %43 = vector.shape_cast %34 : vector<128x32xf32> to vector<2x64x32xf32>
    %44 = arith.truncf %43 : vector<2x64x32xf32> to vector<2x64x32xbf16>
    %45 = vector.extract_strided_slice %44 {offsets = [0, 0, 0], sizes = [1, 64, 32], strides = [1, 1, 1]} : vector<2x64x32xbf16> to vector<1x64x32xbf16>
    %46 = vector.shape_cast %45 : vector<1x64x32xbf16> to vector<64x32xbf16>
    %cst_26 = arith.constant dense<0.000000e+00> : vector<192x32xf32>
    %47 = tpu.matmul %0, %46, %cst_26 {dimension_numbers = #tpu.dot_dimension_numbers<[1], [0], [0], [1], [0, 0, 1, 1], [], []>} : vector<192x64xbf16>, vector<64x32xbf16>, vector<192x32xf32> -> vector<192x32xf32>
    %48 = vector.shape_cast %47 : vector<192x32xf32> to vector<3x64x32xf32>
    %49 = vector.extract_strided_slice %42 {offsets = [0, 0, 0], sizes = [1, 64, 32], strides = [1, 1, 1]} : vector<2x64x32xf32> to vector<1x64x32xf32>
    %50 = vector.shape_cast %49 : vector<1x64x32xf32> to vector<64x32xf32>
    %51 = vector.shape_cast %50 : vector<64x32xf32> to vector<1x64x32xf32>
    %52 = vector.broadcast %51 : vector<1x64x32xf32> to vector<3x64x32xf32>
    %53 = arith.addf %48, %52 : vector<3x64x32xf32>
    %54 = vector.shape_cast %53 : vector<3x64x32xf32> to vector<192x32xf32>
    %55 = vector.extract_strided_slice %44 {offsets = [1, 0, 0], sizes = [1, 64, 32], strides = [1, 1, 1]} : vector<2x64x32xbf16> to vector<1x64x32xbf16>
    %56 = vector.shape_cast %55 : vector<1x64x32xbf16> to vector<64x32xbf16>
    %cst_27 = arith.constant dense<0.000000e+00> : vector<192x32xf32>
    %57 = tpu.matmul %0, %56, %cst_27 {dimension_numbers = #tpu.dot_dimension_numbers<[1], [0], [0], [1], [0, 0, 1, 1], [], []>} : vector<192x64xbf16>, vector<64x32xbf16>, vector<192x32xf32> -> vector<192x32xf32>
    %58 = vector.shape_cast %57 : vector<192x32xf32> to vector<3x64x32xf32>
    %59 = vector.extract_strided_slice %42 {offsets = [1, 0, 0], sizes = [1, 64, 32], strides = [1, 1, 1]} : vector<2x64x32xf32> to vector<1x64x32xf32>
    %60 = vector.shape_cast %59 : vector<1x64x32xf32> to vector<64x32xf32>
    %61 = vector.shape_cast %60 : vector<64x32xf32> to vector<1x64x32xf32>
    %62 = vector.broadcast %61 : vector<1x64x32xf32> to vector<3x64x32xf32>
    %63 = arith.addf %58, %62 : vector<3x64x32xf32>
    %64 = vector.shape_cast %63 : vector<3x64x32xf32> to vector<192x32xf32>
    %65 = tpu.concatenate %54, %64 in 0 : vector<192x32xf32>, vector<192x32xf32> -> vector<384x32xf32>
    %c64 = arith.constant 64 : index
    %c0_28 = arith.constant 0 : index
    %66 = vector.load %arg4[%c64, %c0_28] : memref<96x128xf32, #tpu.memory_space<vmem>>, vector<1x32xf32>
    %c65 = arith.constant 65 : index
    %c0_29 = arith.constant 0 : index
    %67 = vector.load %arg4[%c65, %c0_29] : memref<96x128xf32, #tpu.memory_space<vmem>>, vector<1x32xf32>
    %c66 = arith.constant 66 : index
    %c0_30 = arith.constant 0 : index
    %68 = vector.load %arg4[%c66, %c0_30] : memref<96x128xf32, #tpu.memory_space<vmem>>, vector<1x32xf32>
    %c67 = arith.constant 67 : index
    %c0_31 = arith.constant 0 : index
    %69 = vector.load %arg4[%c67, %c0_31] : memref<96x128xf32, #tpu.memory_space<vmem>>, vector<1x32xf32>
    %c68 = arith.constant 68 : index
    %c0_32 = arith.constant 0 : index
    %70 = vector.load %arg4[%c68, %c0_32] : memref<96x128xf32, #tpu.memory_space<vmem>>, vector<1x32xf32>
    %c69 = arith.constant 69 : index
    %c0_33 = arith.constant 0 : index
    %71 = vector.load %arg4[%c69, %c0_33] : memref<96x128xf32, #tpu.memory_space<vmem>>, vector<1x32xf32>
    %72 = arith.truncf %65 : vector<384x32xf32> to vector<384x32xbf16>
    %cst_34 = arith.constant dense<0.000000e+00> : vector<384x32xf32>
    %73 = tpu.matmul %72, %3, %cst_34 {dimension_numbers = #tpu.dot_dimension_numbers<[1], [0], [0], [1], [0, 0, 1, 1], [], []>} : vector<384x32xbf16>, vector<32x32xbf16>, vector<384x32xf32> -> vector<384x32xf32>
    %74 = vector.broadcast %66 : vector<1x32xf32> to vector<384x32xf32>
    %75 = arith.addf %73, %74 : vector<384x32xf32>
    %76 = arith.truncf %75 : vector<384x32xf32> to vector<384x32xbf16>
    %cst_35 = arith.constant dense<0.000000e+00> : vector<384x32xf32>
    %77 = tpu.matmul %76, %5, %cst_35 {dimension_numbers = #tpu.dot_dimension_numbers<[1], [0], [0], [1], [0, 0, 1, 1], [], []>} : vector<384x32xbf16>, vector<32x32xbf16>, vector<384x32xf32> -> vector<384x32xf32>
    %78 = vector.broadcast %67 : vector<1x32xf32> to vector<384x32xf32>
    %79 = arith.addf %77, %78 : vector<384x32xf32>
    %cst_36 = arith.constant dense<0.000000e+00> : vector<384xf32>
    %80 = vector.multi_reduction <add>, %79, %cst_36 [1] : vector<384x32xf32> to vector<384xf32>
    %81 = vector.shape_cast %80 : vector<384xf32> to vector<384x1xf32>
    %cst_37 = arith.constant 3.200000e+01 : f32
    %82 = vector.broadcast %cst_37 : f32 to vector<384x1xf32>
    %83 = arith.divf %81, %82 : vector<384x1xf32>
    %84 = vector.broadcast %83 : vector<384x1xf32> to vector<384x32xf32>
    %85 = arith.subf %79, %84 : vector<384x32xf32>
    %86 = arith.mulf %85, %85 : vector<384x32xf32>
    %cst_38 = arith.constant dense<0.000000e+00> : vector<384xf32>
    %87 = vector.multi_reduction <add>, %86, %cst_38 [1] : vector<384x32xf32> to vector<384xf32>
    %88 = vector.shape_cast %87 : vector<384xf32> to vector<384x1xf32>
    %cst_39 = arith.constant 3.200000e+01 : f32
    %89 = vector.broadcast %cst_39 : f32 to vector<384x1xf32>
    %90 = arith.divf %88, %89 : vector<384x1xf32>
    %91 = vector.broadcast %83 : vector<384x1xf32> to vector<384x32xf32>
    %92 = arith.subf %79, %91 : vector<384x32xf32>
    %cst_40 = arith.constant 9.99999974E-6 : f32
    %93 = vector.broadcast %cst_40 : f32 to vector<384x1xf32>
    %94 = arith.addf %90, %93 : vector<384x1xf32>
    %95 = math.rsqrt %94 : vector<384x1xf32>
    %96 = vector.broadcast %95 : vector<384x1xf32> to vector<384x32xf32>
    %97 = arith.mulf %92, %96 : vector<384x32xf32>
    %98 = vector.broadcast %68 : vector<1x32xf32> to vector<384x32xf32>
    %99 = arith.mulf %97, %98 : vector<384x32xf32>
    %100 = vector.broadcast %69 : vector<1x32xf32> to vector<384x32xf32>
    %101 = arith.addf %99, %100 : vector<384x32xf32>
    %102 = arith.mulf %101, %101 : vector<384x32xf32>
    %103 = arith.mulf %101, %102 : vector<384x32xf32>
    %cst_41 = arith.constant 4.471500e-02 : f32
    %104 = vector.broadcast %cst_41 : f32 to vector<384x32xf32>
    %105 = arith.mulf %104, %103 : vector<384x32xf32>
    %106 = arith.addf %101, %105 : vector<384x32xf32>
    %cst_42 = arith.constant 0.797884583 : f32
    %107 = vector.broadcast %cst_42 : f32 to vector<384x32xf32>
    %108 = arith.mulf %107, %106 : vector<384x32xf32>
    %109 = math.tanh %108 : vector<384x32xf32>
    %cst_43 = arith.constant 1.000000e+00 : f32
    %110 = vector.broadcast %cst_43 : f32 to vector<384x32xf32>
    %111 = arith.addf %110, %109 : vector<384x32xf32>
    %cst_44 = arith.constant 5.000000e-01 : f32
    %112 = vector.broadcast %cst_44 : f32 to vector<384x32xf32>
    %113 = arith.mulf %112, %111 : vector<384x32xf32>
    %114 = arith.mulf %101, %113 : vector<384x32xf32>
    %115 = arith.addf %114, %65 : vector<384x32xf32>
    %cst_45 = arith.constant dense<0.000000e+00> : vector<384xf32>
    %116 = vector.multi_reduction <add>, %115, %cst_45 [1] : vector<384x32xf32> to vector<384xf32>
    %117 = vector.shape_cast %116 : vector<384xf32> to vector<384x1xf32>
    %cst_46 = arith.constant 3.200000e+01 : f32
    %118 = vector.broadcast %cst_46 : f32 to vector<384x1xf32>
    %119 = arith.divf %117, %118 : vector<384x1xf32>
    %120 = vector.broadcast %119 : vector<384x1xf32> to vector<384x32xf32>
    %121 = arith.subf %115, %120 : vector<384x32xf32>
    %122 = arith.mulf %121, %121 : vector<384x32xf32>
    %cst_47 = arith.constant dense<0.000000e+00> : vector<384xf32>
    %123 = vector.multi_reduction <add>, %122, %cst_47 [1] : vector<384x32xf32> to vector<384xf32>
    %124 = vector.shape_cast %123 : vector<384xf32> to vector<384x1xf32>
    %cst_48 = arith.constant 3.200000e+01 : f32
    %125 = vector.broadcast %cst_48 : f32 to vector<384x1xf32>
    %126 = arith.divf %124, %125 : vector<384x1xf32>
    %127 = vector.broadcast %119 : vector<384x1xf32> to vector<384x32xf32>
    %128 = arith.subf %115, %127 : vector<384x32xf32>
    %cst_49 = arith.constant 9.99999974E-6 : f32
    %129 = vector.broadcast %cst_49 : f32 to vector<384x1xf32>
    %130 = arith.addf %126, %129 : vector<384x1xf32>
    %131 = math.rsqrt %130 : vector<384x1xf32>
    %132 = vector.broadcast %131 : vector<384x1xf32> to vector<384x32xf32>
    %133 = arith.mulf %128, %132 : vector<384x32xf32>
    %134 = vector.broadcast %70 : vector<1x32xf32> to vector<384x32xf32>
    %135 = arith.mulf %133, %134 : vector<384x32xf32>
    %136 = vector.broadcast %71 : vector<1x32xf32> to vector<384x32xf32>
    %137 = arith.addf %135, %136 : vector<384x32xf32>
    %c70 = arith.constant 70 : index
    %c0_50 = arith.constant 0 : index
    %138 = vector.load %arg4[%c70, %c0_50] : memref<96x128xf32, #tpu.memory_space<vmem>>, vector<1x32xf32>
    %c71 = arith.constant 71 : index
    %c0_51 = arith.constant 0 : index
    %139 = vector.load %arg4[%c71, %c0_51] : memref<96x128xf32, #tpu.memory_space<vmem>>, vector<1x32xf32>
    %c72 = arith.constant 72 : index
    %c0_52 = arith.constant 0 : index
    %140 = vector.load %arg4[%c72, %c0_52] : memref<96x128xf32, #tpu.memory_space<vmem>>, vector<1x32xf32>
    %c73 = arith.constant 73 : index
    %c0_53 = arith.constant 0 : index
    %141 = vector.load %arg4[%c73, %c0_53] : memref<96x128xf32, #tpu.memory_space<vmem>>, vector<1x32xf32>
    %c74 = arith.constant 74 : index
    %c0_54 = arith.constant 0 : index
    %142 = vector.load %arg4[%c74, %c0_54] : memref<96x128xf32, #tpu.memory_space<vmem>>, vector<1x32xf32>
    %c75 = arith.constant 75 : index
    %c0_55 = arith.constant 0 : index
    %143 = vector.load %arg4[%c75, %c0_55] : memref<96x128xf32, #tpu.memory_space<vmem>>, vector<1x32xf32>
    %144 = arith.truncf %137 : vector<384x32xf32> to vector<384x32xbf16>
    %cst_56 = arith.constant dense<0.000000e+00> : vector<384x32xf32>
    %145 = tpu.matmul %144, %4, %cst_56 {dimension_numbers = #tpu.dot_dimension_numbers<[1], [0], [0], [1], [0, 0, 1, 1], [], []>} : vector<384x32xbf16>, vector<32x32xbf16>, vector<384x32xf32> -> vector<384x32xf32>
    %146 = vector.broadcast %138 : vector<1x32xf32> to vector<384x32xf32>
    %147 = arith.addf %145, %146 : vector<384x32xf32>
    %148 = arith.truncf %147 : vector<384x32xf32> to vector<384x32xbf16>
    %cst_57 = arith.constant dense<0.000000e+00> : vector<384x32xf32>
    %149 = tpu.matmul %148, %6, %cst_57 {dimension_numbers = #tpu.dot_dimension_numbers<[1], [0], [0], [1], [0, 0, 1, 1], [], []>} : vector<384x32xbf16>, vector<32x32xbf16>, vector<384x32xf32> -> vector<384x32xf32>
    %150 = vector.broadcast %139 : vector<1x32xf32> to vector<384x32xf32>
    %151 = arith.addf %149, %150 : vector<384x32xf32>
    %cst_58 = arith.constant dense<0.000000e+00> : vector<384xf32>
    %152 = vector.multi_reduction <add>, %151, %cst_58 [1] : vector<384x32xf32> to vector<384xf32>
    %153 = vector.shape_cast %152 : vector<384xf32> to vector<384x1xf32>
    %cst_59 = arith.constant 3.200000e+01 : f32
    %154 = vector.broadcast %cst_59 : f32 to vector<384x1xf32>
    %155 = arith.divf %153, %154 : vector<384x1xf32>
    %156 = vector.broadcast %155 : vector<384x1xf32> to vector<384x32xf32>
    %157 = arith.subf %151, %156 : vector<384x32xf32>
    %158 = arith.mulf %157, %157 : vector<384x32xf32>
    %cst_60 = arith.constant dense<0.000000e+00> : vector<384xf32>
    %159 = vector.multi_reduction <add>, %158, %cst_60 [1] : vector<384x32xf32> to vector<384xf32>
    %160 = vector.shape_cast %159 : vector<384xf32> to vector<384x1xf32>
    %cst_61 = arith.constant 3.200000e+01 : f32
    %161 = vector.broadcast %cst_61 : f32 to vector<384x1xf32>
    %162 = arith.divf %160, %161 : vector<384x1xf32>
    %163 = vector.broadcast %155 : vector<384x1xf32> to vector<384x32xf32>
    %164 = arith.subf %151, %163 : vector<384x32xf32>
    %cst_62 = arith.constant 9.99999974E-6 : f32
    %165 = vector.broadcast %cst_62 : f32 to vector<384x1xf32>
    %166 = arith.addf %162, %165 : vector<384x1xf32>
    %167 = math.rsqrt %166 : vector<384x1xf32>
    %168 = vector.broadcast %167 : vector<384x1xf32> to vector<384x32xf32>
    %169 = arith.mulf %164, %168 : vector<384x32xf32>
    %170 = vector.broadcast %140 : vector<1x32xf32> to vector<384x32xf32>
    %171 = arith.mulf %169, %170 : vector<384x32xf32>
    %172 = vector.broadcast %141 : vector<1x32xf32> to vector<384x32xf32>
    %173 = arith.addf %171, %172 : vector<384x32xf32>
    %174 = arith.mulf %173, %173 : vector<384x32xf32>
    %175 = arith.mulf %173, %174 : vector<384x32xf32>
    %cst_63 = arith.constant 4.471500e-02 : f32
    %176 = vector.broadcast %cst_63 : f32 to vector<384x32xf32>
    %177 = arith.mulf %176, %175 : vector<384x32xf32>
    %178 = arith.addf %173, %177 : vector<384x32xf32>
    %cst_64 = arith.constant 0.797884583 : f32
    %179 = vector.broadcast %cst_64 : f32 to vector<384x32xf32>
    %180 = arith.mulf %179, %178 : vector<384x32xf32>
    %181 = math.tanh %180 : vector<384x32xf32>
    %cst_65 = arith.constant 1.000000e+00 : f32
    %182 = vector.broadcast %cst_65 : f32 to vector<384x32xf32>
    %183 = arith.addf %182, %181 : vector<384x32xf32>
    %cst_66 = arith.constant 5.000000e-01 : f32
    %184 = vector.broadcast %cst_66 : f32 to vector<384x32xf32>
    %185 = arith.mulf %184, %183 : vector<384x32xf32>
    %186 = arith.mulf %173, %185 : vector<384x32xf32>
    %187 = arith.addf %186, %137 : vector<384x32xf32>
    %cst_67 = arith.constant dense<0.000000e+00> : vector<384xf32>
    %188 = vector.multi_reduction <add>, %187, %cst_67 [1] : vector<384x32xf32> to vector<384xf32>
    %189 = vector.shape_cast %188 : vector<384xf32> to vector<384x1xf32>
    %cst_68 = arith.constant 3.200000e+01 : f32
    %190 = vector.broadcast %cst_68 : f32 to vector<384x1xf32>
    %191 = arith.divf %189, %190 : vector<384x1xf32>
    %192 = vector.broadcast %191 : vector<384x1xf32> to vector<384x32xf32>
    %193 = arith.subf %187, %192 : vector<384x32xf32>
    %194 = arith.mulf %193, %193 : vector<384x32xf32>
    %cst_69 = arith.constant dense<0.000000e+00> : vector<384xf32>
    %195 = vector.multi_reduction <add>, %194, %cst_69 [1] : vector<384x32xf32> to vector<384xf32>
    %196 = vector.shape_cast %195 : vector<384xf32> to vector<384x1xf32>
    %cst_70 = arith.constant 3.200000e+01 : f32
    %197 = vector.broadcast %cst_70 : f32 to vector<384x1xf32>
    %198 = arith.divf %196, %197 : vector<384x1xf32>
    %199 = vector.broadcast %191 : vector<384x1xf32> to vector<384x32xf32>
    %200 = arith.subf %187, %199 : vector<384x32xf32>
    %cst_71 = arith.constant 9.99999974E-6 : f32
    %201 = vector.broadcast %cst_71 : f32 to vector<384x1xf32>
    %202 = arith.addf %198, %201 : vector<384x1xf32>
    %203 = math.rsqrt %202 : vector<384x1xf32>
    %204 = vector.broadcast %203 : vector<384x1xf32> to vector<384x32xf32>
    %205 = arith.mulf %200, %204 : vector<384x32xf32>
    %206 = vector.broadcast %142 : vector<1x32xf32> to vector<384x32xf32>
    %207 = arith.mulf %205, %206 : vector<384x32xf32>
    %208 = vector.broadcast %143 : vector<1x32xf32> to vector<384x32xf32>
    %209 = arith.addf %207, %208 : vector<384x32xf32>
    %210 = vector.shape_cast %209 : vector<384x32xf32> to vector<2x3x64x32xf32>
    %211 = vector.extract_strided_slice %210 {offsets = [0, 0, 0, 0], sizes = [1, 1, 64, 32], strides = [1, 1, 1, 1]} : vector<2x3x64x32xf32> to vector<1x1x64x32xf32>
    %212 = vector.shape_cast %211 : vector<1x1x64x32xf32> to vector<64x32xf32>
    %213 = vector.extract_strided_slice %210 {offsets = [0, 1, 0, 0], sizes = [1, 1, 64, 32], strides = [1, 1, 1, 1]} : vector<2x3x64x32xf32> to vector<1x1x64x32xf32>
    %214 = vector.shape_cast %213 : vector<1x1x64x32xf32> to vector<64x32xf32>
    %215 = arith.addf %212, %214 : vector<64x32xf32>
    %216 = vector.extract_strided_slice %210 {offsets = [0, 2, 0, 0], sizes = [1, 1, 64, 32], strides = [1, 1, 1, 1]} : vector<2x3x64x32xf32> to vector<1x1x64x32xf32>
    %217 = vector.shape_cast %216 : vector<1x1x64x32xf32> to vector<64x32xf32>
    %218 = arith.addf %215, %217 : vector<64x32xf32>
    %219 = arith.truncf %218 : vector<64x32xf32> to vector<64x32xbf16>
    %cst_72 = arith.constant dense<0.000000e+00> : vector<64x4xf32>
    %220 = tpu.matmul %219, %7, %cst_72 {dimension_numbers = #tpu.dot_dimension_numbers<[1], [0], [0], [1], [0, 0, 1, 1], [], []>} : vector<64x32xbf16>, vector<32x4xbf16>, vector<64x4xf32> -> vector<64x4xf32>
    %221 = arith.truncf %220 : vector<64x4xf32> to vector<64x4xbf16>
    %cst_73 = arith.constant dense<0.000000e+00> : vector<16x4xf32>
    %222 = tpu.matmul %8, %221, %cst_73 {dimension_numbers = #tpu.dot_dimension_numbers<[1], [0], [0], [1], [0, 0, 1, 1], [], []>} : vector<16x64xbf16>, vector<64x4xbf16>, vector<16x4xf32> -> vector<16x4xf32>
    %223 = vector.extract_strided_slice %31 {offsets = [0, 0, 4], sizes = [1, 64, 4], strides = [1, 1, 1]} : vector<2x64x8xf32> to vector<1x64x4xf32>
    %224 = vector.shape_cast %223 : vector<1x64x4xf32> to vector<64x4xf32>
    %225 = arith.truncf %224 : vector<64x4xf32> to vector<64x4xbf16>
    %cst_74 = arith.constant dense<0.000000e+00> : vector<16x4xf32>
    %226 = tpu.matmul %9, %225, %cst_74 {dimension_numbers = #tpu.dot_dimension_numbers<[1], [0], [0], [1], [0, 0, 1, 1], [], []>} : vector<16x64xbf16>, vector<64x4xbf16>, vector<16x4xf32> -> vector<16x4xf32>
    %227 = arith.addf %222, %226 : vector<16x4xf32>
    %228 = arith.addf %227, %11 : vector<16x4xf32>
    %229 = vector.extract_strided_slice %29 {offsets = [0, 0, 4], sizes = [1, 1, 4], strides = [1, 1, 1]} : vector<2x1x8xf32> to vector<1x1x4xf32>
    %230 = vector.shape_cast %229 : vector<1x1x4xf32> to vector<1x4xf32>
    %231 = vector.broadcast %230 : vector<1x4xf32> to vector<16x4xf32>
    %232 = arith.mulf %228, %231 : vector<16x4xf32>
    %233 = vector.extract_strided_slice %16 {offsets = [0, 0, 4], sizes = [1, 1, 4], strides = [1, 1, 1]} : vector<2x1x8xf32> to vector<1x1x4xf32>
    %234 = vector.shape_cast %233 : vector<1x1x4xf32> to vector<1x4xf32>
    %235 = vector.broadcast %234 : vector<1x4xf32> to vector<16x4xf32>
    %236 = arith.addf %232, %235 : vector<16x4xf32>
    %c0_75 = arith.constant 0 : index
    %c0_76 = arith.constant 0 : index
    %c0_77 = arith.constant 0 : index
    %237 = vector.load %arg5[%c0_75, %c0_76, %c0_77] : memref<2x16x4xf32, #tpu.memory_space<vmem>>, vector<1x16x4xf32>
    %238 = vector.shape_cast %237 : vector<1x16x4xf32> to vector<16x4xf32>
    %239 = vector.shape_cast %236 : vector<16x4xf32> to vector<1x16x4xf32>
    tpu.vector_store %arg5[%c0_75, %c0_76, %c0_77], %239 {strides = array<i32>} : memref<2x16x4xf32, #tpu.memory_space<vmem>>, vector<1x16x4xf32>,
    %240 = vector.extract_strided_slice %210 {offsets = [1, 0, 0, 0], sizes = [1, 1, 64, 32], strides = [1, 1, 1, 1]} : vector<2x3x64x32xf32> to vector<1x1x64x32xf32>
    %241 = vector.shape_cast %240 : vector<1x1x64x32xf32> to vector<64x32xf32>
    %242 = vector.extract_strided_slice %210 {offsets = [1, 1, 0, 0], sizes = [1, 1, 64, 32], strides = [1, 1, 1, 1]} : vector<2x3x64x32xf32> to vector<1x1x64x32xf32>
    %243 = vector.shape_cast %242 : vector<1x1x64x32xf32> to vector<64x32xf32>
    %244 = arith.addf %241, %243 : vector<64x32xf32>
    %245 = vector.extract_strided_slice %210 {offsets = [1, 2, 0, 0], sizes = [1, 1, 64, 32], strides = [1, 1, 1, 1]} : vector<2x3x64x32xf32> to vector<1x1x64x32xf32>
    %246 = vector.shape_cast %245 : vector<1x1x64x32xf32> to vector<64x32xf32>
    %247 = arith.addf %244, %246 : vector<64x32xf32>
    %248 = arith.truncf %247 : vector<64x32xf32> to vector<64x32xbf16>
    %cst_78 = arith.constant dense<0.000000e+00> : vector<64x4xf32>
    %249 = tpu.matmul %248, %7, %cst_78 {dimension_numbers = #tpu.dot_dimension_numbers<[1], [0], [0], [1], [0, 0, 1, 1], [], []>} : vector<64x32xbf16>, vector<32x4xbf16>, vector<64x4xf32> -> vector<64x4xf32>
    %250 = arith.truncf %249 : vector<64x4xf32> to vector<64x4xbf16>
    %cst_79 = arith.constant dense<0.000000e+00> : vector<16x4xf32>
    %251 = tpu.matmul %8, %250, %cst_79 {dimension_numbers = #tpu.dot_dimension_numbers<[1], [0], [0], [1], [0, 0, 1, 1], [], []>} : vector<16x64xbf16>, vector<64x4xbf16>, vector<16x4xf32> -> vector<16x4xf32>
    %252 = vector.extract_strided_slice %31 {offsets = [1, 0, 4], sizes = [1, 64, 4], strides = [1, 1, 1]} : vector<2x64x8xf32> to vector<1x64x4xf32>
    %253 = vector.shape_cast %252 : vector<1x64x4xf32> to vector<64x4xf32>
    %254 = arith.truncf %253 : vector<64x4xf32> to vector<64x4xbf16>
    %cst_80 = arith.constant dense<0.000000e+00> : vector<16x4xf32>
    %255 = tpu.matmul %9, %254, %cst_80 {dimension_numbers = #tpu.dot_dimension_numbers<[1], [0], [0], [1], [0, 0, 1, 1], [], []>} : vector<16x64xbf16>, vector<64x4xbf16>, vector<16x4xf32> -> vector<16x4xf32>
    %256 = arith.addf %251, %255 : vector<16x4xf32>
    %257 = arith.addf %256, %11 : vector<16x4xf32>
    %258 = vector.extract_strided_slice %29 {offsets = [1, 0, 4], sizes = [1, 1, 4], strides = [1, 1, 1]} : vector<2x1x8xf32> to vector<1x1x4xf32>
    %259 = vector.shape_cast %258 : vector<1x1x4xf32> to vector<1x4xf32>
    %260 = vector.broadcast %259 : vector<1x4xf32> to vector<16x4xf32>
    %261 = arith.mulf %257, %260 : vector<16x4xf32>
    %262 = vector.extract_strided_slice %16 {offsets = [1, 0, 4], sizes = [1, 1, 4], strides = [1, 1, 1]} : vector<2x1x8xf32> to vector<1x1x4xf32>
    %263 = vector.shape_cast %262 : vector<1x1x4xf32> to vector<1x4xf32>
    %264 = vector.broadcast %263 : vector<1x4xf32> to vector<16x4xf32>
    %265 = arith.addf %261, %264 : vector<16x4xf32>
    %c1 = arith.constant 1 : index
    %c0_81 = arith.constant 0 : index
    %c0_82 = arith.constant 0 : index
    %266 = vector.load %arg5[%c1, %c0_81, %c0_82] : memref<2x16x4xf32, #tpu.memory_space<vmem>>, vector<1x16x4xf32>
    %267 = vector.shape_cast %266 : vector<1x16x4xf32> to vector<16x4xf32>
    %268 = vector.shape_cast %265 : vector<16x4xf32> to vector<1x16x4xf32>
    tpu.vector_store %arg5[%c1, %c0_81, %c0_82], %268 {strides = array<i32>} : memref<2x16x4xf32, #tpu.memory_space<vmem>>, vector<1x16x4xf32>,
    return
  }
  func.func @transform_0(%arg0: i32) -> (i32, i32, i32) {
    %c0_i32 = arith.constant 0 : i32
    %c0_i32_0 = arith.constant 0 : i32
    %c0_i32_1 = arith.constant 0 : i32
    return %arg0, %c0_i32, %c0_i32_0 : i32, i32, i32
  }
  func.func @transform_1(%arg0: i32) -> (i32, i32, i32) {
    %c0_i32 = arith.constant 0 : i32
    %c0_i32_0 = arith.constant 0 : i32
    %c0_i32_1 = arith.constant 0 : i32
    return %arg0, %c0_i32, %c0_i32_0 : i32, i32, i32
  }
  func.func @transform_2(%arg0: i32) -> (i32, i32) {
    %c0_i32 = arith.constant 0 : i32
    %c0_i32_0 = arith.constant 0 : i32
    %c0_i32_1 = arith.constant 0 : i32
    return %c0_i32, %c0_i32_0 : i32, i32
  }
  func.func @transform_3(%arg0: i32) -> (i32, i32) {
    %c0_i32 = arith.constant 0 : i32
    %c0_i32_0 = arith.constant 0 : i32
    %c0_i32_1 = arith.constant 0 : i32
    return %c0_i32, %c0_i32_0 : i32, i32
  }
  func.func @transform_4(%arg0: i32) -> (i32, i32, i32) {
    %c0_i32 = arith.constant 0 : i32
    %c0_i32_0 = arith.constant 0 : i32
    %c0_i32_1 = arith.constant 0 : i32
    return %arg0, %c0_i32, %c0_i32_0 : i32, i32, i32
  }
}

</mosaic_0001>

<llo_original>
// kernel: model_forward.1
$region0: #{model_forward.1}
  #allocation0 [shape = 'u32[]', space=smem, size = 0x4, offset = 0x4, fixed_abs, tag = 'smem constant byte address 0x4 - core index']
  #allocation1 [shape = 'u32[72,128]{1,0:T(1,128)}', space=vmem, size = 0x9000, scoped, tag = 'internal scratch']
  %s0 = inlined_call_operand.vmem [shape: f32[2,64,8], index: 0, kind: input, shape index: {}]
  %s1 = inlined_call_operand.vmem [shape: f32[2,64,4], index: 1, kind: input, shape index: {}]
  %s2 = inlined_call_operand.vmem [shape: bf16[416,128], index: 2, kind: input, shape index: {}]
  %s3 = inlined_call_operand.hbm [shape: f32[96,128], index: 3, kind: input, shape index: {}]
  %s4 = inlined_call_operand.vmem [shape: f32[2,16,4], index: 4, kind: output, shape index: {}]
  %s5 = sld [smem:[#allocation0]]
  $region30: #{model_forward.1} parent=0
    _
  %s7 = ssub.s32 1, %s5
  %s8 = scalar_select 0, %s7, %s5
  $region1: #{model_forward.1} parent=0
    #allocation2 [shape = 'u8[49152]{0}', space=vmem, size = 0xc000, scoped, tag = 'input window, operand 3, single buffered']
    #allocation3 [shape = 's32[1]{0}', space=sflag, size = 0x4, scoped, tag = 'scoped memory for model_forward.1']
    %9 = vsyncpa [#allocation3], 0
    // Predicated region
    $region2: #{model_forward.1} parent=1 // pred_check
      _
    $region3: #{model_forward.1} parent=1 // pred_check_branch
      %11 = sbr.rel (0) target = $region5
    $region4: #{model_forward.1} parent=1 // pred_region
      _
    $region5: #{model_forward.1} parent=1 // pred_fallthru
      _
    // Predicated region
    $region6: #{model_forward.1} parent=1 // pred_check
      _
    $region7: #{model_forward.1} parent=1 // pred_check_branch
      %13 = sbr.rel (0) target = $region9
    $region8: #{model_forward.1} parent=1 // pred_region
      _
    $region9: #{model_forward.1} parent=1 // pred_fallthru
      _
    // Predicated region
    $region10: #{model_forward.1} parent=1 // pred_check
      _
    $region11: #{model_forward.1} parent=1 // pred_check_branch
      %15 = sbr.rel (0) target = $region13
    $region12: #{model_forward.1} parent=1 // pred_region
      _
    $region13: #{model_forward.1} parent=1 // pred_fallthru
      _
    // Predicated region
    $region14: #{model_forward.1} parent=1 // pred_check
      _
    $region15: #{model_forward.1} parent=1 // pred_check_branch
      %17 = sbr.rel (0) target = $region17
    $region16: #{model_forward.1} parent=1 // pred_region
      %19 = vsyncadd [#allocation3], 0
      %s20 = sshll.u32 %s3, 4
      %s21 = int_to_ptr.hbm [resolvable:$true] %s20
      %s22 = sshll.u32 [#allocation2], 4
      %s23 = int_to_ptr.vmem [resolvable:$true] %s22
      %28 = dma.hbm_to_vmem [thread:$0]  %s21, 1536, %s23, [#allocation3], 128, 128, 8
    $region17: #{model_forward.1} parent=1 // pred_fallthru
      _
    // Predicated region
    $region18: #{model_forward.1} parent=1 // pred_check
      _
    $region19: #{model_forward.1} parent=1 // pred_check_branch
      %30 = sbr.rel (0) target = $region21
    $region20: #{model_forward.1} parent=1 // pred_region
      %32 = dma.done [#allocation3], 1536
    $region21: #{model_forward.1} parent=1 // pred_fallthru
      _
    %v34 = vld [vmem:[%s2] sm:$0xf]
    %v35 = vld [vmem:[%s2 + $0x4] sm:$0xf]
    %v36 = vld [vmem:[%s2 + $0x8] sm:$0xf]
    %v37 = vld [vmem:[%s2 + $0xc] sm:$0xf]
    %v38 = vld [vmem:[%s2 + $0x10] sm:$0xf]
    %v39 = vld [vmem:[%s2 + $0x14] sm:$0xf]
    %v40 = vld [vmem:[%s2 + $0x18] sm:$0xf]
    %v41 = vld [vmem:[%s2 + $0x1c] sm:$0xf]
    %v42 = vld [vmem:[%s2 + $0x20] sm:$0xf]
    %v43 = vld [vmem:[%s2 + $0x24] sm:$0xf]
    %v44 = vld [vmem:[%s2 + $0x28] sm:$0xf]
    %v45 = vld [vmem:[%s2 + $0x2c] sm:$0xf]
    %v46 = vld [vmem:[%s2 + $0x30] sm:$0xf]
    %v47 = vld [vmem:[%s2 + $0x34] sm:$0xf]
    %v48 = vld [vmem:[%s2 + $0x38] sm:$0xf]
    %v49 = vld [vmem:[%s2 + $0x3c] sm:$0xf]
    %v50 = vld [vmem:[%s2 + $0x40] sm:$0xf]
    %v51 = vld [vmem:[%s2 + $0x44] sm:$0xf]
    %v52 = vld [vmem:[%s2 + $0x48] sm:$0xf]
    %v53 = vld [vmem:[%s2 + $0x4c] sm:$0xf]
    %v54 = vld [vmem:[%s2 + $0x50] sm:$0xf]
    %v55 = vld [vmem:[%s2 + $0x54] sm:$0xf]
    %v56 = vld [vmem:[%s2 + $0x58] sm:$0xf]
    %v57 = vld [vmem:[%s2 + $0x5c] sm:$0xf]
    %v58 = vld [vmem:[%s2 + $0x60] sm:$0xf]
    %v59 = vld [vmem:[%s2 + $0x68] sm:$0x3]
    %v60 = vld [vmem:[%s2 + $0x70] sm:$0xf]
    %v61 = vld [vmem:[%s2 + $0x74] sm:$0xf]
    %v62 = vld [vmem:[%s2 + $0x78] sm:$0xf]
    %v63 = vld [vmem:[%s2 + $0x7c] sm:$0xf]
    %v64 = vld [vmem:[%s2 + $0x90] sm:$0xf]
    %v65 = vld [vmem:[%s2 + $0x94] sm:$0xf]
    %v66 = vld [vmem:[%s2 + $0x98] sm:$0xf]
    %v67 = vld [vmem:[%s2 + $0x9c] sm:$0xf]
    %v68 = vld [vmem:[%s2 + $0x80] sm:$0xf]
    %v69 = vld [vmem:[%s2 + $0x84] sm:$0xf]
    %v70 = vld [vmem:[%s2 + $0x88] sm:$0xf]
    %v71 = vld [vmem:[%s2 + $0x8c] sm:$0xf]
    %v72 = vld [vmem:[%s2 + $0xa0] sm:$0xf]
    %v73 = vld [vmem:[%s2 + $0xa4] sm:$0xf]
    %v74 = vld [vmem:[%s2 + $0xa8] sm:$0xf]
    %v75 = vld [vmem:[%s2 + $0xac] sm:$0xf]
    %v76 = vld [vmem:[%s2 + $0xb0] sm:$0xf]
    %v77 = vld [vmem:[%s2 + $0xb4] sm:$0xf]
    %v78 = vld [vmem:[%s2 + $0xb8] sm:$0xf]
    %v79 = vld [vmem:[%s2 + $0xbc] sm:$0xf]
    %v80 = vld [vmem:[%s2 + $0xc0] sm:$0xf]
    %v81 = vld [vmem:[%s2 + $0xc4] sm:$0xf]
    %v82 = vld [vmem:[%s2 + $0xc8] sm:$0xf]
    %v83 = vld [vmem:[%s2 + $0xcc] sm:$0xf]
    %v84 = vld [vmem:[#allocation2] sm:$0xff]
    %v85 = vld [vmem:[#allocation2 + $0x8] sm:$0xff]
    %v86 = vld [vmem:[#allocation2 + $0x10] sm:$0xff]
    %v87 = vld [vmem:[#allocation2 + $0x18] sm:$0xff]
    %v88 = vld [vmem:[#allocation2 + $0x20] sm:$0xff]
    %v89 = vld [vmem:[#allocation2 + $0x28] sm:$0xff]
    %v90 = vld [vmem:[#allocation2 + $0x30] sm:$0xff]
    %v91 = vld [vmem:[#allocation2 + $0x38] sm:$0xff]
    %v92 = vld [vmem:[#allocation2 + $0x50] sm:$0xff]
    %v93 = vld [vmem:[#allocation2 + $0x58] sm:$0xff]
    %v94 = vld [vmem:[%s0] sm:$0xff]
    %v95 = vld [vmem:[%s0 + $0x8] sm:$0xff]
    %v96 = vld [vmem:[%s0 + $0x10] sm:$0xff]
    %v97 = vld [vmem:[%s0 + $0x18] sm:$0xff]
    %v98 = vld [vmem:[%s0 + $0x20] sm:$0xff]
    %v99 = vld [vmem:[%s0 + $0x28] sm:$0xff]
    %v100 = vld [vmem:[%s0 + $0x30] sm:$0xff]
    %v101 = vld [vmem:[%s0 + $0x38] sm:$0xff]
    %v102 = vld [vmem:[%s0 + $0x40] sm:$0xff]
    %v103 = vld [vmem:[%s0 + $0x48] sm:$0xff]
    %v104 = vld [vmem:[%s0 + $0x50] sm:$0xff]
    %v105 = vld [vmem:[%s0 + $0x58] sm:$0xff]
    %v106 = vld [vmem:[%s0 + $0x60] sm:$0xff]
    %v107 = vld [vmem:[%s0 + $0x68] sm:$0xff]
    %v108 = vld [vmem:[%s0 + $0x70] sm:$0xff]
    %v109 = vld [vmem:[%s0 + $0x78] sm:$0xff]
    %vm110 = vcmask 64512
    %v111 = vsel %vm110, %v94, 0.0
    %v112 = vsel %vm110, %v95, 0.0
    %v113 = vadd.f32 %v111, %v112
    %v114 = vsel %vm110, %v96, 0.0
    %v115 = vadd.f32 %v113, %v114
    %v116 = vsel %vm110, %v97, 0.0
    %v117 = vadd.f32 %v115, %v116
    %v118 = vsel %vm110, %v98, 0.0
    %v119 = vadd.f32 %v117, %v118
    %v120 = vsel %vm110, %v99, 0.0
    %v121 = vadd.f32 %v119, %v120
    %v122 = vsel %vm110, %v100, 0.0
    %v123 = vadd.f32 %v121, %v122
    %v124 = vsel %vm110, %v101, 0.0
    %v125 = vadd.f32 %v123, %v124
    %v126 = vrot.slane %v125, 4
    %v127 = vadd.f32 %v125, %v126
    %v128 = vrot.slane %v127, 2
    %v129 = vadd.f32 %v127, %v128
    %v130 = vrot.slane %v129, 1
    %v131 = vadd.f32 %v129, %v130
    %v132 = vsel %vm110, %v102, 0.0
    %v133 = vsel %vm110, %v103, 0.0
    %v134 = vadd.f32 %v132, %v133
    %v135 = vsel %vm110, %v104, 0.0
    %v136 = vadd.f32 %v134, %v135
    %v137 = vsel %vm110, %v105, 0.0
    %v138 = vadd.f32 %v136, %v137
    %v139 = vsel %vm110, %v106, 0.0
    %v140 = vadd.f32 %v138, %v139
    %v141 = vsel %vm110, %v107, 0.0
    %v142 = vadd.f32 %v140, %v141
    %v143 = vsel %vm110, %v108, 0.0
    %v144 = vadd.f32 %v142, %v143
    %v145 = vsel %vm110, %v109, 0.0
    %v146 = vadd.f32 %v144, %v145
    %v147 = vrot.slane %v146, 4
    %v148 = vadd.f32 %v146, %v147
    %v149 = vrot.slane %v148, 2
    %v150 = vadd.f32 %v148, %v149
    %v151 = vrot.slane %v150, 1
    %v152 = vadd.f32 %v150, %v151
    %v153 = vrcp.pop 64.0
    %v154 = vmul.f32 64.0, %v153
    %v155 = vsub.f32 1.0, %v154
    %v156 = vmul.f32 %v153, %v155
    %v157 = vadd.f32 %v153, %v156
    %vm158 = vweird.f32 %v153
    %v159 = vsel %vm158, %v153, %v157
    %v160 = vmul.f32 %v131, %v159
    %v161 = vmul.f32 %v152, %v159
    %v162 = vsub.f32 %v94, %v160
    %v163 = vsub.f32 %v95, %v160
    %v164 = vsub.f32 %v96, %v160
    %v165 = vsub.f32 %v97, %v160
    %v166 = vsub.f32 %v98, %v160
    %v167 = vsub.f32 %v99, %v160
    %v168 = vsub.f32 %v100, %v160
    %v169 = vsub.f32 %v101, %v160
    %v170 = vsub.f32 %v102, %v161
    %v171 = vsub.f32 %v103, %v161
    %v172 = vsub.f32 %v104, %v161
    %v173 = vsub.f32 %v105, %v161
    %v174 = vsub.f32 %v106, %v161
    %v175 = vsub.f32 %v107, %v161
    %v176 = vsub.f32 %v108, %v161
    %v177 = vsub.f32 %v109, %v161
    %v178 = vmul.f32 %v162, %v162
    %v179 = vmul.f32 %v163, %v163
    %v180 = vmul.f32 %v164, %v164
    %v181 = vmul.f32 %v165, %v165
    %v182 = vmul.f32 %v166, %v166
    %v183 = vmul.f32 %v167, %v167
    %v184 = vmul.f32 %v168, %v168
    %v185 = vmul.f32 %v169, %v169
    %v186 = vmul.f32 %v170, %v170
    %v187 = vmul.f32 %v171, %v171
    %v188 = vmul.f32 %v172, %v172
    %v189 = vmul.f32 %v173, %v173
    %v190 = vmul.f32 %v174, %v174
    %v191 = vmul.f32 %v175, %v175
    %v192 = vmul.f32 %v176, %v176
    %v193 = vmul.f32 %v177, %v177
    %v194 = vsel %vm110, %v178, 0.0
    %v195 = vsel %vm110, %v179, 0.0
    %v196 = vadd.f32 %v194, %v195
    %v197 = vsel %vm110, %v180, 0.0
    %v198 = vadd.f32 %v196, %v197
    %v199 = vsel %vm110, %v181, 0.0
    %v200 = vadd.f32 %v198, %v199
    %v201 = vsel %vm110, %v182, 0.0
    %v202 = vadd.f32 %v200, %v201
    %v203 = vsel %vm110, %v183, 0.0
    %v204 = vadd.f32 %v202, %v203
    %v205 = vsel %vm110, %v184, 0.0
    %v206 = vadd.f32 %v204, %v205
    %v207 = vsel %vm110, %v185, 0.0
    %v208 = vadd.f32 %v206, %v207
    %v209 = vrot.slane %v208, 4
    %v210 = vadd.f32 %v208, %v209
    %v211 = vrot.slane %v210, 2
    %v212 = vadd.f32 %v210, %v211
    %v213 = vrot.slane %v212, 1
    %v214 = vadd.f32 %v212, %v213
    %v215 = vsel %vm110, %v186, 0.0
    %v216 = vsel %vm110, %v187, 0.0
    %v217 = vadd.f32 %v215, %v216
    %v218 = vsel %vm110, %v188, 0.0
    %v219 = vadd.f32 %v217, %v218
    %v220 = vsel %vm110, %v189, 0.0
    %v221 = vadd.f32 %v219, %v220
    %v222 = vsel %vm110, %v190, 0.0
    %v223 = vadd.f32 %v221, %v222
    %v224 = vsel %vm110, %v191, 0.0
    %v225 = vadd.f32 %v223, %v224
    %v226 = vsel %vm110, %v192, 0.0
    %v227 = vadd.f32 %v225, %v226
    %v228 = vsel %vm110, %v193, 0.0
    %v229 = vadd.f32 %v227, %v228
    %v230 = vrot.slane %v229, 4
    %v231 = vadd.f32 %v229, %v230
    %v232 = vrot.slane %v231, 2
    %v233 = vadd.f32 %v231, %v232
    %v234 = vrot.slane %v233, 1
    %v235 = vadd.f32 %v233, %v234
    %v236 = vmul.f32 %v214, %v159
    %v237 = vmul.f32 %v235, %v159
    %v238 = vadd.f32 %v236, 1e-05
    %v239 = vadd.f32 %v237, 1e-05
    %v240 = vrsqrt.pop %v238
    %v241 = vmul.f32 %v240, %v238
    %v242 = vmul.f32 %v241, %v240
    %v243 = vmul.f32 0.5, %v242
    %v244 = vsub.f32 1.5, %v243
    %v245 = vmul.f32 %v240, %v244
    %vm246 = vweird.f32 %v238
    %vm247 = vweird.f32 %v240
    %vm248 = vmor %vm246, %vm247
    %v249 = vsel %vm248, %v240, %v245
    %v250 = vrsqrt.pop %v239
    %v251 = vmul.f32 %v250, %v239
    %v252 = vmul.f32 %v251, %v250
    %v253 = vmul.f32 0.5, %v252
    %v254 = vsub.f32 1.5, %v253
    %v255 = vmul.f32 %v250, %v254
    %vm256 = vweird.f32 %v239
    %vm257 = vweird.f32 %v250
    %vm258 = vmor %vm256, %vm257
    %v259 = vsel %vm258, %v250, %v255
    %v260 = vrsqrt.pop %v238
    %v261 = vmul.f32 %v260, %v238
    %v262 = vmul.f32 %v261, %v260
    %v263 = vmul.f32 0.5, %v262
    %v264 = vsub.f32 1.5, %v263
    %v265 = vmul.f32 %v260, %v264
    %v266 = vmul.f32 %v238, %v265
    %vm267 = vcmp.eq.f32.partialorder %v238, inf
    %v268 = vsel %vm267, %v238, %v266
    %vm269 = vcmp.eq.f32.partialorder %v238, 0.0
    %v270 = vand.u32 %v238, 2147483648
    %v271 = vsel %vm269, %v270, %v268
    %v272 = vrsqrt.pop %v239
    %v273 = vmul.f32 %v272, %v239
    %v274 = vmul.f32 %v273, %v272
    %v275 = vmul.f32 0.5, %v274
    %v276 = vsub.f32 1.5, %v275
    %v277 = vmul.f32 %v272, %v276
    %v278 = vmul.f32 %v239, %v277
    %vm279 = vcmp.eq.f32.partialorder %v239, inf
    %v280 = vsel %vm279, %v239, %v278
    %vm281 = vcmp.eq.f32.partialorder %v239, 0.0
    %v282 = vand.u32 %v239, 2147483648
    %v283 = vsel %vm281, %v282, %v280
    %v284 = vmul.f32 %v162, %v249
    %v285 = vmul.f32 %v163, %v249
    %v286 = vmul.f32 %v164, %v249
    %v287 = vmul.f32 %v165, %v249
    %v288 = vmul.f32 %v166, %v249
    %v289 = vmul.f32 %v167, %v249
    %v290 = vmul.f32 %v168, %v249
    %v291 = vmul.f32 %v169, %v249
    %v292 = vmul.f32 %v170, %v259
    %v293 = vmul.f32 %v171, %v259
    %v294 = vmul.f32 %v172, %v259
    %v295 = vmul.f32 %v173, %v259
    %v296 = vmul.f32 %v174, %v259
    %v297 = vmul.f32 %v175, %v259
    %v298 = vmul.f32 %v176, %v259
    %v299 = vmul.f32 %v177, %v259
    %v300 = vpack.c.bf16 %v285, %v284
    %v301 = vpack.c.bf16 %v287, %v286
    %v302 = vpack.c.bf16 %v289, %v288
    %v303 = vpack.c.bf16 %v291, %v290
    %v304 = vpack.c.bf16 %v293, %v292
    %v305 = vpack.c.bf16 %v295, %v294
    %v306 = vpack.c.bf16 %v297, %v296
    %v307 = vpack.c.bf16 %v299, %v298
    %v309 = vsel %vm110, %v300, 0
    %v312 = vsel %vm110, %v301, 0
    %v315 = vsel %vm110, %v302, 0
    %v318 = vsel %vm110, %v303, 0
    %v321 = vsel %vm110, %v304, 0
    %v324 = vsel %vm110, %v305, 0
    %v327 = vsel %vm110, %v306, 0
    %v330 = vsel %vm110, %v307, 0
    %vm332 = vcmask 1043456
    %v334 = vsel %vm332, %v58, 0
    %336 = vmatpush.bf16.msra.mxu0 0
    %337 = vmatpush.bf16.msra.mxu0 0
    %338 = vmatpush.bf16.msra.mxu0 0
    %339 = vmatpush.bf16.msra.mxu0 0
    %340 = vmatpush.bf16.msra.mxu0 0
    %341 = vmatpush.bf16.msra.mxu0 0
    %342 = vmatpush.bf16.msra.mxu0 0
    %343 = vmatpush.bf16.msra.mxu0 %v334
    %344 = vmatmul.bf16.gmra.mxu0 %v309
    %v345 = vpop.f32.mrf.mxu0
    %v346 = vadd.f32 0.0, %v345
    %v347 = vpop.f32.mrf.mxu0
    %v348 = vadd.f32 0.0, %v347
    %349 = vmatmul.bf16.gmra.mxu0 %v312
    %v350 = vpop.f32.mrf.mxu0
    %v351 = vadd.f32 0.0, %v350
    %v352 = vpop.f32.mrf.mxu0
    %v353 = vadd.f32 0.0, %v352
    %354 = vmatmul.bf16.gmra.mxu0 %v315
    %v355 = vpop.f32.mrf.mxu0
    %v356 = vadd.f32 0.0, %v355
    %v357 = vpop.f32.mrf.mxu0
    %v358 = vadd.f32 0.0, %v357
    %359 = vmatmul.bf16.gmra.mxu0 %v318
    %v360 = vpop.f32.mrf.mxu0
    %v361 = vadd.f32 0.0, %v360
    %v362 = vpop.f32.mrf.mxu0
    %v363 = vadd.f32 0.0, %v362
    %364 = vmatmul.bf16.gmra.mxu0 %v321
    %v365 = vpop.f32.mrf.mxu0
    %v366 = vadd.f32 0.0, %v365
    %v367 = vpop.f32.mrf.mxu0
    %v368 = vadd.f32 0.0, %v367
    %369 = vmatmul.bf16.gmra.mxu0 %v324
    %v370 = vpop.f32.mrf.mxu0
    %v371 = vadd.f32 0.0, %v370
    %v372 = vpop.f32.mrf.mxu0
    %v373 = vadd.f32 0.0, %v372
    %374 = vmatmul.bf16.gmra.mxu0 %v327
    %v375 = vpop.f32.mrf.mxu0
    %v376 = vadd.f32 0.0, %v375
    %v377 = vpop.f32.mrf.mxu0
    %v378 = vadd.f32 0.0, %v377
    %379 = vmatmul.bf16.gmra.mxu0 %v330
    %v380 = vpop.f32.mrf.mxu0
    %v381 = vadd.f32 0.0, %v380
    %v382 = vpop.f32.mrf.mxu0
    %v383 = vadd.f32 0.0, %v382
    %384 = vdwg.mxu0
    %v385 = vld [vmem:[%s1] sm:$0xff]
    %v386 = vld [vmem:[%s1 + $0x8] sm:$0xff]
    %v387 = vld [vmem:[%s1 + $0x10] sm:$0xff]
    %v388 = vld [vmem:[%s1 + $0x18] sm:$0xff]
    %v389 = vld [vmem:[%s1 + $0x20] sm:$0xff]
    %v390 = vld [vmem:[%s1 + $0x28] sm:$0xff]
    %v391 = vld [vmem:[%s1 + $0x30] sm:$0xff]
    %v392 = vld [vmem:[%s1 + $0x38] sm:$0xff]
    %v393 = vld [vmem:[%s1 + $0x40] sm:$0xff]
    %v394 = vld [vmem:[%s1 + $0x48] sm:$0xff]
    %v395 = vld [vmem:[%s1 + $0x50] sm:$0xff]
    %v396 = vld [vmem:[%s1 + $0x58] sm:$0xff]
    %v397 = vld [vmem:[%s1 + $0x60] sm:$0xff]
    %v398 = vld [vmem:[%s1 + $0x68] sm:$0xff]
    %v399 = vld [vmem:[%s1 + $0x70] sm:$0xff]
    %v400 = vld [vmem:[%s1 + $0x78] sm:$0xff]
    %v401 = vpack.c.bf16 %v386, %v385
    %v402 = vpack.c.bf16 %v388, %v387
    %v403 = vpack.c.bf16 %v390, %v389
    %v404 = vpack.c.bf16 %v392, %v391
    %v405 = vpack.c.bf16 %v394, %v393
    %v406 = vpack.c.bf16 %v396, %v395
    %v407 = vpack.c.bf16 %v398, %v397
    %v408 = vpack.c.bf16 %v400, %v399
    %vm409 = vcmask 31744
    %v411 = vsel %vm409, %v401, 0
    %v414 = vsel %vm409, %v402, 0
    %v417 = vsel %vm409, %v403, 0
    %v420 = vsel %vm409, %v404, 0
    %v423 = vsel %vm409, %v405, 0
    %v426 = vsel %vm409, %v406, 0
    %v429 = vsel %vm409, %v407, 0
    %v432 = vsel %vm409, %v408, 0
    %vm434 = vcmask 1041408
    %v436 = vsel %vm434, %v59, 0
    %438 = vmatpush.bf16.msra.mxu0 0
    %439 = vmatpush.bf16.msra.mxu0 0
    %440 = vmatpush.bf16.msra.mxu0 0
    %441 = vmatpush.bf16.msra.mxu0 0
    %442 = vmatpush.bf16.msra.mxu0 0
    %443 = vmatpush.bf16.msra.mxu0 0
    %444 = vmatpush.bf16.msra.mxu0 0
    %445 = vmatpush.bf16.msra.mxu0 %v436
    %446 = vmatmul.bf16.gmra.mxu0 %v411
    %v447 = vpop.f32.mrf.mxu0
    %v448 = vadd.f32 0.0, %v447
    %v449 = vpop.f32.mrf.mxu0
    %v450 = vadd.f32 0.0, %v449
    %451 = vmatmul.bf16.gmra.mxu0 %v414
    %v452 = vpop.f32.mrf.mxu0
    %v453 = vadd.f32 0.0, %v452
    %v454 = vpop.f32.mrf.mxu0
    %v455 = vadd.f32 0.0, %v454
    %456 = vmatmul.bf16.gmra.mxu0 %v417
    %v457 = vpop.f32.mrf.mxu0
    %v458 = vadd.f32 0.0, %v457
    %v459 = vpop.f32.mrf.mxu0
    %v460 = vadd.f32 0.0, %v459
    %461 = vmatmul.bf16.gmra.mxu0 %v420
    %v462 = vpop.f32.mrf.mxu0
    %v463 = vadd.f32 0.0, %v462
    %v464 = vpop.f32.mrf.mxu0
    %v465 = vadd.f32 0.0, %v464
    %466 = vmatmul.bf16.gmra.mxu0 %v423
    %v467 = vpop.f32.mrf.mxu0
    %v468 = vadd.f32 0.0, %v467
    %v469 = vpop.f32.mrf.mxu0
    %v470 = vadd.f32 0.0, %v469
    %471 = vmatmul.bf16.gmra.mxu0 %v426
    %v472 = vpop.f32.mrf.mxu0
    %v473 = vadd.f32 0.0, %v472
    %v474 = vpop.f32.mrf.mxu0
    %v475 = vadd.f32 0.0, %v474
    %476 = vmatmul.bf16.gmra.mxu0 %v429
    %v477 = vpop.f32.mrf.mxu0
    %v478 = vadd.f32 0.0, %v477
    %v479 = vpop.f32.mrf.mxu0
    %v480 = vadd.f32 0.0, %v479
    %481 = vmatmul.bf16.gmra.mxu0 %v432
    %v482 = vpop.f32.mrf.mxu0
    %v483 = vadd.f32 0.0, %v482
    %v484 = vpop.f32.mrf.mxu0
    %v485 = vadd.f32 0.0, %v484
    %486 = vdwg.mxu0
    %v487 = vadd.f32 %v448, %v84
    %v488 = vadd.f32 %v450, %v85
    %v489 = vadd.f32 %v453, %v86
    %v490 = vadd.f32 %v455, %v87
    %v491 = vadd.f32 %v458, %v88
    %v492 = vadd.f32 %v460, %v89
    %v493 = vadd.f32 %v463, %v90
    %v494 = vadd.f32 %v465, %v91
    %v495 = vadd.f32 %v468, %v84
    %v496 = vadd.f32 %v470, %v85
    %v497 = vadd.f32 %v473, %v86
    %v498 = vadd.f32 %v475, %v87
    %v499 = vadd.f32 %v478, %v88
    %v500 = vadd.f32 %v480, %v89
    %v501 = vadd.f32 %v483, %v90
    %v502 = vadd.f32 %v485, %v91
    %v503 = vpack.c.bf16 %v346, %v346
    %v504 = vpack.c.bf16 %v348, %v348
    %v505 = vpack.c.bf16 %v351, %v351
    %v506 = vpack.c.bf16 %v353, %v353
    %v507 = vpack.c.bf16 %v356, %v356
    %v508 = vpack.c.bf16 %v358, %v358
    %v509 = vpack.c.bf16 %v361, %v361
    %v510 = vpack.c.bf16 %v363, %v363
    %v511 = vpack.c.bf16 %v366, %v366
    %v512 = vpack.c.bf16 %v368, %v368
    %v513 = vpack.c.bf16 %v371, %v371
    %v514 = vpack.c.bf16 %v373, %v373
    %v515 = vpack.c.bf16 %v376, %v376
    %v516 = vpack.c.bf16 %v378, %v378
    %v517 = vpack.c.bf16 %v381, %v381
    %v518 = vpack.c.bf16 %v383, %v383
    %v543 = vunpack.c.l.b16 %v34
    %v544 = vunpack.c.l.b16 %v35
    %v545 = vunpack.c.l.b16 %v36
    %v546 = vunpack.c.l.b16 %v37
    %v547 = vunpack.c.l.b16 %v38
    %v548 = vunpack.c.l.b16 %v39
    %v549 = vunpack.c.l.b16 %v40
    %v550 = vunpack.c.l.b16 %v41
    %v551 = vunpack.c.l.b16 %v42
    %v552 = vunpack.c.l.b16 %v43
    %v553 = vunpack.c.l.b16 %v44
    %v554 = vunpack.c.l.b16 %v45
    %v555 = vunpack.c.l.b16 %v46
    %v556 = vunpack.c.l.b16 %v47
    %v557 = vunpack.c.l.b16 %v48
    %v558 = vunpack.c.l.b16 %v49
    %v559 = vunpack.c.l.b16 %v50
    %v560 = vunpack.c.l.b16 %v51
    %v561 = vunpack.c.l.b16 %v52
    %v562 = vunpack.c.l.b16 %v53
    %v563 = vunpack.c.l.b16 %v54
    %v564 = vunpack.c.l.b16 %v55
    %v565 = vunpack.c.l.b16 %v56
    %v566 = vunpack.c.l.b16 %v57
    %v567 = vpack.c.b16 %v544, %v543
    %v568 = vpack.c.b16 %v546, %v545
    %v569 = vpack.c.b16 %v548, %v547
    %v570 = vpack.c.b16 %v550, %v549
    %v571 = vpack.c.b16 %v552, %v551
    %v572 = vpack.c.b16 %v554, %v553
    %v573 = vpack.c.b16 %v556, %v555
    %v574 = vpack.c.b16 %v558, %v557
    %v575 = vpack.c.b16 %v560, %v559
    %v576 = vpack.c.b16 %v562, %v561
    %v577 = vpack.c.b16 %v564, %v563
    %v578 = vpack.c.b16 %v566, %v565
    %v587 = vunpack.c.l.b16 %v503
    %v588 = vunpack.c.l.b16 %v504
    %v589 = vunpack.c.l.b16 %v505
    %v590 = vunpack.c.l.b16 %v506
    %v591 = vunpack.c.l.b16 %v507
    %v592 = vunpack.c.l.b16 %v508
    %v593 = vunpack.c.l.b16 %v509
    %v594 = vunpack.c.l.b16 %v510
    %v595 = vpack.c.b16 %v588, %v587
    %v596 = vpack.c.b16 %v590, %v589
    %v597 = vpack.c.b16 %v592, %v591
    %v598 = vpack.c.b16 %v594, %v593
    %vm603 = vcmask 523264
    %v605 = vsel %vm603, %v567, 0
    %v608 = vsel %vm603, %v568, 0
    %v611 = vsel %vm603, %v569, 0
    %v614 = vsel %vm603, %v570, 0
    %v617 = vsel %vm603, %v571, 0
    %v620 = vsel %vm603, %v572, 0
    %v623 = vsel %vm603, %v573, 0
    %v626 = vsel %vm603, %v574, 0
    %v629 = vsel %vm603, %v575, 0
    %v632 = vsel %vm603, %v576, 0
    %v635 = vsel %vm603, %v577, 0
    %v638 = vsel %vm603, %v578, 0
    %640 = vmatpush.bf16.msra.mxu0 0
    %641 = vmatpush.bf16.msra.mxu0 0
    %642 = vmatpush.bf16.msra.mxu0 0
    %643 = vmatpush.bf16.msra.mxu0 0
    %644 = vmatpush.bf16.msra.mxu0 %v598
    %645 = vmatpush.bf16.msra.mxu0 %v597
    %646 = vmatpush.bf16.msra.mxu0 %v596
    %647 = vmatpush.bf16.msra.mxu0 %v595
    %648 = vmatmul.bf16.gmra.mxu0 %v605
    %v649 = vpop.f32.mrf.mxu0
    %v650 = vadd.f32 0.0, %v649
    %v651 = vpop.f32.mrf.mxu0
    %v652 = vadd.f32 0.0, %v651
    %653 = vmatmul.bf16.gmra.mxu0 %v608
    %v654 = vpop.f32.mrf.mxu0
    %v655 = vadd.f32 0.0, %v654
    %v656 = vpop.f32.mrf.mxu0
    %v657 = vadd.f32 0.0, %v656
    %658 = vmatmul.bf16.gmra.mxu0 %v611
    %v659 = vpop.f32.mrf.mxu0
    %v660 = vadd.f32 0.0, %v659
    %v661 = vpop.f32.mrf.mxu0
    %v662 = vadd.f32 0.0, %v661
    %663 = vmatmul.bf16.gmra.mxu0 %v614
    %v664 = vpop.f32.mrf.mxu0
    %v665 = vadd.f32 0.0, %v664
    %v666 = vpop.f32.mrf.mxu0
    %v667 = vadd.f32 0.0, %v666
    %668 = vmatmul.bf16.gmra.mxu0 %v617
    %v669 = vpop.f32.mrf.mxu0
    %v670 = vadd.f32 0.0, %v669
    %v671 = vpop.f32.mrf.mxu0
    %v672 = vadd.f32 0.0, %v671
    %673 = vmatmul.bf16.gmra.mxu0 %v620
    %v674 = vpop.f32.mrf.mxu0
    %v675 = vadd.f32 0.0, %v674
    %v676 = vpop.f32.mrf.mxu0
    %v677 = vadd.f32 0.0, %v676
    %678 = vmatmul.bf16.gmra.mxu0 %v623
    %v679 = vpop.f32.mrf.mxu0
    %v680 = vadd.f32 0.0, %v679
    %v681 = vpop.f32.mrf.mxu0
    %v682 = vadd.f32 0.0, %v681
    %683 = vmatmul.bf16.gmra.mxu0 %v626
    %v684 = vpop.f32.mrf.mxu0
    %v685 = vadd.f32 0.0, %v684
    %v686 = vpop.f32.mrf.mxu0
    %v687 = vadd.f32 0.0, %v686
    %688 = vmatmul.bf16.gmra.mxu0 %v629
    %v689 = vpop.f32.mrf.mxu0
    %v690 = vadd.f32 0.0, %v689
    %v691 = vpop.f32.mrf.mxu0
    %v692 = vadd.f32 0.0, %v691
    %693 = vmatmul.bf16.gmra.mxu0 %v632
    %v694 = vpop.f32.mrf.mxu0
    %v695 = vadd.f32 0.0, %v694
    %v696 = vpop.f32.mrf.mxu0
    %v697 = vadd.f32 0.0, %v696
    %698 = vmatmul.bf16.gmra.mxu0 %v635
    %v699 = vpop.f32.mrf.mxu0
    %v700 = vadd.f32 0.0, %v699
    %v701 = vpop.f32.mrf.mxu0
    %v702 = vadd.f32 0.0, %v701
    %703 = vmatmul.bf16.gmra.mxu0 %v638
    %v704 = vpop.f32.mrf.mxu0
    %v705 = vadd.f32 0.0, %v704
    %v706 = vpop.f32.mrf.mxu0
    %v707 = vadd.f32 0.0, %v706
    %708 = vdwg.mxu0
    %v709 = vadd.f32 %v650, %v487
    %v710 = vadd.f32 %v652, %v488
    %v711 = vadd.f32 %v655, %v489
    %v712 = vadd.f32 %v657, %v490
    %v713 = vadd.f32 %v660, %v491
    %v714 = vadd.f32 %v662, %v492
    %v715 = vadd.f32 %v665, %v493
    %v716 = vadd.f32 %v667, %v494
    %v717 = vadd.f32 %v670, %v487
    %v718 = vadd.f32 %v672, %v488
    %v719 = vadd.f32 %v675, %v489
    %v720 = vadd.f32 %v677, %v490
    %v721 = vadd.f32 %v680, %v491
    %v722 = vadd.f32 %v682, %v492
    %v723 = vadd.f32 %v685, %v493
    %v724 = vadd.f32 %v687, %v494
    %v725 = vadd.f32 %v690, %v487
    %v726 = vadd.f32 %v692, %v488
    %v727 = vadd.f32 %v695, %v489
    %v728 = vadd.f32 %v697, %v490
    %v729 = vadd.f32 %v700, %v491
    %v730 = vadd.f32 %v702, %v492
    %v731 = vadd.f32 %v705, %v493
    %v732 = vadd.f32 %v707, %v494
    %v741 = vunpack.c.l.b16 %v511
    %v742 = vunpack.c.l.b16 %v512
    %v743 = vunpack.c.l.b16 %v513
    %v744 = vunpack.c.l.b16 %v514
    %v745 = vunpack.c.l.b16 %v515
    %v746 = vunpack.c.l.b16 %v516
    %v747 = vunpack.c.l.b16 %v517
    %v748 = vunpack.c.l.b16 %v518
    %v749 = vpack.c.b16 %v742, %v741
    %v750 = vpack.c.b16 %v744, %v743
    %v751 = vpack.c.b16 %v746, %v745
    %v752 = vpack.c.b16 %v748, %v747
    %757 = vmatpush.bf16.msra.mxu0 0
    %758 = vmatpush.bf16.msra.mxu0 0
    %759 = vmatpush.bf16.msra.mxu0 0
    %760 = vmatpush.bf16.msra.mxu0 0
    %761 = vmatpush.bf16.msra.mxu0 %v752
    %762 = vmatpush.bf16.msra.mxu0 %v751
    %763 = vmatpush.bf16.msra.mxu0 %v750
    %764 = vmatpush.bf16.msra.mxu0 %v749
    %765 = vmatmul.bf16.gmra.mxu0 %v605
    %v766 = vpop.f32.mrf.mxu0
    %v767 = vadd.f32 0.0, %v766
    %v768 = vpop.f32.mrf.mxu0
    %v769 = vadd.f32 0.0, %v768
    %770 = vmatmul.bf16.gmra.mxu0 %v608
    %v771 = vpop.f32.mrf.mxu0
    %v772 = vadd.f32 0.0, %v771
    %v773 = vpop.f32.mrf.mxu0
    %v774 = vadd.f32 0.0, %v773
    %775 = vmatmul.bf16.gmra.mxu0 %v611
    %v776 = vpop.f32.mrf.mxu0
    %v777 = vadd.f32 0.0, %v776
    %v778 = vpop.f32.mrf.mxu0
    %v779 = vadd.f32 0.0, %v778
    %780 = vmatmul.bf16.gmra.mxu0 %v614
    %v781 = vpop.f32.mrf.mxu0
    %v782 = vadd.f32 0.0, %v781
    %v783 = vpop.f32.mrf.mxu0
    %v784 = vadd.f32 0.0, %v783
    %785 = vmatmul.bf16.gmra.mxu0 %v617
    %v786 = vpop.f32.mrf.mxu0
    %v787 = vadd.f32 0.0, %v786
    %v788 = vpop.f32.mrf.mxu0
    %v789 = vadd.f32 0.0, %v788
    %790 = vmatmul.bf16.gmra.mxu0 %v620
    %v791 = vpop.f32.mrf.mxu0
    %v792 = vadd.f32 0.0, %v791
    %v793 = vpop.f32.mrf.mxu0
    %v794 = vadd.f32 0.0, %v793
    %795 = vmatmul.bf16.gmra.mxu0 %v623
    %v796 = vpop.f32.mrf.mxu0
    %v797 = vadd.f32 0.0, %v796
    %v798 = vpop.f32.mrf.mxu0
    %v799 = vadd.f32 0.0, %v798
    %800 = vmatmul.bf16.gmra.mxu0 %v626
    %v801 = vpop.f32.mrf.mxu0
    %v802 = vadd.f32 0.0, %v801
    %v803 = vpop.f32.mrf.mxu0
    %v804 = vadd.f32 0.0, %v803
    %805 = vmatmul.bf16.gmra.mxu0 %v629
    %v806 = vpop.f32.mrf.mxu0
    %v807 = vadd.f32 0.0, %v806
    %v808 = vpop.f32.mrf.mxu0
    %v809 = vadd.f32 0.0, %v808
    %810 = vmatmul.bf16.gmra.mxu0 %v632
    %v811 = vpop.f32.mrf.mxu0
    %v812 = vadd.f32 0.0, %v811
    %v813 = vpop.f32.mrf.mxu0
    %v814 = vadd.f32 0.0, %v813
    %815 = vmatmul.bf16.gmra.mxu0 %v635
    %v816 = vpop.f32.mrf.mxu0
    %v817 = vadd.f32 0.0, %v816
    %v818 = vpop.f32.mrf.mxu0
    %v819 = vadd.f32 0.0, %v818
    %820 = vmatmul.bf16.gmra.mxu0 %v638
    %v821 = vpop.f32.mrf.mxu0
    %v822 = vadd.f32 0.0, %v821
    %v823 = vpop.f32.mrf.mxu0
    %v824 = vadd.f32 0.0, %v823
    %825 = vdwg.mxu0
    %v826 = vadd.f32 %v767, %v495
    %v827 = vadd.f32 %v769, %v496
    %v828 = vadd.f32 %v772, %v497
    %v829 = vadd.f32 %v774, %v498
    %v830 = vadd.f32 %v777, %v499
    %v831 = vadd.f32 %v779, %v500
    %v832 = vadd.f32 %v782, %v501
    %v833 = vadd.f32 %v784, %v502
    %v834 = vadd.f32 %v787, %v495
    %v835 = vadd.f32 %v789, %v496
    %v836 = vadd.f32 %v792, %v497
    %v837 = vadd.f32 %v794, %v498
    %v838 = vadd.f32 %v797, %v499
    %v839 = vadd.f32 %v799, %v500
    %v840 = vadd.f32 %v802, %v501
    %v841 = vadd.f32 %v804, %v502
    %v842 = vadd.f32 %v807, %v495
    %v843 = vadd.f32 %v809, %v496
    %v844 = vadd.f32 %v812, %v497
    %v845 = vadd.f32 %v814, %v498
    %v846 = vadd.f32 %v817, %v499
    %v847 = vadd.f32 %v819, %v500
    %v848 = vadd.f32 %v822, %v501
    %v849 = vadd.f32 %v824, %v502
    %v850 = vld [vmem:[#allocation2 + $0x40] sm:$0x1]
    %v851 = vld [vmem:[#allocation2 + $0x41] sm:$0x1]
    %v852 = vld [vmem:[#allocation2 + $0x42] sm:$0x1]
    %v853 = vld [vmem:[#allocation2 + $0x43] sm:$0x1]
    %v854 = vld [vmem:[#allocation2 + $0x44] sm:$0x1]
    %v855 = vld [vmem:[#allocation2 + $0x45] sm:$0x1]
    %v856 = vpack.c.bf16 %v710, %v709
    %v857 = vpack.c.bf16 %v712, %v711
    %v858 = vpack.c.bf16 %v714, %v713
    %v859 = vpack.c.bf16 %v716, %v715
    %v860 = vpack.c.bf16 %v718, %v717
    %v861 = vpack.c.bf16 %v720, %v719
    %v862 = vpack.c.bf16 %v722, %v721
    %v863 = vpack.c.bf16 %v724, %v723
    %v864 = vpack.c.bf16 %v726, %v725
    %v865 = vpack.c.bf16 %v728, %v727
    %v866 = vpack.c.bf16 %v730, %v729
    %v867 = vpack.c.bf16 %v732, %v731
    %v868 = vpack.c.bf16 %v827, %v826
    %v869 = vpack.c.bf16 %v829, %v828
    %v870 = vpack.c.bf16 %v831, %v830
    %v871 = vpack.c.bf16 %v833, %v832
    %v872 = vpack.c.bf16 %v835, %v834
    %v873 = vpack.c.bf16 %v837, %v836
    %v874 = vpack.c.bf16 %v839, %v838
    %v875 = vpack.c.bf16 %v841, %v840
    %v876 = vpack.c.bf16 %v843, %v842
    %v877 = vpack.c.bf16 %v845, %v844
    %v878 = vpack.c.bf16 %v847, %v846
    %v879 = vpack.c.bf16 %v849, %v848
    %v880 = vperm.slane %v850, 0
    %v885 = vunpack.c.l.b16 %v60
    %v886 = vunpack.c.l.b16 %v61
    %v887 = vunpack.c.l.b16 %v62
    %v888 = vunpack.c.l.b16 %v63
    %v889 = vpack.c.b16 %v886, %v885
    %v890 = vpack.c.b16 %v888, %v887
    %vm893 = vcmask 261120
    %v895 = vsel %vm893, %v856, 0
    %v898 = vsel %vm893, %v857, 0
    %v901 = vsel %vm893, %v858, 0
    %v904 = vsel %vm893, %v859, 0
    %v907 = vsel %vm893, %v860, 0
    %v910 = vsel %vm893, %v861, 0
    %v913 = vsel %vm893, %v862, 0
    %v916 = vsel %vm893, %v863, 0
    %v919 = vsel %vm893, %v864, 0
    %v922 = vsel %vm893, %v865, 0
    %v925 = vsel %vm893, %v866, 0
    %v928 = vsel %vm893, %v867, 0
    %v931 = vsel %vm893, %v868, 0
    %v934 = vsel %vm893, %v869, 0
    %v937 = vsel %vm893, %v870, 0
    %v940 = vsel %vm893, %v871, 0
    %v943 = vsel %vm893, %v872, 0
    %v946 = vsel %vm893, %v873, 0
    %v949 = vsel %vm893, %v874, 0
    %v952 = vsel %vm893, %v875, 0
    %v955 = vsel %vm893, %v876, 0
    %v958 = vsel %vm893, %v877, 0
    %v961 = vsel %vm893, %v878, 0
    %v964 = vsel %vm893, %v879, 0
    %966 = vmatpush.bf16.msra.mxu0 0
    %967 = vmatpush.bf16.msra.mxu0 0
    %968 = vmatpush.bf16.msra.mxu0 0
    %969 = vmatpush.bf16.msra.mxu0 0
    %970 = vmatpush.bf16.msra.mxu0 0
    %971 = vmatpush.bf16.msra.mxu0 0
    %972 = vmatpush.bf16.msra.mxu0 %v890
    %973 = vmatpush.bf16.msra.mxu0 %v889
    %974 = vmatmul.bf16.gmra.mxu0 %v895
    %v975 = vpop.f32.mrf.mxu0
    %v976 = vadd.f32 %v880, %v975
    %v977 = vpop.f32.mrf.mxu0
    %v978 = vadd.f32 %v880, %v977
    %979 = vmatmul.bf16.gmra.mxu0 %v898
    %v980 = vpop.f32.mrf.mxu0
    %v981 = vadd.f32 %v880, %v980
    %v982 = vpop.f32.mrf.mxu0
    %v983 = vadd.f32 %v880, %v982
    %984 = vmatmul.bf16.gmra.mxu0 %v901
    %v985 = vpop.f32.mrf.mxu0
    %v986 = vadd.f32 %v880, %v985
    %v987 = vpop.f32.mrf.mxu0
    %v988 = vadd.f32 %v880, %v987
    %989 = vmatmul.bf16.gmra.mxu0 %v904
    %v990 = vpop.f32.mrf.mxu0
    %v991 = vadd.f32 %v880, %v990
    %v992 = vpop.f32.mrf.mxu0
    %v993 = vadd.f32 %v880, %v992
    %994 = vmatmul.bf16.gmra.mxu0 %v907
    %v995 = vpop.f32.mrf.mxu0
    %v996 = vadd.f32 %v880, %v995
    %v997 = vpop.f32.mrf.mxu0
    %v998 = vadd.f32 %v880, %v997
    %999 = vmatmul.bf16.gmra.mxu0 %v910
    %v1000 = vpop.f32.mrf.mxu0
    %v1001 = vadd.f32 %v880, %v1000
    %v1002 = vpop.f32.mrf.mxu0
    %v1003 = vadd.f32 %v880, %v1002
    %1004 = vmatmul.bf16.gmra.mxu0 %v913
    %v1005 = vpop.f32.mrf.mxu0
    %v1006 = vadd.f32 %v880, %v1005
    %v1007 = vpop.f32.mrf.mxu0
    %v1008 = vadd.f32 %v880, %v1007
    %1009 = vmatmul.bf16.gmra.mxu0 %v916
    %v1010 = vpop.f32.mrf.mxu0
    %v1011 = vadd.f32 %v880, %v1010
    %v1012 = vpop.f32.mrf.mxu0
    %v1013 = vadd.f32 %v880, %v1012
    %1014 = vmatmul.bf16.gmra.mxu0 %v919
    %v1015 = vpop.f32.mrf.mxu0
    %v1016 = vadd.f32 %v880, %v1015
    %v1017 = vpop.f32.mrf.mxu0
    %v1018 = vadd.f32 %v880, %v1017
    %1019 = vmatmul.bf16.gmra.mxu0 %v922
    %v1020 = vpop.f32.mrf.mxu0
    %v1021 = vadd.f32 %v880, %v1020
    %v1022 = vpop.f32.mrf.mxu0
    %v1023 = vadd.f32 %v880, %v1022
    %1024 = vmatmul.bf16.gmra.mxu0 %v925
    %v1025 = vpop.f32.mrf.mxu0
    %v1026 = vadd.f32 %v880, %v1025
    %v1027 = vpop.f32.mrf.mxu0
    %v1028 = vadd.f32 %v880, %v1027
    %1029 = vmatmul.bf16.gmra.mxu0 %v928
    %v1030 = vpop.f32.mrf.mxu0
    %v1031 = vadd.f32 %v880, %v1030
    %v1032 = vpop.f32.mrf.mxu0
    %v1033 = vadd.f32 %v880, %v1032
    %1034 = vmatmul.bf16.gmra.mxu0 %v931
    %v1035 = vpop.f32.mrf.mxu0
    %v1036 = vadd.f32 %v880, %v1035
    %v1037 = vpop.f32.mrf.mxu0
    %v1038 = vadd.f32 %v880, %v1037
    %1039 = vmatmul.bf16.gmra.mxu0 %v934
    %v1040 = vpop.f32.mrf.mxu0
    %v1041 = vadd.f32 %v880, %v1040
    %v1042 = vpop.f32.mrf.mxu0
    %v1043 = vadd.f32 %v880, %v1042
    %1044 = vmatmul.bf16.gmra.mxu0 %v937
    %v1045 = vpop.f32.mrf.mxu0
    %v1046 = vadd.f32 %v880, %v1045
    %v1047 = vpop.f32.mrf.mxu0
    %v1048 = vadd.f32 %v880, %v1047
    %1049 = vmatmul.bf16.gmra.mxu0 %v940
    %v1050 = vpop.f32.mrf.mxu0
    %v1051 = vadd.f32 %v880, %v1050
    %v1052 = vpop.f32.mrf.mxu0
    %v1053 = vadd.f32 %v880, %v1052
    %1054 = vmatmul.bf16.gmra.mxu0 %v943
    %v1055 = vpop.f32.mrf.mxu0
    %v1056 = vadd.f32 %v880, %v1055
    %v1057 = vpop.f32.mrf.mxu0
    %v1058 = vadd.f32 %v880, %v1057
    %1059 = vmatmul.bf16.gmra.mxu0 %v946
    %v1060 = vpop.f32.mrf.mxu0
    %v1061 = vadd.f32 %v880, %v1060
    %v1062 = vpop.f32.mrf.mxu0
    %v1063 = vadd.f32 %v880, %v1062
    %1064 = vmatmul.bf16.gmra.mxu0 %v949
    %v1065 = vpop.f32.mrf.mxu0
    %v1066 = vadd.f32 %v880, %v1065
    %v1067 = vpop.f32.mrf.mxu0
    %v1068 = vadd.f32 %v880, %v1067
    %1069 = vmatmul.bf16.gmra.mxu0 %v952
    %v1070 = vpop.f32.mrf.mxu0
    %v1071 = vadd.f32 %v880, %v1070
    %v1072 = vpop.f32.mrf.mxu0
    %v1073 = vadd.f32 %v880, %v1072
    %1074 = vmatmul.bf16.gmra.mxu0 %v955
    %v1075 = vpop.f32.mrf.mxu0
    %v1076 = vadd.f32 %v880, %v1075
    %v1077 = vpop.f32.mrf.mxu0
    %v1078 = vadd.f32 %v880, %v1077
    %1079 = vmatmul.bf16.gmra.mxu0 %v958
    %v1080 = vpop.f32.mrf.mxu0
    %v1081 = vadd.f32 %v880, %v1080
    %v1082 = vpop.f32.mrf.mxu0
    %v1083 = vadd.f32 %v880, %v1082
    %1084 = vmatmul.bf16.gmra.mxu0 %v961
    %v1085 = vpop.f32.mrf.mxu0
    %v1086 = vadd.f32 %v880, %v1085
    %v1087 = vpop.f32.mrf.mxu0
    %v1088 = vadd.f32 %v880, %v1087
    %1089 = vmatmul.bf16.gmra.mxu0 %v964
    %v1090 = vpop.f32.mrf.mxu0
    %v1091 = vadd.f32 %v880, %v1090
    %v1092 = vpop.f32.mrf.mxu0
    %v1093 = vadd.f32 %v880, %v1092
    %1094 = vdwg.mxu0
    %v1095 = vpack.c.bf16 %v978, %v976
    %v1096 = vpack.c.bf16 %v983, %v981
    %v1097 = vpack.c.bf16 %v988, %v986
    %v1098 = vpack.c.bf16 %v993, %v991
    %v1099 = vpack.c.bf16 %v998, %v996
    %v1100 = vpack.c.bf16 %v1003, %v1001
    %v1101 = vpack.c.bf16 %v1008, %v1006
    %v1102 = vpack.c.bf16 %v1013, %v1011
    %v1103 = vpack.c.bf16 %v1018, %v1016
    %v1104 = vpack.c.bf16 %v1023, %v1021
    %v1105 = vpack.c.bf16 %v1028, %v1026
    %v1106 = vpack.c.bf16 %v1033, %v1031
    %v1107 = vpack.c.bf16 %v1038, %v1036
    %v1108 = vpack.c.bf16 %v1043, %v1041
    %v1109 = vpack.c.bf16 %v1048, %v1046
    %v1110 = vpack.c.bf16 %v1053, %v1051
    %v1111 = vpack.c.bf16 %v1058, %v1056
    %v1112 = vpack.c.bf16 %v1063, %v1061
    %v1113 = vpack.c.bf16 %v1068, %v1066
    %v1114 = vpack.c.bf16 %v1073, %v1071
    %v1115 = vpack.c.bf16 %v1078, %v1076
    %v1116 = vpack.c.bf16 %v1083, %v1081
    %v1117 = vpack.c.bf16 %v1088, %v1086
    %v1118 = vpack.c.bf16 %v1093, %v1091
    %v1119 = vperm.slane %v851, 0
    %v1124 = vunpack.c.l.b16 %v68
    %v1125 = vunpack.c.l.b16 %v69
    %v1126 = vunpack.c.l.b16 %v70
    %v1127 = vunpack.c.l.b16 %v71
    %v1128 = vpack.c.b16 %v1125, %v1124
    %v1129 = vpack.c.b16 %v1127, %v1126
    %v1133 = vsel %vm893, %v1095, 0
    %v1136 = vsel %vm893, %v1096, 0
    %v1139 = vsel %vm893, %v1097, 0
    %v1142 = vsel %vm893, %v1098, 0
    %v1145 = vsel %vm893, %v1099, 0
    %v1148 = vsel %vm893, %v1100, 0
    %v1151 = vsel %vm893, %v1101, 0
    %v1154 = vsel %vm893, %v1102, 0
    %v1157 = vsel %vm893, %v1103, 0
    %v1160 = vsel %vm893, %v1104, 0
    %v1163 = vsel %vm893, %v1105, 0
    %v1166 = vsel %vm893, %v1106, 0
    %v1169 = vsel %vm893, %v1107, 0
    %v1172 = vsel %vm893, %v1108, 0
    %v1175 = vsel %vm893, %v1109, 0
    %v1178 = vsel %vm893, %v1110, 0
    %v1181 = vsel %vm893, %v1111, 0
    %v1184 = vsel %vm893, %v1112, 0
    %v1187 = vsel %vm893, %v1113, 0
    %v1190 = vsel %vm893, %v1114, 0
    %v1193 = vsel %vm893, %v1115, 0
    %v1196 = vsel %vm893, %v1116, 0
    %v1199 = vsel %vm893, %v1117, 0
    %v1202 = vsel %vm893, %v1118, 0
    %1204 = vmatpush.bf16.msra.mxu0 0
    %1205 = vmatpush.bf16.msra.mxu0 0
    %1206 = vmatpush.bf16.msra.mxu0 0
    %1207 = vmatpush.bf16.msra.mxu0 0
    %1208 = vmatpush.bf16.msra.mxu0 0
    %1209 = vmatpush.bf16.msra.mxu0 0
    %1210 = vmatpush.bf16.msra.mxu0 %v1129
    %1211 = vmatpush.bf16.msra.mxu0 %v1128
    %1212 = vmatmul.bf16.gmra.mxu0 %v1133
    %v1213 = vpop.f32.mrf.mxu0
    %v1214 = vadd.f32 %v1119, %v1213
    %v1215 = vpop.f32.mrf.mxu0
    %v1216 = vadd.f32 %v1119, %v1215
    %1217 = vmatmul.bf16.gmra.mxu0 %v1136
    %v1218 = vpop.f32.mrf.mxu0
    %v1219 = vadd.f32 %v1119, %v1218
    %v1220 = vpop.f32.mrf.mxu0
    %v1221 = vadd.f32 %v1119, %v1220
    %1222 = vmatmul.bf16.gmra.mxu0 %v1139
    %v1223 = vpop.f32.mrf.mxu0
    %v1224 = vadd.f32 %v1119, %v1223
    %v1225 = vpop.f32.mrf.mxu0
    %v1226 = vadd.f32 %v1119, %v1225
    %1227 = vmatmul.bf16.gmra.mxu0 %v1142
    %v1228 = vpop.f32.mrf.mxu0
    %v1229 = vadd.f32 %v1119, %v1228
    %v1230 = vpop.f32.mrf.mxu0
    %v1231 = vadd.f32 %v1119, %v1230
    %1232 = vmatmul.bf16.gmra.mxu0 %v1145
    %v1233 = vpop.f32.mrf.mxu0
    %v1234 = vadd.f32 %v1119, %v1233
    %v1235 = vpop.f32.mrf.mxu0
    %v1236 = vadd.f32 %v1119, %v1235
    %1237 = vmatmul.bf16.gmra.mxu0 %v1148
    %v1238 = vpop.f32.mrf.mxu0
    %v1239 = vadd.f32 %v1119, %v1238
    %v1240 = vpop.f32.mrf.mxu0
    %v1241 = vadd.f32 %v1119, %v1240
    %1242 = vmatmul.bf16.gmra.mxu0 %v1151
    %v1243 = vpop.f32.mrf.mxu0
    %v1244 = vadd.f32 %v1119, %v1243
    %v1245 = vpop.f32.mrf.mxu0
    %v1246 = vadd.f32 %v1119, %v1245
    %1247 = vmatmul.bf16.gmra.mxu0 %v1154
    %v1248 = vpop.f32.mrf.mxu0
    %v1249 = vadd.f32 %v1119, %v1248
    %v1250 = vpop.f32.mrf.mxu0
    %v1251 = vadd.f32 %v1119, %v1250
    %1252 = vmatmul.bf16.gmra.mxu0 %v1157
    %v1253 = vpop.f32.mrf.mxu0
    %v1254 = vadd.f32 %v1119, %v1253
    %v1255 = vpop.f32.mrf.mxu0
    %v1256 = vadd.f32 %v1119, %v1255
    %1257 = vmatmul.bf16.gmra.mxu0 %v1160
    %v1258 = vpop.f32.mrf.mxu0
    %v1259 = vadd.f32 %v1119, %v1258
    %v1260 = vpop.f32.mrf.mxu0
    %v1261 = vadd.f32 %v1119, %v1260
    %1262 = vmatmul.bf16.gmra.mxu0 %v1163
    %v1263 = vpop.f32.mrf.mxu0
    %v1264 = vadd.f32 %v1119, %v1263
    %v1265 = vpop.f32.mrf.mxu0
    %v1266 = vadd.f32 %v1119, %v1265
    %1267 = vmatmul.bf16.gmra.mxu0 %v1166
    %v1268 = vpop.f32.mrf.mxu0
    %v1269 = vadd.f32 %v1119, %v1268
    %v1270 = vpop.f32.mrf.mxu0
    %v1271 = vadd.f32 %v1119, %v1270
    %1272 = vmatmul.bf16.gmra.mxu0 %v1169
    %v1273 = vpop.f32.mrf.mxu0
    %v1274 = vadd.f32 %v1119, %v1273
    %v1275 = vpop.f32.mrf.mxu0
    %v1276 = vadd.f32 %v1119, %v1275
    %1277 = vmatmul.bf16.gmra.mxu0 %v1172
    %v1278 = vpop.f32.mrf.mxu0
    %v1279 = vadd.f32 %v1119, %v1278
    %v1280 = vpop.f32.mrf.mxu0
    %v1281 = vadd.f32 %v1119, %v1280
    %1282 = vmatmul.bf16.gmra.mxu0 %v1175
    %v1283 = vpop.f32.mrf.mxu0
    %v1284 = vadd.f32 %v1119, %v1283
    %v1285 = vpop.f32.mrf.mxu0
    %v1286 = vadd.f32 %v1119, %v1285
    %1287 = vmatmul.bf16.gmra.mxu0 %v1178
    %v1288 = vpop.f32.mrf.mxu0
    %v1289 = vadd.f32 %v1119, %v1288
    %v1290 = vpop.f32.mrf.mxu0
    %v1291 = vadd.f32 %v1119, %v1290
    %1292 = vmatmul.bf16.gmra.mxu0 %v1181
    %v1293 = vpop.f32.mrf.mxu0
    %v1294 = vadd.f32 %v1119, %v1293
    %v1295 = vpop.f32.mrf.mxu0
    %v1296 = vadd.f32 %v1119, %v1295
    %1297 = vmatmul.bf16.gmra.mxu0 %v1184
    %v1298 = vpop.f32.mrf.mxu0
    %v1299 = vadd.f32 %v1119, %v1298
    %v1300 = vpop.f32.mrf.mxu0
    %v1301 = vadd.f32 %v1119, %v1300
    %1302 = vmatmul.bf16.gmra.mxu0 %v1187
    %v1303 = vpop.f32.mrf.mxu0
    %v1304 = vadd.f32 %v1119, %v1303
    %v1305 = vpop.f32.mrf.mxu0
    %v1306 = vadd.f32 %v1119, %v1305
    %1307 = vmatmul.bf16.gmra.mxu0 %v1190
    %v1308 = vpop.f32.mrf.mxu0
    %v1309 = vadd.f32 %v1119, %v1308
    %v1310 = vpop.f32.mrf.mxu0
    %v1311 = vadd.f32 %v1119, %v1310
    %1312 = vmatmul.bf16.gmra.mxu0 %v1193
    %v1313 = vpop.f32.mrf.mxu0
    %v1314 = vadd.f32 %v1119, %v1313
    %v1315 = vpop.f32.mrf.mxu0
    %v1316 = vadd.f32 %v1119, %v1315
    %1317 = vmatmul.bf16.gmra.mxu0 %v1196
    %v1318 = vpop.f32.mrf.mxu0
    %v1319 = vadd.f32 %v1119, %v1318
    %v1320 = vpop.f32.mrf.mxu0
    %v1321 = vadd.f32 %v1119, %v1320
    %1322 = vmatmul.bf16.gmra.mxu0 %v1199
    %v1323 = vpop.f32.mrf.mxu0
    %v1324 = vadd.f32 %v1119, %v1323
    %v1325 = vpop.f32.mrf.mxu0
    %v1326 = vadd.f32 %v1119, %v1325
    %1327 = vmatmul.bf16.gmra.mxu0 %v1202
    %v1328 = vpop.f32.mrf.mxu0
    %v1329 = vadd.f32 %v1119, %v1328
    %v1330 = vpop.f32.mrf.mxu0
    %v1331 = vadd.f32 %v1119, %v1330
    %1332 = vdwg.mxu0
    %v1333 = vsel %vm893, %v1214, 0.0
    %1334 = vadd.xlane.f32.xlu0 %v1333
    %v1335 = vpop.xlane.xlu0 %1334
    %v1336 = vsel %vm893, %v1216, 0.0
    %1337 = vadd.xlane.f32.xlu0 %v1336
    %v1338 = vpop.xlane.xlu0 %1337
    %v1339 = vsel %vm893, %v1219, 0.0
    %1340 = vadd.xlane.f32.xlu0 %v1339
    %v1341 = vpop.xlane.xlu0 %1340
    %v1342 = vsel %vm893, %v1221, 0.0
    %1343 = vadd.xlane.f32.xlu0 %v1342
    %v1344 = vpop.xlane.xlu0 %1343
    %v1345 = vsel %vm893, %v1224, 0.0
    %1346 = vadd.xlane.f32.xlu0 %v1345
    %v1347 = vpop.xlane.xlu0 %1346
    %v1348 = vsel %vm893, %v1226, 0.0
    %1349 = vadd.xlane.f32.xlu0 %v1348
    %v1350 = vpop.xlane.xlu0 %1349
    %v1351 = vsel %vm893, %v1229, 0.0
    %1352 = vadd.xlane.f32.xlu0 %v1351
    %v1353 = vpop.xlane.xlu0 %1352
    %v1354 = vsel %vm893, %v1231, 0.0
    %1355 = vadd.xlane.f32.xlu0 %v1354
    %v1356 = vpop.xlane.xlu0 %1355
    %v1357 = vsel %vm893, %v1234, 0.0
    %1358 = vadd.xlane.f32.xlu0 %v1357
    %v1359 = vpop.xlane.xlu0 %1358
    %v1360 = vsel %vm893, %v1236, 0.0
    %1361 = vadd.xlane.f32.xlu0 %v1360
    %v1362 = vpop.xlane.xlu0 %1361
    %v1363 = vsel %vm893, %v1239, 0.0
    %1364 = vadd.xlane.f32.xlu0 %v1363
    %v1365 = vpop.xlane.xlu0 %1364
    %v1366 = vsel %vm893, %v1241, 0.0
    %1367 = vadd.xlane.f32.xlu0 %v1366
    %v1368 = vpop.xlane.xlu0 %1367
    %v1369 = vsel %vm893, %v1244, 0.0
    %1370 = vadd.xlane.f32.xlu0 %v1369
    %v1371 = vpop.xlane.xlu0 %1370
    %v1372 = vsel %vm893, %v1246, 0.0
    %1373 = vadd.xlane.f32.xlu0 %v1372
    %v1374 = vpop.xlane.xlu0 %1373
    %v1375 = vsel %vm893, %v1249, 0.0
    %1376 = vadd.xlane.f32.xlu0 %v1375
    %v1377 = vpop.xlane.xlu0 %1376
    %v1378 = vsel %vm893, %v1251, 0.0
    %1379 = vadd.xlane.f32.xlu0 %v1378
    %v1380 = vpop.xlane.xlu0 %1379
    %v1381 = vsel %vm893, %v1254, 0.0
    %1382 = vadd.xlane.f32.xlu0 %v1381
    %v1383 = vpop.xlane.xlu0 %1382
    %v1384 = vsel %vm893, %v1256, 0.0
    %1385 = vadd.xlane.f32.xlu0 %v1384
    %v1386 = vpop.xlane.xlu0 %1385
    %v1387 = vsel %vm893, %v1259, 0.0
    %1388 = vadd.xlane.f32.xlu0 %v1387
    %v1389 = vpop.xlane.xlu0 %1388
    %v1390 = vsel %vm893, %v1261, 0.0
    %1391 = vadd.xlane.f32.xlu0 %v1390
    %v1392 = vpop.xlane.xlu0 %1391
    %v1393 = vsel %vm893, %v1264, 0.0
    %1394 = vadd.xlane.f32.xlu0 %v1393
    %v1395 = vpop.xlane.xlu0 %1394
    %v1396 = vsel %vm893, %v1266, 0.0
    %1397 = vadd.xlane.f32.xlu0 %v1396
    %v1398 = vpop.xlane.xlu0 %1397
    %v1399 = vsel %vm893, %v1269, 0.0
    %1400 = vadd.xlane.f32.xlu0 %v1399
    %v1401 = vpop.xlane.xlu0 %1400
    %v1402 = vsel %vm893, %v1271, 0.0
    %1403 = vadd.xlane.f32.xlu0 %v1402
    %v1404 = vpop.xlane.xlu0 %1403
    %v1405 = vsel %vm893, %v1274, 0.0
    %1406 = vadd.xlane.f32.xlu0 %v1405
    %v1407 = vpop.xlane.xlu0 %1406
    %v1408 = vsel %vm893, %v1276, 0.0
    %1409 = vadd.xlane.f32.xlu0 %v1408
    %v1410 = vpop.xlane.xlu0 %1409
    %v1411 = vsel %vm893, %v1279, 0.0
    %1412 = vadd.xlane.f32.xlu0 %v1411
    %v1413 = vpop.xlane.xlu0 %1412
    %v1414 = vsel %vm893, %v1281, 0.0
    %1415 = vadd.xlane.f32.xlu0 %v1414
    %v1416 = vpop.xlane.xlu0 %1415
    %v1417 = vsel %vm893, %v1284, 0.0
    %1418 = vadd.xlane.f32.xlu0 %v1417
    %v1419 = vpop.xlane.xlu0 %1418
    %v1420 = vsel %vm893, %v1286, 0.0
    %1421 = vadd.xlane.f32.xlu0 %v1420
    %v1422 = vpop.xlane.xlu0 %1421
    %v1423 = vsel %vm893, %v1289, 0.0
    %1424 = vadd.xlane.f32.xlu0 %v1423
    %v1425 = vpop.xlane.xlu0 %1424
    %v1426 = vsel %vm893, %v1291, 0.0
    %1427 = vadd.xlane.f32.xlu0 %v1426
    %v1428 = vpop.xlane.xlu0 %1427
    %v1429 = vsel %vm893, %v1294, 0.0
    %1430 = vadd.xlane.f32.xlu0 %v1429
    %v1431 = vpop.xlane.xlu0 %1430
    %v1432 = vsel %vm893, %v1296, 0.0
    %1433 = vadd.xlane.f32.xlu0 %v1432
    %v1434 = vpop.xlane.xlu0 %1433
    %v1435 = vsel %vm893, %v1299, 0.0
    %1436 = vadd.xlane.f32.xlu0 %v1435
    %v1437 = vpop.xlane.xlu0 %1436
    %v1438 = vsel %vm893, %v1301, 0.0
    %1439 = vadd.xlane.f32.xlu0 %v1438
    %v1440 = vpop.xlane.xlu0 %1439
    %v1441 = vsel %vm893, %v1304, 0.0
    %1442 = vadd.xlane.f32.xlu0 %v1441
    %v1443 = vpop.xlane.xlu0 %1442
    %v1444 = vsel %vm893, %v1306, 0.0
    %1445 = vadd.xlane.f32.xlu0 %v1444
    %v1446 = vpop.xlane.xlu0 %1445
    %v1447 = vsel %vm893, %v1309, 0.0
    %1448 = vadd.xlane.f32.xlu0 %v1447
    %v1449 = vpop.xlane.xlu0 %1448
    %v1450 = vsel %vm893, %v1311, 0.0
    %1451 = vadd.xlane.f32.xlu0 %v1450
    %v1452 = vpop.xlane.xlu0 %1451
    %v1453 = vsel %vm893, %v1314, 0.0
    %1454 = vadd.xlane.f32.xlu0 %v1453
    %v1455 = vpop.xlane.xlu0 %1454
    %v1456 = vsel %vm893, %v1316, 0.0
    %1457 = vadd.xlane.f32.xlu0 %v1456
    %v1458 = vpop.xlane.xlu0 %1457
    %v1459 = vsel %vm893, %v1319, 0.0
    %1460 = vadd.xlane.f32.xlu0 %v1459
    %v1461 = vpop.xlane.xlu0 %1460
    %v1462 = vsel %vm893, %v1321, 0.0
    %1463 = vadd.xlane.f32.xlu0 %v1462
    %v1464 = vpop.xlane.xlu0 %1463
    %v1465 = vsel %vm893, %v1324, 0.0
    %1466 = vadd.xlane.f32.xlu0 %v1465
    %v1467 = vpop.xlane.xlu0 %1466
    %v1468 = vsel %vm893, %v1326, 0.0
    %1469 = vadd.xlane.f32.xlu0 %v1468
    %v1470 = vpop.xlane.xlu0 %1469
    %v1471 = vsel %vm893, %v1329, 0.0
    %1472 = vadd.xlane.f32.xlu0 %v1471
    %v1473 = vpop.xlane.xlu0 %1472
    %v1474 = vsel %vm893, %v1331, 0.0
    %1475 = vadd.xlane.f32.xlu0 %v1474
    %v1476 = vpop.xlane.xlu0 %1475
    %v1477 = vrcp.pop 32.0
    %v1478 = vmul.f32 32.0, %v1477
    %v1479 = vsub.f32 1.0, %v1478
    %v1480 = vmul.f32 %v1477, %v1479
    %v1481 = vadd.f32 %v1477, %v1480
    %vm1482 = vweird.f32 %v1477
    %v1483 = vsel %vm1482, %v1477, %v1481
    %v1484 = vmul.f32 %v1335, %v1483
    %v1485 = vmul.f32 %v1338, %v1483
    %v1486 = vmul.f32 %v1341, %v1483
    %v1487 = vmul.f32 %v1344, %v1483
    %v1488 = vmul.f32 %v1347, %v1483
    %v1489 = vmul.f32 %v1350, %v1483
    %v1490 = vmul.f32 %v1353, %v1483
    %v1491 = vmul.f32 %v1356, %v1483
    %v1492 = vmul.f32 %v1359, %v1483
    %v1493 = vmul.f32 %v1362, %v1483
    %v1494 = vmul.f32 %v1365, %v1483
    %v1495 = vmul.f32 %v1368, %v1483
    %v1496 = vmul.f32 %v1371, %v1483
    %v1497 = vmul.f32 %v1374, %v1483
    %v1498 = vmul.f32 %v1377, %v1483
    %v1499 = vmul.f32 %v1380, %v1483
    %v1500 = vmul.f32 %v1383, %v1483
    %v1501 = vmul.f32 %v1386, %v1483
    %v1502 = vmul.f32 %v1389, %v1483
    %v1503 = vmul.f32 %v1392, %v1483
    %v1504 = vmul.f32 %v1395, %v1483
    %v1505 = vmul.f32 %v1398, %v1483
    %v1506 = vmul.f32 %v1401, %v1483
    %v1507 = vmul.f32 %v1404, %v1483
    %v1508 = vmul.f32 %v1407, %v1483
    %v1509 = vmul.f32 %v1410, %v1483
    %v1510 = vmul.f32 %v1413, %v1483
    %v1511 = vmul.f32 %v1416, %v1483
    %v1512 = vmul.f32 %v1419, %v1483
    %v1513 = vmul.f32 %v1422, %v1483
    %v1514 = vmul.f32 %v1425, %v1483
    %v1515 = vmul.f32 %v1428, %v1483
    %v1516 = vmul.f32 %v1431, %v1483
    %v1517 = vmul.f32 %v1434, %v1483
    %v1518 = vmul.f32 %v1437, %v1483
    %v1519 = vmul.f32 %v1440, %v1483
    %v1520 = vmul.f32 %v1443, %v1483
    %v1521 = vmul.f32 %v1446, %v1483
    %v1522 = vmul.f32 %v1449, %v1483
    %v1523 = vmul.f32 %v1452, %v1483
    %v1524 = vmul.f32 %v1455, %v1483
    %v1525 = vmul.f32 %v1458, %v1483
    %v1526 = vmul.f32 %v1461, %v1483
    %v1527 = vmul.f32 %v1464, %v1483
    %v1528 = vmul.f32 %v1467, %v1483
    %v1529 = vmul.f32 %v1470, %v1483
    %v1530 = vmul.f32 %v1473, %v1483
    %v1531 = vmul.f32 %v1476, %v1483
    %v1532 = vsub.f32 %v1214, %v1484
    %v1533 = vsub.f32 %v1216, %v1485
    %v1534 = vsub.f32 %v1219, %v1486
    %v1535 = vsub.f32 %v1221, %v1487
    %v1536 = vsub.f32 %v1224, %v1488
    %v1537 = vsub.f32 %v1226, %v1489
    %v1538 = vsub.f32 %v1229, %v1490
    %v1539 = vsub.f32 %v1231, %v1491
    %v1540 = vsub.f32 %v1234, %v1492
    %v1541 = vsub.f32 %v1236, %v1493
    %v1542 = vsub.f32 %v1239, %v1494
    %v1543 = vsub.f32 %v1241, %v1495
    %v1544 = vsub.f32 %v1244, %v1496
    %v1545 = vsub.f32 %v1246, %v1497
    %v1546 = vsub.f32 %v1249, %v1498
    %v1547 = vsub.f32 %v1251, %v1499
    %v1548 = vsub.f32 %v1254, %v1500
    %v1549 = vsub.f32 %v1256, %v1501
    %v1550 = vsub.f32 %v1259, %v1502
    %v1551 = vsub.f32 %v1261, %v1503
    %v1552 = vsub.f32 %v1264, %v1504
    %v1553 = vsub.f32 %v1266, %v1505
    %v1554 = vsub.f32 %v1269, %v1506
    %v1555 = vsub.f32 %v1271, %v1507
    %v1556 = vsub.f32 %v1274, %v1508
    %v1557 = vsub.f32 %v1276, %v1509
    %v1558 = vsub.f32 %v1279, %v1510
    %v1559 = vsub.f32 %v1281, %v1511
    %v1560 = vsub.f32 %v1284, %v1512
    %v1561 = vsub.f32 %v1286, %v1513
    %v1562 = vsub.f32 %v1289, %v1514
    %v1563 = vsub.f32 %v1291, %v1515
    %v1564 = vsub.f32 %v1294, %v1516
    %v1565 = vsub.f32 %v1296, %v1517
    %v1566 = vsub.f32 %v1299, %v1518
    %v1567 = vsub.f32 %v1301, %v1519
    %v1568 = vsub.f32 %v1304, %v1520
    %v1569 = vsub.f32 %v1306, %v1521
    %v1570 = vsub.f32 %v1309, %v1522
    %v1571 = vsub.f32 %v1311, %v1523
    %v1572 = vsub.f32 %v1314, %v1524
    %v1573 = vsub.f32 %v1316, %v1525
    %v1574 = vsub.f32 %v1319, %v1526
    %v1575 = vsub.f32 %v1321, %v1527
    %v1576 = vsub.f32 %v1324, %v1528
    %v1577 = vsub.f32 %v1326, %v1529
    %v1578 = vsub.f32 %v1329, %v1530
    %v1579 = vsub.f32 %v1331, %v1531
    %v1580 = vmul.f32 %v1532, %v1532
    %v1581 = vmul.f32 %v1533, %v1533
    %v1582 = vmul.f32 %v1534, %v1534
    %v1583 = vmul.f32 %v1535, %v1535
    %v1584 = vmul.f32 %v1536, %v1536
    %v1585 = vmul.f32 %v1537, %v1537
    %v1586 = vmul.f32 %v1538, %v1538
    %v1587 = vmul.f32 %v1539, %v1539
    %v1588 = vmul.f32 %v1540, %v1540
    %v1589 = vmul.f32 %v1541, %v1541
    %v1590 = vmul.f32 %v1542, %v1542
    %v1591 = vmul.f32 %v1543, %v1543
    %v1592 = vmul.f32 %v1544, %v1544
    %v1593 = vmul.f32 %v1545, %v1545
    %v1594 = vmul.f32 %v1546, %v1546
    %v1595 = vmul.f32 %v1547, %v1547
    %v1596 = vmul.f32 %v1548, %v1548
    %v1597 = vmul.f32 %v1549, %v1549
    %v1598 = vmul.f32 %v1550, %v1550
    %v1599 = vmul.f32 %v1551, %v1551
    %v1600 = vmul.f32 %v1552, %v1552
    %v1601 = vmul.f32 %v1553, %v1553
    %v1602 = vmul.f32 %v1554, %v1554
    %v1603 = vmul.f32 %v1555, %v1555
    %v1604 = vmul.f32 %v1556, %v1556
    %v1605 = vmul.f32 %v1557, %v1557
    %v1606 = vmul.f32 %v1558, %v1558
    %v1607 = vmul.f32 %v1559, %v1559
    %v1608 = vmul.f32 %v1560, %v1560
    %v1609 = vmul.f32 %v1561, %v1561
    %v1610 = vmul.f32 %v1562, %v1562
    %v1611 = vmul.f32 %v1563, %v1563
    %v1612 = vmul.f32 %v1564, %v1564
    %v1613 = vmul.f32 %v1565, %v1565
    %v1614 = vmul.f32 %v1566, %v1566
    %v1615 = vmul.f32 %v1567, %v1567
    %v1616 = vmul.f32 %v1568, %v1568
    %v1617 = vmul.f32 %v1569, %v1569
    %v1618 = vmul.f32 %v1570, %v1570
    %v1619 = vmul.f32 %v1571, %v1571
    %v1620 = vmul.f32 %v1572, %v1572
    %v1621 = vmul.f32 %v1573, %v1573
    %v1622 = vmul.f32 %v1574, %v1574
    %v1623 = vmul.f32 %v1575, %v1575
    %v1624 = vmul.f32 %v1576, %v1576
    %v1625 = vmul.f32 %v1577, %v1577
    %v1626 = vmul.f32 %v1578, %v1578
    %v1627 = vmul.f32 %v1579, %v1579
    %v1628 = vsel %vm893, %v1580, 0.0
    %1629 = vadd.xlane.f32.xlu0 %v1628
    %v1630 = vpop.xlane.xlu0 %1629
    %v1631 = vsel %vm893, %v1581, 0.0
    %1632 = vadd.xlane.f32.xlu0 %v1631
    %v1633 = vpop.xlane.xlu0 %1632
    %v1634 = vsel %vm893, %v1582, 0.0
    %1635 = vadd.xlane.f32.xlu0 %v1634
    %v1636 = vpop.xlane.xlu0 %1635
    %v1637 = vsel %vm893, %v1583, 0.0
    %1638 = vadd.xlane.f32.xlu0 %v1637
    %v1639 = vpop.xlane.xlu0 %1638
    %v1640 = vsel %vm893, %v1584, 0.0
    %1641 = vadd.xlane.f32.xlu0 %v1640
    %v1642 = vpop.xlane.xlu0 %1641
    %v1643 = vsel %vm893, %v1585, 0.0
    %1644 = vadd.xlane.f32.xlu0 %v1643
    %v1645 = vpop.xlane.xlu0 %1644
    %v1646 = vsel %vm893, %v1586, 0.0
    %1647 = vadd.xlane.f32.xlu0 %v1646
    %v1648 = vpop.xlane.xlu0 %1647
    %v1649 = vsel %vm893, %v1587, 0.0
    %1650 = vadd.xlane.f32.xlu0 %v1649
    %v1651 = vpop.xlane.xlu0 %1650
    %v1652 = vsel %vm893, %v1588, 0.0
    %1653 = vadd.xlane.f32.xlu0 %v1652
    %v1654 = vpop.xlane.xlu0 %1653
    %v1655 = vsel %vm893, %v1589, 0.0
    %1656 = vadd.xlane.f32.xlu0 %v1655
    %v1657 = vpop.xlane.xlu0 %1656
    %v1658 = vsel %vm893, %v1590, 0.0
    %1659 = vadd.xlane.f32.xlu0 %v1658
    %v1660 = vpop.xlane.xlu0 %1659
    %v1661 = vsel %vm893, %v1591, 0.0
    %1662 = vadd.xlane.f32.xlu0 %v1661
    %v1663 = vpop.xlane.xlu0 %1662
    %v1664 = vsel %vm893, %v1592, 0.0
    %1665 = vadd.xlane.f32.xlu0 %v1664
    %v1666 = vpop.xlane.xlu0 %1665
    %v1667 = vsel %vm893, %v1593, 0.0
    %1668 = vadd.xlane.f32.xlu0 %v1667
    %v1669 = vpop.xlane.xlu0 %1668
    %v1670 = vsel %vm893, %v1594, 0.0
    %1671 = vadd.xlane.f32.xlu0 %v1670
    %v1672 = vpop.xlane.xlu0 %1671
    %v1673 = vsel %vm893, %v1595, 0.0
    %1674 = vadd.xlane.f32.xlu0 %v1673
    %v1675 = vpop.xlane.xlu0 %1674
    %v1676 = vsel %vm893, %v1596, 0.0
    %1677 = vadd.xlane.f32.xlu0 %v1676
    %v1678 = vpop.xlane.xlu0 %1677
    %v1679 = vsel %vm893, %v1597, 0.0
    %1680 = vadd.xlane.f32.xlu0 %v1679
    %v1681 = vpop.xlane.xlu0 %1680
    %v1682 = vsel %vm893, %v1598, 0.0
    %1683 = vadd.xlane.f32.xlu0 %v1682
    %v1684 = vpop.xlane.xlu0 %1683
    %v1685 = vsel %vm893, %v1599, 0.0
    %1686 = vadd.xlane.f32.xlu0 %v1685
    %v1687 = vpop.xlane.xlu0 %1686
    %v1688 = vsel %vm893, %v1600, 0.0
    %1689 = vadd.xlane.f32.xlu0 %v1688
    %v1690 = vpop.xlane.xlu0 %1689
    %v1691 = vsel %vm893, %v1601, 0.0
    %1692 = vadd.xlane.f32.xlu0 %v1691
    %v1693 = vpop.xlane.xlu0 %1692
    %v1694 = vsel %vm893, %v1602, 0.0
    %1695 = vadd.xlane.f32.xlu0 %v1694
    %v1696 = vpop.xlane.xlu0 %1695
    %v1697 = vsel %vm893, %v1603, 0.0
    %1698 = vadd.xlane.f32.xlu0 %v1697
    %v1699 = vpop.xlane.xlu0 %1698
    %v1700 = vsel %vm893, %v1604, 0.0
    %1701 = vadd.xlane.f32.xlu0 %v1700
    %v1702 = vpop.xlane.xlu0 %1701
    %v1703 = vsel %vm893, %v1605, 0.0
    %1704 = vadd.xlane.f32.xlu0 %v1703
    %v1705 = vpop.xlane.xlu0 %1704
    %v1706 = vsel %vm893, %v1606, 0.0
    %1707 = vadd.xlane.f32.xlu0 %v1706
    %v1708 = vpop.xlane.xlu0 %1707
    %v1709 = vsel %vm893, %v1607, 0.0
    %1710 = vadd.xlane.f32.xlu0 %v1709
    %v1711 = vpop.xlane.xlu0 %1710
    %v1712 = vsel %vm893, %v1608, 0.0
    %1713 = vadd.xlane.f32.xlu0 %v1712
    %v1714 = vpop.xlane.xlu0 %1713
    %v1715 = vsel %vm893, %v1609, 0.0
    %1716 = vadd.xlane.f32.xlu0 %v1715
    %v1717 = vpop.xlane.xlu0 %1716
    %v1718 = vsel %vm893, %v1610, 0.0
    %1719 = vadd.xlane.f32.xlu0 %v1718
    %v1720 = vpop.xlane.xlu0 %1719
    %v1721 = vsel %vm893, %v1611, 0.0
    %1722 = vadd.xlane.f32.xlu0 %v1721
    %v1723 = vpop.xlane.xlu0 %1722
    %v1724 = vsel %vm893, %v1612, 0.0
    %1725 = vadd.xlane.f32.xlu0 %v1724
    %v1726 = vpop.xlane.xlu0 %1725
    %v1727 = vsel %vm893, %v1613, 0.0
    %1728 = vadd.xlane.f32.xlu0 %v1727
    %v1729 = vpop.xlane.xlu0 %1728
    %v1730 = vsel %vm893, %v1614, 0.0
    %1731 = vadd.xlane.f32.xlu0 %v1730
    %v1732 = vpop.xlane.xlu0 %1731
    %v1733 = vsel %vm893, %v1615, 0.0
    %1734 = vadd.xlane.f32.xlu0 %v1733
    %v1735 = vpop.xlane.xlu0 %1734
    %v1736 = vsel %vm893, %v1616, 0.0
    %1737 = vadd.xlane.f32.xlu0 %v1736
    %v1738 = vpop.xlane.xlu0 %1737
    %v1739 = vsel %vm893, %v1617, 0.0
    %1740 = vadd.xlane.f32.xlu0 %v1739
    %v1741 = vpop.xlane.xlu0 %1740
    %v1742 = vsel %vm893, %v1618, 0.0
    %1743 = vadd.xlane.f32.xlu0 %v1742
    %v1744 = vpop.xlane.xlu0 %1743
    %v1745 = vsel %vm893, %v1619, 0.0
    %1746 = vadd.xlane.f32.xlu0 %v1745
    %v1747 = vpop.xlane.xlu0 %1746
    %v1748 = vsel %vm893, %v1620, 0.0
    %1749 = vadd.xlane.f32.xlu0 %v1748
    %v1750 = vpop.xlane.xlu0 %1749
    %v1751 = vsel %vm893, %v1621, 0.0
    %1752 = vadd.xlane.f32.xlu0 %v1751
    %v1753 = vpop.xlane.xlu0 %1752
    %v1754 = vsel %vm893, %v1622, 0.0
    %1755 = vadd.xlane.f32.xlu0 %v1754
    %v1756 = vpop.xlane.xlu0 %1755
    %v1757 = vsel %vm893, %v1623, 0.0
    %1758 = vadd.xlane.f32.xlu0 %v1757
    %v1759 = vpop.xlane.xlu0 %1758
    %v1760 = vsel %vm893, %v1624, 0.0
    %1761 = vadd.xlane.f32.xlu0 %v1760
    %v1762 = vpop.xlane.xlu0 %1761
    %v1763 = vsel %vm893, %v1625, 0.0
    %1764 = vadd.xlane.f32.xlu0 %v1763
    %v1765 = vpop.xlane.xlu0 %1764
    %v1766 = vsel %vm893, %v1626, 0.0
    %1767 = vadd.xlane.f32.xlu0 %v1766
    %v1768 = vpop.xlane.xlu0 %1767
    %v1769 = vsel %vm893, %v1627, 0.0
    %1770 = vadd.xlane.f32.xlu0 %v1769
    %v1771 = vpop.xlane.xlu0 %1770
    %v1772 = vmul.f32 %v1630, %v1483
    %v1773 = vmul.f32 %v1633, %v1483
    %v1774 = vmul.f32 %v1636, %v1483
    %v1775 = vmul.f32 %v1639, %v1483
    %v1776 = vmul.f32 %v1642, %v1483
    %v1777 = vmul.f32 %v1645, %v1483
    %v1778 = vmul.f32 %v1648, %v1483
    %v1779 = vmul.f32 %v1651, %v1483
    %v1780 = vmul.f32 %v1654, %v1483
    %v1781 = vmul.f32 %v1657, %v1483
    %v1782 = vmul.f32 %v1660, %v1483
    %v1783 = vmul.f32 %v1663, %v1483
    %v1784 = vmul.f32 %v1666, %v1483
    %v1785 = vmul.f32 %v1669, %v1483
    %v1786 = vmul.f32 %v1672, %v1483
    %v1787 = vmul.f32 %v1675, %v1483
    %v1788 = vmul.f32 %v1678, %v1483
    %v1789 = vmul.f32 %v1681, %v1483
    %v1790 = vmul.f32 %v1684, %v1483
    %v1791 = vmul.f32 %v1687, %v1483
    %v1792 = vmul.f32 %v1690, %v1483
    %v1793 = vmul.f32 %v1693, %v1483
    %v1794 = vmul.f32 %v1696, %v1483
    %v1795 = vmul.f32 %v1699, %v1483
    %v1796 = vmul.f32 %v1702, %v1483
    %v1797 = vmul.f32 %v1705, %v1483
    %v1798 = vmul.f32 %v1708, %v1483
    %v1799 = vmul.f32 %v1711, %v1483
    %v1800 = vmul.f32 %v1714, %v1483
    %v1801 = vmul.f32 %v1717, %v1483
    %v1802 = vmul.f32 %v1720, %v1483
    %v1803 = vmul.f32 %v1723, %v1483
    %v1804 = vmul.f32 %v1726, %v1483
    %v1805 = vmul.f32 %v1729, %v1483
    %v1806 = vmul.f32 %v1732, %v1483
    %v1807 = vmul.f32 %v1735, %v1483
    %v1808 = vmul.f32 %v1738, %v1483
    %v1809 = vmul.f32 %v1741, %v1483
    %v1810 = vmul.f32 %v1744, %v1483
    %v1811 = vmul.f32 %v1747, %v1483
    %v1812 = vmul.f32 %v1750, %v1483
    %v1813 = vmul.f32 %v1753, %v1483
    %v1814 = vmul.f32 %v1756, %v1483
    %v1815 = vmul.f32 %v1759, %v1483
    %v1816 = vmul.f32 %v1762, %v1483
    %v1817 = vmul.f32 %v1765, %v1483
    %v1818 = vmul.f32 %v1768, %v1483
    %v1819 = vmul.f32 %v1771, %v1483
    %v1820 = vadd.f32 %v1772, 1e-05
    %v1821 = vadd.f32 %v1773, 1e-05
    %v1822 = vadd.f32 %v1774, 1e-05
    %v1823 = vadd.f32 %v1775, 1e-05
    %v1824 = vadd.f32 %v1776, 1e-05
    %v1825 = vadd.f32 %v1777, 1e-05
    %v1826 = vadd.f32 %v1778, 1e-05
    %v1827 = vadd.f32 %v1779, 1e-05
    %v1828 = vadd.f32 %v1780, 1e-05
    %v1829 = vadd.f32 %v1781, 1e-05
    %v1830 = vadd.f32 %v1782, 1e-05
    %v1831 = vadd.f32 %v1783, 1e-05
    %v1832 = vadd.f32 %v1784, 1e-05
    %v1833 = vadd.f32 %v1785, 1e-05
    %v1834 = vadd.f32 %v1786, 1e-05
    %v1835 = vadd.f32 %v1787, 1e-05
    %v1836 = vadd.f32 %v1788, 1e-05
    %v1837 = vadd.f32 %v1789, 1e-05
    %v1838 = vadd.f32 %v1790, 1e-05
    %v1839 = vadd.f32 %v1791, 1e-05
    %v1840 = vadd.f32 %v1792, 1e-05
    %v1841 = vadd.f32 %v1793, 1e-05
    %v1842 = vadd.f32 %v1794, 1e-05
    %v1843 = vadd.f32 %v1795, 1e-05
    %v1844 = vadd.f32 %v1796, 1e-05
    %v1845 = vadd.f32 %v1797, 1e-05
    %v1846 = vadd.f32 %v1798, 1e-05
    %v1847 = vadd.f32 %v1799, 1e-05
    %v1848 = vadd.f32 %v1800, 1e-05
    %v1849 = vadd.f32 %v1801, 1e-05
    %v1850 = vadd.f32 %v1802, 1e-05
    %v1851 = vadd.f32 %v1803, 1e-05
    %v1852 = vadd.f32 %v1804, 1e-05
    %v1853 = vadd.f32 %v1805, 1e-05
    %v1854 = vadd.f32 %v1806, 1e-05
    %v1855 = vadd.f32 %v1807, 1e-05
    %v1856 = vadd.f32 %v1808, 1e-05
    %v1857 = vadd.f32 %v1809, 1e-05
    %v1858 = vadd.f32 %v1810, 1e-05
    %v1859 = vadd.f32 %v1811, 1e-05
    %v1860 = vadd.f32 %v1812, 1e-05
    %v1861 = vadd.f32 %v1813, 1e-05
    %v1862 = vadd.f32 %v1814, 1e-05
    %v1863 = vadd.f32 %v1815, 1e-05
    %v1864 = vadd.f32 %v1816, 1e-05
    %v1865 = vadd.f32 %v1817, 1e-05
    %v1866 = vadd.f32 %v1818, 1e-05
    %v1867 = vadd.f32 %v1819, 1e-05
    %v1868 = vrsqrt.pop %v1820
    %v1869 = vmul.f32 %v1868, %v1820
    %v1870 = vmul.f32 %v1869, %v1868
    %v1871 = vmul.f32 0.5, %v1870
    %v1872 = vsub.f32 1.5, %v1871
    %v1873 = vmul.f32 %v1868, %v1872
    %vm1874 = vweird.f32 %v1820
    %vm1875 = vweird.f32 %v1868
    %vm1876 = vmor %vm1874, %vm1875
    %v1877 = vsel %vm1876, %v1868, %v1873
    %v1878 = vrsqrt.pop %v1821
    %v1879 = vmul.f32 %v1878, %v1821
    %v1880 = vmul.f32 %v1879, %v1878
    %v1881 = vmul.f32 0.5, %v1880
    %v1882 = vsub.f32 1.5, %v1881
    %v1883 = vmul.f32 %v1878, %v1882
    %vm1884 = vweird.f32 %v1821
    %vm1885 = vweird.f32 %v1878
    %vm1886 = vmor %vm1884, %vm1885
    %v1887 = vsel %vm1886, %v1878, %v1883
    %v1888 = vrsqrt.pop %v1822
    %v1889 = vmul.f32 %v1888, %v1822
    %v1890 = vmul.f32 %v1889, %v1888
    %v1891 = vmul.f32 0.5, %v1890
    %v1892 = vsub.f32 1.5, %v1891
    %v1893 = vmul.f32 %v1888, %v1892
    %vm1894 = vweird.f32 %v1822
    %vm1895 = vweird.f32 %v1888
    %vm1896 = vmor %vm1894, %vm1895
    %v1897 = vsel %vm1896, %v1888, %v1893
    %v1898 = vrsqrt.pop %v1823
    %v1899 = vmul.f32 %v1898, %v1823
    %v1900 = vmul.f32 %v1899, %v1898
    %v1901 = vmul.f32 0.5, %v1900
    %v1902 = vsub.f32 1.5, %v1901
    %v1903 = vmul.f32 %v1898, %v1902
    %vm1904 = vweird.f32 %v1823
    %vm1905 = vweird.f32 %v1898
    %vm1906 = vmor %vm1904, %vm1905
    %v1907 = vsel %vm1906, %v1898, %v1903
    %v1908 = vrsqrt.pop %v1824
    %v1909 = vmul.f32 %v1908, %v1824
    %v1910 = vmul.f32 %v1909, %v1908
    %v1911 = vmul.f32 0.5, %v1910
    %v1912 = vsub.f32 1.5, %v1911
    %v1913 = vmul.f32 %v1908, %v1912
    %vm1914 = vweird.f32 %v1824
    %vm1915 = vweird.f32 %v1908
    %vm1916 = vmor %vm1914, %vm1915
    %v1917 = vsel %vm1916, %v1908, %v1913
    %v1918 = vrsqrt.pop %v1825
    %v1919 = vmul.f32 %v1918, %v1825
    %v1920 = vmul.f32 %v1919, %v1918
    %v1921 = vmul.f32 0.5, %v1920
    %v1922 = vsub.f32 1.5, %v1921
    %v1923 = vmul.f32 %v1918, %v1922
    %vm1924 = vweird.f32 %v1825
    %vm1925 = vweird.f32 %v1918
    %vm1926 = vmor %vm1924, %vm1925
    %v1927 = vsel %vm1926, %v1918, %v1923
    %v1928 = vrsqrt.pop %v1826
    %v1929 = vmul.f32 %v1928, %v1826
    %v1930 = vmul.f32 %v1929, %v1928
    %v1931 = vmul.f32 0.5, %v1930
    %v1932 = vsub.f32 1.5, %v1931
    %v1933 = vmul.f32 %v1928, %v1932
    %vm1934 = vweird.f32 %v1826
    %vm1935 = vweird.f32 %v1928
    %vm1936 = vmor %vm1934, %vm1935
    %v1937 = vsel %vm1936, %v1928, %v1933
    %v1938 = vrsqrt.pop %v1827
    %v1939 = vmul.f32 %v1938, %v1827
    %v1940 = vmul.f32 %v1939, %v1938
    %v1941 = vmul.f32 0.5, %v1940
    %v1942 = vsub.f32 1.5, %v1941
    %v1943 = vmul.f32 %v1938, %v1942
    %vm1944 = vweird.f32 %v1827
    %vm1945 = vweird.f32 %v1938
    %vm1946 = vmor %vm1944, %vm1945
    %v1947 = vsel %vm1946, %v1938, %v1943
    %v1948 = vrsqrt.pop %v1828
    %v1949 = vmul.f32 %v1948, %v1828
    %v1950 = vmul.f32 %v1949, %v1948
    %v1951 = vmul.f32 0.5, %v1950
    %v1952 = vsub.f32 1.5, %v1951
    %v1953 = vmul.f32 %v1948, %v1952
    %vm1954 = vweird.f32 %v1828
    %vm1955 = vweird.f32 %v1948
    %vm1956 = vmor %vm1954, %vm1955
    %v1957 = vsel %vm1956, %v1948, %v1953
    %v1958 = vrsqrt.pop %v1829
    %v1959 = vmul.f32 %v1958, %v1829
    %v1960 = vmul.f32 %v1959, %v1958
    %v1961 = vmul.f32 0.5, %v1960
    %v1962 = vsub.f32 1.5, %v1961
    %v1963 = vmul.f32 %v1958, %v1962
    %vm1964 = vweird.f32 %v1829
    %vm1965 = vweird.f32 %v1958
    %vm1966 = vmor %vm1964, %vm1965
    %v1967 = vsel %vm1966, %v1958, %v1963
    %v1968 = vrsqrt.pop %v1830
    %v1969 = vmul.f32 %v1968, %v1830
    %v1970 = vmul.f32 %v1969, %v1968
    %v1971 = vmul.f32 0.5, %v1970
    %v1972 = vsub.f32 1.5, %v1971
    %v1973 = vmul.f32 %v1968, %v1972
    %vm1974 = vweird.f32 %v1830
    %vm1975 = vweird.f32 %v1968
    %vm1976 = vmor %vm1974, %vm1975
    %v1977 = vsel %vm1976, %v1968, %v1973
    %v1978 = vrsqrt.pop %v1831
    %v1979 = vmul.f32 %v1978, %v1831
    %v1980 = vmul.f32 %v1979, %v1978
    %v1981 = vmul.f32 0.5, %v1980
    %v1982 = vsub.f32 1.5, %v1981
    %v1983 = vmul.f32 %v1978, %v1982
    %vm1984 = vweird.f32 %v1831
    %vm1985 = vweird.f32 %v1978
    %vm1986 = vmor %vm1984, %vm1985
    %v1987 = vsel %vm1986, %v1978, %v1983
    %v1988 = vrsqrt.pop %v1832
    %v1989 = vmul.f32 %v1988, %v1832
    %v1990 = vmul.f32 %v1989, %v1988
    %v1991 = vmul.f32 0.5, %v1990
    %v1992 = vsub.f32 1.5, %v1991
    %v1993 = vmul.f32 %v1988, %v1992
    %vm1994 = vweird.f32 %v1832
    %vm1995 = vweird.f32 %v1988
    %vm1996 = vmor %vm1994, %vm1995
    %v1997 = vsel %vm1996, %v1988, %v1993
    %v1998 = vrsqrt.pop %v1833
    %v1999 = vmul.f32 %v1998, %v1833
    %v2000 = vmul.f32 %v1999, %v1998
    %v2001 = vmul.f32 0.5, %v2000
    %v2002 = vsub.f32 1.5, %v2001
    %v2003 = vmul.f32 %v1998, %v2002
    %vm2004 = vweird.f32 %v1833
    %vm2005 = vweird.f32 %v1998
    %vm2006 = vmor %vm2004, %vm2005
    %v2007 = vsel %vm2006, %v1998, %v2003
    %v2008 = vrsqrt.pop %v1834
    %v2009 = vmul.f32 %v2008, %v1834
    %v2010 = vmul.f32 %v2009, %v2008
    %v2011 = vmul.f32 0.5, %v2010
    %v2012 = vsub.f32 1.5, %v2011
    %v2013 = vmul.f32 %v2008, %v2012
    %vm2014 = vweird.f32 %v1834
    %vm2015 = vweird.f32 %v2008
    %vm2016 = vmor %vm2014, %vm2015
    %v2017 = vsel %vm2016, %v2008, %v2013
    %v2018 = vrsqrt.pop %v1835
    %v2019 = vmul.f32 %v2018, %v1835
    %v2020 = vmul.f32 %v2019, %v2018
    %v2021 = vmul.f32 0.5, %v2020
    %v2022 = vsub.f32 1.5, %v2021
    %v2023 = vmul.f32 %v2018, %v2022
    %vm2024 = vweird.f32 %v1835
    %vm2025 = vweird.f32 %v2018
    %vm2026 = vmor %vm2024, %vm2025
    %v2027 = vsel %vm2026, %v2018, %v2023
    %v2028 = vrsqrt.pop %v1836
    %v2029 = vmul.f32 %v2028, %v1836
    %v2030 = vmul.f32 %v2029, %v2028
    %v2031 = vmul.f32 0.5, %v2030
    %v2032 = vsub.f32 1.5, %v2031
    %v2033 = vmul.f32 %v2028, %v2032
    %vm2034 = vweird.f32 %v1836
    %vm2035 = vweird.f32 %v2028
    %vm2036 = vmor %vm2034, %vm2035
    %v2037 = vsel %vm2036, %v2028, %v2033
    %v2038 = vrsqrt.pop %v1837
    %v2039 = vmul.f32 %v2038, %v1837
    %v2040 = vmul.f32 %v2039, %v2038
    %v2041 = vmul.f32 0.5, %v2040
    %v2042 = vsub.f32 1.5, %v2041
    %v2043 = vmul.f32 %v2038, %v2042
    %vm2044 = vweird.f32 %v1837
    %vm2045 = vweird.f32 %v2038
    %vm2046 = vmor %vm2044, %vm2045
    %v2047 = vsel %vm2046, %v2038, %v2043
    %v2048 = vrsqrt.pop %v1838
    %v2049 = vmul.f32 %v2048, %v1838
    %v2050 = vmul.f32 %v2049, %v2048
    %v2051 = vmul.f32 0.5, %v2050
    %v2052 = vsub.f32 1.5, %v2051
    %v2053 = vmul.f32 %v2048, %v2052
    %vm2054 = vweird.f32 %v1838
    %vm2055 = vweird.f32 %v2048
    %vm2056 = vmor %vm2054, %vm2055
    %v2057 = vsel %vm2056, %v2048, %v2053
    %v2058 = vrsqrt.pop %v1839
    %v2059 = vmul.f32 %v2058, %v1839
    %v2060 = vmul.f32 %v2059, %v2058
    %v2061 = vmul.f32 0.5, %v2060
    %v2062 = vsub.f32 1.5, %v2061
    %v2063 = vmul.f32 %v2058, %v2062
    %vm2064 = vweird.f32 %v1839
    %vm2065 = vweird.f32 %v2058
    %vm2066 = vmor %vm2064, %vm2065
    %v2067 = vsel %vm2066, %v2058, %v2063
    %v2068 = vrsqrt.pop %v1840
    %v2069 = vmul.f32 %v2068, %v1840
    %v2070 = vmul.f32 %v2069, %v2068
    %v2071 = vmul.f32 0.5, %v2070
    %v2072 = vsub.f32 1.5, %v2071
    %v2073 = vmul.f32 %v2068, %v2072
    %vm2074 = vweird.f32 %v1840
    %vm2075 = vweird.f32 %v2068
    %vm2076 = vmor %vm2074, %vm2075
    %v2077 = vsel %vm2076, %v2068, %v2073
    %v2078 = vrsqrt.pop %v1841
    %v2079 = vmul.f32 %v2078, %v1841
    %v2080 = vmul.f32 %v2079, %v2078
    %v2081 = vmul.f32 0.5, %v2080
    %v2082 = vsub.f32 1.5, %v2081
    %v2083 = vmul.f32 %v2078, %v2082
    %vm2084 = vweird.f32 %v1841
    %vm2085 = vweird.f32 %v2078
    %vm2086 = vmor %vm2084, %vm2085
    %v2087 = vsel %vm2086, %v2078, %v2083
    %v2088 = vrsqrt.pop %v1842
    %v2089 = vmul.f32 %v2088, %v1842
    %v2090 = vmul.f32 %v2089, %v2088
    %v2091 = vmul.f32 0.5, %v2090
    %v2092 = vsub.f32 1.5, %v2091
    %v2093 = vmul.f32 %v2088, %v2092
    %vm2094 = vweird.f32 %v1842
    %vm2095 = vweird.f32 %v2088
    %vm2096 = vmor %vm2094, %vm2095
    %v2097 = vsel %vm2096, %v2088, %v2093
    %v2098 = vrsqrt.pop %v1843
    %v2099 = vmul.f32 %v2098, %v1843
    %v2100 = vmul.f32 %v2099, %v2098
    %v2101 = vmul.f32 0.5, %v2100
    %v2102 = vsub.f32 1.5, %v2101
    %v2103 = vmul.f32 %v2098, %v2102
    %vm2104 = vweird.f32 %v1843
    %vm2105 = vweird.f32 %v2098
    %vm2106 = vmor %vm2104, %vm2105
    %v2107 = vsel %vm2106, %v2098, %v2103
    %v2108 = vrsqrt.pop %v1844
    %v2109 = vmul.f32 %v2108, %v1844
    %v2110 = vmul.f32 %v2109, %v2108
    %v2111 = vmul.f32 0.5, %v2110
    %v2112 = vsub.f32 1.5, %v2111
    %v2113 = vmul.f32 %v2108, %v2112
    %vm2114 = vweird.f32 %v1844
    %vm2115 = vweird.f32 %v2108
    %vm2116 = vmor %vm2114, %vm2115
    %v2117 = vsel %vm2116, %v2108, %v2113
    %v2118 = vrsqrt.pop %v1845
    %v2119 = vmul.f32 %v2118, %v1845
    %v2120 = vmul.f32 %v2119, %v2118
    %v2121 = vmul.f32 0.5, %v2120
    %v2122 = vsub.f32 1.5, %v2121
    %v2123 = vmul.f32 %v2118, %v2122
    %vm2124 = vweird.f32 %v1845
    %vm2125 = vweird.f32 %v2118
    %vm2126 = vmor %vm2124, %vm2125
    %v2127 = vsel %vm2126, %v2118, %v2123
    %v2128 = vrsqrt.pop %v1846
    %v2129 = vmul.f32 %v2128, %v1846
    %v2130 = vmul.f32 %v2129, %v2128
    %v2131 = vmul.f32 0.5, %v2130
    %v2132 = vsub.f32 1.5, %v2131
    %v2133 = vmul.f32 %v2128, %v2132
    %vm2134 = vweird.f32 %v1846
    %vm2135 = vweird.f32 %v2128
    %vm2136 = vmor %vm2134, %vm2135
    %v2137 = vsel %vm2136, %v2128, %v2133
    %v2138 = vrsqrt.pop %v1847
    %v2139 = vmul.f32 %v2138, %v1847
    %v2140 = vmul.f32 %v2139, %v2138
    %v2141 = vmul.f32 0.5, %v2140
    %v2142 = vsub.f32 1.5, %v2141
    %v2143 = vmul.f32 %v2138, %v2142
    %vm2144 = vweird.f32 %v1847
    %vm2145 = vweird.f32 %v2138
    %vm2146 = vmor %vm2144, %vm2145
    %v2147 = vsel %vm2146, %v2138, %v2143
    %v2148 = vrsqrt.pop %v1848
    %v2149 = vmul.f32 %v2148, %v1848
    %v2150 = vmul.f32 %v2149, %v2148
    %v2151 = vmul.f32 0.5, %v2150
    %v2152 = vsub.f32 1.5, %v2151
    %v2153 = vmul.f32 %v2148, %v2152
    %vm2154 = vweird.f32 %v1848
    %vm2155 = vweird.f32 %v2148
    %vm2156 = vmor %vm2154, %vm2155
    %v2157 = vsel %vm2156, %v2148, %v2153
    %v2158 = vrsqrt.pop %v1849
    %v2159 = vmul.f32 %v2158, %v1849
    %v2160 = vmul.f32 %v2159, %v2158
    %v2161 = vmul.f32 0.5, %v2160
    %v2162 = vsub.f32 1.5, %v2161
    %v2163 = vmul.f32 %v2158, %v2162
    %vm2164 = vweird.f32 %v1849
    %vm2165 = vweird.f32 %v2158
    %vm2166 = vmor %vm2164, %vm2165
    %v2167 = vsel %vm2166, %v2158, %v2163
    %v2168 = vrsqrt.pop %v1850
    %v2169 = vmul.f32 %v2168, %v1850
    %v2170 = vmul.f32 %v2169, %v2168
    %v2171 = vmul.f32 0.5, %v2170
    %v2172 = vsub.f32 1.5, %v2171
    %v2173 = vmul.f32 %v2168, %v2172
    %vm2174 = vweird.f32 %v1850
    %vm2175 = vweird.f32 %v2168
    %vm2176 = vmor %vm2174, %vm2175
    %v2177 = vsel %vm2176, %v2168, %v2173
    %v2178 = vrsqrt.pop %v1851
    %v2179 = vmul.f32 %v2178, %v1851
    %v2180 = vmul.f32 %v2179, %v2178
    %v2181 = vmul.f32 0.5, %v2180
    %v2182 = vsub.f32 1.5, %v2181
    %v2183 = vmul.f32 %v2178, %v2182
    %vm2184 = vweird.f32 %v1851
    %vm2185 = vweird.f32 %v2178
    %vm2186 = vmor %vm2184, %vm2185
    %v2187 = vsel %vm2186, %v2178, %v2183
    %v2188 = vrsqrt.pop %v1852
    %v2189 = vmul.f32 %v2188, %v1852
    %v2190 = vmul.f32 %v2189, %v2188
    %v2191 = vmul.f32 0.5, %v2190
    %v2192 = vsub.f32 1.5, %v2191
    %v2193 = vmul.f32 %v2188, %v2192
    %vm2194 = vweird.f32 %v1852
    %vm2195 = vweird.f32 %v2188
    %vm2196 = vmor %vm2194, %vm2195
    %v2197 = vsel %vm2196, %v2188, %v2193
    %v2198 = vrsqrt.pop %v1853
    %v2199 = vmul.f32 %v2198, %v1853
    %v2200 = vmul.f32 %v2199, %v2198
    %v2201 = vmul.f32 0.5, %v2200
    %v2202 = vsub.f32 1.5, %v2201
    %v2203 = vmul.f32 %v2198, %v2202
    %vm2204 = vweird.f32 %v1853
    %vm2205 = vweird.f32 %v2198
    %vm2206 = vmor %vm2204, %vm2205
    %v2207 = vsel %vm2206, %v2198, %v2203
    %v2208 = vrsqrt.pop %v1854
    %v2209 = vmul.f32 %v2208, %v1854
    %v2210 = vmul.f32 %v2209, %v2208
    %v2211 = vmul.f32 0.5, %v2210
    %v2212 = vsub.f32 1.5, %v2211
    %v2213 = vmul.f32 %v2208, %v2212
    %vm2214 = vweird.f32 %v1854
    %vm2215 = vweird.f32 %v2208
    %vm2216 = vmor %vm2214, %vm2215
    %v2217 = vsel %vm2216, %v2208, %v2213
    %v2218 = vrsqrt.pop %v1855
    %v2219 = vmul.f32 %v2218, %v1855
    %v2220 = vmul.f32 %v2219, %v2218
    %v2221 = vmul.f32 0.5, %v2220
    %v2222 = vsub.f32 1.5, %v2221
    %v2223 = vmul.f32 %v2218, %v2222
    %vm2224 = vweird.f32 %v1855
    %vm2225 = vweird.f32 %v2218
    %vm2226 = vmor %vm2224, %vm2225
    %v2227 = vsel %vm2226, %v2218, %v2223
    %v2228 = vrsqrt.pop %v1856
    %v2229 = vmul.f32 %v2228, %v1856
    %v2230 = vmul.f32 %v2229, %v2228
    %v2231 = vmul.f32 0.5, %v2230
    %v2232 = vsub.f32 1.5, %v2231
    %v2233 = vmul.f32 %v2228, %v2232
    %vm2234 = vweird.f32 %v1856
    %vm2235 = vweird.f32 %v2228
    %vm2236 = vmor %vm2234, %vm2235
    %v2237 = vsel %vm2236, %v2228, %v2233
    %v2238 = vrsqrt.pop %v1857
    %v2239 = vmul.f32 %v2238, %v1857
    %v2240 = vmul.f32 %v2239, %v2238
    %v2241 = vmul.f32 0.5, %v2240
    %v2242 = vsub.f32 1.5, %v2241
    %v2243 = vmul.f32 %v2238, %v2242
    %vm2244 = vweird.f32 %v1857
    %vm2245 = vweird.f32 %v2238
    %vm2246 = vmor %vm2244, %vm2245
    %v2247 = vsel %vm2246, %v2238, %v2243
    %v2248 = vrsqrt.pop %v1858
    %v2249 = vmul.f32 %v2248, %v1858
    %v2250 = vmul.f32 %v2249, %v2248
    %v2251 = vmul.f32 0.5, %v2250
    %v2252 = vsub.f32 1.5, %v2251
    %v2253 = vmul.f32 %v2248, %v2252
    %vm2254 = vweird.f32 %v1858
    %vm2255 = vweird.f32 %v2248
    %vm2256 = vmor %vm2254, %vm2255
    %v2257 = vsel %vm2256, %v2248, %v2253
    %v2258 = vrsqrt.pop %v1859
    %v2259 = vmul.f32 %v2258, %v1859
    %v2260 = vmul.f32 %v2259, %v2258
    %v2261 = vmul.f32 0.5, %v2260
    %v2262 = vsub.f32 1.5, %v2261
    %v2263 = vmul.f32 %v2258, %v2262
    %vm2264 = vweird.f32 %v1859
    %vm2265 = vweird.f32 %v2258
    %vm2266 = vmor %vm2264, %vm2265
    %v2267 = vsel %vm2266, %v2258, %v2263
    %v2268 = vrsqrt.pop %v1860
    %v2269 = vmul.f32 %v2268, %v1860
    %v2270 = vmul.f32 %v2269, %v2268
    %v2271 = vmul.f32 0.5, %v2270
    %v2272 = vsub.f32 1.5, %v2271
    %v2273 = vmul.f32 %v2268, %v2272
    %vm2274 = vweird.f32 %v1860
    %vm2275 = vweird.f32 %v2268
    %vm2276 = vmor %vm2274, %vm2275
    %v2277 = vsel %vm2276, %v2268, %v2273
    %v2278 = vrsqrt.pop %v1861
    %v2279 = vmul.f32 %v2278, %v1861
    %v2280 = vmul.f32 %v2279, %v2278
    %v2281 = vmul.f32 0.5, %v2280
    %v2282 = vsub.f32 1.5, %v2281
    %v2283 = vmul.f32 %v2278, %v2282
    %vm2284 = vweird.f32 %v1861
    %vm2285 = vweird.f32 %v2278
    %vm2286 = vmor %vm2284, %vm2285
    %v2287 = vsel %vm2286, %v2278, %v2283
    %v2288 = vrsqrt.pop %v1862
    %v2289 = vmul.f32 %v2288, %v1862
    %v2290 = vmul.f32 %v2289, %v2288
    %v2291 = vmul.f32 0.5, %v2290
    %v2292 = vsub.f32 1.5, %v2291
    %v2293 = vmul.f32 %v2288, %v2292
    %vm2294 = vweird.f32 %v1862
    %vm2295 = vweird.f32 %v2288
    %vm2296 = vmor %vm2294, %vm2295
    %v2297 = vsel %vm2296, %v2288, %v2293
    %v2298 = vrsqrt.pop %v1863
    %v2299 = vmul.f32 %v2298, %v1863
    %v2300 = vmul.f32 %v2299, %v2298
    %v2301 = vmul.f32 0.5, %v2300
    %v2302 = vsub.f32 1.5, %v2301
    %v2303 = vmul.f32 %v2298, %v2302
    %vm2304 = vweird.f32 %v1863
    %vm2305 = vweird.f32 %v2298
    %vm2306 = vmor %vm2304, %vm2305
    %v2307 = vsel %vm2306, %v2298, %v2303
    %v2308 = vrsqrt.pop %v1864
    %v2309 = vmul.f32 %v2308, %v1864
    %v2310 = vmul.f32 %v2309, %v2308
    %v2311 = vmul.f32 0.5, %v2310
    %v2312 = vsub.f32 1.5, %v2311
    %v2313 = vmul.f32 %v2308, %v2312
    %vm2314 = vweird.f32 %v1864
    %vm2315 = vweird.f32 %v2308
    %vm2316 = vmor %vm2314, %vm2315
    %v2317 = vsel %vm2316, %v2308, %v2313
    %v2318 = vrsqrt.pop %v1865
    %v2319 = vmul.f32 %v2318, %v1865
    %v2320 = vmul.f32 %v2319, %v2318
    %v2321 = vmul.f32 0.5, %v2320
    %v2322 = vsub.f32 1.5, %v2321
    %v2323 = vmul.f32 %v2318, %v2322
    %vm2324 = vweird.f32 %v1865
    %vm2325 = vweird.f32 %v2318
    %vm2326 = vmor %vm2324, %vm2325
    %v2327 = vsel %vm2326, %v2318, %v2323
    %v2328 = vrsqrt.pop %v1866
    %v2329 = vmul.f32 %v2328, %v1866
    %v2330 = vmul.f32 %v2329, %v2328
    %v2331 = vmul.f32 0.5, %v2330
    %v2332 = vsub.f32 1.5, %v2331
    %v2333 = vmul.f32 %v2328, %v2332
    %vm2334 = vweird.f32 %v1866
    %vm2335 = vweird.f32 %v2328
    %vm2336 = vmor %vm2334, %vm2335
    %v2337 = vsel %vm2336, %v2328, %v2333
    %v2338 = vrsqrt.pop %v1867
    %v2339 = vmul.f32 %v2338, %v1867
    %v2340 = vmul.f32 %v2339, %v2338
    %v2341 = vmul.f32 0.5, %v2340
    %v2342 = vsub.f32 1.5, %v2341
    %v2343 = vmul.f32 %v2338, %v2342
    %vm2344 = vweird.f32 %v1867
    %vm2345 = vweird.f32 %v2338
    %vm2346 = vmor %vm2344, %vm2345
    %v2347 = vsel %vm2346, %v2338, %v2343
    %v2348 = vmul.f32 %v1532, %v1877
    %v2349 = vmul.f32 %v1533, %v1887
    %v2350 = vmul.f32 %v1534, %v1897
    %v2351 = vmul.f32 %v1535, %v1907
    %v2352 = vmul.f32 %v1536, %v1917
    %v2353 = vmul.f32 %v1537, %v1927
    %v2354 = vmul.f32 %v1538, %v1937
    %v2355 = vmul.f32 %v1539, %v1947
    %v2356 = vmul.f32 %v1540, %v1957
    %v2357 = vmul.f32 %v1541, %v1967
    %v2358 = vmul.f32 %v1542, %v1977
    %v2359 = vmul.f32 %v1543, %v1987
    %v2360 = vmul.f32 %v1544, %v1997
    %v2361 = vmul.f32 %v1545, %v2007
    %v2362 = vmul.f32 %v1546, %v2017
    %v2363 = vmul.f32 %v1547, %v2027
    %v2364 = vmul.f32 %v1548, %v2037
    %v2365 = vmul.f32 %v1549, %v2047
    %v2366 = vmul.f32 %v1550, %v2057
    %v2367 = vmul.f32 %v1551, %v2067
    %v2368 = vmul.f32 %v1552, %v2077
    %v2369 = vmul.f32 %v1553, %v2087
    %v2370 = vmul.f32 %v1554, %v2097
    %v2371 = vmul.f32 %v1555, %v2107
    %v2372 = vmul.f32 %v1556, %v2117
    %v2373 = vmul.f32 %v1557, %v2127
    %v2374 = vmul.f32 %v1558, %v2137
    %v2375 = vmul.f32 %v1559, %v2147
    %v2376 = vmul.f32 %v1560, %v2157
    %v2377 = vmul.f32 %v1561, %v2167
    %v2378 = vmul.f32 %v1562, %v2177
    %v2379 = vmul.f32 %v1563, %v2187
    %v2380 = vmul.f32 %v1564, %v2197
    %v2381 = vmul.f32 %v1565, %v2207
    %v2382 = vmul.f32 %v1566, %v2217
    %v2383 = vmul.f32 %v1567, %v2227
    %v2384 = vmul.f32 %v1568, %v2237
    %v2385 = vmul.f32 %v1569, %v2247
    %v2386 = vmul.f32 %v1570, %v2257
    %v2387 = vmul.f32 %v1571, %v2267
    %v2388 = vmul.f32 %v1572, %v2277
    %v2389 = vmul.f32 %v1573, %v2287
    %v2390 = vmul.f32 %v1574, %v2297
    %v2391 = vmul.f32 %v1575, %v2307
    %v2392 = vmul.f32 %v1576, %v2317
    %v2393 = vmul.f32 %v1577, %v2327
    %v2394 = vmul.f32 %v1578, %v2337
    %v2395 = vmul.f32 %v1579, %v2347
    %v2396 = vperm.slane %v852, 0
    %v2397 = vmul.f32 %v2348, %v2396
    %v2398 = vmul.f32 %v2349, %v2396
    %v2399 = vmul.f32 %v2350, %v2396
    %v2400 = vmul.f32 %v2351, %v2396
    %v2401 = vmul.f32 %v2352, %v2396
    %v2402 = vmul.f32 %v2353, %v2396
    %v2403 = vmul.f32 %v2354, %v2396
    %v2404 = vmul.f32 %v2355, %v2396
    %v2405 = vmul.f32 %v2356, %v2396
    %v2406 = vmul.f32 %v2357, %v2396
    %v2407 = vmul.f32 %v2358, %v2396
    %v2408 = vmul.f32 %v2359, %v2396
    %v2409 = vmul.f32 %v2360, %v2396
    %v2410 = vmul.f32 %v2361, %v2396
    %v2411 = vmul.f32 %v2362, %v2396
    %v2412 = vmul.f32 %v2363, %v2396
    %v2413 = vmul.f32 %v2364, %v2396
    %v2414 = vmul.f32 %v2365, %v2396
    %v2415 = vmul.f32 %v2366, %v2396
    %v2416 = vmul.f32 %v2367, %v2396
    %v2417 = vmul.f32 %v2368, %v2396
    %v2418 = vmul.f32 %v2369, %v2396
    %v2419 = vmul.f32 %v2370, %v2396
    %v2420 = vmul.f32 %v2371, %v2396
    %v2421 = vmul.f32 %v2372, %v2396
    %v2422 = vmul.f32 %v2373, %v2396
    %v2423 = vmul.f32 %v2374, %v2396
    %v2424 = vmul.f32 %v2375, %v2396
    %v2425 = vmul.f32 %v2376, %v2396
    %v2426 = vmul.f32 %v2377, %v2396
    %v2427 = vmul.f32 %v2378, %v2396
    %v2428 = vmul.f32 %v2379, %v2396
    %v2429 = vmul.f32 %v2380, %v2396
    %v2430 = vmul.f32 %v2381, %v2396
    %v2431 = vmul.f32 %v2382, %v2396
    %v2432 = vmul.f32 %v2383, %v2396
    %v2433 = vmul.f32 %v2384, %v2396
    %v2434 = vmul.f32 %v2385, %v2396
    %v2435 = vmul.f32 %v2386, %v2396
    %v2436 = vmul.f32 %v2387, %v2396
    %v2437 = vmul.f32 %v2388, %v2396
    %v2438 = vmul.f32 %v2389, %v2396
    %v2439 = vmul.f32 %v2390, %v2396
    %v2440 = vmul.f32 %v2391, %v2396
    %v2441 = vmul.f32 %v2392, %v2396
    %v2442 = vmul.f32 %v2393, %v2396
    %v2443 = vmul.f32 %v2394, %v2396
    %v2444 = vmul.f32 %v2395, %v2396
    %v2445 = vperm.slane %v853, 0
    %v2446 = vadd.f32 %v2397, %v2445
    %v2447 = vadd.f32 %v2398, %v2445
    %v2448 = vadd.f32 %v2399, %v2445
    %v2449 = vadd.f32 %v2400, %v2445
    %v2450 = vadd.f32 %v2401, %v2445
    %v2451 = vadd.f32 %v2402, %v2445
    %v2452 = vadd.f32 %v2403, %v2445
    %v2453 = vadd.f32 %v2404, %v2445
    %v2454 = vadd.f32 %v2405, %v2445
    %v2455 = vadd.f32 %v2406, %v2445
    %v2456 = vadd.f32 %v2407, %v2445
    %v2457 = vadd.f32 %v2408, %v2445
    %v2458 = vadd.f32 %v2409, %v2445
    %v2459 = vadd.f32 %v2410, %v2445
    %v2460 = vadd.f32 %v2411, %v2445
    %v2461 = vadd.f32 %v2412, %v2445
    %v2462 = vadd.f32 %v2413, %v2445
    %v2463 = vadd.f32 %v2414, %v2445
    %v2464 = vadd.f32 %v2415, %v2445
    %v2465 = vadd.f32 %v2416, %v2445
    %v2466 = vadd.f32 %v2417, %v2445
    %v2467 = vadd.f32 %v2418, %v2445
    %v2468 = vadd.f32 %v2419, %v2445
    %v2469 = vadd.f32 %v2420, %v2445
    %v2470 = vadd.f32 %v2421, %v2445
    %v2471 = vadd.f32 %v2422, %v2445
    %v2472 = vadd.f32 %v2423, %v2445
    %v2473 = vadd.f32 %v2424, %v2445
    %v2474 = vadd.f32 %v2425, %v2445
    %v2475 = vadd.f32 %v2426, %v2445
    %v2476 = vadd.f32 %v2427, %v2445
    %v2477 = vadd.f32 %v2428, %v2445
    %v2478 = vadd.f32 %v2429, %v2445
    %v2479 = vadd.f32 %v2430, %v2445
    %v2480 = vadd.f32 %v2431, %v2445
    %v2481 = vadd.f32 %v2432, %v2445
    %v2482 = vadd.f32 %v2433, %v2445
    %v2483 = vadd.f32 %v2434, %v2445
    %v2484 = vadd.f32 %v2435, %v2445
    %v2485 = vadd.f32 %v2436, %v2445
    %v2486 = vadd.f32 %v2437, %v2445
    %v2487 = vadd.f32 %v2438, %v2445
    %v2488 = vadd.f32 %v2439, %v2445
    %v2489 = vadd.f32 %v2440, %v2445
    %v2490 = vadd.f32 %v2441, %v2445
    %v2491 = vadd.f32 %v2442, %v2445
    %v2492 = vadd.f32 %v2443, %v2445
    %v2493 = vadd.f32 %v2444, %v2445
    %v2494 = vmul.f32 %v2446, %v2446
    %v2495 = vmul.f32 %v2447, %v2447
    %v2496 = vmul.f32 %v2448, %v2448
    %v2497 = vmul.f32 %v2449, %v2449
    %v2498 = vmul.f32 %v2450, %v2450
    %v2499 = vmul.f32 %v2451, %v2451
    %v2500 = vmul.f32 %v2452, %v2452
    %v2501 = vmul.f32 %v2453, %v2453
    %v2502 = vmul.f32 %v2454, %v2454
    %v2503 = vmul.f32 %v2455, %v2455
    %v2504 = vmul.f32 %v2456, %v2456
    %v2505 = vmul.f32 %v2457, %v2457
    %v2506 = vmul.f32 %v2458, %v2458
    %v2507 = vmul.f32 %v2459, %v2459
    %v2508 = vmul.f32 %v2460, %v2460
    %v2509 = vmul.f32 %v2461, %v2461
    %v2510 = vmul.f32 %v2462, %v2462
    %v2511 = vmul.f32 %v2463, %v2463
    %v2512 = vmul.f32 %v2464, %v2464
    %v2513 = vmul.f32 %v2465, %v2465
    %v2514 = vmul.f32 %v2466, %v2466
    %v2515 = vmul.f32 %v2467, %v2467
    %v2516 = vmul.f32 %v2468, %v2468
    %v2517 = vmul.f32 %v2469, %v2469
    %v2518 = vmul.f32 %v2470, %v2470
    %v2519 = vmul.f32 %v2471, %v2471
    %v2520 = vmul.f32 %v2472, %v2472
    %v2521 = vmul.f32 %v2473, %v2473
    %v2522 = vmul.f32 %v2474, %v2474
    %v2523 = vmul.f32 %v2475, %v2475
    %v2524 = vmul.f32 %v2476, %v2476
    %v2525 = vmul.f32 %v2477, %v2477
    %v2526 = vmul.f32 %v2478, %v2478
    %v2527 = vmul.f32 %v2479, %v2479
    %v2528 = vmul.f32 %v2480, %v2480
    %v2529 = vmul.f32 %v2481, %v2481
    %v2530 = vmul.f32 %v2482, %v2482
    %v2531 = vmul.f32 %v2483, %v2483
    %v2532 = vmul.f32 %v2484, %v2484
    %v2533 = vmul.f32 %v2485, %v2485
    %v2534 = vmul.f32 %v2486, %v2486
    %v2535 = vmul.f32 %v2487, %v2487
    %v2536 = vmul.f32 %v2488, %v2488
    %v2537 = vmul.f32 %v2489, %v2489
    %v2538 = vmul.f32 %v2490, %v2490
    %v2539 = vmul.f32 %v2491, %v2491
    %v2540 = vmul.f32 %v2492, %v2492
    %v2541 = vmul.f32 %v2493, %v2493
    %v2542 = vmul.f32 %v2446, %v2494
    %v2543 = vmul.f32 %v2447, %v2495
    %v2544 = vmul.f32 %v2448, %v2496
    %v2545 = vmul.f32 %v2449, %v2497
    %v2546 = vmul.f32 %v2450, %v2498
    %v2547 = vmul.f32 %v2451, %v2499
    %v2548 = vmul.f32 %v2452, %v2500
    %v2549 = vmul.f32 %v2453, %v2501
    %v2550 = vmul.f32 %v2454, %v2502
    %v2551 = vmul.f32 %v2455, %v2503
    %v2552 = vmul.f32 %v2456, %v2504
    %v2553 = vmul.f32 %v2457, %v2505
    %v2554 = vmul.f32 %v2458, %v2506
    %v2555 = vmul.f32 %v2459, %v2507
    %v2556 = vmul.f32 %v2460, %v2508
    %v2557 = vmul.f32 %v2461, %v2509
    %v2558 = vmul.f32 %v2462, %v2510
    %v2559 = vmul.f32 %v2463, %v2511
    %v2560 = vmul.f32 %v2464, %v2512
    %v2561 = vmul.f32 %v2465, %v2513
    %v2562 = vmul.f32 %v2466, %v2514
    %v2563 = vmul.f32 %v2467, %v2515
    %v2564 = vmul.f32 %v2468, %v2516
    %v2565 = vmul.f32 %v2469, %v2517
    %v2566 = vmul.f32 %v2470, %v2518
    %v2567 = vmul.f32 %v2471, %v2519
    %v2568 = vmul.f32 %v2472, %v2520
    %v2569 = vmul.f32 %v2473, %v2521
    %v2570 = vmul.f32 %v2474, %v2522
    %v2571 = vmul.f32 %v2475, %v2523
    %v2572 = vmul.f32 %v2476, %v2524
    %v2573 = vmul.f32 %v2477, %v2525
    %v2574 = vmul.f32 %v2478, %v2526
    %v2575 = vmul.f32 %v2479, %v2527
    %v2576 = vmul.f32 %v2480, %v2528
    %v2577 = vmul.f32 %v2481, %v2529
    %v2578 = vmul.f32 %v2482, %v2530
    %v2579 = vmul.f32 %v2483, %v2531
    %v2580 = vmul.f32 %v2484, %v2532
    %v2581 = vmul.f32 %v2485, %v2533
    %v2582 = vmul.f32 %v2486, %v2534
    %v2583 = vmul.f32 %v2487, %v2535
    %v2584 = vmul.f32 %v2488, %v2536
    %v2585 = vmul.f32 %v2489, %v2537
    %v2586 = vmul.f32 %v2490, %v2538
    %v2587 = vmul.f32 %v2491, %v2539
    %v2588 = vmul.f32 %v2492, %v2540
    %v2589 = vmul.f32 %v2493, %v2541
    %v2590 = vmul.f32 %v2542, 0.044715
    %v2591 = vmul.f32 %v2543, 0.044715
    %v2592 = vmul.f32 %v2544, 0.044715
    %v2593 = vmul.f32 %v2545, 0.044715
    %v2594 = vmul.f32 %v2546, 0.044715
    %v2595 = vmul.f32 %v2547, 0.044715
    %v2596 = vmul.f32 %v2548, 0.044715
    %v2597 = vmul.f32 %v2549, 0.044715
    %v2598 = vmul.f32 %v2550, 0.044715
    %v2599 = vmul.f32 %v2551, 0.044715
    %v2600 = vmul.f32 %v2552, 0.044715
    %v2601 = vmul.f32 %v2553, 0.044715
    %v2602 = vmul.f32 %v2554, 0.044715
    %v2603 = vmul.f32 %v2555, 0.044715
    %v2604 = vmul.f32 %v2556, 0.044715
    %v2605 = vmul.f32 %v2557, 0.044715
    %v2606 = vmul.f32 %v2558, 0.044715
    %v2607 = vmul.f32 %v2559, 0.044715
    %v2608 = vmul.f32 %v2560, 0.044715
    %v2609 = vmul.f32 %v2561, 0.044715
    %v2610 = vmul.f32 %v2562, 0.044715
    %v2611 = vmul.f32 %v2563, 0.044715
    %v2612 = vmul.f32 %v2564, 0.044715
    %v2613 = vmul.f32 %v2565, 0.044715
    %v2614 = vmul.f32 %v2566, 0.044715
    %v2615 = vmul.f32 %v2567, 0.044715
    %v2616 = vmul.f32 %v2568, 0.044715
    %v2617 = vmul.f32 %v2569, 0.044715
    %v2618 = vmul.f32 %v2570, 0.044715
    %v2619 = vmul.f32 %v2571, 0.044715
    %v2620 = vmul.f32 %v2572, 0.044715
    %v2621 = vmul.f32 %v2573, 0.044715
    %v2622 = vmul.f32 %v2574, 0.044715
    %v2623 = vmul.f32 %v2575, 0.044715
    %v2624 = vmul.f32 %v2576, 0.044715
    %v2625 = vmul.f32 %v2577, 0.044715
    %v2626 = vmul.f32 %v2578, 0.044715
    %v2627 = vmul.f32 %v2579, 0.044715
    %v2628 = vmul.f32 %v2580, 0.044715
    %v2629 = vmul.f32 %v2581, 0.044715
    %v2630 = vmul.f32 %v2582, 0.044715
    %v2631 = vmul.f32 %v2583, 0.044715
    %v2632 = vmul.f32 %v2584, 0.044715
    %v2633 = vmul.f32 %v2585, 0.044715
    %v2634 = vmul.f32 %v2586, 0.044715
    %v2635 = vmul.f32 %v2587, 0.044715
    %v2636 = vmul.f32 %v2588, 0.044715
    %v2637 = vmul.f32 %v2589, 0.044715
    %v2638 = vadd.f32 %v2446, %v2590
    %v2639 = vadd.f32 %v2447, %v2591
    %v2640 = vadd.f32 %v2448, %v2592
    %v2641 = vadd.f32 %v2449, %v2593
    %v2642 = vadd.f32 %v2450, %v2594
    %v2643 = vadd.f32 %v2451, %v2595
    %v2644 = vadd.f32 %v2452, %v2596
    %v2645 = vadd.f32 %v2453, %v2597
    %v2646 = vadd.f32 %v2454, %v2598
    %v2647 = vadd.f32 %v2455, %v2599
    %v2648 = vadd.f32 %v2456, %v2600
    %v2649 = vadd.f32 %v2457, %v2601
    %v2650 = vadd.f32 %v2458, %v2602
    %v2651 = vadd.f32 %v2459, %v2603
    %v2652 = vadd.f32 %v2460, %v2604
    %v2653 = vadd.f32 %v2461, %v2605
    %v2654 = vadd.f32 %v2462, %v2606
    %v2655 = vadd.f32 %v2463, %v2607
    %v2656 = vadd.f32 %v2464, %v2608
    %v2657 = vadd.f32 %v2465, %v2609
    %v2658 = vadd.f32 %v2466, %v2610
    %v2659 = vadd.f32 %v2467, %v2611
    %v2660 = vadd.f32 %v2468, %v2612
    %v2661 = vadd.f32 %v2469, %v2613
    %v2662 = vadd.f32 %v2470, %v2614
    %v2663 = vadd.f32 %v2471, %v2615
    %v2664 = vadd.f32 %v2472, %v2616
    %v2665 = vadd.f32 %v2473, %v2617
    %v2666 = vadd.f32 %v2474, %v2618
    %v2667 = vadd.f32 %v2475, %v2619
    %v2668 = vadd.f32 %v2476, %v2620
    %v2669 = vadd.f32 %v2477, %v2621
    %v2670 = vadd.f32 %v2478, %v2622
    %v2671 = vadd.f32 %v2479, %v2623
    %v2672 = vadd.f32 %v2480, %v2624
    %v2673 = vadd.f32 %v2481, %v2625
    %v2674 = vadd.f32 %v2482, %v2626
    %v2675 = vadd.f32 %v2483, %v2627
    %v2676 = vadd.f32 %v2484, %v2628
    %v2677 = vadd.f32 %v2485, %v2629
    %v2678 = vadd.f32 %v2486, %v2630
    %v2679 = vadd.f32 %v2487, %v2631
    %v2680 = vadd.f32 %v2488, %v2632
    %v2681 = vadd.f32 %v2489, %v2633
    %v2682 = vadd.f32 %v2490, %v2634
    %v2683 = vadd.f32 %v2491, %v2635
    %v2684 = vadd.f32 %v2492, %v2636
    %v2685 = vadd.f32 %v2493, %v2637
    %v2686 = vmul.f32 %v2638, 0.7978846
    %v2687 = vmul.f32 %v2639, 0.7978846
    %v2688 = vmul.f32 %v2640, 0.7978846
    %v2689 = vmul.f32 %v2641, 0.7978846
    %v2690 = vmul.f32 %v2642, 0.7978846
    %v2691 = vmul.f32 %v2643, 0.7978846
    %v2692 = vmul.f32 %v2644, 0.7978846
    %v2693 = vmul.f32 %v2645, 0.7978846
    %v2694 = vmul.f32 %v2646, 0.7978846
    %v2695 = vmul.f32 %v2647, 0.7978846
    %v2696 = vmul.f32 %v2648, 0.7978846
    %v2697 = vmul.f32 %v2649, 0.7978846
    %v2698 = vmul.f32 %v2650, 0.7978846
    %v2699 = vmul.f32 %v2651, 0.7978846
    %v2700 = vmul.f32 %v2652, 0.7978846
    %v2701 = vmul.f32 %v2653, 0.7978846
    %v2702 = vmul.f32 %v2654, 0.7978846
    %v2703 = vmul.f32 %v2655, 0.7978846
    %v2704 = vmul.f32 %v2656, 0.7978846
    %v2705 = vmul.f32 %v2657, 0.7978846
    %v2706 = vmul.f32 %v2658, 0.7978846
    %v2707 = vmul.f32 %v2659, 0.7978846
    %v2708 = vmul.f32 %v2660, 0.7978846
    %v2709 = vmul.f32 %v2661, 0.7978846
    %v2710 = vmul.f32 %v2662, 0.7978846
    %v2711 = vmul.f32 %v2663, 0.7978846
    %v2712 = vmul.f32 %v2664, 0.7978846
    %v2713 = vmul.f32 %v2665, 0.7978846
    %v2714 = vmul.f32 %v2666, 0.7978846
    %v2715 = vmul.f32 %v2667, 0.7978846
    %v2716 = vmul.f32 %v2668, 0.7978846
    %v2717 = vmul.f32 %v2669, 0.7978846
    %v2718 = vmul.f32 %v2670, 0.7978846
    %v2719 = vmul.f32 %v2671, 0.7978846
    %v2720 = vmul.f32 %v2672, 0.7978846
    %v2721 = vmul.f32 %v2673, 0.7978846
    %v2722 = vmul.f32 %v2674, 0.7978846
    %v2723 = vmul.f32 %v2675, 0.7978846
    %v2724 = vmul.f32 %v2676, 0.7978846
    %v2725 = vmul.f32 %v2677, 0.7978846
    %v2726 = vmul.f32 %v2678, 0.7978846
    %v2727 = vmul.f32 %v2679, 0.7978846
    %v2728 = vmul.f32 %v2680, 0.7978846
    %v2729 = vmul.f32 %v2681, 0.7978846
    %v2730 = vmul.f32 %v2682, 0.7978846
    %v2731 = vmul.f32 %v2683, 0.7978846
    %v2732 = vmul.f32 %v2684, 0.7978846
    %v2733 = vmul.f32 %v2685, 0.7978846
    %v2734 = vtanh.pop %v2686
    %v2735 = vtanh.pop %v2687
    %v2736 = vtanh.pop %v2688
    %v2737 = vtanh.pop %v2689
    %v2738 = vtanh.pop %v2690
    %v2739 = vtanh.pop %v2691
    %v2740 = vtanh.pop %v2692
    %v2741 = vtanh.pop %v2693
    %v2742 = vtanh.pop %v2694
    %v2743 = vtanh.pop %v2695
    %v2744 = vtanh.pop %v2696
    %v2745 = vtanh.pop %v2697
    %v2746 = vtanh.pop %v2698
    %v2747 = vtanh.pop %v2699
    %v2748 = vtanh.pop %v2700
    %v2749 = vtanh.pop %v2701
    %v2750 = vtanh.pop %v2702
    %v2751 = vtanh.pop %v2703
    %v2752 = vtanh.pop %v2704
    %v2753 = vtanh.pop %v2705
    %v2754 = vtanh.pop %v2706
    %v2755 = vtanh.pop %v2707
    %v2756 = vtanh.pop %v2708
    %v2757 = vtanh.pop %v2709
    %v2758 = vtanh.pop %v2710
    %v2759 = vtanh.pop %v2711
    %v2760 = vtanh.pop %v2712
    %v2761 = vtanh.pop %v2713
    %v2762 = vtanh.pop %v2714
    %v2763 = vtanh.pop %v2715
    %v2764 = vtanh.pop %v2716
    %v2765 = vtanh.pop %v2717
    %v2766 = vtanh.pop %v2718
    %v2767 = vtanh.pop %v2719
    %v2768 = vtanh.pop %v2720
    %v2769 = vtanh.pop %v2721
    %v2770 = vtanh.pop %v2722
    %v2771 = vtanh.pop %v2723
    %v2772 = vtanh.pop %v2724
    %v2773 = vtanh.pop %v2725
    %v2774 = vtanh.pop %v2726
    %v2775 = vtanh.pop %v2727
    %v2776 = vtanh.pop %v2728
    %v2777 = vtanh.pop %v2729
    %v2778 = vtanh.pop %v2730
    %v2779 = vtanh.pop %v2731
    %v2780 = vtanh.pop %v2732
    %v2781 = vtanh.pop %v2733
    %v2782 = vadd.f32 %v2734, 1.0
    %v2783 = vadd.f32 %v2735, 1.0
    %v2784 = vadd.f32 %v2736, 1.0
    %v2785 = vadd.f32 %v2737, 1.0
    %v2786 = vadd.f32 %v2738, 1.0
    %v2787 = vadd.f32 %v2739, 1.0
    %v2788 = vadd.f32 %v2740, 1.0
    %v2789 = vadd.f32 %v2741, 1.0
    %v2790 = vadd.f32 %v2742, 1.0
    %v2791 = vadd.f32 %v2743, 1.0
    %v2792 = vadd.f32 %v2744, 1.0
    %v2793 = vadd.f32 %v2745, 1.0
    %v2794 = vadd.f32 %v2746, 1.0
    %v2795 = vadd.f32 %v2747, 1.0
    %v2796 = vadd.f32 %v2748, 1.0
    %v2797 = vadd.f32 %v2749, 1.0
    %v2798 = vadd.f32 %v2750, 1.0
    %v2799 = vadd.f32 %v2751, 1.0
    %v2800 = vadd.f32 %v2752, 1.0
    %v2801 = vadd.f32 %v2753, 1.0
    %v2802 = vadd.f32 %v2754, 1.0
    %v2803 = vadd.f32 %v2755, 1.0
    %v2804 = vadd.f32 %v2756, 1.0
    %v2805 = vadd.f32 %v2757, 1.0
    %v2806 = vadd.f32 %v2758, 1.0
    %v2807 = vadd.f32 %v2759, 1.0
    %v2808 = vadd.f32 %v2760, 1.0
    %v2809 = vadd.f32 %v2761, 1.0
    %v2810 = vadd.f32 %v2762, 1.0
    %v2811 = vadd.f32 %v2763, 1.0
    %v2812 = vadd.f32 %v2764, 1.0
    %v2813 = vadd.f32 %v2765, 1.0
    %v2814 = vadd.f32 %v2766, 1.0
    %v2815 = vadd.f32 %v2767, 1.0
    %v2816 = vadd.f32 %v2768, 1.0
    %v2817 = vadd.f32 %v2769, 1.0
    %v2818 = vadd.f32 %v2770, 1.0
    %v2819 = vadd.f32 %v2771, 1.0
    %v2820 = vadd.f32 %v2772, 1.0
    %v2821 = vadd.f32 %v2773, 1.0
    %v2822 = vadd.f32 %v2774, 1.0
    %v2823 = vadd.f32 %v2775, 1.0
    %v2824 = vadd.f32 %v2776, 1.0
    %v2825 = vadd.f32 %v2777, 1.0
    %v2826 = vadd.f32 %v2778, 1.0
    %v2827 = vadd.f32 %v2779, 1.0
    %v2828 = vadd.f32 %v2780, 1.0
    %v2829 = vadd.f32 %v2781, 1.0
    %v2830 = vmul.f32 %v2782, 0.5
    %v2831 = vmul.f32 %v2783, 0.5
    %v2832 = vmul.f32 %v2784, 0.5
    %v2833 = vmul.f32 %v2785, 0.5
    %v2834 = vmul.f32 %v2786, 0.5
    %v2835 = vmul.f32 %v2787, 0.5
    %v2836 = vmul.f32 %v2788, 0.5
    %v2837 = vmul.f32 %v2789, 0.5
    %v2838 = vmul.f32 %v2790, 0.5
    %v2839 = vmul.f32 %v2791, 0.5
    %v2840 = vmul.f32 %v2792, 0.5
    %v2841 = vmul.f32 %v2793, 0.5
    %v2842 = vmul.f32 %v2794, 0.5
    %v2843 = vmul.f32 %v2795, 0.5
    %v2844 = vmul.f32 %v2796, 0.5
    %v2845 = vmul.f32 %v2797, 0.5
    %v2846 = vmul.f32 %v2798, 0.5
    %v2847 = vmul.f32 %v2799, 0.5
    %v2848 = vmul.f32 %v2800, 0.5
    %v2849 = vmul.f32 %v2801, 0.5
    %v2850 = vmul.f32 %v2802, 0.5
    %v2851 = vmul.f32 %v2803, 0.5
    %v2852 = vmul.f32 %v2804, 0.5
    %v2853 = vmul.f32 %v2805, 0.5
    %v2854 = vmul.f32 %v2806, 0.5
    %v2855 = vmul.f32 %v2807, 0.5
    %v2856 = vmul.f32 %v2808, 0.5
    %v2857 = vmul.f32 %v2809, 0.5
    %v2858 = vmul.f32 %v2810, 0.5
    %v2859 = vmul.f32 %v2811, 0.5
    %v2860 = vmul.f32 %v2812, 0.5
    %v2861 = vmul.f32 %v2813, 0.5
    %v2862 = vmul.f32 %v2814, 0.5
    %v2863 = vmul.f32 %v2815, 0.5
    %v2864 = vmul.f32 %v2816, 0.5
    %v2865 = vmul.f32 %v2817, 0.5
    %v2866 = vmul.f32 %v2818, 0.5
    %v2867 = vmul.f32 %v2819, 0.5
    %v2868 = vmul.f32 %v2820, 0.5
    %v2869 = vmul.f32 %v2821, 0.5
    %v2870 = vmul.f32 %v2822, 0.5
    %v2871 = vmul.f32 %v2823, 0.5
    %v2872 = vmul.f32 %v2824, 0.5
    %v2873 = vmul.f32 %v2825, 0.5
    %v2874 = vmul.f32 %v2826, 0.5
    %v2875 = vmul.f32 %v2827, 0.5
    %v2876 = vmul.f32 %v2828, 0.5
    %v2877 = vmul.f32 %v2829, 0.5
    %v2878 = vmul.f32 %v2446, %v2830
    %v2879 = vmul.f32 %v2447, %v2831
    %v2880 = vmul.f32 %v2448, %v2832
    %v2881 = vmul.f32 %v2449, %v2833
    %v2882 = vmul.f32 %v2450, %v2834
    %v2883 = vmul.f32 %v2451, %v2835
    %v2884 = vmul.f32 %v2452, %v2836
    %v2885 = vmul.f32 %v2453, %v2837
    %v2886 = vmul.f32 %v2454, %v2838
    %v2887 = vmul.f32 %v2455, %v2839
    %v2888 = vmul.f32 %v2456, %v2840
    %v2889 = vmul.f32 %v2457, %v2841
    %v2890 = vmul.f32 %v2458, %v2842
    %v2891 = vmul.f32 %v2459, %v2843
    %v2892 = vmul.f32 %v2460, %v2844
    %v2893 = vmul.f32 %v2461, %v2845
    %v2894 = vmul.f32 %v2462, %v2846
    %v2895 = vmul.f32 %v2463, %v2847
    %v2896 = vmul.f32 %v2464, %v2848
    %v2897 = vmul.f32 %v2465, %v2849
    %v2898 = vmul.f32 %v2466, %v2850
    %v2899 = vmul.f32 %v2467, %v2851
    %v2900 = vmul.f32 %v2468, %v2852
    %v2901 = vmul.f32 %v2469, %v2853
    %v2902 = vmul.f32 %v2470, %v2854
    %v2903 = vmul.f32 %v2471, %v2855
    %v2904 = vmul.f32 %v2472, %v2856
    %v2905 = vmul.f32 %v2473, %v2857
    %v2906 = vmul.f32 %v2474, %v2858
    %v2907 = vmul.f32 %v2475, %v2859
    %v2908 = vmul.f32 %v2476, %v2860
    %v2909 = vmul.f32 %v2477, %v2861
    %v2910 = vmul.f32 %v2478, %v2862
    %v2911 = vmul.f32 %v2479, %v2863
    %v2912 = vmul.f32 %v2480, %v2864
    %v2913 = vmul.f32 %v2481, %v2865
    %v2914 = vmul.f32 %v2482, %v2866
    %v2915 = vmul.f32 %v2483, %v2867
    %v2916 = vmul.f32 %v2484, %v2868
    %v2917 = vmul.f32 %v2485, %v2869
    %v2918 = vmul.f32 %v2486, %v2870
    %v2919 = vmul.f32 %v2487, %v2871
    %v2920 = vmul.f32 %v2488, %v2872
    %v2921 = vmul.f32 %v2489, %v2873
    %v2922 = vmul.f32 %v2490, %v2874
    %v2923 = vmul.f32 %v2491, %v2875
    %v2924 = vmul.f32 %v2492, %v2876
    %v2925 = vmul.f32 %v2493, %v2877
    %v2926 = vadd.f32 %v2878, %v709
    %v2927 = vadd.f32 %v2879, %v710
    %v2928 = vadd.f32 %v2880, %v711
    %v2929 = vadd.f32 %v2881, %v712
    %v2930 = vadd.f32 %v2882, %v713
    %v2931 = vadd.f32 %v2883, %v714
    %v2932 = vadd.f32 %v2884, %v715
    %v2933 = vadd.f32 %v2885, %v716
    %v2934 = vadd.f32 %v2886, %v717
    %v2935 = vadd.f32 %v2887, %v718
    %v2936 = vadd.f32 %v2888, %v719
    %v2937 = vadd.f32 %v2889, %v720
    %v2938 = vadd.f32 %v2890, %v721
    %v2939 = vadd.f32 %v2891, %v722
    %v2940 = vadd.f32 %v2892, %v723
    %v2941 = vadd.f32 %v2893, %v724
    %v2942 = vadd.f32 %v2894, %v725
    %v2943 = vadd.f32 %v2895, %v726
    %v2944 = vadd.f32 %v2896, %v727
    %v2945 = vadd.f32 %v2897, %v728
    %v2946 = vadd.f32 %v2898, %v729
    %v2947 = vadd.f32 %v2899, %v730
    %v2948 = vadd.f32 %v2900, %v731
    %v2949 = vadd.f32 %v2901, %v732
    %v2950 = vadd.f32 %v2902, %v826
    %v2951 = vadd.f32 %v2903, %v827
    %v2952 = vadd.f32 %v2904, %v828
    %v2953 = vadd.f32 %v2905, %v829
    %v2954 = vadd.f32 %v2906, %v830
    %v2955 = vadd.f32 %v2907, %v831
    %v2956 = vadd.f32 %v2908, %v832
    %v2957 = vadd.f32 %v2909, %v833
    %v2958 = vadd.f32 %v2910, %v834
    %v2959 = vadd.f32 %v2911, %v835
    %v2960 = vadd.f32 %v2912, %v836
    %v2961 = vadd.f32 %v2913, %v837
    %v2962 = vadd.f32 %v2914, %v838
    %v2963 = vadd.f32 %v2915, %v839
    %v2964 = vadd.f32 %v2916, %v840
    %v2965 = vadd.f32 %v2917, %v841
    %v2966 = vadd.f32 %v2918, %v842
    %v2967 = vadd.f32 %v2919, %v843
    %v2968 = vadd.f32 %v2920, %v844
    %v2969 = vadd.f32 %v2921, %v845
    %v2970 = vadd.f32 %v2922, %v846
    %v2971 = vadd.f32 %v2923, %v847
    %v2972 = vadd.f32 %v2924, %v848
    %v2973 = vadd.f32 %v2925, %v849
    %v2974 = vsel %vm893, %v2926, 0.0
    %2975 = vadd.xlane.f32.xlu0 %v2974
    %v2976 = vpop.xlane.xlu0 %2975
    %v2977 = vsel %vm893, %v2927, 0.0
    %2978 = vadd.xlane.f32.xlu0 %v2977
    %v2979 = vpop.xlane.xlu0 %2978
    %v2980 = vsel %vm893, %v2928, 0.0
    %2981 = vadd.xlane.f32.xlu0 %v2980
    %v2982 = vpop.xlane.xlu0 %2981
    %v2983 = vsel %vm893, %v2929, 0.0
    %2984 = vadd.xlane.f32.xlu0 %v2983
    %v2985 = vpop.xlane.xlu0 %2984
    %v2986 = vsel %vm893, %v2930, 0.0
    %2987 = vadd.xlane.f32.xlu0 %v2986
    %v2988 = vpop.xlane.xlu0 %2987
    %v2989 = vsel %vm893, %v2931, 0.0
    %2990 = vadd.xlane.f32.xlu0 %v2989
    %v2991 = vpop.xlane.xlu0 %2990
    %v2992 = vsel %vm893, %v2932, 0.0
    %2993 = vadd.xlane.f32.xlu0 %v2992
    %v2994 = vpop.xlane.xlu0 %2993
    %v2995 = vsel %vm893, %v2933, 0.0
    %2996 = vadd.xlane.f32.xlu0 %v2995
    %v2997 = vpop.xlane.xlu0 %2996
    %v2998 = vsel %vm893, %v2934, 0.0
    %2999 = vadd.xlane.f32.xlu0 %v2998
    %v3000 = vpop.xlane.xlu0 %2999
    %v3001 = vsel %vm893, %v2935, 0.0
    %3002 = vadd.xlane.f32.xlu0 %v3001
    %v3003 = vpop.xlane.xlu0 %3002
    %v3004 = vsel %vm893, %v2936, 0.0
    %3005 = vadd.xlane.f32.xlu0 %v3004
    %v3006 = vpop.xlane.xlu0 %3005
    %v3007 = vsel %vm893, %v2937, 0.0
    %3008 = vadd.xlane.f32.xlu0 %v3007
    %v3009 = vpop.xlane.xlu0 %3008
    %v3010 = vsel %vm893, %v2938, 0.0
    %3011 = vadd.xlane.f32.xlu0 %v3010
    %v3012 = vpop.xlane.xlu0 %3011
    %v3013 = vsel %vm893, %v2939, 0.0
    %3014 = vadd.xlane.f32.xlu0 %v3013
    %v3015 = vpop.xlane.xlu0 %3014
    %v3016 = vsel %vm893, %v2940, 0.0
    %3017 = vadd.xlane.f32.xlu0 %v3016
    %v3018 = vpop.xlane.xlu0 %3017
    %v3019 = vsel %vm893, %v2941, 0.0
    %3020 = vadd.xlane.f32.xlu0 %v3019
    %v3021 = vpop.xlane.xlu0 %3020
    %v3022 = vsel %vm893, %v2942, 0.0
    %3023 = vadd.xlane.f32.xlu0 %v3022
    %v3024 = vpop.xlane.xlu0 %3023
    %v3025 = vsel %vm893, %v2943, 0.0
    %3026 = vadd.xlane.f32.xlu0 %v3025
    %v3027 = vpop.xlane.xlu0 %3026
    %v3028 = vsel %vm893, %v2944, 0.0
    %3029 = vadd.xlane.f32.xlu0 %v3028
    %v3030 = vpop.xlane.xlu0 %3029
    %v3031 = vsel %vm893, %v2945, 0.0
    %3032 = vadd.xlane.f32.xlu0 %v3031
    %v3033 = vpop.xlane.xlu0 %3032
    %v3034 = vsel %vm893, %v2946, 0.0
    %3035 = vadd.xlane.f32.xlu0 %v3034
    %v3036 = vpop.xlane.xlu0 %3035
    %v3037 = vsel %vm893, %v2947, 0.0
    %3038 = vadd.xlane.f32.xlu0 %v3037
    %v3039 = vpop.xlane.xlu0 %3038
    %v3040 = vsel %vm893, %v2948, 0.0
    %3041 = vadd.xlane.f32.xlu0 %v3040
    %v3042 = vpop.xlane.xlu0 %3041
    %v3043 = vsel %vm893, %v2949, 0.0
    %3044 = vadd.xlane.f32.xlu0 %v3043
    %v3045 = vpop.xlane.xlu0 %3044
    %v3046 = vsel %vm893, %v2950, 0.0
    %3047 = vadd.xlane.f32.xlu0 %v3046
    %v3048 = vpop.xlane.xlu0 %3047
    %v3049 = vsel %vm893, %v2951, 0.0
    %3050 = vadd.xlane.f32.xlu0 %v3049
    %v3051 = vpop.xlane.xlu0 %3050
    %v3052 = vsel %vm893, %v2952, 0.0
    %3053 = vadd.xlane.f32.xlu0 %v3052
    %v3054 = vpop.xlane.xlu0 %3053
    %v3055 = vsel %vm893, %v2953, 0.0
    %3056 = vadd.xlane.f32.xlu0 %v3055
    %v3057 = vpop.xlane.xlu0 %3056
    %v3058 = vsel %vm893, %v2954, 0.0
    %3059 = vadd.xlane.f32.xlu0 %v3058
    %v3060 = vpop.xlane.xlu0 %3059
    %v3061 = vsel %vm893, %v2955, 0.0
    %3062 = vadd.xlane.f32.xlu0 %v3061
    %v3063 = vpop.xlane.xlu0 %3062
    %v3064 = vsel %vm893, %v2956, 0.0
    %3065 = vadd.xlane.f32.xlu0 %v3064
    %v3066 = vpop.xlane.xlu0 %3065
    %v3067 = vsel %vm893, %v2957, 0.0
    %3068 = vadd.xlane.f32.xlu0 %v3067
    %v3069 = vpop.xlane.xlu0 %3068
    %v3070 = vsel %vm893, %v2958, 0.0
    %3071 = vadd.xlane.f32.xlu0 %v3070
    %v3072 = vpop.xlane.xlu0 %3071
    %v3073 = vsel %vm893, %v2959, 0.0
    %3074 = vadd.xlane.f32.xlu0 %v3073
    %v3075 = vpop.xlane.xlu0 %3074
    %v3076 = vsel %vm893, %v2960, 0.0
    %3077 = vadd.xlane.f32.xlu0 %v3076
    %v3078 = vpop.xlane.xlu0 %3077
    %v3079 = vsel %vm893, %v2961, 0.0
    %3080 = vadd.xlane.f32.xlu0 %v3079
    %v3081 = vpop.xlane.xlu0 %3080
    %v3082 = vsel %vm893, %v2962, 0.0
    %3083 = vadd.xlane.f32.xlu0 %v3082
    %v3084 = vpop.xlane.xlu0 %3083
    %v3085 = vsel %vm893, %v2963, 0.0
    %3086 = vadd.xlane.f32.xlu0 %v3085
    %v3087 = vpop.xlane.xlu0 %3086
    %v3088 = vsel %vm893, %v2964, 0.0
    %3089 = vadd.xlane.f32.xlu0 %v3088
    %v3090 = vpop.xlane.xlu0 %3089
    %v3091 = vsel %vm893, %v2965, 0.0
    %3092 = vadd.xlane.f32.xlu0 %v3091
    %v3093 = vpop.xlane.xlu0 %3092
    %v3094 = vsel %vm893, %v2966, 0.0
    %3095 = vadd.xlane.f32.xlu0 %v3094
    %v3096 = vpop.xlane.xlu0 %3095
    %v3097 = vsel %vm893, %v2967, 0.0
    %3098 = vadd.xlane.f32.xlu0 %v3097
    %v3099 = vpop.xlane.xlu0 %3098
    %v3100 = vsel %vm893, %v2968, 0.0
    %3101 = vadd.xlane.f32.xlu0 %v3100
    %v3102 = vpop.xlane.xlu0 %3101
    %v3103 = vsel %vm893, %v2969, 0.0
    %3104 = vadd.xlane.f32.xlu0 %v3103
    %v3105 = vpop.xlane.xlu0 %3104
    %v3106 = vsel %vm893, %v2970, 0.0
    %3107 = vadd.xlane.f32.xlu0 %v3106
    %v3108 = vpop.xlane.xlu0 %3107
    %v3109 = vsel %vm893, %v2971, 0.0
    %3110 = vadd.xlane.f32.xlu0 %v3109
    %v3111 = vpop.xlane.xlu0 %3110
    %v3112 = vsel %vm893, %v2972, 0.0
    %3113 = vadd.xlane.f32.xlu0 %v3112
    %v3114 = vpop.xlane.xlu0 %3113
    %v3115 = vsel %vm893, %v2973, 0.0
    %3116 = vadd.xlane.f32.xlu0 %v3115
    %v3117 = vpop.xlane.xlu0 %3116
    %v3118 = vmul.f32 %v2976, %v1483
    %v3119 = vmul.f32 %v2979, %v1483
    %v3120 = vmul.f32 %v2982, %v1483
    %v3121 = vmul.f32 %v2985, %v1483
    %v3122 = vmul.f32 %v2988, %v1483
    %v3123 = vmul.f32 %v2991, %v1483
    %v3124 = vmul.f32 %v2994, %v1483
    %v3125 = vmul.f32 %v2997, %v1483
    %v3126 = vmul.f32 %v3000, %v1483
    %v3127 = vmul.f32 %v3003, %v1483
    %v3128 = vmul.f32 %v3006, %v1483
    %v3129 = vmul.f32 %v3009, %v1483
    %v3130 = vmul.f32 %v3012, %v1483
    %v3131 = vmul.f32 %v3015, %v1483
    %v3132 = vmul.f32 %v3018, %v1483
    %v3133 = vmul.f32 %v3021, %v1483
    %v3134 = vmul.f32 %v3024, %v1483
    %v3135 = vmul.f32 %v3027, %v1483
    %v3136 = vmul.f32 %v3030, %v1483
    %v3137 = vmul.f32 %v3033, %v1483
    %v3138 = vmul.f32 %v3036, %v1483
    %v3139 = vmul.f32 %v3039, %v1483
    %v3140 = vmul.f32 %v3042, %v1483
    %v3141 = vmul.f32 %v3045, %v1483
    %v3142 = vmul.f32 %v3048, %v1483
    %v3143 = vmul.f32 %v3051, %v1483
    %v3144 = vmul.f32 %v3054, %v1483
    %v3145 = vmul.f32 %v3057, %v1483
    %v3146 = vmul.f32 %v3060, %v1483
    %v3147 = vmul.f32 %v3063, %v1483
    %v3148 = vmul.f32 %v3066, %v1483
    %v3149 = vmul.f32 %v3069, %v1483
    %v3150 = vmul.f32 %v3072, %v1483
    %v3151 = vmul.f32 %v3075, %v1483
    %v3152 = vmul.f32 %v3078, %v1483
    %v3153 = vmul.f32 %v3081, %v1483
    %v3154 = vmul.f32 %v3084, %v1483
    %v3155 = vmul.f32 %v3087, %v1483
    %v3156 = vmul.f32 %v3090, %v1483
    %v3157 = vmul.f32 %v3093, %v1483
    %v3158 = vmul.f32 %v3096, %v1483
    %v3159 = vmul.f32 %v3099, %v1483
    %v3160 = vmul.f32 %v3102, %v1483
    %v3161 = vmul.f32 %v3105, %v1483
    %v3162 = vmul.f32 %v3108, %v1483
    %v3163 = vmul.f32 %v3111, %v1483
    %v3164 = vmul.f32 %v3114, %v1483
    %v3165 = vmul.f32 %v3117, %v1483
    %v3166 = vsub.f32 %v2926, %v3118
    %v3167 = vsub.f32 %v2927, %v3119
    %v3168 = vsub.f32 %v2928, %v3120
    %v3169 = vsub.f32 %v2929, %v3121
    %v3170 = vsub.f32 %v2930, %v3122
    %v3171 = vsub.f32 %v2931, %v3123
    %v3172 = vsub.f32 %v2932, %v3124
    %v3173 = vsub.f32 %v2933, %v3125
    %v3174 = vsub.f32 %v2934, %v3126
    %v3175 = vsub.f32 %v2935, %v3127
    %v3176 = vsub.f32 %v2936, %v3128
    %v3177 = vsub.f32 %v2937, %v3129
    %v3178 = vsub.f32 %v2938, %v3130
    %v3179 = vsub.f32 %v2939, %v3131
    %v3180 = vsub.f32 %v2940, %v3132
    %v3181 = vsub.f32 %v2941, %v3133
    %v3182 = vsub.f32 %v2942, %v3134
    %v3183 = vsub.f32 %v2943, %v3135
    %v3184 = vsub.f32 %v2944, %v3136
    %v3185 = vsub.f32 %v2945, %v3137
    %v3186 = vsub.f32 %v2946, %v3138
    %v3187 = vsub.f32 %v2947, %v3139
    %v3188 = vsub.f32 %v2948, %v3140
    %v3189 = vsub.f32 %v2949, %v3141
    %v3190 = vsub.f32 %v2950, %v3142
    %v3191 = vsub.f32 %v2951, %v3143
    %v3192 = vsub.f32 %v2952, %v3144
    %v3193 = vsub.f32 %v2953, %v3145
    %v3194 = vsub.f32 %v2954, %v3146
    %v3195 = vsub.f32 %v2955, %v3147
    %v3196 = vsub.f32 %v2956, %v3148
    %v3197 = vsub.f32 %v2957, %v3149
    %v3198 = vsub.f32 %v2958, %v3150
    %v3199 = vsub.f32 %v2959, %v3151
    %v3200 = vsub.f32 %v2960, %v3152
    %v3201 = vsub.f32 %v2961, %v3153
    %v3202 = vsub.f32 %v2962, %v3154
    %v3203 = vsub.f32 %v2963, %v3155
    %v3204 = vsub.f32 %v2964, %v3156
    %v3205 = vsub.f32 %v2965, %v3157
    %v3206 = vsub.f32 %v2966, %v3158
    %v3207 = vsub.f32 %v2967, %v3159
    %v3208 = vsub.f32 %v2968, %v3160
    %v3209 = vsub.f32 %v2969, %v3161
    %v3210 = vsub.f32 %v2970, %v3162
    %v3211 = vsub.f32 %v2971, %v3163
    %v3212 = vsub.f32 %v2972, %v3164
    %v3213 = vsub.f32 %v2973, %v3165
    %v3214 = vmul.f32 %v3166, %v3166
    %v3215 = vmul.f32 %v3167, %v3167
    %v3216 = vmul.f32 %v3168, %v3168
    %v3217 = vmul.f32 %v3169, %v3169
    %v3218 = vmul.f32 %v3170, %v3170
    %v3219 = vmul.f32 %v3171, %v3171
    %v3220 = vmul.f32 %v3172, %v3172
    %v3221 = vmul.f32 %v3173, %v3173
    %v3222 = vmul.f32 %v3174, %v3174
    %v3223 = vmul.f32 %v3175, %v3175
    %v3224 = vmul.f32 %v3176, %v3176
    %v3225 = vmul.f32 %v3177, %v3177
    %v3226 = vmul.f32 %v3178, %v3178
    %v3227 = vmul.f32 %v3179, %v3179
    %v3228 = vmul.f32 %v3180, %v3180
    %v3229 = vmul.f32 %v3181, %v3181
    %v3230 = vmul.f32 %v3182, %v3182
    %v3231 = vmul.f32 %v3183, %v3183
    %v3232 = vmul.f32 %v3184, %v3184
    %v3233 = vmul.f32 %v3185, %v3185
    %v3234 = vmul.f32 %v3186, %v3186
    %v3235 = vmul.f32 %v3187, %v3187
    %v3236 = vmul.f32 %v3188, %v3188
    %v3237 = vmul.f32 %v3189, %v3189
    %v3238 = vmul.f32 %v3190, %v3190
    %v3239 = vmul.f32 %v3191, %v3191
    %v3240 = vmul.f32 %v3192, %v3192
    %v3241 = vmul.f32 %v3193, %v3193
    %v3242 = vmul.f32 %v3194, %v3194
    %v3243 = vmul.f32 %v3195, %v3195
    %v3244 = vmul.f32 %v3196, %v3196
    %v3245 = vmul.f32 %v3197, %v3197
    %v3246 = vmul.f32 %v3198, %v3198
    %v3247 = vmul.f32 %v3199, %v3199
    %v3248 = vmul.f32 %v3200, %v3200
    %v3249 = vmul.f32 %v3201, %v3201
    %v3250 = vmul.f32 %v3202, %v3202
    %v3251 = vmul.f32 %v3203, %v3203
    %v3252 = vmul.f32 %v3204, %v3204
    %v3253 = vmul.f32 %v3205, %v3205
    %v3254 = vmul.f32 %v3206, %v3206
    %v3255 = vmul.f32 %v3207, %v3207
    %v3256 = vmul.f32 %v3208, %v3208
    %v3257 = vmul.f32 %v3209, %v3209
    %v3258 = vmul.f32 %v3210, %v3210
    %v3259 = vmul.f32 %v3211, %v3211
    %v3260 = vmul.f32 %v3212, %v3212
    %v3261 = vmul.f32 %v3213, %v3213
    %v3262 = vsel %vm893, %v3214, 0.0
    %3263 = vadd.xlane.f32.xlu0 %v3262
    %v3264 = vpop.xlane.xlu0 %3263
    %v3265 = vsel %vm893, %v3215, 0.0
    %3266 = vadd.xlane.f32.xlu0 %v3265
    %v3267 = vpop.xlane.xlu0 %3266
    %v3268 = vsel %vm893, %v3216, 0.0
    %3269 = vadd.xlane.f32.xlu0 %v3268
    %v3270 = vpop.xlane.xlu0 %3269
    %v3271 = vsel %vm893, %v3217, 0.0
    %3272 = vadd.xlane.f32.xlu0 %v3271
    %v3273 = vpop.xlane.xlu0 %3272
    %v3274 = vsel %vm893, %v3218, 0.0
    %3275 = vadd.xlane.f32.xlu0 %v3274
    %v3276 = vpop.xlane.xlu0 %3275
    %v3277 = vsel %vm893, %v3219, 0.0
    %3278 = vadd.xlane.f32.xlu0 %v3277
    %v3279 = vpop.xlane.xlu0 %3278
    %v3280 = vsel %vm893, %v3220, 0.0
    %3281 = vadd.xlane.f32.xlu0 %v3280
    %v3282 = vpop.xlane.xlu0 %3281
    %v3283 = vsel %vm893, %v3221, 0.0
    %3284 = vadd.xlane.f32.xlu0 %v3283
    %v3285 = vpop.xlane.xlu0 %3284
    %v3286 = vsel %vm893, %v3222, 0.0
    %3287 = vadd.xlane.f32.xlu0 %v3286
    %v3288 = vpop.xlane.xlu0 %3287
    %v3289 = vsel %vm893, %v3223, 0.0
    %3290 = vadd.xlane.f32.xlu0 %v3289
    %v3291 = vpop.xlane.xlu0 %3290
    %v3292 = vsel %vm893, %v3224, 0.0
    %3293 = vadd.xlane.f32.xlu0 %v3292
    %v3294 = vpop.xlane.xlu0 %3293
    %v3295 = vsel %vm893, %v3225, 0.0
    %3296 = vadd.xlane.f32.xlu0 %v3295
    %v3297 = vpop.xlane.xlu0 %3296
    %v3298 = vsel %vm893, %v3226, 0.0
    %3299 = vadd.xlane.f32.xlu0 %v3298
    %v3300 = vpop.xlane.xlu0 %3299
    %v3301 = vsel %vm893, %v3227, 0.0
    %3302 = vadd.xlane.f32.xlu0 %v3301
    %v3303 = vpop.xlane.xlu0 %3302
    %v3304 = vsel %vm893, %v3228, 0.0
    %3305 = vadd.xlane.f32.xlu0 %v3304
    %v3306 = vpop.xlane.xlu0 %3305
    %v3307 = vsel %vm893, %v3229, 0.0
    %3308 = vadd.xlane.f32.xlu0 %v3307
    %v3309 = vpop.xlane.xlu0 %3308
    %v3310 = vsel %vm893, %v3230, 0.0
    %3311 = vadd.xlane.f32.xlu0 %v3310
    %v3312 = vpop.xlane.xlu0 %3311
    %v3313 = vsel %vm893, %v3231, 0.0
    %3314 = vadd.xlane.f32.xlu0 %v3313
    %v3315 = vpop.xlane.xlu0 %3314
    %v3316 = vsel %vm893, %v3232, 0.0
    %3317 = vadd.xlane.f32.xlu0 %v3316
    %v3318 = vpop.xlane.xlu0 %3317
    %v3319 = vsel %vm893, %v3233, 0.0
    %3320 = vadd.xlane.f32.xlu0 %v3319
    %v3321 = vpop.xlane.xlu0 %3320
    %v3322 = vsel %vm893, %v3234, 0.0
    %3323 = vadd.xlane.f32.xlu0 %v3322
    %v3324 = vpop.xlane.xlu0 %3323
    %v3325 = vsel %vm893, %v3235, 0.0
    %3326 = vadd.xlane.f32.xlu0 %v3325
    %v3327 = vpop.xlane.xlu0 %3326
    %v3328 = vsel %vm893, %v3236, 0.0
    %3329 = vadd.xlane.f32.xlu0 %v3328
    %v3330 = vpop.xlane.xlu0 %3329
    %v3331 = vsel %vm893, %v3237, 0.0
    %3332 = vadd.xlane.f32.xlu0 %v3331
    %v3333 = vpop.xlane.xlu0 %3332
    %v3334 = vsel %vm893, %v3238, 0.0
    %3335 = vadd.xlane.f32.xlu0 %v3334
    %v3336 = vpop.xlane.xlu0 %3335
    %v3337 = vsel %vm893, %v3239, 0.0
    %3338 = vadd.xlane.f32.xlu0 %v3337
    %v3339 = vpop.xlane.xlu0 %3338
    %v3340 = vsel %vm893, %v3240, 0.0
    %3341 = vadd.xlane.f32.xlu0 %v3340
    %v3342 = vpop.xlane.xlu0 %3341
    %v3343 = vsel %vm893, %v3241, 0.0
    %3344 = vadd.xlane.f32.xlu0 %v3343
    %v3345 = vpop.xlane.xlu0 %3344
    %v3346 = vsel %vm893, %v3242, 0.0
    %3347 = vadd.xlane.f32.xlu0 %v3346
    %v3348 = vpop.xlane.xlu0 %3347
    %v3349 = vsel %vm893, %v3243, 0.0
    %3350 = vadd.xlane.f32.xlu0 %v3349
    %v3351 = vpop.xlane.xlu0 %3350
    %v3352 = vsel %vm893, %v3244, 0.0
    %3353 = vadd.xlane.f32.xlu0 %v3352
    %v3354 = vpop.xlane.xlu0 %3353
    %v3355 = vsel %vm893, %v3245, 0.0
    %3356 = vadd.xlane.f32.xlu0 %v3355
    %v3357 = vpop.xlane.xlu0 %3356
    %v3358 = vsel %vm893, %v3246, 0.0
    %3359 = vadd.xlane.f32.xlu0 %v3358
    %v3360 = vpop.xlane.xlu0 %3359
    %v3361 = vsel %vm893, %v3247, 0.0
    %3362 = vadd.xlane.f32.xlu0 %v3361
    %v3363 = vpop.xlane.xlu0 %3362
    %v3364 = vsel %vm893, %v3248, 0.0
    %3365 = vadd.xlane.f32.xlu0 %v3364
    %v3366 = vpop.xlane.xlu0 %3365
    %v3367 = vsel %vm893, %v3249, 0.0
    %3368 = vadd.xlane.f32.xlu0 %v3367
    %v3369 = vpop.xlane.xlu0 %3368
    %v3370 = vsel %vm893, %v3250, 0.0
    %3371 = vadd.xlane.f32.xlu0 %v3370
    %v3372 = vpop.xlane.xlu0 %3371
    %v3373 = vsel %vm893, %v3251, 0.0
    %3374 = vadd.xlane.f32.xlu0 %v3373
    %v3375 = vpop.xlane.xlu0 %3374
    %v3376 = vsel %vm893, %v3252, 0.0
    %3377 = vadd.xlane.f32.xlu0 %v3376
    %v3378 = vpop.xlane.xlu0 %3377
    %v3379 = vsel %vm893, %v3253, 0.0
    %3380 = vadd.xlane.f32.xlu0 %v3379
    %v3381 = vpop.xlane.xlu0 %3380
    %v3382 = vsel %vm893, %v3254, 0.0
    %3383 = vadd.xlane.f32.xlu0 %v3382
    %v3384 = vpop.xlane.xlu0 %3383
    %v3385 = vsel %vm893, %v3255, 0.0
    %3386 = vadd.xlane.f32.xlu0 %v3385
    %v3387 = vpop.xlane.xlu0 %3386
    %v3388 = vsel %vm893, %v3256, 0.0
    %3389 = vadd.xlane.f32.xlu0 %v3388
    %v3390 = vpop.xlane.xlu0 %3389
    %v3391 = vsel %vm893, %v3257, 0.0
    %3392 = vadd.xlane.f32.xlu0 %v3391
    %v3393 = vpop.xlane.xlu0 %3392
    %v3394 = vsel %vm893, %v3258, 0.0
    %3395 = vadd.xlane.f32.xlu0 %v3394
    %v3396 = vpop.xlane.xlu0 %3395
    %v3397 = vsel %vm893, %v3259, 0.0
    %3398 = vadd.xlane.f32.xlu0 %v3397
    %v3399 = vpop.xlane.xlu0 %3398
    %v3400 = vsel %vm893, %v3260, 0.0
    %3401 = vadd.xlane.f32.xlu0 %v3400
    %v3402 = vpop.xlane.xlu0 %3401
    %v3403 = vsel %vm893, %v3261, 0.0
    %3404 = vadd.xlane.f32.xlu0 %v3403
    %v3405 = vpop.xlane.xlu0 %3404
    %v3406 = vmul.f32 %v3264, %v1483
    %v3407 = vmul.f32 %v3267, %v1483
    %v3408 = vmul.f32 %v3270, %v1483
    %v3409 = vmul.f32 %v3273, %v1483
    %v3410 = vmul.f32 %v3276, %v1483
    %v3411 = vmul.f32 %v3279, %v1483
    %v3412 = vmul.f32 %v3282, %v1483
    %v3413 = vmul.f32 %v3285, %v1483
    %v3414 = vmul.f32 %v3288, %v1483
    %v3415 = vmul.f32 %v3291, %v1483
    %v3416 = vmul.f32 %v3294, %v1483
    %v3417 = vmul.f32 %v3297, %v1483
    %v3418 = vmul.f32 %v3300, %v1483
    %v3419 = vmul.f32 %v3303, %v1483
    %v3420 = vmul.f32 %v3306, %v1483
    %v3421 = vmul.f32 %v3309, %v1483
    %v3422 = vmul.f32 %v3312, %v1483
    %v3423 = vmul.f32 %v3315, %v1483
    %v3424 = vmul.f32 %v3318, %v1483
    %v3425 = vmul.f32 %v3321, %v1483
    %v3426 = vmul.f32 %v3324, %v1483
    %v3427 = vmul.f32 %v3327, %v1483
    %v3428 = vmul.f32 %v3330, %v1483
    %v3429 = vmul.f32 %v3333, %v1483
    %v3430 = vmul.f32 %v3336, %v1483
    %v3431 = vmul.f32 %v3339, %v1483
    %v3432 = vmul.f32 %v3342, %v1483
    %v3433 = vmul.f32 %v3345, %v1483
    %v3434 = vmul.f32 %v3348, %v1483
    %v3435 = vmul.f32 %v3351, %v1483
    %v3436 = vmul.f32 %v3354, %v1483
    %v3437 = vmul.f32 %v3357, %v1483
    %v3438 = vmul.f32 %v3360, %v1483
    %v3439 = vmul.f32 %v3363, %v1483
    %v3440 = vmul.f32 %v3366, %v1483
    %v3441 = vmul.f32 %v3369, %v1483
    %v3442 = vmul.f32 %v3372, %v1483
    %v3443 = vmul.f32 %v3375, %v1483
    %v3444 = vmul.f32 %v3378, %v1483
    %v3445 = vmul.f32 %v3381, %v1483
    %v3446 = vmul.f32 %v3384, %v1483
    %v3447 = vmul.f32 %v3387, %v1483
    %v3448 = vmul.f32 %v3390, %v1483
    %v3449 = vmul.f32 %v3393, %v1483
    %v3450 = vmul.f32 %v3396, %v1483
    %v3451 = vmul.f32 %v3399, %v1483
    %v3452 = vmul.f32 %v3402, %v1483
    %v3453 = vmul.f32 %v3405, %v1483
    %v3454 = vadd.f32 %v3406, 1e-05
    %v3455 = vadd.f32 %v3407, 1e-05
    %v3456 = vadd.f32 %v3408, 1e-05
    %v3457 = vadd.f32 %v3409, 1e-05
    %v3458 = vadd.f32 %v3410, 1e-05
    %v3459 = vadd.f32 %v3411, 1e-05
    %v3460 = vadd.f32 %v3412, 1e-05
    %v3461 = vadd.f32 %v3413, 1e-05
    %v3462 = vadd.f32 %v3414, 1e-05
    %v3463 = vadd.f32 %v3415, 1e-05
    %v3464 = vadd.f32 %v3416, 1e-05
    %v3465 = vadd.f32 %v3417, 1e-05
    %v3466 = vadd.f32 %v3418, 1e-05
    %v3467 = vadd.f32 %v3419, 1e-05
    %v3468 = vadd.f32 %v3420, 1e-05
    %v3469 = vadd.f32 %v3421, 1e-05
    %v3470 = vadd.f32 %v3422, 1e-05
    %v3471 = vadd.f32 %v3423, 1e-05
    %v3472 = vadd.f32 %v3424, 1e-05
    %v3473 = vadd.f32 %v3425, 1e-05
    %v3474 = vadd.f32 %v3426, 1e-05
    %v3475 = vadd.f32 %v3427, 1e-05
    %v3476 = vadd.f32 %v3428, 1e-05
    %v3477 = vadd.f32 %v3429, 1e-05
    %v3478 = vadd.f32 %v3430, 1e-05
    %v3479 = vadd.f32 %v3431, 1e-05
    %v3480 = vadd.f32 %v3432, 1e-05
    %v3481 = vadd.f32 %v3433, 1e-05
    %v3482 = vadd.f32 %v3434, 1e-05
    %v3483 = vadd.f32 %v3435, 1e-05
    %v3484 = vadd.f32 %v3436, 1e-05
    %v3485 = vadd.f32 %v3437, 1e-05
    %v3486 = vadd.f32 %v3438, 1e-05
    %v3487 = vadd.f32 %v3439, 1e-05
    %v3488 = vadd.f32 %v3440, 1e-05
    %v3489 = vadd.f32 %v3441, 1e-05
    %v3490 = vadd.f32 %v3442, 1e-05
    %v3491 = vadd.f32 %v3443, 1e-05
    %v3492 = vadd.f32 %v3444, 1e-05
    %v3493 = vadd.f32 %v3445, 1e-05
    %v3494 = vadd.f32 %v3446, 1e-05
    %v3495 = vadd.f32 %v3447, 1e-05
    %v3496 = vadd.f32 %v3448, 1e-05
    %v3497 = vadd.f32 %v3449, 1e-05
    %v3498 = vadd.f32 %v3450, 1e-05
    %v3499 = vadd.f32 %v3451, 1e-05
    %v3500 = vadd.f32 %v3452, 1e-05
    %v3501 = vadd.f32 %v3453, 1e-05
    %v3502 = vrsqrt.pop %v3454
    %v3503 = vmul.f32 %v3502, %v3454
    %v3504 = vmul.f32 %v3503, %v3502
    %v3505 = vmul.f32 0.5, %v3504
    %v3506 = vsub.f32 1.5, %v3505
    %v3507 = vmul.f32 %v3502, %v3506
    %vm3508 = vweird.f32 %v3454
    %vm3509 = vweird.f32 %v3502
    %vm3510 = vmor %vm3508, %vm3509
    %v3511 = vsel %vm3510, %v3502, %v3507
    %v3512 = vrsqrt.pop %v3455
    %v3513 = vmul.f32 %v3512, %v3455
    %v3514 = vmul.f32 %v3513, %v3512
    %v3515 = vmul.f32 0.5, %v3514
    %v3516 = vsub.f32 1.5, %v3515
    %v3517 = vmul.f32 %v3512, %v3516
    %vm3518 = vweird.f32 %v3455
    %vm3519 = vweird.f32 %v3512
    %vm3520 = vmor %vm3518, %vm3519
    %v3521 = vsel %vm3520, %v3512, %v3517
    %v3522 = vrsqrt.pop %v3456
    %v3523 = vmul.f32 %v3522, %v3456
    %v3524 = vmul.f32 %v3523, %v3522
    %v3525 = vmul.f32 0.5, %v3524
    %v3526 = vsub.f32 1.5, %v3525
    %v3527 = vmul.f32 %v3522, %v3526
    %vm3528 = vweird.f32 %v3456
    %vm3529 = vweird.f32 %v3522
    %vm3530 = vmor %vm3528, %vm3529
    %v3531 = vsel %vm3530, %v3522, %v3527
    %v3532 = vrsqrt.pop %v3457
    %v3533 = vmul.f32 %v3532, %v3457
    %v3534 = vmul.f32 %v3533, %v3532
    %v3535 = vmul.f32 0.5, %v3534
    %v3536 = vsub.f32 1.5, %v3535
    %v3537 = vmul.f32 %v3532, %v3536
    %vm3538 = vweird.f32 %v3457
    %vm3539 = vweird.f32 %v3532
    %vm3540 = vmor %vm3538, %vm3539
    %v3541 = vsel %vm3540, %v3532, %v3537
    %v3542 = vrsqrt.pop %v3458
    %v3543 = vmul.f32 %v3542, %v3458
    %v3544 = vmul.f32 %v3543, %v3542
    %v3545 = vmul.f32 0.5, %v3544
    %v3546 = vsub.f32 1.5, %v3545
    %v3547 = vmul.f32 %v3542, %v3546
    %vm3548 = vweird.f32 %v3458
    %vm3549 = vweird.f32 %v3542
    %vm3550 = vmor %vm3548, %vm3549
    %v3551 = vsel %vm3550, %v3542, %v3547
    %v3552 = vrsqrt.pop %v3459
    %v3553 = vmul.f32 %v3552, %v3459
    %v3554 = vmul.f32 %v3553, %v3552
    %v3555 = vmul.f32 0.5, %v3554
    %v3556 = vsub.f32 1.5, %v3555
    %v3557 = vmul.f32 %v3552, %v3556
    %vm3558 = vweird.f32 %v3459
    %vm3559 = vweird.f32 %v3552
    %vm3560 = vmor %vm3558, %vm3559
    %v3561 = vsel %vm3560, %v3552, %v3557
    %v3562 = vrsqrt.pop %v3460
    %v3563 = vmul.f32 %v3562, %v3460
    %v3564 = vmul.f32 %v3563, %v3562
    %v3565 = vmul.f32 0.5, %v3564
    %v3566 = vsub.f32 1.5, %v3565
    %v3567 = vmul.f32 %v3562, %v3566
    %vm3568 = vweird.f32 %v3460
    %vm3569 = vweird.f32 %v3562
    %vm3570 = vmor %vm3568, %vm3569
    %v3571 = vsel %vm3570, %v3562, %v3567
    %v3572 = vrsqrt.pop %v3461
    %v3573 = vmul.f32 %v3572, %v3461
    %v3574 = vmul.f32 %v3573, %v3572
    %v3575 = vmul.f32 0.5, %v3574
    %v3576 = vsub.f32 1.5, %v3575
    %v3577 = vmul.f32 %v3572, %v3576
    %vm3578 = vweird.f32 %v3461
    %vm3579 = vweird.f32 %v3572
    %vm3580 = vmor %vm3578, %vm3579
    %v3581 = vsel %vm3580, %v3572, %v3577
    %v3582 = vrsqrt.pop %v3462
    %v3583 = vmul.f32 %v3582, %v3462
    %v3584 = vmul.f32 %v3583, %v3582
    %v3585 = vmul.f32 0.5, %v3584
    %v3586 = vsub.f32 1.5, %v3585
    %v3587 = vmul.f32 %v3582, %v3586
    %vm3588 = vweird.f32 %v3462
    %vm3589 = vweird.f32 %v3582
    %vm3590 = vmor %vm3588, %vm3589
    %v3591 = vsel %vm3590, %v3582, %v3587
    %v3592 = vrsqrt.pop %v3463
    %v3593 = vmul.f32 %v3592, %v3463
    %v3594 = vmul.f32 %v3593, %v3592
    %v3595 = vmul.f32 0.5, %v3594
    %v3596 = vsub.f32 1.5, %v3595
    %v3597 = vmul.f32 %v3592, %v3596
    %vm3598 = vweird.f32 %v3463
    %vm3599 = vweird.f32 %v3592
    %vm3600 = vmor %vm3598, %vm3599
    %v3601 = vsel %vm3600, %v3592, %v3597
    %v3602 = vrsqrt.pop %v3464
    %v3603 = vmul.f32 %v3602, %v3464
    %v3604 = vmul.f32 %v3603, %v3602
    %v3605 = vmul.f32 0.5, %v3604
    %v3606 = vsub.f32 1.5, %v3605
    %v3607 = vmul.f32 %v3602, %v3606
    %vm3608 = vweird.f32 %v3464
    %vm3609 = vweird.f32 %v3602
    %vm3610 = vmor %vm3608, %vm3609
    %v3611 = vsel %vm3610, %v3602, %v3607
    %v3612 = vrsqrt.pop %v3465
    %v3613 = vmul.f32 %v3612, %v3465
    %v3614 = vmul.f32 %v3613, %v3612
    %v3615 = vmul.f32 0.5, %v3614
    %v3616 = vsub.f32 1.5, %v3615
    %v3617 = vmul.f32 %v3612, %v3616
    %vm3618 = vweird.f32 %v3465
    %vm3619 = vweird.f32 %v3612
    %vm3620 = vmor %vm3618, %vm3619
    %v3621 = vsel %vm3620, %v3612, %v3617
    %v3622 = vrsqrt.pop %v3466
    %v3623 = vmul.f32 %v3622, %v3466
    %v3624 = vmul.f32 %v3623, %v3622
    %v3625 = vmul.f32 0.5, %v3624
    %v3626 = vsub.f32 1.5, %v3625
    %v3627 = vmul.f32 %v3622, %v3626
    %vm3628 = vweird.f32 %v3466
    %vm3629 = vweird.f32 %v3622
    %vm3630 = vmor %vm3628, %vm3629
    %v3631 = vsel %vm3630, %v3622, %v3627
    %v3632 = vrsqrt.pop %v3467
    %v3633 = vmul.f32 %v3632, %v3467
    %v3634 = vmul.f32 %v3633, %v3632
    %v3635 = vmul.f32 0.5, %v3634
    %v3636 = vsub.f32 1.5, %v3635
    %v3637 = vmul.f32 %v3632, %v3636
    %vm3638 = vweird.f32 %v3467
    %vm3639 = vweird.f32 %v3632
    %vm3640 = vmor %vm3638, %vm3639
    %v3641 = vsel %vm3640, %v3632, %v3637
    %v3642 = vrsqrt.pop %v3468
    %v3643 = vmul.f32 %v3642, %v3468
    %v3644 = vmul.f32 %v3643, %v3642
    %v3645 = vmul.f32 0.5, %v3644
    %v3646 = vsub.f32 1.5, %v3645
    %v3647 = vmul.f32 %v3642, %v3646
    %vm3648 = vweird.f32 %v3468
    %vm3649 = vweird.f32 %v3642
    %vm3650 = vmor %vm3648, %vm3649
    %v3651 = vsel %vm3650, %v3642, %v3647
    %v3652 = vrsqrt.pop %v3469
    %v3653 = vmul.f32 %v3652, %v3469
    %v3654 = vmul.f32 %v3653, %v3652
    %v3655 = vmul.f32 0.5, %v3654
    %v3656 = vsub.f32 1.5, %v3655
    %v3657 = vmul.f32 %v3652, %v3656
    %vm3658 = vweird.f32 %v3469
    %vm3659 = vweird.f32 %v3652
    %vm3660 = vmor %vm3658, %vm3659
    %v3661 = vsel %vm3660, %v3652, %v3657
    %v3662 = vrsqrt.pop %v3470
    %v3663 = vmul.f32 %v3662, %v3470
    %v3664 = vmul.f32 %v3663, %v3662
    %v3665 = vmul.f32 0.5, %v3664
    %v3666 = vsub.f32 1.5, %v3665
    %v3667 = vmul.f32 %v3662, %v3666
    %vm3668 = vweird.f32 %v3470
    %vm3669 = vweird.f32 %v3662
    %vm3670 = vmor %vm3668, %vm3669
    %v3671 = vsel %vm3670, %v3662, %v3667
    %v3672 = vrsqrt.pop %v3471
    %v3673 = vmul.f32 %v3672, %v3471
    %v3674 = vmul.f32 %v3673, %v3672
    %v3675 = vmul.f32 0.5, %v3674
    %v3676 = vsub.f32 1.5, %v3675
    %v3677 = vmul.f32 %v3672, %v3676
    %vm3678 = vweird.f32 %v3471
    %vm3679 = vweird.f32 %v3672
    %vm3680 = vmor %vm3678, %vm3679
    %v3681 = vsel %vm3680, %v3672, %v3677
    %v3682 = vrsqrt.pop %v3472
    %v3683 = vmul.f32 %v3682, %v3472
    %v3684 = vmul.f32 %v3683, %v3682
    %v3685 = vmul.f32 0.5, %v3684
    %v3686 = vsub.f32 1.5, %v3685
    %v3687 = vmul.f32 %v3682, %v3686
    %vm3688 = vweird.f32 %v3472
    %vm3689 = vweird.f32 %v3682
    %vm3690 = vmor %vm3688, %vm3689
    %v3691 = vsel %vm3690, %v3682, %v3687
    %v3692 = vrsqrt.pop %v3473
    %v3693 = vmul.f32 %v3692, %v3473
    %v3694 = vmul.f32 %v3693, %v3692
    %v3695 = vmul.f32 0.5, %v3694
    %v3696 = vsub.f32 1.5, %v3695
    %v3697 = vmul.f32 %v3692, %v3696
    %vm3698 = vweird.f32 %v3473
    %vm3699 = vweird.f32 %v3692
    %vm3700 = vmor %vm3698, %vm3699
    %v3701 = vsel %vm3700, %v3692, %v3697
    %v3702 = vrsqrt.pop %v3474
    %v3703 = vmul.f32 %v3702, %v3474
    %v3704 = vmul.f32 %v3703, %v3702
    %v3705 = vmul.f32 0.5, %v3704
    %v3706 = vsub.f32 1.5, %v3705
    %v3707 = vmul.f32 %v3702, %v3706
    %vm3708 = vweird.f32 %v3474
    %vm3709 = vweird.f32 %v3702
    %vm3710 = vmor %vm3708, %vm3709
    %v3711 = vsel %vm3710, %v3702, %v3707
    %v3712 = vrsqrt.pop %v3475
    %v3713 = vmul.f32 %v3712, %v3475
    %v3714 = vmul.f32 %v3713, %v3712
    %v3715 = vmul.f32 0.5, %v3714
    %v3716 = vsub.f32 1.5, %v3715
    %v3717 = vmul.f32 %v3712, %v3716
    %vm3718 = vweird.f32 %v3475
    %vm3719 = vweird.f32 %v3712
    %vm3720 = vmor %vm3718, %vm3719
    %v3721 = vsel %vm3720, %v3712, %v3717
    %v3722 = vrsqrt.pop %v3476
    %v3723 = vmul.f32 %v3722, %v3476
    %v3724 = vmul.f32 %v3723, %v3722
    %v3725 = vmul.f32 0.5, %v3724
    %v3726 = vsub.f32 1.5, %v3725
    %v3727 = vmul.f32 %v3722, %v3726
    %vm3728 = vweird.f32 %v3476
    %vm3729 = vweird.f32 %v3722
    %vm3730 = vmor %vm3728, %vm3729
    %v3731 = vsel %vm3730, %v3722, %v3727
    %v3732 = vrsqrt.pop %v3477
    %v3733 = vmul.f32 %v3732, %v3477
    %v3734 = vmul.f32 %v3733, %v3732
    %v3735 = vmul.f32 0.5, %v3734
    %v3736 = vsub.f32 1.5, %v3735
    %v3737 = vmul.f32 %v3732, %v3736
    %vm3738 = vweird.f32 %v3477
    %vm3739 = vweird.f32 %v3732
    %vm3740 = vmor %vm3738, %vm3739
    %v3741 = vsel %vm3740, %v3732, %v3737
    %v3742 = vrsqrt.pop %v3478
    %v3743 = vmul.f32 %v3742, %v3478
    %v3744 = vmul.f32 %v3743, %v3742
    %v3745 = vmul.f32 0.5, %v3744
    %v3746 = vsub.f32 1.5, %v3745
    %v3747 = vmul.f32 %v3742, %v3746
    %vm3748 = vweird.f32 %v3478
    %vm3749 = vweird.f32 %v3742
    %vm3750 = vmor %vm3748, %vm3749
    %v3751 = vsel %vm3750, %v3742, %v3747
    %v3752 = vrsqrt.pop %v3479
    %v3753 = vmul.f32 %v3752, %v3479
    %v3754 = vmul.f32 %v3753, %v3752
    %v3755 = vmul.f32 0.5, %v3754
    %v3756 = vsub.f32 1.5, %v3755
    %v3757 = vmul.f32 %v3752, %v3756
    %vm3758 = vweird.f32 %v3479
    %vm3759 = vweird.f32 %v3752
    %vm3760 = vmor %vm3758, %vm3759
    %v3761 = vsel %vm3760, %v3752, %v3757
    %v3762 = vrsqrt.pop %v3480
    %v3763 = vmul.f32 %v3762, %v3480
    %v3764 = vmul.f32 %v3763, %v3762
    %v3765 = vmul.f32 0.5, %v3764
    %v3766 = vsub.f32 1.5, %v3765
    %v3767 = vmul.f32 %v3762, %v3766
    %vm3768 = vweird.f32 %v3480
    %vm3769 = vweird.f32 %v3762
    %vm3770 = vmor %vm3768, %vm3769
    %v3771 = vsel %vm3770, %v3762, %v3767
    %v3772 = vrsqrt.pop %v3481
    %v3773 = vmul.f32 %v3772, %v3481
    %v3774 = vmul.f32 %v3773, %v3772
    %v3775 = vmul.f32 0.5, %v3774
    %v3776 = vsub.f32 1.5, %v3775
    %v3777 = vmul.f32 %v3772, %v3776
    %vm3778 = vweird.f32 %v3481
    %vm3779 = vweird.f32 %v3772
    %vm3780 = vmor %vm3778, %vm3779
    %v3781 = vsel %vm3780, %v3772, %v3777
    %v3782 = vrsqrt.pop %v3482
    %v3783 = vmul.f32 %v3782, %v3482
    %v3784 = vmul.f32 %v3783, %v3782
    %v3785 = vmul.f32 0.5, %v3784
    %v3786 = vsub.f32 1.5, %v3785
    %v3787 = vmul.f32 %v3782, %v3786
    %vm3788 = vweird.f32 %v3482
    %vm3789 = vweird.f32 %v3782
    %vm3790 = vmor %vm3788, %vm3789
    %v3791 = vsel %vm3790, %v3782, %v3787
    %v3792 = vrsqrt.pop %v3483
    %v3793 = vmul.f32 %v3792, %v3483
    %v3794 = vmul.f32 %v3793, %v3792
    %v3795 = vmul.f32 0.5, %v3794
    %v3796 = vsub.f32 1.5, %v3795
    %v3797 = vmul.f32 %v3792, %v3796
    %vm3798 = vweird.f32 %v3483
    %vm3799 = vweird.f32 %v3792
    %vm3800 = vmor %vm3798, %vm3799
    %v3801 = vsel %vm3800, %v3792, %v3797
    %v3802 = vrsqrt.pop %v3484
    %v3803 = vmul.f32 %v3802, %v3484
    %v3804 = vmul.f32 %v3803, %v3802
    %v3805 = vmul.f32 0.5, %v3804
    %v3806 = vsub.f32 1.5, %v3805
    %v3807 = vmul.f32 %v3802, %v3806
    %vm3808 = vweird.f32 %v3484
    %vm3809 = vweird.f32 %v3802
    %vm3810 = vmor %vm3808, %vm3809
    %v3811 = vsel %vm3810, %v3802, %v3807
    %v3812 = vrsqrt.pop %v3485
    %v3813 = vmul.f32 %v3812, %v3485
    %v3814 = vmul.f32 %v3813, %v3812
    %v3815 = vmul.f32 0.5, %v3814
    %v3816 = vsub.f32 1.5, %v3815
    %v3817 = vmul.f32 %v3812, %v3816
    %vm3818 = vweird.f32 %v3485
    %vm3819 = vweird.f32 %v3812
    %vm3820 = vmor %vm3818, %vm3819
    %v3821 = vsel %vm3820, %v3812, %v3817
    %v3822 = vrsqrt.pop %v3486
    %v3823 = vmul.f32 %v3822, %v3486
    %v3824 = vmul.f32 %v3823, %v3822
    %v3825 = vmul.f32 0.5, %v3824
    %v3826 = vsub.f32 1.5, %v3825
    %v3827 = vmul.f32 %v3822, %v3826
    %vm3828 = vweird.f32 %v3486
    %vm3829 = vweird.f32 %v3822
    %vm3830 = vmor %vm3828, %vm3829
    %v3831 = vsel %vm3830, %v3822, %v3827
    %v3832 = vrsqrt.pop %v3487
    %v3833 = vmul.f32 %v3832, %v3487
    %v3834 = vmul.f32 %v3833, %v3832
    %v3835 = vmul.f32 0.5, %v3834
    %v3836 = vsub.f32 1.5, %v3835
    %v3837 = vmul.f32 %v3832, %v3836
    %vm3838 = vweird.f32 %v3487
    %vm3839 = vweird.f32 %v3832
    %vm3840 = vmor %vm3838, %vm3839
    %v3841 = vsel %vm3840, %v3832, %v3837
    %v3842 = vrsqrt.pop %v3488
    %v3843 = vmul.f32 %v3842, %v3488
    %v3844 = vmul.f32 %v3843, %v3842
    %v3845 = vmul.f32 0.5, %v3844
    %v3846 = vsub.f32 1.5, %v3845
    %v3847 = vmul.f32 %v3842, %v3846
    %vm3848 = vweird.f32 %v3488
    %vm3849 = vweird.f32 %v3842
    %vm3850 = vmor %vm3848, %vm3849
    %v3851 = vsel %vm3850, %v3842, %v3847
    %v3852 = vrsqrt.pop %v3489
    %v3853 = vmul.f32 %v3852, %v3489
    %v3854 = vmul.f32 %v3853, %v3852
    %v3855 = vmul.f32 0.5, %v3854
    %v3856 = vsub.f32 1.5, %v3855
    %v3857 = vmul.f32 %v3852, %v3856
    %vm3858 = vweird.f32 %v3489
    %vm3859 = vweird.f32 %v3852
    %vm3860 = vmor %vm3858, %vm3859
    %v3861 = vsel %vm3860, %v3852, %v3857
    %v3862 = vrsqrt.pop %v3490
    %v3863 = vmul.f32 %v3862, %v3490
    %v3864 = vmul.f32 %v3863, %v3862
    %v3865 = vmul.f32 0.5, %v3864
    %v3866 = vsub.f32 1.5, %v3865
    %v3867 = vmul.f32 %v3862, %v3866
    %vm3868 = vweird.f32 %v3490
    %vm3869 = vweird.f32 %v3862
    %vm3870 = vmor %vm3868, %vm3869
    %v3871 = vsel %vm3870, %v3862, %v3867
    %v3872 = vrsqrt.pop %v3491
    %v3873 = vmul.f32 %v3872, %v3491
    %v3874 = vmul.f32 %v3873, %v3872
    %v3875 = vmul.f32 0.5, %v3874
    %v3876 = vsub.f32 1.5, %v3875
    %v3877 = vmul.f32 %v3872, %v3876
    %vm3878 = vweird.f32 %v3491
    %vm3879 = vweird.f32 %v3872
    %vm3880 = vmor %vm3878, %vm3879
    %v3881 = vsel %vm3880, %v3872, %v3877
    %v3882 = vrsqrt.pop %v3492
    %v3883 = vmul.f32 %v3882, %v3492
    %v3884 = vmul.f32 %v3883, %v3882
    %v3885 = vmul.f32 0.5, %v3884
    %v3886 = vsub.f32 1.5, %v3885
    %v3887 = vmul.f32 %v3882, %v3886
    %vm3888 = vweird.f32 %v3492
    %vm3889 = vweird.f32 %v3882
    %vm3890 = vmor %vm3888, %vm3889
    %v3891 = vsel %vm3890, %v3882, %v3887
    %v3892 = vrsqrt.pop %v3493
    %v3893 = vmul.f32 %v3892, %v3493
    %v3894 = vmul.f32 %v3893, %v3892
    %v3895 = vmul.f32 0.5, %v3894
    %v3896 = vsub.f32 1.5, %v3895
    %v3897 = vmul.f32 %v3892, %v3896
    %vm3898 = vweird.f32 %v3493
    %vm3899 = vweird.f32 %v3892
    %vm3900 = vmor %vm3898, %vm3899
    %v3901 = vsel %vm3900, %v3892, %v3897
    %v3902 = vrsqrt.pop %v3494
    %v3903 = vmul.f32 %v3902, %v3494
    %v3904 = vmul.f32 %v3903, %v3902
    %v3905 = vmul.f32 0.5, %v3904
    %v3906 = vsub.f32 1.5, %v3905
    %v3907 = vmul.f32 %v3902, %v3906
    %vm3908 = vweird.f32 %v3494
    %vm3909 = vweird.f32 %v3902
    %vm3910 = vmor %vm3908, %vm3909
    %v3911 = vsel %vm3910, %v3902, %v3907
    %v3912 = vrsqrt.pop %v3495
    %v3913 = vmul.f32 %v3912, %v3495
    %v3914 = vmul.f32 %v3913, %v3912
    %v3915 = vmul.f32 0.5, %v3914
    %v3916 = vsub.f32 1.5, %v3915
    %v3917 = vmul.f32 %v3912, %v3916
    %vm3918 = vweird.f32 %v3495
    %vm3919 = vweird.f32 %v3912
    %vm3920 = vmor %vm3918, %vm3919
    %v3921 = vsel %vm3920, %v3912, %v3917
    %v3922 = vrsqrt.pop %v3496
    %v3923 = vmul.f32 %v3922, %v3496
    %v3924 = vmul.f32 %v3923, %v3922
    %v3925 = vmul.f32 0.5, %v3924
    %v3926 = vsub.f32 1.5, %v3925
    %v3927 = vmul.f32 %v3922, %v3926
    %vm3928 = vweird.f32 %v3496
    %vm3929 = vweird.f32 %v3922
    %vm3930 = vmor %vm3928, %vm3929
    %v3931 = vsel %vm3930, %v3922, %v3927
    %v3932 = vrsqrt.pop %v3497
    %v3933 = vmul.f32 %v3932, %v3497
    %v3934 = vmul.f32 %v3933, %v3932
    %v3935 = vmul.f32 0.5, %v3934
    %v3936 = vsub.f32 1.5, %v3935
    %v3937 = vmul.f32 %v3932, %v3936
    %vm3938 = vweird.f32 %v3497
    %vm3939 = vweird.f32 %v3932
    %vm3940 = vmor %vm3938, %vm3939
    %v3941 = vsel %vm3940, %v3932, %v3937
    %v3942 = vrsqrt.pop %v3498
    %v3943 = vmul.f32 %v3942, %v3498
    %v3944 = vmul.f32 %v3943, %v3942
    %v3945 = vmul.f32 0.5, %v3944
    %v3946 = vsub.f32 1.5, %v3945
    %v3947 = vmul.f32 %v3942, %v3946
    %vm3948 = vweird.f32 %v3498
    %vm3949 = vweird.f32 %v3942
    %vm3950 = vmor %vm3948, %vm3949
    %v3951 = vsel %vm3950, %v3942, %v3947
    %v3952 = vrsqrt.pop %v3499
    %v3953 = vmul.f32 %v3952, %v3499
    %v3954 = vmul.f32 %v3953, %v3952
    %v3955 = vmul.f32 0.5, %v3954
    %v3956 = vsub.f32 1.5, %v3955
    %v3957 = vmul.f32 %v3952, %v3956
    %vm3958 = vweird.f32 %v3499
    %vm3959 = vweird.f32 %v3952
    %vm3960 = vmor %vm3958, %vm3959
    %v3961 = vsel %vm3960, %v3952, %v3957
    %v3962 = vrsqrt.pop %v3500
    %v3963 = vmul.f32 %v3962, %v3500
    %v3964 = vmul.f32 %v3963, %v3962
    %v3965 = vmul.f32 0.5, %v3964
    %v3966 = vsub.f32 1.5, %v3965
    %v3967 = vmul.f32 %v3962, %v3966
    %vm3968 = vweird.f32 %v3500
    %vm3969 = vweird.f32 %v3962
    %vm3970 = vmor %vm3968, %vm3969
    %v3971 = vsel %vm3970, %v3962, %v3967
    %v3972 = vrsqrt.pop %v3501
    %v3973 = vmul.f32 %v3972, %v3501
    %v3974 = vmul.f32 %v3973, %v3972
    %v3975 = vmul.f32 0.5, %v3974
    %v3976 = vsub.f32 1.5, %v3975
    %v3977 = vmul.f32 %v3972, %v3976
    %vm3978 = vweird.f32 %v3501
    %vm3979 = vweird.f32 %v3972
    %vm3980 = vmor %vm3978, %vm3979
    %v3981 = vsel %vm3980, %v3972, %v3977
    %v3982 = vmul.f32 %v3166, %v3511
    %v3983 = vmul.f32 %v3167, %v3521
    %v3984 = vmul.f32 %v3168, %v3531
    %v3985 = vmul.f32 %v3169, %v3541
    %v3986 = vmul.f32 %v3170, %v3551
    %v3987 = vmul.f32 %v3171, %v3561
    %v3988 = vmul.f32 %v3172, %v3571
    %v3989 = vmul.f32 %v3173, %v3581
    %v3990 = vmul.f32 %v3174, %v3591
    %v3991 = vmul.f32 %v3175, %v3601
    %v3992 = vmul.f32 %v3176, %v3611
    %v3993 = vmul.f32 %v3177, %v3621
    %v3994 = vmul.f32 %v3178, %v3631
    %v3995 = vmul.f32 %v3179, %v3641
    %v3996 = vmul.f32 %v3180, %v3651
    %v3997 = vmul.f32 %v3181, %v3661
    %v3998 = vmul.f32 %v3182, %v3671
    %v3999 = vmul.f32 %v3183, %v3681
    %v4000 = vmul.f32 %v3184, %v3691
    %v4001 = vmul.f32 %v3185, %v3701
    %v4002 = vmul.f32 %v3186, %v3711
    %v4003 = vmul.f32 %v3187, %v3721
    %v4004 = vmul.f32 %v3188, %v3731
    %v4005 = vmul.f32 %v3189, %v3741
    %v4006 = vmul.f32 %v3190, %v3751
    %v4007 = vmul.f32 %v3191, %v3761
    %v4008 = vmul.f32 %v3192, %v3771
    %v4009 = vmul.f32 %v3193, %v3781
    %v4010 = vmul.f32 %v3194, %v3791
    %v4011 = vmul.f32 %v3195, %v3801
    %v4012 = vmul.f32 %v3196, %v3811
    %v4013 = vmul.f32 %v3197, %v3821
    %v4014 = vmul.f32 %v3198, %v3831
    %v4015 = vmul.f32 %v3199, %v3841
    %v4016 = vmul.f32 %v3200, %v3851
    %v4017 = vmul.f32 %v3201, %v3861
    %v4018 = vmul.f32 %v3202, %v3871
    %v4019 = vmul.f32 %v3203, %v3881
    %v4020 = vmul.f32 %v3204, %v3891
    %v4021 = vmul.f32 %v3205, %v3901
    %v4022 = vmul.f32 %v3206, %v3911
    %v4023 = vmul.f32 %v3207, %v3921
    %v4024 = vmul.f32 %v3208, %v3931
    %v4025 = vmul.f32 %v3209, %v3941
    %v4026 = vmul.f32 %v3210, %v3951
    %v4027 = vmul.f32 %v3211, %v3961
    %v4028 = vmul.f32 %v3212, %v3971
    %v4029 = vmul.f32 %v3213, %v3981
    %v4030 = vperm.slane %v854, 0
    %v4031 = vmul.f32 %v3982, %v4030
    %v4032 = vmul.f32 %v3983, %v4030
    %v4033 = vmul.f32 %v3984, %v4030
    %v4034 = vmul.f32 %v3985, %v4030
    %v4035 = vmul.f32 %v3986, %v4030
    %v4036 = vmul.f32 %v3987, %v4030
    %v4037 = vmul.f32 %v3988, %v4030
    %v4038 = vmul.f32 %v3989, %v4030
    %v4039 = vmul.f32 %v3990, %v4030
    %v4040 = vmul.f32 %v3991, %v4030
    %v4041 = vmul.f32 %v3992, %v4030
    %v4042 = vmul.f32 %v3993, %v4030
    %v4043 = vmul.f32 %v3994, %v4030
    %v4044 = vmul.f32 %v3995, %v4030
    %v4045 = vmul.f32 %v3996, %v4030
    %v4046 = vmul.f32 %v3997, %v4030
    %v4047 = vmul.f32 %v3998, %v4030
    %v4048 = vmul.f32 %v3999, %v4030
    %v4049 = vmul.f32 %v4000, %v4030
    %v4050 = vmul.f32 %v4001, %v4030
    %v4051 = vmul.f32 %v4002, %v4030
    %v4052 = vmul.f32 %v4003, %v4030
    %v4053 = vmul.f32 %v4004, %v4030
    %v4054 = vmul.f32 %v4005, %v4030
    %v4055 = vmul.f32 %v4006, %v4030
    %v4056 = vmul.f32 %v4007, %v4030
    %v4057 = vmul.f32 %v4008, %v4030
    %v4058 = vmul.f32 %v4009, %v4030
    %v4059 = vmul.f32 %v4010, %v4030
    %v4060 = vmul.f32 %v4011, %v4030
    %v4061 = vmul.f32 %v4012, %v4030
    %v4062 = vmul.f32 %v4013, %v4030
    %v4063 = vmul.f32 %v4014, %v4030
    %v4064 = vmul.f32 %v4015, %v4030
    %v4065 = vmul.f32 %v4016, %v4030
    %v4066 = vmul.f32 %v4017, %v4030
    %v4067 = vmul.f32 %v4018, %v4030
    %v4068 = vmul.f32 %v4019, %v4030
    %v4069 = vmul.f32 %v4020, %v4030
    %v4070 = vmul.f32 %v4021, %v4030
    %v4071 = vmul.f32 %v4022, %v4030
    %v4072 = vmul.f32 %v4023, %v4030
    %v4073 = vmul.f32 %v4024, %v4030
    %v4074 = vmul.f32 %v4025, %v4030
    %v4075 = vmul.f32 %v4026, %v4030
    %v4076 = vmul.f32 %v4027, %v4030
    %v4077 = vmul.f32 %v4028, %v4030
    %v4078 = vmul.f32 %v4029, %v4030
    %v4079 = vperm.slane %v855, 0
    %v4080 = vadd.f32 %v4031, %v4079
    %v4081 = vadd.f32 %v4032, %v4079
    %v4082 = vadd.f32 %v4033, %v4079
    %v4083 = vadd.f32 %v4034, %v4079
    %v4084 = vadd.f32 %v4035, %v4079
    %v4085 = vadd.f32 %v4036, %v4079
    %v4086 = vadd.f32 %v4037, %v4079
    %v4087 = vadd.f32 %v4038, %v4079
    %v4088 = vadd.f32 %v4039, %v4079
    %v4089 = vadd.f32 %v4040, %v4079
    %v4090 = vadd.f32 %v4041, %v4079
    %v4091 = vadd.f32 %v4042, %v4079
    %v4092 = vadd.f32 %v4043, %v4079
    %v4093 = vadd.f32 %v4044, %v4079
    %v4094 = vadd.f32 %v4045, %v4079
    %v4095 = vadd.f32 %v4046, %v4079
    %v4096 = vadd.f32 %v4047, %v4079
    %v4097 = vadd.f32 %v4048, %v4079
    %v4098 = vadd.f32 %v4049, %v4079
    %v4099 = vadd.f32 %v4050, %v4079
    %v4100 = vadd.f32 %v4051, %v4079
    %v4101 = vadd.f32 %v4052, %v4079
    %v4102 = vadd.f32 %v4053, %v4079
    %v4103 = vadd.f32 %v4054, %v4079
    %v4104 = vadd.f32 %v4055, %v4079
    %v4105 = vadd.f32 %v4056, %v4079
    %v4106 = vadd.f32 %v4057, %v4079
    %v4107 = vadd.f32 %v4058, %v4079
    %v4108 = vadd.f32 %v4059, %v4079
    %v4109 = vadd.f32 %v4060, %v4079
    %v4110 = vadd.f32 %v4061, %v4079
    %v4111 = vadd.f32 %v4062, %v4079
    %v4112 = vadd.f32 %v4063, %v4079
    %v4113 = vadd.f32 %v4064, %v4079
    %v4114 = vadd.f32 %v4065, %v4079
    %v4115 = vadd.f32 %v4066, %v4079
    %v4116 = vadd.f32 %v4067, %v4079
    %v4117 = vadd.f32 %v4068, %v4079
    %v4118 = vadd.f32 %v4069, %v4079
    %v4119 = vadd.f32 %v4070, %v4079
    %v4120 = vadd.f32 %v4071, %v4079
    %v4121 = vadd.f32 %v4072, %v4079
    %v4122 = vadd.f32 %v4073, %v4079
    %v4123 = vadd.f32 %v4074, %v4079
    %v4124 = vadd.f32 %v4075, %v4079
    %v4125 = vadd.f32 %v4076, %v4079
    %v4126 = vadd.f32 %v4077, %v4079
    %v4127 = vadd.f32 %v4078, %v4079
    %v4128 = vld [vmem:[#allocation2 + $0x46] sm:$0x1]
    %v4129 = vld [vmem:[#allocation2 + $0x47] sm:$0x1]
    %v4130 = vld [vmem:[#allocation2 + $0x48] sm:$0x1]
    %v4131 = vld [vmem:[#allocation2 + $0x49] sm:$0x1]
    %v4132 = vld [vmem:[#allocation2 + $0x4a] sm:$0x1]
    %v4133 = vld [vmem:[#allocation2 + $0x4b] sm:$0x1]
    %v4134 = vpack.c.bf16 %v4081, %v4080
    %v4135 = vpack.c.bf16 %v4083, %v4082
    %v4136 = vpack.c.bf16 %v4085, %v4084
    %v4137 = vpack.c.bf16 %v4087, %v4086
    %v4138 = vpack.c.bf16 %v4089, %v4088
    %v4139 = vpack.c.bf16 %v4091, %v4090
    %v4140 = vpack.c.bf16 %v4093, %v4092
    %v4141 = vpack.c.bf16 %v4095, %v4094
    %v4142 = vpack.c.bf16 %v4097, %v4096
    %v4143 = vpack.c.bf16 %v4099, %v4098
    %v4144 = vpack.c.bf16 %v4101, %v4100
    %v4145 = vpack.c.bf16 %v4103, %v4102
    %v4146 = vpack.c.bf16 %v4105, %v4104
    %v4147 = vpack.c.bf16 %v4107, %v4106
    %v4148 = vpack.c.bf16 %v4109, %v4108
    %v4149 = vpack.c.bf16 %v4111, %v4110
    %v4150 = vpack.c.bf16 %v4113, %v4112
    %v4151 = vpack.c.bf16 %v4115, %v4114
    %v4152 = vpack.c.bf16 %v4117, %v4116
    %v4153 = vpack.c.bf16 %v4119, %v4118
    %v4154 = vpack.c.bf16 %v4121, %v4120
    %v4155 = vpack.c.bf16 %v4123, %v4122
    %v4156 = vpack.c.bf16 %v4125, %v4124
    %v4157 = vpack.c.bf16 %v4127, %v4126
    %v4158 = vperm.slane %v4128, 0
    %v4163 = vunpack.c.l.b16 %v64
    %v4164 = vunpack.c.l.b16 %v65
    %v4165 = vunpack.c.l.b16 %v66
    %v4166 = vunpack.c.l.b16 %v67
    %v4167 = vpack.c.b16 %v4164, %v4163
    %v4168 = vpack.c.b16 %v4166, %v4165
    %v4172 = vsel %vm893, %v4134, 0
    %v4175 = vsel %vm893, %v4135, 0
    %v4178 = vsel %vm893, %v4136, 0
    %v4181 = vsel %vm893, %v4137, 0
    %v4184 = vsel %vm893, %v4138, 0
    %v4187 = vsel %vm893, %v4139, 0
    %v4190 = vsel %vm893, %v4140, 0
    %v4193 = vsel %vm893, %v4141, 0
    %v4196 = vsel %vm893, %v4142, 0
    %v4199 = vsel %vm893, %v4143, 0
    %v4202 = vsel %vm893, %v4144, 0
    %v4205 = vsel %vm893, %v4145, 0
    %v4208 = vsel %vm893, %v4146, 0
    %v4211 = vsel %vm893, %v4147, 0
    %v4214 = vsel %vm893, %v4148, 0
    %v4217 = vsel %vm893, %v4149, 0
    %v4220 = vsel %vm893, %v4150, 0
    %v4223 = vsel %vm893, %v4151, 0
    %v4226 = vsel %vm893, %v4152, 0
    %v4229 = vsel %vm893, %v4153, 0
    %v4232 = vsel %vm893, %v4154, 0
    %v4235 = vsel %vm893, %v4155, 0
    %v4238 = vsel %vm893, %v4156, 0
    %v4241 = vsel %vm893, %v4157, 0
    %4243 = vmatpush.bf16.msra.mxu0 0
    %4244 = vmatpush.bf16.msra.mxu0 0
    %4245 = vmatpush.bf16.msra.mxu0 0
    %4246 = vmatpush.bf16.msra.mxu0 0
    %4247 = vmatpush.bf16.msra.mxu0 0
    %4248 = vmatpush.bf16.msra.mxu0 0
    %4249 = vmatpush.bf16.msra.mxu0 %v4168
    %4250 = vmatpush.bf16.msra.mxu0 %v4167
    %4251 = vmatmul.bf16.gmra.mxu0 %v4172
    %v4252 = vpop.f32.mrf.mxu0
    %v4253 = vadd.f32 %v4158, %v4252
    %v4254 = vpop.f32.mrf.mxu0
    %v4255 = vadd.f32 %v4158, %v4254
    %4256 = vmatmul.bf16.gmra.mxu0 %v4175
    %v4257 = vpop.f32.mrf.mxu0
    %v4258 = vadd.f32 %v4158, %v4257
    %v4259 = vpop.f32.mrf.mxu0
    %v4260 = vadd.f32 %v4158, %v4259
    %4261 = vmatmul.bf16.gmra.mxu0 %v4178
    %v4262 = vpop.f32.mrf.mxu0
    %v4263 = vadd.f32 %v4158, %v4262
    %v4264 = vpop.f32.mrf.mxu0
    %v4265 = vadd.f32 %v4158, %v4264
    %4266 = vmatmul.bf16.gmra.mxu0 %v4181
    %v4267 = vpop.f32.mrf.mxu0
    %v4268 = vadd.f32 %v4158, %v4267
    %v4269 = vpop.f32.mrf.mxu0
    %v4270 = vadd.f32 %v4158, %v4269
    %4271 = vmatmul.bf16.gmra.mxu0 %v4184
    %v4272 = vpop.f32.mrf.mxu0
    %v4273 = vadd.f32 %v4158, %v4272
    %v4274 = vpop.f32.mrf.mxu0
    %v4275 = vadd.f32 %v4158, %v4274
    %4276 = vmatmul.bf16.gmra.mxu0 %v4187
    %v4277 = vpop.f32.mrf.mxu0
    %v4278 = vadd.f32 %v4158, %v4277
    %v4279 = vpop.f32.mrf.mxu0
    %v4280 = vadd.f32 %v4158, %v4279
    %4281 = vmatmul.bf16.gmra.mxu0 %v4190
    %v4282 = vpop.f32.mrf.mxu0
    %v4283 = vadd.f32 %v4158, %v4282
    %v4284 = vpop.f32.mrf.mxu0
    %v4285 = vadd.f32 %v4158, %v4284
    %4286 = vmatmul.bf16.gmra.mxu0 %v4193
    %v4287 = vpop.f32.mrf.mxu0
    %v4288 = vadd.f32 %v4158, %v4287
    %v4289 = vpop.f32.mrf.mxu0
    %v4290 = vadd.f32 %v4158, %v4289
    %4291 = vmatmul.bf16.gmra.mxu0 %v4196
    %v4292 = vpop.f32.mrf.mxu0
    %v4293 = vadd.f32 %v4158, %v4292
    %v4294 = vpop.f32.mrf.mxu0
    %v4295 = vadd.f32 %v4158, %v4294
    %4296 = vmatmul.bf16.gmra.mxu0 %v4199
    %v4297 = vpop.f32.mrf.mxu0
    %v4298 = vadd.f32 %v4158, %v4297
    %v4299 = vpop.f32.mrf.mxu0
    %v4300 = vadd.f32 %v4158, %v4299
    %4301 = vmatmul.bf16.gmra.mxu0 %v4202
    %v4302 = vpop.f32.mrf.mxu0
    %v4303 = vadd.f32 %v4158, %v4302
    %v4304 = vpop.f32.mrf.mxu0
    %v4305 = vadd.f32 %v4158, %v4304
    %4306 = vmatmul.bf16.gmra.mxu0 %v4205
    %v4307 = vpop.f32.mrf.mxu0
    %v4308 = vadd.f32 %v4158, %v4307
    %v4309 = vpop.f32.mrf.mxu0
    %v4310 = vadd.f32 %v4158, %v4309
    %4311 = vmatmul.bf16.gmra.mxu0 %v4208
    %v4312 = vpop.f32.mrf.mxu0
    %v4313 = vadd.f32 %v4158, %v4312
    %v4314 = vpop.f32.mrf.mxu0
    %v4315 = vadd.f32 %v4158, %v4314
    %4316 = vmatmul.bf16.gmra.mxu0 %v4211
    %v4317 = vpop.f32.mrf.mxu0
    %v4318 = vadd.f32 %v4158, %v4317
    %v4319 = vpop.f32.mrf.mxu0
    %v4320 = vadd.f32 %v4158, %v4319
    %4321 = vmatmul.bf16.gmra.mxu0 %v4214
    %v4322 = vpop.f32.mrf.mxu0
    %v4323 = vadd.f32 %v4158, %v4322
    %v4324 = vpop.f32.mrf.mxu0
    %v4325 = vadd.f32 %v4158, %v4324
    %4326 = vmatmul.bf16.gmra.mxu0 %v4217
    %v4327 = vpop.f32.mrf.mxu0
    %v4328 = vadd.f32 %v4158, %v4327
    %v4329 = vpop.f32.mrf.mxu0
    %v4330 = vadd.f32 %v4158, %v4329
    %4331 = vmatmul.bf16.gmra.mxu0 %v4220
    %v4332 = vpop.f32.mrf.mxu0
    %v4333 = vadd.f32 %v4158, %v4332
    %v4334 = vpop.f32.mrf.mxu0
    %v4335 = vadd.f32 %v4158, %v4334
    %4336 = vmatmul.bf16.gmra.mxu0 %v4223
    %v4337 = vpop.f32.mrf.mxu0
    %v4338 = vadd.f32 %v4158, %v4337
    %v4339 = vpop.f32.mrf.mxu0
    %v4340 = vadd.f32 %v4158, %v4339
    %4341 = vmatmul.bf16.gmra.mxu0 %v4226
    %v4342 = vpop.f32.mrf.mxu0
    %v4343 = vadd.f32 %v4158, %v4342
    %v4344 = vpop.f32.mrf.mxu0
    %v4345 = vadd.f32 %v4158, %v4344
    %4346 = vmatmul.bf16.gmra.mxu0 %v4229
    %v4347 = vpop.f32.mrf.mxu0
    %v4348 = vadd.f32 %v4158, %v4347
    %v4349 = vpop.f32.mrf.mxu0
    %v4350 = vadd.f32 %v4158, %v4349
    %4351 = vmatmul.bf16.gmra.mxu0 %v4232
    %v4352 = vpop.f32.mrf.mxu0
    %v4353 = vadd.f32 %v4158, %v4352
    %v4354 = vpop.f32.mrf.mxu0
    %v4355 = vadd.f32 %v4158, %v4354
    %4356 = vmatmul.bf16.gmra.mxu0 %v4235
    %v4357 = vpop.f32.mrf.mxu0
    %v4358 = vadd.f32 %v4158, %v4357
    %v4359 = vpop.f32.mrf.mxu0
    %v4360 = vadd.f32 %v4158, %v4359
    %4361 = vmatmul.bf16.gmra.mxu0 %v4238
    %v4362 = vpop.f32.mrf.mxu0
    %v4363 = vadd.f32 %v4158, %v4362
    %v4364 = vpop.f32.mrf.mxu0
    %v4365 = vadd.f32 %v4158, %v4364
    %4366 = vmatmul.bf16.gmra.mxu0 %v4241
    %v4367 = vpop.f32.mrf.mxu0
    %v4368 = vadd.f32 %v4158, %v4367
    %v4369 = vpop.f32.mrf.mxu0
    %v4370 = vadd.f32 %v4158, %v4369
    %4371 = vdwg.mxu0
    %v4372 = vpack.c.bf16 %v4255, %v4253
    %v4373 = vpack.c.bf16 %v4260, %v4258
    %v4374 = vpack.c.bf16 %v4265, %v4263
    %v4375 = vpack.c.bf16 %v4270, %v4268
    %v4376 = vpack.c.bf16 %v4275, %v4273
    %v4377 = vpack.c.bf16 %v4280, %v4278
    %v4378 = vpack.c.bf16 %v4285, %v4283
    %v4379 = vpack.c.bf16 %v4290, %v4288
    %v4380 = vpack.c.bf16 %v4295, %v4293
    %v4381 = vpack.c.bf16 %v4300, %v4298
    %v4382 = vpack.c.bf16 %v4305, %v4303
    %v4383 = vpack.c.bf16 %v4310, %v4308
    %v4384 = vpack.c.bf16 %v4315, %v4313
    %v4385 = vpack.c.bf16 %v4320, %v4318
    %v4386 = vpack.c.bf16 %v4325, %v4323
    %v4387 = vpack.c.bf16 %v4330, %v4328
    %v4388 = vpack.c.bf16 %v4335, %v4333
    %v4389 = vpack.c.bf16 %v4340, %v4338
    %v4390 = vpack.c.bf16 %v4345, %v4343
    %v4391 = vpack.c.bf16 %v4350, %v4348
    %v4392 = vpack.c.bf16 %v4355, %v4353
    %v4393 = vpack.c.bf16 %v4360, %v4358
    %v4394 = vpack.c.bf16 %v4365, %v4363
    %v4395 = vpack.c.bf16 %v4370, %v4368
    %v4396 = vperm.slane %v4129, 0
    %v4401 = vunpack.c.l.b16 %v72
    %v4402 = vunpack.c.l.b16 %v73
    %v4403 = vunpack.c.l.b16 %v74
    %v4404 = vunpack.c.l.b16 %v75
    %v4405 = vpack.c.b16 %v4402, %v4401
    %v4406 = vpack.c.b16 %v4404, %v4403
    %v4410 = vsel %vm893, %v4372, 0
    %v4413 = vsel %vm893, %v4373, 0
    %v4416 = vsel %vm893, %v4374, 0
    %v4419 = vsel %vm893, %v4375, 0
    %v4422 = vsel %vm893, %v4376, 0
    %v4425 = vsel %vm893, %v4377, 0
    %v4428 = vsel %vm893, %v4378, 0
    %v4431 = vsel %vm893, %v4379, 0
    %v4434 = vsel %vm893, %v4380, 0
    %v4437 = vsel %vm893, %v4381, 0
    %v4440 = vsel %vm893, %v4382, 0
    %v4443 = vsel %vm893, %v4383, 0
    %v4446 = vsel %vm893, %v4384, 0
    %v4449 = vsel %vm893, %v4385, 0
    %v4452 = vsel %vm893, %v4386, 0
    %v4455 = vsel %vm893, %v4387, 0
    %v4458 = vsel %vm893, %v4388, 0
    %v4461 = vsel %vm893, %v4389, 0
    %v4464 = vsel %vm893, %v4390, 0
    %v4467 = vsel %vm893, %v4391, 0
    %v4470 = vsel %vm893, %v4392, 0
    %v4473 = vsel %vm893, %v4393, 0
    %v4476 = vsel %vm893, %v4394, 0
    %v4479 = vsel %vm893, %v4395, 0
    %4481 = vmatpush.bf16.msra.mxu0 0
    %4482 = vmatpush.bf16.msra.mxu0 0
    %4483 = vmatpush.bf16.msra.mxu0 0
    %4484 = vmatpush.bf16.msra.mxu0 0
    %4485 = vmatpush.bf16.msra.mxu0 0
    %4486 = vmatpush.bf16.msra.mxu0 0
    %4487 = vmatpush.bf16.msra.mxu0 %v4406
    %4488 = vmatpush.bf16.msra.mxu0 %v4405
    %4489 = vmatmul.bf16.gmra.mxu0 %v4410
    %v4490 = vpop.f32.mrf.mxu0
    %v4491 = vadd.f32 %v4396, %v4490
    %v4492 = vpop.f32.mrf.mxu0
    %v4493 = vadd.f32 %v4396, %v4492
    %4494 = vmatmul.bf16.gmra.mxu0 %v4413
    %v4495 = vpop.f32.mrf.mxu0
    %v4496 = vadd.f32 %v4396, %v4495
    %v4497 = vpop.f32.mrf.mxu0
    %v4498 = vadd.f32 %v4396, %v4497
    %4499 = vmatmul.bf16.gmra.mxu0 %v4416
    %v4500 = vpop.f32.mrf.mxu0
    %v4501 = vadd.f32 %v4396, %v4500
    %v4502 = vpop.f32.mrf.mxu0
    %v4503 = vadd.f32 %v4396, %v4502
    %4504 = vmatmul.bf16.gmra.mxu0 %v4419
    %v4505 = vpop.f32.mrf.mxu0
    %v4506 = vadd.f32 %v4396, %v4505
    %v4507 = vpop.f32.mrf.mxu0
    %v4508 = vadd.f32 %v4396, %v4507
    %4509 = vmatmul.bf16.gmra.mxu0 %v4422
    %v4510 = vpop.f32.mrf.mxu0
    %v4511 = vadd.f32 %v4396, %v4510
    %v4512 = vpop.f32.mrf.mxu0
    %v4513 = vadd.f32 %v4396, %v4512
    %4514 = vmatmul.bf16.gmra.mxu0 %v4425
    %v4515 = vpop.f32.mrf.mxu0
    %v4516 = vadd.f32 %v4396, %v4515
    %v4517 = vpop.f32.mrf.mxu0
    %v4518 = vadd.f32 %v4396, %v4517
    %4519 = vmatmul.bf16.gmra.mxu0 %v4428
    %v4520 = vpop.f32.mrf.mxu0
    %v4521 = vadd.f32 %v4396, %v4520
    %v4522 = vpop.f32.mrf.mxu0
    %v4523 = vadd.f32 %v4396, %v4522
    %4524 = vmatmul.bf16.gmra.mxu0 %v4431
    %v4525 = vpop.f32.mrf.mxu0
    %v4526 = vadd.f32 %v4396, %v4525
    %v4527 = vpop.f32.mrf.mxu0
    %v4528 = vadd.f32 %v4396, %v4527
    %4529 = vmatmul.bf16.gmra.mxu0 %v4434
    %v4530 = vpop.f32.mrf.mxu0
    %v4531 = vadd.f32 %v4396, %v4530
    %v4532 = vpop.f32.mrf.mxu0
    %v4533 = vadd.f32 %v4396, %v4532
    %4534 = vmatmul.bf16.gmra.mxu0 %v4437
    %v4535 = vpop.f32.mrf.mxu0
    %v4536 = vadd.f32 %v4396, %v4535
    %v4537 = vpop.f32.mrf.mxu0
    %v4538 = vadd.f32 %v4396, %v4537
    %4539 = vmatmul.bf16.gmra.mxu0 %v4440
    %v4540 = vpop.f32.mrf.mxu0
    %v4541 = vadd.f32 %v4396, %v4540
    %v4542 = vpop.f32.mrf.mxu0
    %v4543 = vadd.f32 %v4396, %v4542
    %4544 = vmatmul.bf16.gmra.mxu0 %v4443
    %v4545 = vpop.f32.mrf.mxu0
    %v4546 = vadd.f32 %v4396, %v4545
    %v4547 = vpop.f32.mrf.mxu0
    %v4548 = vadd.f32 %v4396, %v4547
    %4549 = vmatmul.bf16.gmra.mxu0 %v4446
    %v4550 = vpop.f32.mrf.mxu0
    %v4551 = vadd.f32 %v4396, %v4550
    %v4552 = vpop.f32.mrf.mxu0
    %v4553 = vadd.f32 %v4396, %v4552
    %4554 = vmatmul.bf16.gmra.mxu0 %v4449
    %v4555 = vpop.f32.mrf.mxu0
    %v4556 = vadd.f32 %v4396, %v4555
    %v4557 = vpop.f32.mrf.mxu0
    %v4558 = vadd.f32 %v4396, %v4557
    %4559 = vmatmul.bf16.gmra.mxu0 %v4452
    %v4560 = vpop.f32.mrf.mxu0
    %v4561 = vadd.f32 %v4396, %v4560
    %v4562 = vpop.f32.mrf.mxu0
    %v4563 = vadd.f32 %v4396, %v4562
    %4564 = vmatmul.bf16.gmra.mxu0 %v4455
    %v4565 = vpop.f32.mrf.mxu0
    %v4566 = vadd.f32 %v4396, %v4565
    %v4567 = vpop.f32.mrf.mxu0
    %v4568 = vadd.f32 %v4396, %v4567
    %4569 = vmatmul.bf16.gmra.mxu0 %v4458
    %v4570 = vpop.f32.mrf.mxu0
    %v4571 = vadd.f32 %v4396, %v4570
    %v4572 = vpop.f32.mrf.mxu0
    %v4573 = vadd.f32 %v4396, %v4572
    %4574 = vmatmul.bf16.gmra.mxu0 %v4461
    %v4575 = vpop.f32.mrf.mxu0
    %v4576 = vadd.f32 %v4396, %v4575
    %v4577 = vpop.f32.mrf.mxu0
    %v4578 = vadd.f32 %v4396, %v4577
    %4579 = vmatmul.bf16.gmra.mxu0 %v4464
    %v4580 = vpop.f32.mrf.mxu0
    %v4581 = vadd.f32 %v4396, %v4580
    %v4582 = vpop.f32.mrf.mxu0
    %v4583 = vadd.f32 %v4396, %v4582
    %4584 = vmatmul.bf16.gmra.mxu0 %v4467
    %v4585 = vpop.f32.mrf.mxu0
    %v4586 = vadd.f32 %v4396, %v4585
    %v4587 = vpop.f32.mrf.mxu0
    %v4588 = vadd.f32 %v4396, %v4587
    %4589 = vmatmul.bf16.gmra.mxu0 %v4470
    %v4590 = vpop.f32.mrf.mxu0
    %v4591 = vadd.f32 %v4396, %v4590
    %v4592 = vpop.f32.mrf.mxu0
    %v4593 = vadd.f32 %v4396, %v4592
    %4594 = vmatmul.bf16.gmra.mxu0 %v4473
    %v4595 = vpop.f32.mrf.mxu0
    %v4596 = vadd.f32 %v4396, %v4595
    %v4597 = vpop.f32.mrf.mxu0
    %v4598 = vadd.f32 %v4396, %v4597
    %4599 = vmatmul.bf16.gmra.mxu0 %v4476
    %v4600 = vpop.f32.mrf.mxu0
    %v4601 = vadd.f32 %v4396, %v4600
    %v4602 = vpop.f32.mrf.mxu0
    %v4603 = vadd.f32 %v4396, %v4602
    %4604 = vmatmul.bf16.gmra.mxu0 %v4479
    %v4605 = vpop.f32.mrf.mxu0
    %v4606 = vadd.f32 %v4396, %v4605
    %v4607 = vpop.f32.mrf.mxu0
    %v4608 = vadd.f32 %v4396, %v4607
    %4609 = vdwg.mxu0
    %v4610 = vsel %vm893, %v4491, 0.0
    %4611 = vadd.xlane.f32.xlu0 %v4610
    %v4612 = vpop.xlane.xlu0 %4611
    %v4613 = vsel %vm893, %v4493, 0.0
    %4614 = vadd.xlane.f32.xlu0 %v4613
    %v4615 = vpop.xlane.xlu0 %4614
    %v4616 = vsel %vm893, %v4496, 0.0
    %4617 = vadd.xlane.f32.xlu0 %v4616
    %v4618 = vpop.xlane.xlu0 %4617
    %v4619 = vsel %vm893, %v4498, 0.0
    %4620 = vadd.xlane.f32.xlu0 %v4619
    %v4621 = vpop.xlane.xlu0 %4620
    %v4622 = vsel %vm893, %v4501, 0.0
    %4623 = vadd.xlane.f32.xlu0 %v4622
    %v4624 = vpop.xlane.xlu0 %4623
    %v4625 = vsel %vm893, %v4503, 0.0
    %4626 = vadd.xlane.f32.xlu0 %v4625
    %v4627 = vpop.xlane.xlu0 %4626
    %v4628 = vsel %vm893, %v4506, 0.0
    %4629 = vadd.xlane.f32.xlu0 %v4628
    %v4630 = vpop.xlane.xlu0 %4629
    %v4631 = vsel %vm893, %v4508, 0.0
    %4632 = vadd.xlane.f32.xlu0 %v4631
    %v4633 = vpop.xlane.xlu0 %4632
    %v4634 = vsel %vm893, %v4511, 0.0
    %4635 = vadd.xlane.f32.xlu0 %v4634
    %v4636 = vpop.xlane.xlu0 %4635
    %v4637 = vsel %vm893, %v4513, 0.0
    %4638 = vadd.xlane.f32.xlu0 %v4637
    %v4639 = vpop.xlane.xlu0 %4638
    %v4640 = vsel %vm893, %v4516, 0.0
    %4641 = vadd.xlane.f32.xlu0 %v4640
    %v4642 = vpop.xlane.xlu0 %4641
    %v4643 = vsel %vm893, %v4518, 0.0
    %4644 = vadd.xlane.f32.xlu0 %v4643
    %v4645 = vpop.xlane.xlu0 %4644
    %v4646 = vsel %vm893, %v4521, 0.0
    %4647 = vadd.xlane.f32.xlu0 %v4646
    %v4648 = vpop.xlane.xlu0 %4647
    %v4649 = vsel %vm893, %v4523, 0.0
    %4650 = vadd.xlane.f32.xlu0 %v4649
    %v4651 = vpop.xlane.xlu0 %4650
    %v4652 = vsel %vm893, %v4526, 0.0
    %4653 = vadd.xlane.f32.xlu0 %v4652
    %v4654 = vpop.xlane.xlu0 %4653
    %v4655 = vsel %vm893, %v4528, 0.0
    %4656 = vadd.xlane.f32.xlu0 %v4655
    %v4657 = vpop.xlane.xlu0 %4656
    %v4658 = vsel %vm893, %v4531, 0.0
    %4659 = vadd.xlane.f32.xlu0 %v4658
    %v4660 = vpop.xlane.xlu0 %4659
    %v4661 = vsel %vm893, %v4533, 0.0
    %4662 = vadd.xlane.f32.xlu0 %v4661
    %v4663 = vpop.xlane.xlu0 %4662
    %v4664 = vsel %vm893, %v4536, 0.0
    %4665 = vadd.xlane.f32.xlu0 %v4664
    %v4666 = vpop.xlane.xlu0 %4665
    %v4667 = vsel %vm893, %v4538, 0.0
    %4668 = vadd.xlane.f32.xlu0 %v4667
    %v4669 = vpop.xlane.xlu0 %4668
    %v4670 = vsel %vm893, %v4541, 0.0
    %4671 = vadd.xlane.f32.xlu0 %v4670
    %v4672 = vpop.xlane.xlu0 %4671
    %v4673 = vsel %vm893, %v4543, 0.0
    %4674 = vadd.xlane.f32.xlu0 %v4673
    %v4675 = vpop.xlane.xlu0 %4674
    %v4676 = vsel %vm893, %v4546, 0.0
    %4677 = vadd.xlane.f32.xlu0 %v4676
    %v4678 = vpop.xlane.xlu0 %4677
    %v4679 = vsel %vm893, %v4548, 0.0
    %4680 = vadd.xlane.f32.xlu0 %v4679
    %v4681 = vpop.xlane.xlu0 %4680
    %v4682 = vsel %vm893, %v4551, 0.0
    %4683 = vadd.xlane.f32.xlu0 %v4682
    %v4684 = vpop.xlane.xlu0 %4683
    %v4685 = vsel %vm893, %v4553, 0.0
    %4686 = vadd.xlane.f32.xlu0 %v4685
    %v4687 = vpop.xlane.xlu0 %4686
    %v4688 = vsel %vm893, %v4556, 0.0
    %4689 = vadd.xlane.f32.xlu0 %v4688
    %v4690 = vpop.xlane.xlu0 %4689
    %v4691 = vsel %vm893, %v4558, 0.0
    %4692 = vadd.xlane.f32.xlu0 %v4691
    %v4693 = vpop.xlane.xlu0 %4692
    %v4694 = vsel %vm893, %v4561, 0.0
    %4695 = vadd.xlane.f32.xlu0 %v4694
    %v4696 = vpop.xlane.xlu0 %4695
    %v4697 = vsel %vm893, %v4563, 0.0
    %4698 = vadd.xlane.f32.xlu0 %v4697
    %v4699 = vpop.xlane.xlu0 %4698
    %v4700 = vsel %vm893, %v4566, 0.0
    %4701 = vadd.xlane.f32.xlu0 %v4700
    %v4702 = vpop.xlane.xlu0 %4701
    %v4703 = vsel %vm893, %v4568, 0.0
    %4704 = vadd.xlane.f32.xlu0 %v4703
    %v4705 = vpop.xlane.xlu0 %4704
    %v4706 = vsel %vm893, %v4571, 0.0
    %4707 = vadd.xlane.f32.xlu0 %v4706
    %v4708 = vpop.xlane.xlu0 %4707
    %v4709 = vsel %vm893, %v4573, 0.0
    %4710 = vadd.xlane.f32.xlu0 %v4709
    %v4711 = vpop.xlane.xlu0 %4710
    %v4712 = vsel %vm893, %v4576, 0.0
    %4713 = vadd.xlane.f32.xlu0 %v4712
    %v4714 = vpop.xlane.xlu0 %4713
    %v4715 = vsel %vm893, %v4578, 0.0
    %4716 = vadd.xlane.f32.xlu0 %v4715
    %v4717 = vpop.xlane.xlu0 %4716
    %v4718 = vsel %vm893, %v4581, 0.0
    %4719 = vadd.xlane.f32.xlu0 %v4718
    %v4720 = vpop.xlane.xlu0 %4719
    %v4721 = vsel %vm893, %v4583, 0.0
    %4722 = vadd.xlane.f32.xlu0 %v4721
    %v4723 = vpop.xlane.xlu0 %4722
    %v4724 = vsel %vm893, %v4586, 0.0
    %4725 = vadd.xlane.f32.xlu0 %v4724
    %v4726 = vpop.xlane.xlu0 %4725
    %v4727 = vsel %vm893, %v4588, 0.0
    %4728 = vadd.xlane.f32.xlu0 %v4727
    %v4729 = vpop.xlane.xlu0 %4728
    %v4730 = vsel %vm893, %v4591, 0.0
    %4731 = vadd.xlane.f32.xlu0 %v4730
    %v4732 = vpop.xlane.xlu0 %4731
    %v4733 = vsel %vm893, %v4593, 0.0
    %4734 = vadd.xlane.f32.xlu0 %v4733
    %v4735 = vpop.xlane.xlu0 %4734
    %v4736 = vsel %vm893, %v4596, 0.0
    %4737 = vadd.xlane.f32.xlu0 %v4736
    %v4738 = vpop.xlane.xlu0 %4737
    %v4739 = vsel %vm893, %v4598, 0.0
    %4740 = vadd.xlane.f32.xlu0 %v4739
    %v4741 = vpop.xlane.xlu0 %4740
    %v4742 = vsel %vm893, %v4601, 0.0
    %4743 = vadd.xlane.f32.xlu0 %v4742
    %v4744 = vpop.xlane.xlu0 %4743
    %v4745 = vsel %vm893, %v4603, 0.0
    %4746 = vadd.xlane.f32.xlu0 %v4745
    %v4747 = vpop.xlane.xlu0 %4746
    %v4748 = vsel %vm893, %v4606, 0.0
    %4749 = vadd.xlane.f32.xlu0 %v4748
    %v4750 = vpop.xlane.xlu0 %4749
    %v4751 = vsel %vm893, %v4608, 0.0
    %4752 = vadd.xlane.f32.xlu0 %v4751
    %v4753 = vpop.xlane.xlu0 %4752
    %v4754 = vmul.f32 %v4612, %v1483
    %v4755 = vmul.f32 %v4615, %v1483
    %v4756 = vmul.f32 %v4618, %v1483
    %v4757 = vmul.f32 %v4621, %v1483
    %v4758 = vmul.f32 %v4624, %v1483
    %v4759 = vmul.f32 %v4627, %v1483
    %v4760 = vmul.f32 %v4630, %v1483
    %v4761 = vmul.f32 %v4633, %v1483
    %v4762 = vmul.f32 %v4636, %v1483
    %v4763 = vmul.f32 %v4639, %v1483
    %v4764 = vmul.f32 %v4642, %v1483
    %v4765 = vmul.f32 %v4645, %v1483
    %v4766 = vmul.f32 %v4648, %v1483
    %v4767 = vmul.f32 %v4651, %v1483
    %v4768 = vmul.f32 %v4654, %v1483
    %v4769 = vmul.f32 %v4657, %v1483
    %v4770 = vmul.f32 %v4660, %v1483
    %v4771 = vmul.f32 %v4663, %v1483
    %v4772 = vmul.f32 %v4666, %v1483
    %v4773 = vmul.f32 %v4669, %v1483
    %v4774 = vmul.f32 %v4672, %v1483
    %v4775 = vmul.f32 %v4675, %v1483
    %v4776 = vmul.f32 %v4678, %v1483
    %v4777 = vmul.f32 %v4681, %v1483
    %v4778 = vmul.f32 %v4684, %v1483
    %v4779 = vmul.f32 %v4687, %v1483
    %v4780 = vmul.f32 %v4690, %v1483
    %v4781 = vmul.f32 %v4693, %v1483
    %v4782 = vmul.f32 %v4696, %v1483
    %v4783 = vmul.f32 %v4699, %v1483
    %v4784 = vmul.f32 %v4702, %v1483
    %v4785 = vmul.f32 %v4705, %v1483
    %v4786 = vmul.f32 %v4708, %v1483
    %v4787 = vmul.f32 %v4711, %v1483
    %v4788 = vmul.f32 %v4714, %v1483
    %v4789 = vmul.f32 %v4717, %v1483
    %v4790 = vmul.f32 %v4720, %v1483
    %v4791 = vmul.f32 %v4723, %v1483
    %v4792 = vmul.f32 %v4726, %v1483
    %v4793 = vmul.f32 %v4729, %v1483
    %v4794 = vmul.f32 %v4732, %v1483
    %v4795 = vmul.f32 %v4735, %v1483
    %v4796 = vmul.f32 %v4738, %v1483
    %v4797 = vmul.f32 %v4741, %v1483
    %v4798 = vmul.f32 %v4744, %v1483
    %v4799 = vmul.f32 %v4747, %v1483
    %v4800 = vmul.f32 %v4750, %v1483
    %v4801 = vmul.f32 %v4753, %v1483
    %v4802 = vsub.f32 %v4491, %v4754
    %v4803 = vsub.f32 %v4493, %v4755
    %v4804 = vsub.f32 %v4496, %v4756
    %v4805 = vsub.f32 %v4498, %v4757
    %v4806 = vsub.f32 %v4501, %v4758
    %v4807 = vsub.f32 %v4503, %v4759
    %v4808 = vsub.f32 %v4506, %v4760
    %v4809 = vsub.f32 %v4508, %v4761
    %v4810 = vsub.f32 %v4511, %v4762
    %v4811 = vsub.f32 %v4513, %v4763
    %v4812 = vsub.f32 %v4516, %v4764
    %v4813 = vsub.f32 %v4518, %v4765
    %v4814 = vsub.f32 %v4521, %v4766
    %v4815 = vsub.f32 %v4523, %v4767
    %v4816 = vsub.f32 %v4526, %v4768
    %v4817 = vsub.f32 %v4528, %v4769
    %v4818 = vsub.f32 %v4531, %v4770
    %v4819 = vsub.f32 %v4533, %v4771
    %v4820 = vsub.f32 %v4536, %v4772
    %v4821 = vsub.f32 %v4538, %v4773
    %v4822 = vsub.f32 %v4541, %v4774
    %v4823 = vsub.f32 %v4543, %v4775
    %v4824 = vsub.f32 %v4546, %v4776
    %v4825 = vsub.f32 %v4548, %v4777
    %v4826 = vsub.f32 %v4551, %v4778
    %v4827 = vsub.f32 %v4553, %v4779
    %v4828 = vsub.f32 %v4556, %v4780
    %v4829 = vsub.f32 %v4558, %v4781
    %v4830 = vsub.f32 %v4561, %v4782
    %v4831 = vsub.f32 %v4563, %v4783
    %v4832 = vsub.f32 %v4566, %v4784
    %v4833 = vsub.f32 %v4568, %v4785
    %v4834 = vsub.f32 %v4571, %v4786
    %v4835 = vsub.f32 %v4573, %v4787
    %v4836 = vsub.f32 %v4576, %v4788
    %v4837 = vsub.f32 %v4578, %v4789
    %v4838 = vsub.f32 %v4581, %v4790
    %v4839 = vsub.f32 %v4583, %v4791
    %v4840 = vsub.f32 %v4586, %v4792
    %v4841 = vsub.f32 %v4588, %v4793
    %v4842 = vsub.f32 %v4591, %v4794
    %v4843 = vsub.f32 %v4593, %v4795
    %v4844 = vsub.f32 %v4596, %v4796
    %v4845 = vsub.f32 %v4598, %v4797
    %v4846 = vsub.f32 %v4601, %v4798
    %v4847 = vsub.f32 %v4603, %v4799
    %v4848 = vsub.f32 %v4606, %v4800
    %v4849 = vsub.f32 %v4608, %v4801
    %v4850 = vmul.f32 %v4802, %v4802
    %v4851 = vmul.f32 %v4803, %v4803
    %v4852 = vmul.f32 %v4804, %v4804
    %v4853 = vmul.f32 %v4805, %v4805
    %v4854 = vmul.f32 %v4806, %v4806
    %v4855 = vmul.f32 %v4807, %v4807
    %v4856 = vmul.f32 %v4808, %v4808
    %v4857 = vmul.f32 %v4809, %v4809
    %v4858 = vmul.f32 %v4810, %v4810
    %v4859 = vmul.f32 %v4811, %v4811
    %v4860 = vmul.f32 %v4812, %v4812
    %v4861 = vmul.f32 %v4813, %v4813
    %v4862 = vmul.f32 %v4814, %v4814
    %v4863 = vmul.f32 %v4815, %v4815
    %v4864 = vmul.f32 %v4816, %v4816
    %v4865 = vmul.f32 %v4817, %v4817
    %v4866 = vmul.f32 %v4818, %v4818
    %v4867 = vmul.f32 %v4819, %v4819
    %v4868 = vmul.f32 %v4820, %v4820
    %v4869 = vmul.f32 %v4821, %v4821
    %v4870 = vmul.f32 %v4822, %v4822
    %v4871 = vmul.f32 %v4823, %v4823
    %v4872 = vmul.f32 %v4824, %v4824
    %v4873 = vmul.f32 %v4825, %v4825
    %v4874 = vmul.f32 %v4826, %v4826
    %v4875 = vmul.f32 %v4827, %v4827
    %v4876 = vmul.f32 %v4828, %v4828
    %v4877 = vmul.f32 %v4829, %v4829
    %v4878 = vmul.f32 %v4830, %v4830
    %v4879 = vmul.f32 %v4831, %v4831
    %v4880 = vmul.f32 %v4832, %v4832
    %v4881 = vmul.f32 %v4833, %v4833
    %v4882 = vmul.f32 %v4834, %v4834
    %v4883 = vmul.f32 %v4835, %v4835
    %v4884 = vmul.f32 %v4836, %v4836
    %v4885 = vmul.f32 %v4837, %v4837
    %v4886 = vmul.f32 %v4838, %v4838
    %v4887 = vmul.f32 %v4839, %v4839
    %v4888 = vmul.f32 %v4840, %v4840
    %v4889 = vmul.f32 %v4841, %v4841
    %v4890 = vmul.f32 %v4842, %v4842
    %v4891 = vmul.f32 %v4843, %v4843
    %v4892 = vmul.f32 %v4844, %v4844
    %v4893 = vmul.f32 %v4845, %v4845
    %v4894 = vmul.f32 %v4846, %v4846
    %v4895 = vmul.f32 %v4847, %v4847
    %v4896 = vmul.f32 %v4848, %v4848
    %v4897 = vmul.f32 %v4849, %v4849
    %v4898 = vsel %vm893, %v4850, 0.0
    %4899 = vadd.xlane.f32.xlu0 %v4898
    %v4900 = vpop.xlane.xlu0 %4899
    %v4901 = vsel %vm893, %v4851, 0.0
    %4902 = vadd.xlane.f32.xlu0 %v4901
    %v4903 = vpop.xlane.xlu0 %4902
    %v4904 = vsel %vm893, %v4852, 0.0
    %4905 = vadd.xlane.f32.xlu0 %v4904
    %v4906 = vpop.xlane.xlu0 %4905
    %v4907 = vsel %vm893, %v4853, 0.0
    %4908 = vadd.xlane.f32.xlu0 %v4907
    %v4909 = vpop.xlane.xlu0 %4908
    %v4910 = vsel %vm893, %v4854, 0.0
    %4911 = vadd.xlane.f32.xlu0 %v4910
    %v4912 = vpop.xlane.xlu0 %4911
    %v4913 = vsel %vm893, %v4855, 0.0
    %4914 = vadd.xlane.f32.xlu0 %v4913
    %v4915 = vpop.xlane.xlu0 %4914
    %v4916 = vsel %vm893, %v4856, 0.0
    %4917 = vadd.xlane.f32.xlu0 %v4916
    %v4918 = vpop.xlane.xlu0 %4917
    %v4919 = vsel %vm893, %v4857, 0.0
    %4920 = vadd.xlane.f32.xlu0 %v4919
    %v4921 = vpop.xlane.xlu0 %4920
    %v4922 = vsel %vm893, %v4858, 0.0
    %4923 = vadd.xlane.f32.xlu0 %v4922
    %v4924 = vpop.xlane.xlu0 %4923
    %v4925 = vsel %vm893, %v4859, 0.0
    %4926 = vadd.xlane.f32.xlu0 %v4925
    %v4927 = vpop.xlane.xlu0 %4926
    %v4928 = vsel %vm893, %v4860, 0.0
    %4929 = vadd.xlane.f32.xlu0 %v4928
    %v4930 = vpop.xlane.xlu0 %4929
    %v4931 = vsel %vm893, %v4861, 0.0
    %4932 = vadd.xlane.f32.xlu0 %v4931
    %v4933 = vpop.xlane.xlu0 %4932
    %v4934 = vsel %vm893, %v4862, 0.0
    %4935 = vadd.xlane.f32.xlu0 %v4934
    %v4936 = vpop.xlane.xlu0 %4935
    %v4937 = vsel %vm893, %v4863, 0.0
    %4938 = vadd.xlane.f32.xlu0 %v4937
    %v4939 = vpop.xlane.xlu0 %4938
    %v4940 = vsel %vm893, %v4864, 0.0
    %4941 = vadd.xlane.f32.xlu0 %v4940
    %v4942 = vpop.xlane.xlu0 %4941
    %v4943 = vsel %vm893, %v4865, 0.0
    %4944 = vadd.xlane.f32.xlu0 %v4943
    %v4945 = vpop.xlane.xlu0 %4944
    %v4946 = vsel %vm893, %v4866, 0.0
    %4947 = vadd.xlane.f32.xlu0 %v4946
    %v4948 = vpop.xlane.xlu0 %4947
    %v4949 = vsel %vm893, %v4867, 0.0
    %4950 = vadd.xlane.f32.xlu0 %v4949
    %v4951 = vpop.xlane.xlu0 %4950
    %v4952 = vsel %vm893, %v4868, 0.0
    %4953 = vadd.xlane.f32.xlu0 %v4952
    %v4954 = vpop.xlane.xlu0 %4953
    %v4955 = vsel %vm893, %v4869, 0.0
    %4956 = vadd.xlane.f32.xlu0 %v4955
    %v4957 = vpop.xlane.xlu0 %4956
    %v4958 = vsel %vm893, %v4870, 0.0
    %4959 = vadd.xlane.f32.xlu0 %v4958
    %v4960 = vpop.xlane.xlu0 %4959
    %v4961 = vsel %vm893, %v4871, 0.0
    %4962 = vadd.xlane.f32.xlu0 %v4961
    %v4963 = vpop.xlane.xlu0 %4962
    %v4964 = vsel %vm893, %v4872, 0.0
    %4965 = vadd.xlane.f32.xlu0 %v4964
    %v4966 = vpop.xlane.xlu0 %4965
    %v4967 = vsel %vm893, %v4873, 0.0
    %4968 = vadd.xlane.f32.xlu0 %v4967
    %v4969 = vpop.xlane.xlu0 %4968
    %v4970 = vsel %vm893, %v4874, 0.0
    %4971 = vadd.xlane.f32.xlu0 %v4970
    %v4972 = vpop.xlane.xlu0 %4971
    %v4973 = vsel %vm893, %v4875, 0.0
    %4974 = vadd.xlane.f32.xlu0 %v4973
    %v4975 = vpop.xlane.xlu0 %4974
    %v4976 = vsel %vm893, %v4876, 0.0
    %4977 = vadd.xlane.f32.xlu0 %v4976
    %v4978 = vpop.xlane.xlu0 %4977
    %v4979 = vsel %vm893, %v4877, 0.0
    %4980 = vadd.xlane.f32.xlu0 %v4979
    %v4981 = vpop.xlane.xlu0 %4980
    %v4982 = vsel %vm893, %v4878, 0.0
    %4983 = vadd.xlane.f32.xlu0 %v4982
    %v4984 = vpop.xlane.xlu0 %4983
    %v4985 = vsel %vm893, %v4879, 0.0
    %4986 = vadd.xlane.f32.xlu0 %v4985
    %v4987 = vpop.xlane.xlu0 %4986
    %v4988 = vsel %vm893, %v4880, 0.0
    %4989 = vadd.xlane.f32.xlu0 %v4988
    %v4990 = vpop.xlane.xlu0 %4989
    %v4991 = vsel %vm893, %v4881, 0.0
    %4992 = vadd.xlane.f32.xlu0 %v4991
    %v4993 = vpop.xlane.xlu0 %4992
    %v4994 = vsel %vm893, %v4882, 0.0
    %4995 = vadd.xlane.f32.xlu0 %v4994
    %v4996 = vpop.xlane.xlu0 %4995
    %v4997 = vsel %vm893, %v4883, 0.0
    %4998 = vadd.xlane.f32.xlu0 %v4997
    %v4999 = vpop.xlane.xlu0 %4998
    %v5000 = vsel %vm893, %v4884, 0.0
    %5001 = vadd.xlane.f32.xlu0 %v5000
    %v5002 = vpop.xlane.xlu0 %5001
    %v5003 = vsel %vm893, %v4885, 0.0
    %5004 = vadd.xlane.f32.xlu0 %v5003
    %v5005 = vpop.xlane.xlu0 %5004
    %v5006 = vsel %vm893, %v4886, 0.0
    %5007 = vadd.xlane.f32.xlu0 %v5006
    %v5008 = vpop.xlane.xlu0 %5007
    %v5009 = vsel %vm893, %v4887, 0.0
    %5010 = vadd.xlane.f32.xlu0 %v5009
    %v5011 = vpop.xlane.xlu0 %5010
    %v5012 = vsel %vm893, %v4888, 0.0
    %5013 = vadd.xlane.f32.xlu0 %v5012
    %v5014 = vpop.xlane.xlu0 %5013
    %v5015 = vsel %vm893, %v4889, 0.0
    %5016 = vadd.xlane.f32.xlu0 %v5015
    %v5017 = vpop.xlane.xlu0 %5016
    %v5018 = vsel %vm893, %v4890, 0.0
    %5019 = vadd.xlane.f32.xlu0 %v5018
    %v5020 = vpop.xlane.xlu0 %5019
    %v5021 = vsel %vm893, %v4891, 0.0
    %5022 = vadd.xlane.f32.xlu0 %v5021
    %v5023 = vpop.xlane.xlu0 %5022
    %v5024 = vsel %vm893, %v4892, 0.0
    %5025 = vadd.xlane.f32.xlu0 %v5024
    %v5026 = vpop.xlane.xlu0 %5025
    %v5027 = vsel %vm893, %v4893, 0.0
    %5028 = vadd.xlane.f32.xlu0 %v5027
    %v5029 = vpop.xlane.xlu0 %5028
    %v5030 = vsel %vm893, %v4894, 0.0
    %5031 = vadd.xlane.f32.xlu0 %v5030
    %v5032 = vpop.xlane.xlu0 %5031
    %v5033 = vsel %vm893, %v4895, 0.0
    %5034 = vadd.xlane.f32.xlu0 %v5033
    %v5035 = vpop.xlane.xlu0 %5034
    %v5036 = vsel %vm893, %v4896, 0.0
    %5037 = vadd.xlane.f32.xlu0 %v5036
    %v5038 = vpop.xlane.xlu0 %5037
    %v5039 = vsel %vm893, %v4897, 0.0
    %5040 = vadd.xlane.f32.xlu0 %v5039
    %v5041 = vpop.xlane.xlu0 %5040
    %v5042 = vmul.f32 %v4900, %v1483
    %v5043 = vmul.f32 %v4903, %v1483
    %v5044 = vmul.f32 %v4906, %v1483
    %v5045 = vmul.f32 %v4909, %v1483
    %v5046 = vmul.f32 %v4912, %v1483
    %v5047 = vmul.f32 %v4915, %v1483
    %v5048 = vmul.f32 %v4918, %v1483
    %v5049 = vmul.f32 %v4921, %v1483
    %v5050 = vmul.f32 %v4924, %v1483
    %v5051 = vmul.f32 %v4927, %v1483
    %v5052 = vmul.f32 %v4930, %v1483
    %v5053 = vmul.f32 %v4933, %v1483
    %v5054 = vmul.f32 %v4936, %v1483
    %v5055 = vmul.f32 %v4939, %v1483
    %v5056 = vmul.f32 %v4942, %v1483
    %v5057 = vmul.f32 %v4945, %v1483
    %v5058 = vmul.f32 %v4948, %v1483
    %v5059 = vmul.f32 %v4951, %v1483
    %v5060 = vmul.f32 %v4954, %v1483
    %v5061 = vmul.f32 %v4957, %v1483
    %v5062 = vmul.f32 %v4960, %v1483
    %v5063 = vmul.f32 %v4963, %v1483
    %v5064 = vmul.f32 %v4966, %v1483
    %v5065 = vmul.f32 %v4969, %v1483
    %v5066 = vmul.f32 %v4972, %v1483
    %v5067 = vmul.f32 %v4975, %v1483
    %v5068 = vmul.f32 %v4978, %v1483
    %v5069 = vmul.f32 %v4981, %v1483
    %v5070 = vmul.f32 %v4984, %v1483
    %v5071 = vmul.f32 %v4987, %v1483
    %v5072 = vmul.f32 %v4990, %v1483
    %v5073 = vmul.f32 %v4993, %v1483
    %v5074 = vmul.f32 %v4996, %v1483
    %v5075 = vmul.f32 %v4999, %v1483
    %v5076 = vmul.f32 %v5002, %v1483
    %v5077 = vmul.f32 %v5005, %v1483
    %v5078 = vmul.f32 %v5008, %v1483
    %v5079 = vmul.f32 %v5011, %v1483
    %v5080 = vmul.f32 %v5014, %v1483
    %v5081 = vmul.f32 %v5017, %v1483
    %v5082 = vmul.f32 %v5020, %v1483
    %v5083 = vmul.f32 %v5023, %v1483
    %v5084 = vmul.f32 %v5026, %v1483
    %v5085 = vmul.f32 %v5029, %v1483
    %v5086 = vmul.f32 %v5032, %v1483
    %v5087 = vmul.f32 %v5035, %v1483
    %v5088 = vmul.f32 %v5038, %v1483
    %v5089 = vmul.f32 %v5041, %v1483
    %v5090 = vadd.f32 %v5042, 1e-05
    %v5091 = vadd.f32 %v5043, 1e-05
    %v5092 = vadd.f32 %v5044, 1e-05
    %v5093 = vadd.f32 %v5045, 1e-05
    %v5094 = vadd.f32 %v5046, 1e-05
    %v5095 = vadd.f32 %v5047, 1e-05
    %v5096 = vadd.f32 %v5048, 1e-05
    %v5097 = vadd.f32 %v5049, 1e-05
    %v5098 = vadd.f32 %v5050, 1e-05
    %v5099 = vadd.f32 %v5051, 1e-05
    %v5100 = vadd.f32 %v5052, 1e-05
    %v5101 = vadd.f32 %v5053, 1e-05
    %v5102 = vadd.f32 %v5054, 1e-05
    %v5103 = vadd.f32 %v5055, 1e-05
    %v5104 = vadd.f32 %v5056, 1e-05
    %v5105 = vadd.f32 %v5057, 1e-05
    %v5106 = vadd.f32 %v5058, 1e-05
    %v5107 = vadd.f32 %v5059, 1e-05
    %v5108 = vadd.f32 %v5060, 1e-05
    %v5109 = vadd.f32 %v5061, 1e-05
    %v5110 = vadd.f32 %v5062, 1e-05
    %v5111 = vadd.f32 %v5063, 1e-05
    %v5112 = vadd.f32 %v5064, 1e-05
    %v5113 = vadd.f32 %v5065, 1e-05
    %v5114 = vadd.f32 %v5066, 1e-05
    %v5115 = vadd.f32 %v5067, 1e-05
    %v5116 = vadd.f32 %v5068, 1e-05
    %v5117 = vadd.f32 %v5069, 1e-05
    %v5118 = vadd.f32 %v5070, 1e-05
    %v5119 = vadd.f32 %v5071, 1e-05
    %v5120 = vadd.f32 %v5072, 1e-05
    %v5121 = vadd.f32 %v5073, 1e-05
    %v5122 = vadd.f32 %v5074, 1e-05
    %v5123 = vadd.f32 %v5075, 1e-05
    %v5124 = vadd.f32 %v5076, 1e-05
    %v5125 = vadd.f32 %v5077, 1e-05
    %v5126 = vadd.f32 %v5078, 1e-05
    %v5127 = vadd.f32 %v5079, 1e-05
    %v5128 = vadd.f32 %v5080, 1e-05
    %v5129 = vadd.f32 %v5081, 1e-05
    %v5130 = vadd.f32 %v5082, 1e-05
    %v5131 = vadd.f32 %v5083, 1e-05
    %v5132 = vadd.f32 %v5084, 1e-05
    %v5133 = vadd.f32 %v5085, 1e-05
    %v5134 = vadd.f32 %v5086, 1e-05
    %v5135 = vadd.f32 %v5087, 1e-05
    %v5136 = vadd.f32 %v5088, 1e-05
    %v5137 = vadd.f32 %v5089, 1e-05
    %v5138 = vrsqrt.pop %v5090
    %v5139 = vmul.f32 %v5138, %v5090
    %v5140 = vmul.f32 %v5139, %v5138
    %v5141 = vmul.f32 0.5, %v5140
    %v5142 = vsub.f32 1.5, %v5141
    %v5143 = vmul.f32 %v5138, %v5142
    %vm5144 = vweird.f32 %v5090
    %vm5145 = vweird.f32 %v5138
    %vm5146 = vmor %vm5144, %vm5145
    %v5147 = vsel %vm5146, %v5138, %v5143
    %v5148 = vrsqrt.pop %v5091
    %v5149 = vmul.f32 %v5148, %v5091
    %v5150 = vmul.f32 %v5149, %v5148
    %v5151 = vmul.f32 0.5, %v5150
    %v5152 = vsub.f32 1.5, %v5151
    %v5153 = vmul.f32 %v5148, %v5152
    %vm5154 = vweird.f32 %v5091
    %vm5155 = vweird.f32 %v5148
    %vm5156 = vmor %vm5154, %vm5155
    %v5157 = vsel %vm5156, %v5148, %v5153
    %v5158 = vrsqrt.pop %v5092
    %v5159 = vmul.f32 %v5158, %v5092
    %v5160 = vmul.f32 %v5159, %v5158
    %v5161 = vmul.f32 0.5, %v5160
    %v5162 = vsub.f32 1.5, %v5161
    %v5163 = vmul.f32 %v5158, %v5162
    %vm5164 = vweird.f32 %v5092
    %vm5165 = vweird.f32 %v5158
    %vm5166 = vmor %vm5164, %vm5165
    %v5167 = vsel %vm5166, %v5158, %v5163
    %v5168 = vrsqrt.pop %v5093
    %v5169 = vmul.f32 %v5168, %v5093
    %v5170 = vmul.f32 %v5169, %v5168
    %v5171 = vmul.f32 0.5, %v5170
    %v5172 = vsub.f32 1.5, %v5171
    %v5173 = vmul.f32 %v5168, %v5172
    %vm5174 = vweird.f32 %v5093
    %vm5175 = vweird.f32 %v5168
    %vm5176 = vmor %vm5174, %vm5175
    %v5177 = vsel %vm5176, %v5168, %v5173
    %v5178 = vrsqrt.pop %v5094
    %v5179 = vmul.f32 %v5178, %v5094
    %v5180 = vmul.f32 %v5179, %v5178
    %v5181 = vmul.f32 0.5, %v5180
    %v5182 = vsub.f32 1.5, %v5181
    %v5183 = vmul.f32 %v5178, %v5182
    %vm5184 = vweird.f32 %v5094
    %vm5185 = vweird.f32 %v5178
    %vm5186 = vmor %vm5184, %vm5185
    %v5187 = vsel %vm5186, %v5178, %v5183
    %v5188 = vrsqrt.pop %v5095
    %v5189 = vmul.f32 %v5188, %v5095
    %v5190 = vmul.f32 %v5189, %v5188
    %v5191 = vmul.f32 0.5, %v5190
    %v5192 = vsub.f32 1.5, %v5191
    %v5193 = vmul.f32 %v5188, %v5192
    %vm5194 = vweird.f32 %v5095
    %vm5195 = vweird.f32 %v5188
    %vm5196 = vmor %vm5194, %vm5195
    %v5197 = vsel %vm5196, %v5188, %v5193
    %v5198 = vrsqrt.pop %v5096
    %v5199 = vmul.f32 %v5198, %v5096
    %v5200 = vmul.f32 %v5199, %v5198
    %v5201 = vmul.f32 0.5, %v5200
    %v5202 = vsub.f32 1.5, %v5201
    %v5203 = vmul.f32 %v5198, %v5202
    %vm5204 = vweird.f32 %v5096
    %vm5205 = vweird.f32 %v5198
    %vm5206 = vmor %vm5204, %vm5205
    %v5207 = vsel %vm5206, %v5198, %v5203
    %v5208 = vrsqrt.pop %v5097
    %v5209 = vmul.f32 %v5208, %v5097
    %v5210 = vmul.f32 %v5209, %v5208
    %v5211 = vmul.f32 0.5, %v5210
    %v5212 = vsub.f32 1.5, %v5211
    %v5213 = vmul.f32 %v5208, %v5212
    %vm5214 = vweird.f32 %v5097
    %vm5215 = vweird.f32 %v5208
    %vm5216 = vmor %vm5214, %vm5215
    %v5217 = vsel %vm5216, %v5208, %v5213
    %v5218 = vrsqrt.pop %v5098
    %v5219 = vmul.f32 %v5218, %v5098
    %v5220 = vmul.f32 %v5219, %v5218
    %v5221 = vmul.f32 0.5, %v5220
    %v5222 = vsub.f32 1.5, %v5221
    %v5223 = vmul.f32 %v5218, %v5222
    %vm5224 = vweird.f32 %v5098
    %vm5225 = vweird.f32 %v5218
    %vm5226 = vmor %vm5224, %vm5225
    %v5227 = vsel %vm5226, %v5218, %v5223
    %v5228 = vrsqrt.pop %v5099
    %v5229 = vmul.f32 %v5228, %v5099
    %v5230 = vmul.f32 %v5229, %v5228
    %v5231 = vmul.f32 0.5, %v5230
    %v5232 = vsub.f32 1.5, %v5231
    %v5233 = vmul.f32 %v5228, %v5232
    %vm5234 = vweird.f32 %v5099
    %vm5235 = vweird.f32 %v5228
    %vm5236 = vmor %vm5234, %vm5235
    %v5237 = vsel %vm5236, %v5228, %v5233
    %v5238 = vrsqrt.pop %v5100
    %v5239 = vmul.f32 %v5238, %v5100
    %v5240 = vmul.f32 %v5239, %v5238
    %v5241 = vmul.f32 0.5, %v5240
    %v5242 = vsub.f32 1.5, %v5241
    %v5243 = vmul.f32 %v5238, %v5242
    %vm5244 = vweird.f32 %v5100
    %vm5245 = vweird.f32 %v5238
    %vm5246 = vmor %vm5244, %vm5245
    %v5247 = vsel %vm5246, %v5238, %v5243
    %v5248 = vrsqrt.pop %v5101
    %v5249 = vmul.f32 %v5248, %v5101
    %v5250 = vmul.f32 %v5249, %v5248
    %v5251 = vmul.f32 0.5, %v5250
    %v5252 = vsub.f32 1.5, %v5251
    %v5253 = vmul.f32 %v5248, %v5252
    %vm5254 = vweird.f32 %v5101
    %vm5255 = vweird.f32 %v5248
    %vm5256 = vmor %vm5254, %vm5255
    %v5257 = vsel %vm5256, %v5248, %v5253
    %v5258 = vrsqrt.pop %v5102
    %v5259 = vmul.f32 %v5258, %v5102
    %v5260 = vmul.f32 %v5259, %v5258
    %v5261 = vmul.f32 0.5, %v5260
    %v5262 = vsub.f32 1.5, %v5261
    %v5263 = vmul.f32 %v5258, %v5262
    %vm5264 = vweird.f32 %v5102
    %vm5265 = vweird.f32 %v5258
    %vm5266 = vmor %vm5264, %vm5265
    %v5267 = vsel %vm5266, %v5258, %v5263
    %v5268 = vrsqrt.pop %v5103
    %v5269 = vmul.f32 %v5268, %v5103
    %v5270 = vmul.f32 %v5269, %v5268
    %v5271 = vmul.f32 0.5, %v5270
    %v5272 = vsub.f32 1.5, %v5271
    %v5273 = vmul.f32 %v5268, %v5272
    %vm5274 = vweird.f32 %v5103
    %vm5275 = vweird.f32 %v5268
    %vm5276 = vmor %vm5274, %vm5275
    %v5277 = vsel %vm5276, %v5268, %v5273
    %v5278 = vrsqrt.pop %v5104
    %v5279 = vmul.f32 %v5278, %v5104
    %v5280 = vmul.f32 %v5279, %v5278
    %v5281 = vmul.f32 0.5, %v5280
    %v5282 = vsub.f32 1.5, %v5281
    %v5283 = vmul.f32 %v5278, %v5282
    %vm5284 = vweird.f32 %v5104
    %vm5285 = vweird.f32 %v5278
    %vm5286 = vmor %vm5284, %vm5285
    %v5287 = vsel %vm5286, %v5278, %v5283
    %v5288 = vrsqrt.pop %v5105
    %v5289 = vmul.f32 %v5288, %v5105
    %v5290 = vmul.f32 %v5289, %v5288
    %v5291 = vmul.f32 0.5, %v5290
    %v5292 = vsub.f32 1.5, %v5291
    %v5293 = vmul.f32 %v5288, %v5292
    %vm5294 = vweird.f32 %v5105
    %vm5295 = vweird.f32 %v5288
    %vm5296 = vmor %vm5294, %vm5295
    %v5297 = vsel %vm5296, %v5288, %v5293
    %v5298 = vrsqrt.pop %v5106
    %v5299 = vmul.f32 %v5298, %v5106
    %v5300 = vmul.f32 %v5299, %v5298
    %v5301 = vmul.f32 0.5, %v5300
    %v5302 = vsub.f32 1.5, %v5301
    %v5303 = vmul.f32 %v5298, %v5302
    %vm5304 = vweird.f32 %v5106
    %vm5305 = vweird.f32 %v5298
    %vm5306 = vmor %vm5304, %vm5305
    %v5307 = vsel %vm5306, %v5298, %v5303
    %v5308 = vrsqrt.pop %v5107
    %v5309 = vmul.f32 %v5308, %v5107
    %v5310 = vmul.f32 %v5309, %v5308
    %v5311 = vmul.f32 0.5, %v5310
    %v5312 = vsub.f32 1.5, %v5311
    %v5313 = vmul.f32 %v5308, %v5312
    %vm5314 = vweird.f32 %v5107
    %vm5315 = vweird.f32 %v5308
    %vm5316 = vmor %vm5314, %vm5315
    %v5317 = vsel %vm5316, %v5308, %v5313
    %v5318 = vrsqrt.pop %v5108
    %v5319 = vmul.f32 %v5318, %v5108
    %v5320 = vmul.f32 %v5319, %v5318
    %v5321 = vmul.f32 0.5, %v5320
    %v5322 = vsub.f32 1.5, %v5321
    %v5323 = vmul.f32 %v5318, %v5322
    %vm5324 = vweird.f32 %v5108
    %vm5325 = vweird.f32 %v5318
    %vm5326 = vmor %vm5324, %vm5325
    %v5327 = vsel %vm5326, %v5318, %v5323
    %v5328 = vrsqrt.pop %v5109
    %v5329 = vmul.f32 %v5328, %v5109
    %v5330 = vmul.f32 %v5329, %v5328
    %v5331 = vmul.f32 0.5, %v5330
    %v5332 = vsub.f32 1.5, %v5331
    %v5333 = vmul.f32 %v5328, %v5332
    %vm5334 = vweird.f32 %v5109
    %vm5335 = vweird.f32 %v5328
    %vm5336 = vmor %vm5334, %vm5335
    %v5337 = vsel %vm5336, %v5328, %v5333
    %v5338 = vrsqrt.pop %v5110
    %v5339 = vmul.f32 %v5338, %v5110
    %v5340 = vmul.f32 %v5339, %v5338
    %v5341 = vmul.f32 0.5, %v5340
    %v5342 = vsub.f32 1.5, %v5341
    %v5343 = vmul.f32 %v5338, %v5342
    %vm5344 = vweird.f32 %v5110
    %vm5345 = vweird.f32 %v5338
    %vm5346 = vmor %vm5344, %vm5345
    %v5347 = vsel %vm5346, %v5338, %v5343
    %v5348 = vrsqrt.pop %v5111
    %v5349 = vmul.f32 %v5348, %v5111
    %v5350 = vmul.f32 %v5349, %v5348
    %v5351 = vmul.f32 0.5, %v5350
    %v5352 = vsub.f32 1.5, %v5351
    %v5353 = vmul.f32 %v5348, %v5352
    %vm5354 = vweird.f32 %v5111
    %vm5355 = vweird.f32 %v5348
    %vm5356 = vmor %vm5354, %vm5355
    %v5357 = vsel %vm5356, %v5348, %v5353
    %v5358 = vrsqrt.pop %v5112
    %v5359 = vmul.f32 %v5358, %v5112
    %v5360 = vmul.f32 %v5359, %v5358
    %v5361 = vmul.f32 0.5, %v5360
    %v5362 = vsub.f32 1.5, %v5361
    %v5363 = vmul.f32 %v5358, %v5362
    %vm5364 = vweird.f32 %v5112
    %vm5365 = vweird.f32 %v5358
    %vm5366 = vmor %vm5364, %vm5365
    %v5367 = vsel %vm5366, %v5358, %v5363
    %v5368 = vrsqrt.pop %v5113
    %v5369 = vmul.f32 %v5368, %v5113
    %v5370 = vmul.f32 %v5369, %v5368
    %v5371 = vmul.f32 0.5, %v5370
    %v5372 = vsub.f32 1.5, %v5371
    %v5373 = vmul.f32 %v5368, %v5372
    %vm5374 = vweird.f32 %v5113
    %vm5375 = vweird.f32 %v5368
    %vm5376 = vmor %vm5374, %vm5375
    %v5377 = vsel %vm5376, %v5368, %v5373
    %v5378 = vrsqrt.pop %v5114
    %v5379 = vmul.f32 %v5378, %v5114
    %v5380 = vmul.f32 %v5379, %v5378
    %v5381 = vmul.f32 0.5, %v5380
    %v5382 = vsub.f32 1.5, %v5381
    %v5383 = vmul.f32 %v5378, %v5382
    %vm5384 = vweird.f32 %v5114
    %vm5385 = vweird.f32 %v5378
    %vm5386 = vmor %vm5384, %vm5385
    %v5387 = vsel %vm5386, %v5378, %v5383
    %v5388 = vrsqrt.pop %v5115
    %v5389 = vmul.f32 %v5388, %v5115
    %v5390 = vmul.f32 %v5389, %v5388
    %v5391 = vmul.f32 0.5, %v5390
    %v5392 = vsub.f32 1.5, %v5391
    %v5393 = vmul.f32 %v5388, %v5392
    %vm5394 = vweird.f32 %v5115
    %vm5395 = vweird.f32 %v5388
    %vm5396 = vmor %vm5394, %vm5395
    %v5397 = vsel %vm5396, %v5388, %v5393
    %v5398 = vrsqrt.pop %v5116
    %v5399 = vmul.f32 %v5398, %v5116
    %v5400 = vmul.f32 %v5399, %v5398
    %v5401 = vmul.f32 0.5, %v5400
    %v5402 = vsub.f32 1.5, %v5401
    %v5403 = vmul.f32 %v5398, %v5402
    %vm5404 = vweird.f32 %v5116
    %vm5405 = vweird.f32 %v5398
    %vm5406 = vmor %vm5404, %vm5405
    %v5407 = vsel %vm5406, %v5398, %v5403
    %v5408 = vrsqrt.pop %v5117
    %v5409 = vmul.f32 %v5408, %v5117
    %v5410 = vmul.f32 %v5409, %v5408
    %v5411 = vmul.f32 0.5, %v5410
    %v5412 = vsub.f32 1.5, %v5411
    %v5413 = vmul.f32 %v5408, %v5412
    %vm5414 = vweird.f32 %v5117
    %vm5415 = vweird.f32 %v5408
    %vm5416 = vmor %vm5414, %vm5415
    %v5417 = vsel %vm5416, %v5408, %v5413
    %v5418 = vrsqrt.pop %v5118
    %v5419 = vmul.f32 %v5418, %v5118
    %v5420 = vmul.f32 %v5419, %v5418
    %v5421 = vmul.f32 0.5, %v5420
    %v5422 = vsub.f32 1.5, %v5421
    %v5423 = vmul.f32 %v5418, %v5422
    %vm5424 = vweird.f32 %v5118
    %vm5425 = vweird.f32 %v5418
    %vm5426 = vmor %vm5424, %vm5425
    %v5427 = vsel %vm5426, %v5418, %v5423
    %v5428 = vrsqrt.pop %v5119
    %v5429 = vmul.f32 %v5428, %v5119
    %v5430 = vmul.f32 %v5429, %v5428
    %v5431 = vmul.f32 0.5, %v5430
    %v5432 = vsub.f32 1.5, %v5431
    %v5433 = vmul.f32 %v5428, %v5432
    %vm5434 = vweird.f32 %v5119
    %vm5435 = vweird.f32 %v5428
    %vm5436 = vmor %vm5434, %vm5435
    %v5437 = vsel %vm5436, %v5428, %v5433
    %v5438 = vrsqrt.pop %v5120
    %v5439 = vmul.f32 %v5438, %v5120
    %v5440 = vmul.f32 %v5439, %v5438
    %v5441 = vmul.f32 0.5, %v5440
    %v5442 = vsub.f32 1.5, %v5441
    %v5443 = vmul.f32 %v5438, %v5442
    %vm5444 = vweird.f32 %v5120
    %vm5445 = vweird.f32 %v5438
    %vm5446 = vmor %vm5444, %vm5445
    %v5447 = vsel %vm5446, %v5438, %v5443
    %v5448 = vrsqrt.pop %v5121
    %v5449 = vmul.f32 %v5448, %v5121
    %v5450 = vmul.f32 %v5449, %v5448
    %v5451 = vmul.f32 0.5, %v5450
    %v5452 = vsub.f32 1.5, %v5451
    %v5453 = vmul.f32 %v5448, %v5452
    %vm5454 = vweird.f32 %v5121
    %vm5455 = vweird.f32 %v5448
    %vm5456 = vmor %vm5454, %vm5455
    %v5457 = vsel %vm5456, %v5448, %v5453
    %v5458 = vrsqrt.pop %v5122
    %v5459 = vmul.f32 %v5458, %v5122
    %v5460 = vmul.f32 %v5459, %v5458
    %v5461 = vmul.f32 0.5, %v5460
    %v5462 = vsub.f32 1.5, %v5461
    %v5463 = vmul.f32 %v5458, %v5462
    %vm5464 = vweird.f32 %v5122
    %vm5465 = vweird.f32 %v5458
    %vm5466 = vmor %vm5464, %vm5465
    %v5467 = vsel %vm5466, %v5458, %v5463
    %v5468 = vrsqrt.pop %v5123
    %v5469 = vmul.f32 %v5468, %v5123
    %v5470 = vmul.f32 %v5469, %v5468
    %v5471 = vmul.f32 0.5, %v5470
    %v5472 = vsub.f32 1.5, %v5471
    %v5473 = vmul.f32 %v5468, %v5472
    %vm5474 = vweird.f32 %v5123
    %vm5475 = vweird.f32 %v5468
    %vm5476 = vmor %vm5474, %vm5475
    %v5477 = vsel %vm5476, %v5468, %v5473
    %v5478 = vrsqrt.pop %v5124
    %v5479 = vmul.f32 %v5478, %v5124
    %v5480 = vmul.f32 %v5479, %v5478
    %v5481 = vmul.f32 0.5, %v5480
    %v5482 = vsub.f32 1.5, %v5481
    %v5483 = vmul.f32 %v5478, %v5482
    %vm5484 = vweird.f32 %v5124
    %vm5485 = vweird.f32 %v5478
    %vm5486 = vmor %vm5484, %vm5485
    %v5487 = vsel %vm5486, %v5478, %v5483
    %v5488 = vrsqrt.pop %v5125
    %v5489 = vmul.f32 %v5488, %v5125
    %v5490 = vmul.f32 %v5489, %v5488
    %v5491 = vmul.f32 0.5, %v5490
    %v5492 = vsub.f32 1.5, %v5491
    %v5493 = vmul.f32 %v5488, %v5492
    %vm5494 = vweird.f32 %v5125
    %vm5495 = vweird.f32 %v5488
    %vm5496 = vmor %vm5494, %vm5495
    %v5497 = vsel %vm5496, %v5488, %v5493
    %v5498 = vrsqrt.pop %v5126
    %v5499 = vmul.f32 %v5498, %v5126
    %v5500 = vmul.f32 %v5499, %v5498
    %v5501 = vmul.f32 0.5, %v5500
    %v5502 = vsub.f32 1.5, %v5501
    %v5503 = vmul.f32 %v5498, %v5502
    %vm5504 = vweird.f32 %v5126
    %vm5505 = vweird.f32 %v5498
    %vm5506 = vmor %vm5504, %vm5505
    %v5507 = vsel %vm5506, %v5498, %v5503
    %v5508 = vrsqrt.pop %v5127
    %v5509 = vmul.f32 %v5508, %v5127
    %v5510 = vmul.f32 %v5509, %v5508
    %v5511 = vmul.f32 0.5, %v5510
    %v5512 = vsub.f32 1.5, %v5511
    %v5513 = vmul.f32 %v5508, %v5512
    %vm5514 = vweird.f32 %v5127
    %vm5515 = vweird.f32 %v5508
    %vm5516 = vmor %vm5514, %vm5515
    %v5517 = vsel %vm5516, %v5508, %v5513
    %v5518 = vrsqrt.pop %v5128
    %v5519 = vmul.f32 %v5518, %v5128
    %v5520 = vmul.f32 %v5519, %v5518
    %v5521 = vmul.f32 0.5, %v5520
    %v5522 = vsub.f32 1.5, %v5521
    %v5523 = vmul.f32 %v5518, %v5522
    %vm5524 = vweird.f32 %v5128
    %vm5525 = vweird.f32 %v5518
    %vm5526 = vmor %vm5524, %vm5525
    %v5527 = vsel %vm5526, %v5518, %v5523
    %v5528 = vrsqrt.pop %v5129
    %v5529 = vmul.f32 %v5528, %v5129
    %v5530 = vmul.f32 %v5529, %v5528
    %v5531 = vmul.f32 0.5, %v5530
    %v5532 = vsub.f32 1.5, %v5531
    %v5533 = vmul.f32 %v5528, %v5532
    %vm5534 = vweird.f32 %v5129
    %vm5535 = vweird.f32 %v5528
    %vm5536 = vmor %vm5534, %vm5535
    %v5537 = vsel %vm5536, %v5528, %v5533
    %v5538 = vrsqrt.pop %v5130
    %v5539 = vmul.f32 %v5538, %v5130
    %v5540 = vmul.f32 %v5539, %v5538
    %v5541 = vmul.f32 0.5, %v5540
    %v5542 = vsub.f32 1.5, %v5541
    %v5543 = vmul.f32 %v5538, %v5542
    %vm5544 = vweird.f32 %v5130
    %vm5545 = vweird.f32 %v5538
    %vm5546 = vmor %vm5544, %vm5545
    %v5547 = vsel %vm5546, %v5538, %v5543
    %v5548 = vrsqrt.pop %v5131
    %v5549 = vmul.f32 %v5548, %v5131
    %v5550 = vmul.f32 %v5549, %v5548
    %v5551 = vmul.f32 0.5, %v5550
    %v5552 = vsub.f32 1.5, %v5551
    %v5553 = vmul.f32 %v5548, %v5552
    %vm5554 = vweird.f32 %v5131
    %vm5555 = vweird.f32 %v5548
    %vm5556 = vmor %vm5554, %vm5555
    %v5557 = vsel %vm5556, %v5548, %v5553
    %v5558 = vrsqrt.pop %v5132
    %v5559 = vmul.f32 %v5558, %v5132
    %v5560 = vmul.f32 %v5559, %v5558
    %v5561 = vmul.f32 0.5, %v5560
    %v5562 = vsub.f32 1.5, %v5561
    %v5563 = vmul.f32 %v5558, %v5562
    %vm5564 = vweird.f32 %v5132
    %vm5565 = vweird.f32 %v5558
    %vm5566 = vmor %vm5564, %vm5565
    %v5567 = vsel %vm5566, %v5558, %v5563
    %v5568 = vrsqrt.pop %v5133
    %v5569 = vmul.f32 %v5568, %v5133
    %v5570 = vmul.f32 %v5569, %v5568
    %v5571 = vmul.f32 0.5, %v5570
    %v5572 = vsub.f32 1.5, %v5571
    %v5573 = vmul.f32 %v5568, %v5572
    %vm5574 = vweird.f32 %v5133
    %vm5575 = vweird.f32 %v5568
    %vm5576 = vmor %vm5574, %vm5575
    %v5577 = vsel %vm5576, %v5568, %v5573
    %v5578 = vrsqrt.pop %v5134
    %v5579 = vmul.f32 %v5578, %v5134
    %v5580 = vmul.f32 %v5579, %v5578
    %v5581 = vmul.f32 0.5, %v5580
    %v5582 = vsub.f32 1.5, %v5581
    %v5583 = vmul.f32 %v5578, %v5582
    %vm5584 = vweird.f32 %v5134
    %vm5585 = vweird.f32 %v5578
    %vm5586 = vmor %vm5584, %vm5585
    %v5587 = vsel %vm5586, %v5578, %v5583
    %v5588 = vrsqrt.pop %v5135
    %v5589 = vmul.f32 %v5588, %v5135
    %v5590 = vmul.f32 %v5589, %v5588
    %v5591 = vmul.f32 0.5, %v5590
    %v5592 = vsub.f32 1.5, %v5591
    %v5593 = vmul.f32 %v5588, %v5592
    %vm5594 = vweird.f32 %v5135
    %vm5595 = vweird.f32 %v5588
    %vm5596 = vmor %vm5594, %vm5595
    %v5597 = vsel %vm5596, %v5588, %v5593
    %v5598 = vrsqrt.pop %v5136
    %v5599 = vmul.f32 %v5598, %v5136
    %v5600 = vmul.f32 %v5599, %v5598
    %v5601 = vmul.f32 0.5, %v5600
    %v5602 = vsub.f32 1.5, %v5601
    %v5603 = vmul.f32 %v5598, %v5602
    %vm5604 = vweird.f32 %v5136
    %vm5605 = vweird.f32 %v5598
    %vm5606 = vmor %vm5604, %vm5605
    %v5607 = vsel %vm5606, %v5598, %v5603
    %v5608 = vrsqrt.pop %v5137
    %v5609 = vmul.f32 %v5608, %v5137
    %v5610 = vmul.f32 %v5609, %v5608
    %v5611 = vmul.f32 0.5, %v5610
    %v5612 = vsub.f32 1.5, %v5611
    %v5613 = vmul.f32 %v5608, %v5612
    %vm5614 = vweird.f32 %v5137
    %vm5615 = vweird.f32 %v5608
    %vm5616 = vmor %vm5614, %vm5615
    %v5617 = vsel %vm5616, %v5608, %v5613
    %v5618 = vmul.f32 %v4802, %v5147
    %v5619 = vmul.f32 %v4803, %v5157
    %v5620 = vmul.f32 %v4804, %v5167
    %v5621 = vmul.f32 %v4805, %v5177
    %v5622 = vmul.f32 %v4806, %v5187
    %v5623 = vmul.f32 %v4807, %v5197
    %v5624 = vmul.f32 %v4808, %v5207
    %v5625 = vmul.f32 %v4809, %v5217
    %v5626 = vmul.f32 %v4810, %v5227
    %v5627 = vmul.f32 %v4811, %v5237
    %v5628 = vmul.f32 %v4812, %v5247
    %v5629 = vmul.f32 %v4813, %v5257
    %v5630 = vmul.f32 %v4814, %v5267
    %v5631 = vmul.f32 %v4815, %v5277
    %v5632 = vmul.f32 %v4816, %v5287
    %v5633 = vmul.f32 %v4817, %v5297
    %v5634 = vmul.f32 %v4818, %v5307
    %v5635 = vmul.f32 %v4819, %v5317
    %v5636 = vmul.f32 %v4820, %v5327
    %v5637 = vmul.f32 %v4821, %v5337
    %v5638 = vmul.f32 %v4822, %v5347
    %v5639 = vmul.f32 %v4823, %v5357
    %v5640 = vmul.f32 %v4824, %v5367
    %v5641 = vmul.f32 %v4825, %v5377
    %v5642 = vmul.f32 %v4826, %v5387
    %v5643 = vmul.f32 %v4827, %v5397
    %v5644 = vmul.f32 %v4828, %v5407
    %v5645 = vmul.f32 %v4829, %v5417
    %v5646 = vmul.f32 %v4830, %v5427
    %v5647 = vmul.f32 %v4831, %v5437
    %v5648 = vmul.f32 %v4832, %v5447
    %v5649 = vmul.f32 %v4833, %v5457
    %v5650 = vmul.f32 %v4834, %v5467
    %v5651 = vmul.f32 %v4835, %v5477
    %v5652 = vmul.f32 %v4836, %v5487
    %v5653 = vmul.f32 %v4837, %v5497
    %v5654 = vmul.f32 %v4838, %v5507
    %v5655 = vmul.f32 %v4839, %v5517
    %v5656 = vmul.f32 %v4840, %v5527
    %v5657 = vmul.f32 %v4841, %v5537
    %v5658 = vmul.f32 %v4842, %v5547
    %v5659 = vmul.f32 %v4843, %v5557
    %v5660 = vmul.f32 %v4844, %v5567
    %v5661 = vmul.f32 %v4845, %v5577
    %v5662 = vmul.f32 %v4846, %v5587
    %v5663 = vmul.f32 %v4847, %v5597
    %v5664 = vmul.f32 %v4848, %v5607
    %v5665 = vmul.f32 %v4849, %v5617
    %v5666 = vperm.slane %v4130, 0
    %v5667 = vmul.f32 %v5618, %v5666
    %v5668 = vmul.f32 %v5619, %v5666
    %v5669 = vmul.f32 %v5620, %v5666
    %v5670 = vmul.f32 %v5621, %v5666
    %v5671 = vmul.f32 %v5622, %v5666
    %v5672 = vmul.f32 %v5623, %v5666
    %v5673 = vmul.f32 %v5624, %v5666
    %v5674 = vmul.f32 %v5625, %v5666
    %v5675 = vmul.f32 %v5626, %v5666
    %v5676 = vmul.f32 %v5627, %v5666
    %v5677 = vmul.f32 %v5628, %v5666
    %v5678 = vmul.f32 %v5629, %v5666
    %v5679 = vmul.f32 %v5630, %v5666
    %v5680 = vmul.f32 %v5631, %v5666
    %v5681 = vmul.f32 %v5632, %v5666
    %v5682 = vmul.f32 %v5633, %v5666
    %v5683 = vmul.f32 %v5634, %v5666
    %v5684 = vmul.f32 %v5635, %v5666
    %v5685 = vmul.f32 %v5636, %v5666
    %v5686 = vmul.f32 %v5637, %v5666
    %v5687 = vmul.f32 %v5638, %v5666
    %v5688 = vmul.f32 %v5639, %v5666
    %v5689 = vmul.f32 %v5640, %v5666
    %v5690 = vmul.f32 %v5641, %v5666
    %v5691 = vmul.f32 %v5642, %v5666
    %v5692 = vmul.f32 %v5643, %v5666
    %v5693 = vmul.f32 %v5644, %v5666
    %v5694 = vmul.f32 %v5645, %v5666
    %v5695 = vmul.f32 %v5646, %v5666
    %v5696 = vmul.f32 %v5647, %v5666
    %v5697 = vmul.f32 %v5648, %v5666
    %v5698 = vmul.f32 %v5649, %v5666
    %v5699 = vmul.f32 %v5650, %v5666
    %v5700 = vmul.f32 %v5651, %v5666
    %v5701 = vmul.f32 %v5652, %v5666
    %v5702 = vmul.f32 %v5653, %v5666
    %v5703 = vmul.f32 %v5654, %v5666
    %v5704 = vmul.f32 %v5655, %v5666
    %v5705 = vmul.f32 %v5656, %v5666
    %v5706 = vmul.f32 %v5657, %v5666
    %v5707 = vmul.f32 %v5658, %v5666
    %v5708 = vmul.f32 %v5659, %v5666
    %v5709 = vmul.f32 %v5660, %v5666
    %v5710 = vmul.f32 %v5661, %v5666
    %v5711 = vmul.f32 %v5662, %v5666
    %v5712 = vmul.f32 %v5663, %v5666
    %v5713 = vmul.f32 %v5664, %v5666
    %v5714 = vmul.f32 %v5665, %v5666
    %v5715 = vperm.slane %v4131, 0
    %v5716 = vadd.f32 %v5667, %v5715
    %v5717 = vadd.f32 %v5668, %v5715
    %v5718 = vadd.f32 %v5669, %v5715
    %v5719 = vadd.f32 %v5670, %v5715
    %v5720 = vadd.f32 %v5671, %v5715
    %v5721 = vadd.f32 %v5672, %v5715
    %v5722 = vadd.f32 %v5673, %v5715
    %v5723 = vadd.f32 %v5674, %v5715
    %v5724 = vadd.f32 %v5675, %v5715
    %v5725 = vadd.f32 %v5676, %v5715
    %v5726 = vadd.f32 %v5677, %v5715
    %v5727 = vadd.f32 %v5678, %v5715
    %v5728 = vadd.f32 %v5679, %v5715
    %v5729 = vadd.f32 %v5680, %v5715
    %v5730 = vadd.f32 %v5681, %v5715
    %v5731 = vadd.f32 %v5682, %v5715
    %v5732 = vadd.f32 %v5683, %v5715
    %v5733 = vadd.f32 %v5684, %v5715
    %v5734 = vadd.f32 %v5685, %v5715
    %v5735 = vadd.f32 %v5686, %v5715
    %v5736 = vadd.f32 %v5687, %v5715
    %v5737 = vadd.f32 %v5688, %v5715
    %v5738 = vadd.f32 %v5689, %v5715
    %v5739 = vadd.f32 %v5690, %v5715
    %v5740 = vadd.f32 %v5691, %v5715
    %v5741 = vadd.f32 %v5692, %v5715
    %v5742 = vadd.f32 %v5693, %v5715
    %v5743 = vadd.f32 %v5694, %v5715
    %v5744 = vadd.f32 %v5695, %v5715
    %v5745 = vadd.f32 %v5696, %v5715
    %v5746 = vadd.f32 %v5697, %v5715
    %v5747 = vadd.f32 %v5698, %v5715
    %v5748 = vadd.f32 %v5699, %v5715
    %v5749 = vadd.f32 %v5700, %v5715
    %v5750 = vadd.f32 %v5701, %v5715
    %v5751 = vadd.f32 %v5702, %v5715
    %v5752 = vadd.f32 %v5703, %v5715
    %v5753 = vadd.f32 %v5704, %v5715
    %v5754 = vadd.f32 %v5705, %v5715
    %v5755 = vadd.f32 %v5706, %v5715
    %v5756 = vadd.f32 %v5707, %v5715
    %v5757 = vadd.f32 %v5708, %v5715
    %v5758 = vadd.f32 %v5709, %v5715
    %v5759 = vadd.f32 %v5710, %v5715
    %v5760 = vadd.f32 %v5711, %v5715
    %v5761 = vadd.f32 %v5712, %v5715
    %v5762 = vadd.f32 %v5713, %v5715
    %v5763 = vadd.f32 %v5714, %v5715
    %v5764 = vmul.f32 %v5716, %v5716
    %v5765 = vmul.f32 %v5717, %v5717
    %v5766 = vmul.f32 %v5718, %v5718
    %v5767 = vmul.f32 %v5719, %v5719
    %v5768 = vmul.f32 %v5720, %v5720
    %v5769 = vmul.f32 %v5721, %v5721
    %v5770 = vmul.f32 %v5722, %v5722
    %v5771 = vmul.f32 %v5723, %v5723
    %v5772 = vmul.f32 %v5724, %v5724
    %v5773 = vmul.f32 %v5725, %v5725
    %v5774 = vmul.f32 %v5726, %v5726
    %v5775 = vmul.f32 %v5727, %v5727
    %v5776 = vmul.f32 %v5728, %v5728
    %v5777 = vmul.f32 %v5729, %v5729
    %v5778 = vmul.f32 %v5730, %v5730
    %v5779 = vmul.f32 %v5731, %v5731
    %v5780 = vmul.f32 %v5732, %v5732
    %v5781 = vmul.f32 %v5733, %v5733
    %v5782 = vmul.f32 %v5734, %v5734
    %v5783 = vmul.f32 %v5735, %v5735
    %v5784 = vmul.f32 %v5736, %v5736
    %v5785 = vmul.f32 %v5737, %v5737
    %v5786 = vmul.f32 %v5738, %v5738
    %v5787 = vmul.f32 %v5739, %v5739
    %v5788 = vmul.f32 %v5740, %v5740
    %v5789 = vmul.f32 %v5741, %v5741
    %v5790 = vmul.f32 %v5742, %v5742
    %v5791 = vmul.f32 %v5743, %v5743
    %v5792 = vmul.f32 %v5744, %v5744
    %v5793 = vmul.f32 %v5745, %v5745
    %v5794 = vmul.f32 %v5746, %v5746
    %v5795 = vmul.f32 %v5747, %v5747
    %v5796 = vmul.f32 %v5748, %v5748
    %v5797 = vmul.f32 %v5749, %v5749
    %v5798 = vmul.f32 %v5750, %v5750
    %v5799 = vmul.f32 %v5751, %v5751
    %v5800 = vmul.f32 %v5752, %v5752
    %v5801 = vmul.f32 %v5753, %v5753
    %v5802 = vmul.f32 %v5754, %v5754
    %v5803 = vmul.f32 %v5755, %v5755
    %v5804 = vmul.f32 %v5756, %v5756
    %v5805 = vmul.f32 %v5757, %v5757
    %v5806 = vmul.f32 %v5758, %v5758
    %v5807 = vmul.f32 %v5759, %v5759
    %v5808 = vmul.f32 %v5760, %v5760
    %v5809 = vmul.f32 %v5761, %v5761
    %v5810 = vmul.f32 %v5762, %v5762
    %v5811 = vmul.f32 %v5763, %v5763
    %v5812 = vmul.f32 %v5716, %v5764
    %v5813 = vmul.f32 %v5717, %v5765
    %v5814 = vmul.f32 %v5718, %v5766
    %v5815 = vmul.f32 %v5719, %v5767
    %v5816 = vmul.f32 %v5720, %v5768
    %v5817 = vmul.f32 %v5721, %v5769
    %v5818 = vmul.f32 %v5722, %v5770
    %v5819 = vmul.f32 %v5723, %v5771
    %v5820 = vmul.f32 %v5724, %v5772
    %v5821 = vmul.f32 %v5725, %v5773
    %v5822 = vmul.f32 %v5726, %v5774
    %v5823 = vmul.f32 %v5727, %v5775
    %v5824 = vmul.f32 %v5728, %v5776
    %v5825 = vmul.f32 %v5729, %v5777
    %v5826 = vmul.f32 %v5730, %v5778
    %v5827 = vmul.f32 %v5731, %v5779
    %v5828 = vmul.f32 %v5732, %v5780
    %v5829 = vmul.f32 %v5733, %v5781
    %v5830 = vmul.f32 %v5734, %v5782
    %v5831 = vmul.f32 %v5735, %v5783
    %v5832 = vmul.f32 %v5736, %v5784
    %v5833 = vmul.f32 %v5737, %v5785
    %v5834 = vmul.f32 %v5738, %v5786
    %v5835 = vmul.f32 %v5739, %v5787
    %v5836 = vmul.f32 %v5740, %v5788
    %v5837 = vmul.f32 %v5741, %v5789
    %v5838 = vmul.f32 %v5742, %v5790
    %v5839 = vmul.f32 %v5743, %v5791
    %v5840 = vmul.f32 %v5744, %v5792
    %v5841 = vmul.f32 %v5745, %v5793
    %v5842 = vmul.f32 %v5746, %v5794
    %v5843 = vmul.f32 %v5747, %v5795
    %v5844 = vmul.f32 %v5748, %v5796
    %v5845 = vmul.f32 %v5749, %v5797
    %v5846 = vmul.f32 %v5750, %v5798
    %v5847 = vmul.f32 %v5751, %v5799
    %v5848 = vmul.f32 %v5752, %v5800
    %v5849 = vmul.f32 %v5753, %v5801
    %v5850 = vmul.f32 %v5754, %v5802
    %v5851 = vmul.f32 %v5755, %v5803
    %v5852 = vmul.f32 %v5756, %v5804
    %v5853 = vmul.f32 %v5757, %v5805
    %v5854 = vmul.f32 %v5758, %v5806
    %v5855 = vmul.f32 %v5759, %v5807
    %v5856 = vmul.f32 %v5760, %v5808
    %v5857 = vmul.f32 %v5761, %v5809
    %v5858 = vmul.f32 %v5762, %v5810
    %v5859 = vmul.f32 %v5763, %v5811
    %v5860 = vmul.f32 %v5812, 0.044715
    %v5861 = vmul.f32 %v5813, 0.044715
    %v5862 = vmul.f32 %v5814, 0.044715
    %v5863 = vmul.f32 %v5815, 0.044715
    %v5864 = vmul.f32 %v5816, 0.044715
    %v5865 = vmul.f32 %v5817, 0.044715
    %v5866 = vmul.f32 %v5818, 0.044715
    %v5867 = vmul.f32 %v5819, 0.044715
    %v5868 = vmul.f32 %v5820, 0.044715
    %v5869 = vmul.f32 %v5821, 0.044715
    %v5870 = vmul.f32 %v5822, 0.044715
    %v5871 = vmul.f32 %v5823, 0.044715
    %v5872 = vmul.f32 %v5824, 0.044715
    %v5873 = vmul.f32 %v5825, 0.044715
    %v5874 = vmul.f32 %v5826, 0.044715
    %v5875 = vmul.f32 %v5827, 0.044715
    %v5876 = vmul.f32 %v5828, 0.044715
    %v5877 = vmul.f32 %v5829, 0.044715
    %v5878 = vmul.f32 %v5830, 0.044715
    %v5879 = vmul.f32 %v5831, 0.044715
    %v5880 = vmul.f32 %v5832, 0.044715
    %v5881 = vmul.f32 %v5833, 0.044715
    %v5882 = vmul.f32 %v5834, 0.044715
    %v5883 = vmul.f32 %v5835, 0.044715
    %v5884 = vmul.f32 %v5836, 0.044715
    %v5885 = vmul.f32 %v5837, 0.044715
    %v5886 = vmul.f32 %v5838, 0.044715
    %v5887 = vmul.f32 %v5839, 0.044715
    %v5888 = vmul.f32 %v5840, 0.044715
    %v5889 = vmul.f32 %v5841, 0.044715
    %v5890 = vmul.f32 %v5842, 0.044715
    %v5891 = vmul.f32 %v5843, 0.044715
    %v5892 = vmul.f32 %v5844, 0.044715
    %v5893 = vmul.f32 %v5845, 0.044715
    %v5894 = vmul.f32 %v5846, 0.044715
    %v5895 = vmul.f32 %v5847, 0.044715
    %v5896 = vmul.f32 %v5848, 0.044715
    %v5897 = vmul.f32 %v5849, 0.044715
    %v5898 = vmul.f32 %v5850, 0.044715
    %v5899 = vmul.f32 %v5851, 0.044715
    %v5900 = vmul.f32 %v5852, 0.044715
    %v5901 = vmul.f32 %v5853, 0.044715
    %v5902 = vmul.f32 %v5854, 0.044715
    %v5903 = vmul.f32 %v5855, 0.044715
    %v5904 = vmul.f32 %v5856, 0.044715
    %v5905 = vmul.f32 %v5857, 0.044715
    %v5906 = vmul.f32 %v5858, 0.044715
    %v5907 = vmul.f32 %v5859, 0.044715
    %v5908 = vadd.f32 %v5716, %v5860
    %v5909 = vadd.f32 %v5717, %v5861
    %v5910 = vadd.f32 %v5718, %v5862
    %v5911 = vadd.f32 %v5719, %v5863
    %v5912 = vadd.f32 %v5720, %v5864
    %v5913 = vadd.f32 %v5721, %v5865
    %v5914 = vadd.f32 %v5722, %v5866
    %v5915 = vadd.f32 %v5723, %v5867
    %v5916 = vadd.f32 %v5724, %v5868
    %v5917 = vadd.f32 %v5725, %v5869
    %v5918 = vadd.f32 %v5726, %v5870
    %v5919 = vadd.f32 %v5727, %v5871
    %v5920 = vadd.f32 %v5728, %v5872
    %v5921 = vadd.f32 %v5729, %v5873
    %v5922 = vadd.f32 %v5730, %v5874
    %v5923 = vadd.f32 %v5731, %v5875
    %v5924 = vadd.f32 %v5732, %v5876
    %v5925 = vadd.f32 %v5733, %v5877
    %v5926 = vadd.f32 %v5734, %v5878
    %v5927 = vadd.f32 %v5735, %v5879
    %v5928 = vadd.f32 %v5736, %v5880
    %v5929 = vadd.f32 %v5737, %v5881
    %v5930 = vadd.f32 %v5738, %v5882
    %v5931 = vadd.f32 %v5739, %v5883
    %v5932 = vadd.f32 %v5740, %v5884
    %v5933 = vadd.f32 %v5741, %v5885
    %v5934 = vadd.f32 %v5742, %v5886
    %v5935 = vadd.f32 %v5743, %v5887
    %v5936 = vadd.f32 %v5744, %v5888
    %v5937 = vadd.f32 %v5745, %v5889
    %v5938 = vadd.f32 %v5746, %v5890
    %v5939 = vadd.f32 %v5747, %v5891
    %v5940 = vadd.f32 %v5748, %v5892
    %v5941 = vadd.f32 %v5749, %v5893
    %v5942 = vadd.f32 %v5750, %v5894
    %v5943 = vadd.f32 %v5751, %v5895
    %v5944 = vadd.f32 %v5752, %v5896
    %v5945 = vadd.f32 %v5753, %v5897
    %v5946 = vadd.f32 %v5754, %v5898
    %v5947 = vadd.f32 %v5755, %v5899
    %v5948 = vadd.f32 %v5756, %v5900
    %v5949 = vadd.f32 %v5757, %v5901
    %v5950 = vadd.f32 %v5758, %v5902
    %v5951 = vadd.f32 %v5759, %v5903
    %v5952 = vadd.f32 %v5760, %v5904
    %v5953 = vadd.f32 %v5761, %v5905
    %v5954 = vadd.f32 %v5762, %v5906
    %v5955 = vadd.f32 %v5763, %v5907
    %v5956 = vmul.f32 %v5908, 0.7978846
    %v5957 = vmul.f32 %v5909, 0.7978846
    %v5958 = vmul.f32 %v5910, 0.7978846
    %v5959 = vmul.f32 %v5911, 0.7978846
    %v5960 = vmul.f32 %v5912, 0.7978846
    %v5961 = vmul.f32 %v5913, 0.7978846
    %v5962 = vmul.f32 %v5914, 0.7978846
    %v5963 = vmul.f32 %v5915, 0.7978846
    %v5964 = vmul.f32 %v5916, 0.7978846
    %v5965 = vmul.f32 %v5917, 0.7978846
    %v5966 = vmul.f32 %v5918, 0.7978846
    %v5967 = vmul.f32 %v5919, 0.7978846
    %v5968 = vmul.f32 %v5920, 0.7978846
    %v5969 = vmul.f32 %v5921, 0.7978846
    %v5970 = vmul.f32 %v5922, 0.7978846
    %v5971 = vmul.f32 %v5923, 0.7978846
    %v5972 = vmul.f32 %v5924, 0.7978846
    %v5973 = vmul.f32 %v5925, 0.7978846
    %v5974 = vmul.f32 %v5926, 0.7978846
    %v5975 = vmul.f32 %v5927, 0.7978846
    %v5976 = vmul.f32 %v5928, 0.7978846
    %v5977 = vmul.f32 %v5929, 0.7978846
    %v5978 = vmul.f32 %v5930, 0.7978846
    %v5979 = vmul.f32 %v5931, 0.7978846
    %v5980 = vmul.f32 %v5932, 0.7978846
    %v5981 = vmul.f32 %v5933, 0.7978846
    %v5982 = vmul.f32 %v5934, 0.7978846
    %v5983 = vmul.f32 %v5935, 0.7978846
    %v5984 = vmul.f32 %v5936, 0.7978846
    %v5985 = vmul.f32 %v5937, 0.7978846
    %v5986 = vmul.f32 %v5938, 0.7978846
    %v5987 = vmul.f32 %v5939, 0.7978846
    %v5988 = vmul.f32 %v5940, 0.7978846
    %v5989 = vmul.f32 %v5941, 0.7978846
    %v5990 = vmul.f32 %v5942, 0.7978846
    %v5991 = vmul.f32 %v5943, 0.7978846
    %v5992 = vmul.f32 %v5944, 0.7978846
    %v5993 = vmul.f32 %v5945, 0.7978846
    %v5994 = vmul.f32 %v5946, 0.7978846
    %v5995 = vmul.f32 %v5947, 0.7978846
    %v5996 = vmul.f32 %v5948, 0.7978846
    %v5997 = vmul.f32 %v5949, 0.7978846
    %v5998 = vmul.f32 %v5950, 0.7978846
    %v5999 = vmul.f32 %v5951, 0.7978846
    %v6000 = vmul.f32 %v5952, 0.7978846
    %v6001 = vmul.f32 %v5953, 0.7978846
    %v6002 = vmul.f32 %v5954, 0.7978846
    %v6003 = vmul.f32 %v5955, 0.7978846
    %v6004 = vtanh.pop %v5956
    %v6005 = vtanh.pop %v5957
    %v6006 = vtanh.pop %v5958
    %v6007 = vtanh.pop %v5959
    %v6008 = vtanh.pop %v5960
    %v6009 = vtanh.pop %v5961
    %v6010 = vtanh.pop %v5962
    %v6011 = vtanh.pop %v5963
    %v6012 = vtanh.pop %v5964
    %v6013 = vtanh.pop %v5965
    %v6014 = vtanh.pop %v5966
    %v6015 = vtanh.pop %v5967
    %v6016 = vtanh.pop %v5968
    %v6017 = vtanh.pop %v5969
    %v6018 = vtanh.pop %v5970
    %v6019 = vtanh.pop %v5971
    %v6020 = vtanh.pop %v5972
    %v6021 = vtanh.pop %v5973
    %v6022 = vtanh.pop %v5974
    %v6023 = vtanh.pop %v5975
    %v6024 = vtanh.pop %v5976
    %v6025 = vtanh.pop %v5977
    %v6026 = vtanh.pop %v5978
    %v6027 = vtanh.pop %v5979
    %v6028 = vtanh.pop %v5980
    %v6029 = vtanh.pop %v5981
    %v6030 = vtanh.pop %v5982
    %v6031 = vtanh.pop %v5983
    %v6032 = vtanh.pop %v5984
    %v6033 = vtanh.pop %v5985
    %v6034 = vtanh.pop %v5986
    %v6035 = vtanh.pop %v5987
    %v6036 = vtanh.pop %v5988
    %v6037 = vtanh.pop %v5989
    %v6038 = vtanh.pop %v5990
    %v6039 = vtanh.pop %v5991
    %v6040 = vtanh.pop %v5992
    %v6041 = vtanh.pop %v5993
    %v6042 = vtanh.pop %v5994
    %v6043 = vtanh.pop %v5995
    %v6044 = vtanh.pop %v5996
    %v6045 = vtanh.pop %v5997
    %v6046 = vtanh.pop %v5998
    %v6047 = vtanh.pop %v5999
    %v6048 = vtanh.pop %v6000
    %v6049 = vtanh.pop %v6001
    %v6050 = vtanh.pop %v6002
    %v6051 = vtanh.pop %v6003
    %v6052 = vadd.f32 %v6004, 1.0
    %v6053 = vadd.f32 %v6005, 1.0
    %v6054 = vadd.f32 %v6006, 1.0
    %v6055 = vadd.f32 %v6007, 1.0
    %v6056 = vadd.f32 %v6008, 1.0
    %v6057 = vadd.f32 %v6009, 1.0
    %v6058 = vadd.f32 %v6010, 1.0
    %v6059 = vadd.f32 %v6011, 1.0
    %v6060 = vadd.f32 %v6012, 1.0
    %v6061 = vadd.f32 %v6013, 1.0
    %v6062 = vadd.f32 %v6014, 1.0
    %v6063 = vadd.f32 %v6015, 1.0
    %v6064 = vadd.f32 %v6016, 1.0
    %v6065 = vadd.f32 %v6017, 1.0
    %v6066 = vadd.f32 %v6018, 1.0
    %v6067 = vadd.f32 %v6019, 1.0
    %v6068 = vadd.f32 %v6020, 1.0
    %v6069 = vadd.f32 %v6021, 1.0
    %v6070 = vadd.f32 %v6022, 1.0
    %v6071 = vadd.f32 %v6023, 1.0
    %v6072 = vadd.f32 %v6024, 1.0
    %v6073 = vadd.f32 %v6025, 1.0
    %v6074 = vadd.f32 %v6026, 1.0
    %v6075 = vadd.f32 %v6027, 1.0
    %v6076 = vadd.f32 %v6028, 1.0
    %v6077 = vadd.f32 %v6029, 1.0
    %v6078 = vadd.f32 %v6030, 1.0
    %v6079 = vadd.f32 %v6031, 1.0
    %v6080 = vadd.f32 %v6032, 1.0
    %v6081 = vadd.f32 %v6033, 1.0
    %v6082 = vadd.f32 %v6034, 1.0
    %v6083 = vadd.f32 %v6035, 1.0
    %v6084 = vadd.f32 %v6036, 1.0
    %v6085 = vadd.f32 %v6037, 1.0
    %v6086 = vadd.f32 %v6038, 1.0
    %v6087 = vadd.f32 %v6039, 1.0
    %v6088 = vadd.f32 %v6040, 1.0
    %v6089 = vadd.f32 %v6041, 1.0
    %v6090 = vadd.f32 %v6042, 1.0
    %v6091 = vadd.f32 %v6043, 1.0
    %v6092 = vadd.f32 %v6044, 1.0
    %v6093 = vadd.f32 %v6045, 1.0
    %v6094 = vadd.f32 %v6046, 1.0
    %v6095 = vadd.f32 %v6047, 1.0
    %v6096 = vadd.f32 %v6048, 1.0
    %v6097 = vadd.f32 %v6049, 1.0
    %v6098 = vadd.f32 %v6050, 1.0
    %v6099 = vadd.f32 %v6051, 1.0
    %v6100 = vmul.f32 %v6052, 0.5
    %v6101 = vmul.f32 %v6053, 0.5
    %v6102 = vmul.f32 %v6054, 0.5
    %v6103 = vmul.f32 %v6055, 0.5
    %v6104 = vmul.f32 %v6056, 0.5
    %v6105 = vmul.f32 %v6057, 0.5
    %v6106 = vmul.f32 %v6058, 0.5
    %v6107 = vmul.f32 %v6059, 0.5
    %v6108 = vmul.f32 %v6060, 0.5
    %v6109 = vmul.f32 %v6061, 0.5
    %v6110 = vmul.f32 %v6062, 0.5
    %v6111 = vmul.f32 %v6063, 0.5
    %v6112 = vmul.f32 %v6064, 0.5
    %v6113 = vmul.f32 %v6065, 0.5
    %v6114 = vmul.f32 %v6066, 0.5
    %v6115 = vmul.f32 %v6067, 0.5
    %v6116 = vmul.f32 %v6068, 0.5
    %v6117 = vmul.f32 %v6069, 0.5
    %v6118 = vmul.f32 %v6070, 0.5
    %v6119 = vmul.f32 %v6071, 0.5
    %v6120 = vmul.f32 %v6072, 0.5
    %v6121 = vmul.f32 %v6073, 0.5
    %v6122 = vmul.f32 %v6074, 0.5
    %v6123 = vmul.f32 %v6075, 0.5
    %v6124 = vmul.f32 %v6076, 0.5
    %v6125 = vmul.f32 %v6077, 0.5
    %v6126 = vmul.f32 %v6078, 0.5
    %v6127 = vmul.f32 %v6079, 0.5
    %v6128 = vmul.f32 %v6080, 0.5
    %v6129 = vmul.f32 %v6081, 0.5
    %v6130 = vmul.f32 %v6082, 0.5
    %v6131 = vmul.f32 %v6083, 0.5
    %v6132 = vmul.f32 %v6084, 0.5
    %v6133 = vmul.f32 %v6085, 0.5
    %v6134 = vmul.f32 %v6086, 0.5
    %v6135 = vmul.f32 %v6087, 0.5
    %v6136 = vmul.f32 %v6088, 0.5
    %v6137 = vmul.f32 %v6089, 0.5
    %v6138 = vmul.f32 %v6090, 0.5
    %v6139 = vmul.f32 %v6091, 0.5
    %v6140 = vmul.f32 %v6092, 0.5
    %v6141 = vmul.f32 %v6093, 0.5
    %v6142 = vmul.f32 %v6094, 0.5
    %v6143 = vmul.f32 %v6095, 0.5
    %v6144 = vmul.f32 %v6096, 0.5
    %v6145 = vmul.f32 %v6097, 0.5
    %v6146 = vmul.f32 %v6098, 0.5
    %v6147 = vmul.f32 %v6099, 0.5
    %v6148 = vmul.f32 %v5716, %v6100
    %v6149 = vmul.f32 %v5717, %v6101
    %v6150 = vmul.f32 %v5718, %v6102
    %v6151 = vmul.f32 %v5719, %v6103
    %v6152 = vmul.f32 %v5720, %v6104
    %v6153 = vmul.f32 %v5721, %v6105
    %v6154 = vmul.f32 %v5722, %v6106
    %v6155 = vmul.f32 %v5723, %v6107
    %v6156 = vmul.f32 %v5724, %v6108
    %v6157 = vmul.f32 %v5725, %v6109
    %v6158 = vmul.f32 %v5726, %v6110
    %v6159 = vmul.f32 %v5727, %v6111
    %v6160 = vmul.f32 %v5728, %v6112
    %v6161 = vmul.f32 %v5729, %v6113
    %v6162 = vmul.f32 %v5730, %v6114
    %v6163 = vmul.f32 %v5731, %v6115
    %v6164 = vmul.f32 %v5732, %v6116
    %v6165 = vmul.f32 %v5733, %v6117
    %v6166 = vmul.f32 %v5734, %v6118
    %v6167 = vmul.f32 %v5735, %v6119
    %v6168 = vmul.f32 %v5736, %v6120
    %v6169 = vmul.f32 %v5737, %v6121
    %v6170 = vmul.f32 %v5738, %v6122
    %v6171 = vmul.f32 %v5739, %v6123
    %v6172 = vmul.f32 %v5740, %v6124
    %v6173 = vmul.f32 %v5741, %v6125
    %v6174 = vmul.f32 %v5742, %v6126
    %v6175 = vmul.f32 %v5743, %v6127
    %v6176 = vmul.f32 %v5744, %v6128
    %v6177 = vmul.f32 %v5745, %v6129
    %v6178 = vmul.f32 %v5746, %v6130
    %v6179 = vmul.f32 %v5747, %v6131
    %v6180 = vmul.f32 %v5748, %v6132
    %v6181 = vmul.f32 %v5749, %v6133
    %v6182 = vmul.f32 %v5750, %v6134
    %v6183 = vmul.f32 %v5751, %v6135
    %v6184 = vmul.f32 %v5752, %v6136
    %v6185 = vmul.f32 %v5753, %v6137
    %v6186 = vmul.f32 %v5754, %v6138
    %v6187 = vmul.f32 %v5755, %v6139
    %v6188 = vmul.f32 %v5756, %v6140
    %v6189 = vmul.f32 %v5757, %v6141
    %v6190 = vmul.f32 %v5758, %v6142
    %v6191 = vmul.f32 %v5759, %v6143
    %v6192 = vmul.f32 %v5760, %v6144
    %v6193 = vmul.f32 %v5761, %v6145
    %v6194 = vmul.f32 %v5762, %v6146
    %v6195 = vmul.f32 %v5763, %v6147
    %v6196 = vadd.f32 %v6148, %v4080
    %v6197 = vadd.f32 %v6149, %v4081
    %v6198 = vadd.f32 %v6150, %v4082
    %v6199 = vadd.f32 %v6151, %v4083
    %v6200 = vadd.f32 %v6152, %v4084
    %v6201 = vadd.f32 %v6153, %v4085
    %v6202 = vadd.f32 %v6154, %v4086
    %v6203 = vadd.f32 %v6155, %v4087
    %v6204 = vadd.f32 %v6156, %v4088
    %v6205 = vadd.f32 %v6157, %v4089
    %v6206 = vadd.f32 %v6158, %v4090
    %v6207 = vadd.f32 %v6159, %v4091
    %v6208 = vadd.f32 %v6160, %v4092
    %v6209 = vadd.f32 %v6161, %v4093
    %v6210 = vadd.f32 %v6162, %v4094
    %v6211 = vadd.f32 %v6163, %v4095
    %v6212 = vadd.f32 %v6164, %v4096
    %v6213 = vadd.f32 %v6165, %v4097
    %v6214 = vadd.f32 %v6166, %v4098
    %v6215 = vadd.f32 %v6167, %v4099
    %v6216 = vadd.f32 %v6168, %v4100
    %v6217 = vadd.f32 %v6169, %v4101
    %v6218 = vadd.f32 %v6170, %v4102
    %v6219 = vadd.f32 %v6171, %v4103
    %v6220 = vadd.f32 %v6172, %v4104
    %v6221 = vadd.f32 %v6173, %v4105
    %v6222 = vadd.f32 %v6174, %v4106
    %v6223 = vadd.f32 %v6175, %v4107
    %v6224 = vadd.f32 %v6176, %v4108
    %v6225 = vadd.f32 %v6177, %v4109
    %v6226 = vadd.f32 %v6178, %v4110
    %v6227 = vadd.f32 %v6179, %v4111
    %v6228 = vadd.f32 %v6180, %v4112
    %v6229 = vadd.f32 %v6181, %v4113
    %v6230 = vadd.f32 %v6182, %v4114
    %v6231 = vadd.f32 %v6183, %v4115
    %v6232 = vadd.f32 %v6184, %v4116
    %v6233 = vadd.f32 %v6185, %v4117
    %v6234 = vadd.f32 %v6186, %v4118
    %v6235 = vadd.f32 %v6187, %v4119
    %v6236 = vadd.f32 %v6188, %v4120
    %v6237 = vadd.f32 %v6189, %v4121
    %v6238 = vadd.f32 %v6190, %v4122
    %v6239 = vadd.f32 %v6191, %v4123
    %v6240 = vadd.f32 %v6192, %v4124
    %v6241 = vadd.f32 %v6193, %v4125
    %v6242 = vadd.f32 %v6194, %v4126
    %v6243 = vadd.f32 %v6195, %v4127
    %v6244 = vsel %vm893, %v6196, 0.0
    %6245 = vadd.xlane.f32.xlu0 %v6244
    %v6246 = vpop.xlane.xlu0 %6245
    %v6247 = vsel %vm893, %v6197, 0.0
    %6248 = vadd.xlane.f32.xlu0 %v6247
    %v6249 = vpop.xlane.xlu0 %6248
    %v6250 = vsel %vm893, %v6198, 0.0
    %6251 = vadd.xlane.f32.xlu0 %v6250
    %v6252 = vpop.xlane.xlu0 %6251
    %v6253 = vsel %vm893, %v6199, 0.0
    %6254 = vadd.xlane.f32.xlu0 %v6253
    %v6255 = vpop.xlane.xlu0 %6254
    %v6256 = vsel %vm893, %v6200, 0.0
    %6257 = vadd.xlane.f32.xlu0 %v6256
    %v6258 = vpop.xlane.xlu0 %6257
    %v6259 = vsel %vm893, %v6201, 0.0
    %6260 = vadd.xlane.f32.xlu0 %v6259
    %v6261 = vpop.xlane.xlu0 %6260
    %v6262 = vsel %vm893, %v6202, 0.0
    %6263 = vadd.xlane.f32.xlu0 %v6262
    %v6264 = vpop.xlane.xlu0 %6263
    %v6265 = vsel %vm893, %v6203, 0.0
    %6266 = vadd.xlane.f32.xlu0 %v6265
    %v6267 = vpop.xlane.xlu0 %6266
    %v6268 = vsel %vm893, %v6204, 0.0
    %6269 = vadd.xlane.f32.xlu0 %v6268
    %v6270 = vpop.xlane.xlu0 %6269
    %v6271 = vsel %vm893, %v6205, 0.0
    %6272 = vadd.xlane.f32.xlu0 %v6271
    %v6273 = vpop.xlane.xlu0 %6272
    %v6274 = vsel %vm893, %v6206, 0.0
    %6275 = vadd.xlane.f32.xlu0 %v6274
    %v6276 = vpop.xlane.xlu0 %6275
    %v6277 = vsel %vm893, %v6207, 0.0
    %6278 = vadd.xlane.f32.xlu0 %v6277
    %v6279 = vpop.xlane.xlu0 %6278
    %v6280 = vsel %vm893, %v6208, 0.0
    %6281 = vadd.xlane.f32.xlu0 %v6280
    %v6282 = vpop.xlane.xlu0 %6281
    %v6283 = vsel %vm893, %v6209, 0.0
    %6284 = vadd.xlane.f32.xlu0 %v6283
    %v6285 = vpop.xlane.xlu0 %6284
    %v6286 = vsel %vm893, %v6210, 0.0
    %6287 = vadd.xlane.f32.xlu0 %v6286
    %v6288 = vpop.xlane.xlu0 %6287
    %v6289 = vsel %vm893, %v6211, 0.0
    %6290 = vadd.xlane.f32.xlu0 %v6289
    %v6291 = vpop.xlane.xlu0 %6290
    %v6292 = vsel %vm893, %v6212, 0.0
    %6293 = vadd.xlane.f32.xlu0 %v6292
    %v6294 = vpop.xlane.xlu0 %6293
    %v6295 = vsel %vm893, %v6213, 0.0
    %6296 = vadd.xlane.f32.xlu0 %v6295
    %v6297 = vpop.xlane.xlu0 %6296
    %v6298 = vsel %vm893, %v6214, 0.0
    %6299 = vadd.xlane.f32.xlu0 %v6298
    %v6300 = vpop.xlane.xlu0 %6299
    %v6301 = vsel %vm893, %v6215, 0.0
    %6302 = vadd.xlane.f32.xlu0 %v6301
    %v6303 = vpop.xlane.xlu0 %6302
    %v6304 = vsel %vm893, %v6216, 0.0
    %6305 = vadd.xlane.f32.xlu0 %v6304
    %v6306 = vpop.xlane.xlu0 %6305
    %v6307 = vsel %vm893, %v6217, 0.0
    %6308 = vadd.xlane.f32.xlu0 %v6307
    %v6309 = vpop.xlane.xlu0 %6308
    %v6310 = vsel %vm893, %v6218, 0.0
    %6311 = vadd.xlane.f32.xlu0 %v6310
    %v6312 = vpop.xlane.xlu0 %6311
    %v6313 = vsel %vm893, %v6219, 0.0
    %6314 = vadd.xlane.f32.xlu0 %v6313
    %v6315 = vpop.xlane.xlu0 %6314
    %v6316 = vsel %vm893, %v6220, 0.0
    %6317 = vadd.xlane.f32.xlu0 %v6316
    %v6318 = vpop.xlane.xlu0 %6317
    %v6319 = vsel %vm893, %v6221, 0.0
    %6320 = vadd.xlane.f32.xlu0 %v6319
    %v6321 = vpop.xlane.xlu0 %6320
    %v6322 = vsel %vm893, %v6222, 0.0
    %6323 = vadd.xlane.f32.xlu0 %v6322
    %v6324 = vpop.xlane.xlu0 %6323
    %v6325 = vsel %vm893, %v6223, 0.0
    %6326 = vadd.xlane.f32.xlu0 %v6325
    %v6327 = vpop.xlane.xlu0 %6326
    %v6328 = vsel %vm893, %v6224, 0.0
    %6329 = vadd.xlane.f32.xlu0 %v6328
    %v6330 = vpop.xlane.xlu0 %6329
    %v6331 = vsel %vm893, %v6225, 0.0
    %6332 = vadd.xlane.f32.xlu0 %v6331
    %v6333 = vpop.xlane.xlu0 %6332
    %v6334 = vsel %vm893, %v6226, 0.0
    %6335 = vadd.xlane.f32.xlu0 %v6334
    %v6336 = vpop.xlane.xlu0 %6335
    %v6337 = vsel %vm893, %v6227, 0.0
    %6338 = vadd.xlane.f32.xlu0 %v6337
    %v6339 = vpop.xlane.xlu0 %6338
    %v6340 = vsel %vm893, %v6228, 0.0
    %6341 = vadd.xlane.f32.xlu0 %v6340
    %v6342 = vpop.xlane.xlu0 %6341
    %v6343 = vsel %vm893, %v6229, 0.0
    %6344 = vadd.xlane.f32.xlu0 %v6343
    %v6345 = vpop.xlane.xlu0 %6344
    %v6346 = vsel %vm893, %v6230, 0.0
    %6347 = vadd.xlane.f32.xlu0 %v6346
    %v6348 = vpop.xlane.xlu0 %6347
    %v6349 = vsel %vm893, %v6231, 0.0
    %6350 = vadd.xlane.f32.xlu0 %v6349
    %v6351 = vpop.xlane.xlu0 %6350
    %v6352 = vsel %vm893, %v6232, 0.0
    %6353 = vadd.xlane.f32.xlu0 %v6352
    %v6354 = vpop.xlane.xlu0 %6353
    %v6355 = vsel %vm893, %v6233, 0.0
    %6356 = vadd.xlane.f32.xlu0 %v6355
    %v6357 = vpop.xlane.xlu0 %6356
    %v6358 = vsel %vm893, %v6234, 0.0
    %6359 = vadd.xlane.f32.xlu0 %v6358
    %v6360 = vpop.xlane.xlu0 %6359
    %v6361 = vsel %vm893, %v6235, 0.0
    %6362 = vadd.xlane.f32.xlu0 %v6361
    %v6363 = vpop.xlane.xlu0 %6362
    %v6364 = vsel %vm893, %v6236, 0.0
    %6365 = vadd.xlane.f32.xlu0 %v6364
    %v6366 = vpop.xlane.xlu0 %6365
    %v6367 = vsel %vm893, %v6237, 0.0
    %6368 = vadd.xlane.f32.xlu0 %v6367
    %v6369 = vpop.xlane.xlu0 %6368
    %v6370 = vsel %vm893, %v6238, 0.0
    %6371 = vadd.xlane.f32.xlu0 %v6370
    %v6372 = vpop.xlane.xlu0 %6371
    %v6373 = vsel %vm893, %v6239, 0.0
    %6374 = vadd.xlane.f32.xlu0 %v6373
    %v6375 = vpop.xlane.xlu0 %6374
    %v6376 = vsel %vm893, %v6240, 0.0
    %6377 = vadd.xlane.f32.xlu0 %v6376
    %v6378 = vpop.xlane.xlu0 %6377
    %v6379 = vsel %vm893, %v6241, 0.0
    %6380 = vadd.xlane.f32.xlu0 %v6379
    %v6381 = vpop.xlane.xlu0 %6380
    %v6382 = vsel %vm893, %v6242, 0.0
    %6383 = vadd.xlane.f32.xlu0 %v6382
    %v6384 = vpop.xlane.xlu0 %6383
    %v6385 = vsel %vm893, %v6243, 0.0
    %6386 = vadd.xlane.f32.xlu0 %v6385
    %v6387 = vpop.xlane.xlu0 %6386
    %v6388 = vmul.f32 %v6246, %v1483
    %v6389 = vmul.f32 %v6249, %v1483
    %v6390 = vmul.f32 %v6252, %v1483
    %v6391 = vmul.f32 %v6255, %v1483
    %v6392 = vmul.f32 %v6258, %v1483
    %v6393 = vmul.f32 %v6261, %v1483
    %v6394 = vmul.f32 %v6264, %v1483
    %v6395 = vmul.f32 %v6267, %v1483
    %v6396 = vmul.f32 %v6270, %v1483
    %v6397 = vmul.f32 %v6273, %v1483
    %v6398 = vmul.f32 %v6276, %v1483
    %v6399 = vmul.f32 %v6279, %v1483
    %v6400 = vmul.f32 %v6282, %v1483
    %v6401 = vmul.f32 %v6285, %v1483
    %v6402 = vmul.f32 %v6288, %v1483
    %v6403 = vmul.f32 %v6291, %v1483
    %v6404 = vmul.f32 %v6294, %v1483
    %v6405 = vmul.f32 %v6297, %v1483
    %v6406 = vmul.f32 %v6300, %v1483
    %v6407 = vmul.f32 %v6303, %v1483
    %v6408 = vmul.f32 %v6306, %v1483
    %v6409 = vmul.f32 %v6309, %v1483
    %v6410 = vmul.f32 %v6312, %v1483
    %v6411 = vmul.f32 %v6315, %v1483
    %v6412 = vmul.f32 %v6318, %v1483
    %v6413 = vmul.f32 %v6321, %v1483
    %v6414 = vmul.f32 %v6324, %v1483
    %v6415 = vmul.f32 %v6327, %v1483
    %v6416 = vmul.f32 %v6330, %v1483
    %v6417 = vmul.f32 %v6333, %v1483
    %v6418 = vmul.f32 %v6336, %v1483
    %v6419 = vmul.f32 %v6339, %v1483
    %v6420 = vmul.f32 %v6342, %v1483
    %v6421 = vmul.f32 %v6345, %v1483
    %v6422 = vmul.f32 %v6348, %v1483
    %v6423 = vmul.f32 %v6351, %v1483
    %v6424 = vmul.f32 %v6354, %v1483
    %v6425 = vmul.f32 %v6357, %v1483
    %v6426 = vmul.f32 %v6360, %v1483
    %v6427 = vmul.f32 %v6363, %v1483
    %v6428 = vmul.f32 %v6366, %v1483
    %v6429 = vmul.f32 %v6369, %v1483
    %v6430 = vmul.f32 %v6372, %v1483
    %v6431 = vmul.f32 %v6375, %v1483
    %v6432 = vmul.f32 %v6378, %v1483
    %v6433 = vmul.f32 %v6381, %v1483
    %v6434 = vmul.f32 %v6384, %v1483
    %v6435 = vmul.f32 %v6387, %v1483
    %v6436 = vsub.f32 %v6196, %v6388
    %v6437 = vsub.f32 %v6197, %v6389
    %v6438 = vsub.f32 %v6198, %v6390
    %v6439 = vsub.f32 %v6199, %v6391
    %v6440 = vsub.f32 %v6200, %v6392
    %v6441 = vsub.f32 %v6201, %v6393
    %v6442 = vsub.f32 %v6202, %v6394
    %v6443 = vsub.f32 %v6203, %v6395
    %v6444 = vsub.f32 %v6204, %v6396
    %v6445 = vsub.f32 %v6205, %v6397
    %v6446 = vsub.f32 %v6206, %v6398
    %v6447 = vsub.f32 %v6207, %v6399
    %v6448 = vsub.f32 %v6208, %v6400
    %v6449 = vsub.f32 %v6209, %v6401
    %v6450 = vsub.f32 %v6210, %v6402
    %v6451 = vsub.f32 %v6211, %v6403
    %v6452 = vsub.f32 %v6212, %v6404
    %v6453 = vsub.f32 %v6213, %v6405
    %v6454 = vsub.f32 %v6214, %v6406
    %v6455 = vsub.f32 %v6215, %v6407
    %v6456 = vsub.f32 %v6216, %v6408
    %v6457 = vsub.f32 %v6217, %v6409
    %v6458 = vsub.f32 %v6218, %v6410
    %v6459 = vsub.f32 %v6219, %v6411
    %v6460 = vsub.f32 %v6220, %v6412
    %v6461 = vsub.f32 %v6221, %v6413
    %v6462 = vsub.f32 %v6222, %v6414
    %v6463 = vsub.f32 %v6223, %v6415
    %v6464 = vsub.f32 %v6224, %v6416
    %v6465 = vsub.f32 %v6225, %v6417
    %v6466 = vsub.f32 %v6226, %v6418
    %v6467 = vsub.f32 %v6227, %v6419
    %v6468 = vsub.f32 %v6228, %v6420
    %v6469 = vsub.f32 %v6229, %v6421
    %v6470 = vsub.f32 %v6230, %v6422
    %v6471 = vsub.f32 %v6231, %v6423
    %v6472 = vsub.f32 %v6232, %v6424
    %v6473 = vsub.f32 %v6233, %v6425
    %v6474 = vsub.f32 %v6234, %v6426
    %v6475 = vsub.f32 %v6235, %v6427
    %v6476 = vsub.f32 %v6236, %v6428
    %v6477 = vsub.f32 %v6237, %v6429
    %v6478 = vsub.f32 %v6238, %v6430
    %v6479 = vsub.f32 %v6239, %v6431
    %v6480 = vsub.f32 %v6240, %v6432
    %v6481 = vsub.f32 %v6241, %v6433
    %v6482 = vsub.f32 %v6242, %v6434
    %v6483 = vsub.f32 %v6243, %v6435
    %v6484 = vmul.f32 %v6436, %v6436
    %v6485 = vmul.f32 %v6437, %v6437
    %v6486 = vmul.f32 %v6438, %v6438
    %v6487 = vmul.f32 %v6439, %v6439
    %v6488 = vmul.f32 %v6440, %v6440
    %v6489 = vmul.f32 %v6441, %v6441
    %v6490 = vmul.f32 %v6442, %v6442
    %v6491 = vmul.f32 %v6443, %v6443
    %v6492 = vmul.f32 %v6444, %v6444
    %v6493 = vmul.f32 %v6445, %v6445
    %v6494 = vmul.f32 %v6446, %v6446
    %v6495 = vmul.f32 %v6447, %v6447
    %v6496 = vmul.f32 %v6448, %v6448
    %v6497 = vmul.f32 %v6449, %v6449
    %v6498 = vmul.f32 %v6450, %v6450
    %v6499 = vmul.f32 %v6451, %v6451
    %v6500 = vmul.f32 %v6452, %v6452
    %v6501 = vmul.f32 %v6453, %v6453
    %v6502 = vmul.f32 %v6454, %v6454
    %v6503 = vmul.f32 %v6455, %v6455
    %v6504 = vmul.f32 %v6456, %v6456
    %v6505 = vmul.f32 %v6457, %v6457
    %v6506 = vmul.f32 %v6458, %v6458
    %v6507 = vmul.f32 %v6459, %v6459
    %v6508 = vmul.f32 %v6460, %v6460
    %v6509 = vmul.f32 %v6461, %v6461
    %v6510 = vmul.f32 %v6462, %v6462
    %v6511 = vmul.f32 %v6463, %v6463
    %v6512 = vmul.f32 %v6464, %v6464
    %v6513 = vmul.f32 %v6465, %v6465
    %v6514 = vmul.f32 %v6466, %v6466
    %v6515 = vmul.f32 %v6467, %v6467
    %v6516 = vmul.f32 %v6468, %v6468
    %v6517 = vmul.f32 %v6469, %v6469
    %v6518 = vmul.f32 %v6470, %v6470
    %v6519 = vmul.f32 %v6471, %v6471
    %v6520 = vmul.f32 %v6472, %v6472
    %v6521 = vmul.f32 %v6473, %v6473
    %v6522 = vmul.f32 %v6474, %v6474
    %v6523 = vmul.f32 %v6475, %v6475
    %v6524 = vmul.f32 %v6476, %v6476
    %v6525 = vmul.f32 %v6477, %v6477
    %v6526 = vmul.f32 %v6478, %v6478
    %v6527 = vmul.f32 %v6479, %v6479
    %v6528 = vmul.f32 %v6480, %v6480
    %v6529 = vmul.f32 %v6481, %v6481
    %v6530 = vmul.f32 %v6482, %v6482
    %v6531 = vmul.f32 %v6483, %v6483
    %v6532 = vsel %vm893, %v6484, 0.0
    %6533 = vadd.xlane.f32.xlu0 %v6532
    %v6534 = vpop.xlane.xlu0 %6533
    %v6535 = vsel %vm893, %v6485, 0.0
    %6536 = vadd.xlane.f32.xlu0 %v6535
    %v6537 = vpop.xlane.xlu0 %6536
    %v6538 = vsel %vm893, %v6486, 0.0
    %6539 = vadd.xlane.f32.xlu0 %v6538
    %v6540 = vpop.xlane.xlu0 %6539
    %v6541 = vsel %vm893, %v6487, 0.0
    %6542 = vadd.xlane.f32.xlu0 %v6541
    %v6543 = vpop.xlane.xlu0 %6542
    %v6544 = vsel %vm893, %v6488, 0.0
    %6545 = vadd.xlane.f32.xlu0 %v6544
    %v6546 = vpop.xlane.xlu0 %6545
    %v6547 = vsel %vm893, %v6489, 0.0
    %6548 = vadd.xlane.f32.xlu0 %v6547
    %v6549 = vpop.xlane.xlu0 %6548
    %v6550 = vsel %vm893, %v6490, 0.0
    %6551 = vadd.xlane.f32.xlu0 %v6550
    %v6552 = vpop.xlane.xlu0 %6551
    %v6553 = vsel %vm893, %v6491, 0.0
    %6554 = vadd.xlane.f32.xlu0 %v6553
    %v6555 = vpop.xlane.xlu0 %6554
    %v6556 = vsel %vm893, %v6492, 0.0
    %6557 = vadd.xlane.f32.xlu0 %v6556
    %v6558 = vpop.xlane.xlu0 %6557
    %v6559 = vsel %vm893, %v6493, 0.0
    %6560 = vadd.xlane.f32.xlu0 %v6559
    %v6561 = vpop.xlane.xlu0 %6560
    %v6562 = vsel %vm893, %v6494, 0.0
    %6563 = vadd.xlane.f32.xlu0 %v6562
    %v6564 = vpop.xlane.xlu0 %6563
    %v6565 = vsel %vm893, %v6495, 0.0
    %6566 = vadd.xlane.f32.xlu0 %v6565
    %v6567 = vpop.xlane.xlu0 %6566
    %v6568 = vsel %vm893, %v6496, 0.0
    %6569 = vadd.xlane.f32.xlu0 %v6568
    %v6570 = vpop.xlane.xlu0 %6569
    %v6571 = vsel %vm893, %v6497, 0.0
    %6572 = vadd.xlane.f32.xlu0 %v6571
    %v6573 = vpop.xlane.xlu0 %6572
    %v6574 = vsel %vm893, %v6498, 0.0
    %6575 = vadd.xlane.f32.xlu0 %v6574
    %v6576 = vpop.xlane.xlu0 %6575
    %v6577 = vsel %vm893, %v6499, 0.0
    %6578 = vadd.xlane.f32.xlu0 %v6577
    %v6579 = vpop.xlane.xlu0 %6578
    %v6580 = vsel %vm893, %v6500, 0.0
    %6581 = vadd.xlane.f32.xlu0 %v6580
    %v6582 = vpop.xlane.xlu0 %6581
    %v6583 = vsel %vm893, %v6501, 0.0
    %6584 = vadd.xlane.f32.xlu0 %v6583
    %v6585 = vpop.xlane.xlu0 %6584
    %v6586 = vsel %vm893, %v6502, 0.0
    %6587 = vadd.xlane.f32.xlu0 %v6586
    %v6588 = vpop.xlane.xlu0 %6587
    %v6589 = vsel %vm893, %v6503, 0.0
    %6590 = vadd.xlane.f32.xlu0 %v6589
    %v6591 = vpop.xlane.xlu0 %6590
    %v6592 = vsel %vm893, %v6504, 0.0
    %6593 = vadd.xlane.f32.xlu0 %v6592
    %v6594 = vpop.xlane.xlu0 %6593
    %v6595 = vsel %vm893, %v6505, 0.0
    %6596 = vadd.xlane.f32.xlu0 %v6595
    %v6597 = vpop.xlane.xlu0 %6596
    %v6598 = vsel %vm893, %v6506, 0.0
    %6599 = vadd.xlane.f32.xlu0 %v6598
    %v6600 = vpop.xlane.xlu0 %6599
    %v6601 = vsel %vm893, %v6507, 0.0
    %6602 = vadd.xlane.f32.xlu0 %v6601
    %v6603 = vpop.xlane.xlu0 %6602
    %v6604 = vsel %vm893, %v6508, 0.0
    %6605 = vadd.xlane.f32.xlu0 %v6604
    %v6606 = vpop.xlane.xlu0 %6605
    %v6607 = vsel %vm893, %v6509, 0.0
    %6608 = vadd.xlane.f32.xlu0 %v6607
    %v6609 = vpop.xlane.xlu0 %6608
    %v6610 = vsel %vm893, %v6510, 0.0
    %6611 = vadd.xlane.f32.xlu0 %v6610
    %v6612 = vpop.xlane.xlu0 %6611
    %v6613 = vsel %vm893, %v6511, 0.0
    %6614 = vadd.xlane.f32.xlu0 %v6613
    %v6615 = vpop.xlane.xlu0 %6614
    %v6616 = vsel %vm893, %v6512, 0.0
    %6617 = vadd.xlane.f32.xlu0 %v6616
    %v6618 = vpop.xlane.xlu0 %6617
    %v6619 = vsel %vm893, %v6513, 0.0
    %6620 = vadd.xlane.f32.xlu0 %v6619
    %v6621 = vpop.xlane.xlu0 %6620
    %v6622 = vsel %vm893, %v6514, 0.0
    %6623 = vadd.xlane.f32.xlu0 %v6622
    %v6624 = vpop.xlane.xlu0 %6623
    %v6625 = vsel %vm893, %v6515, 0.0
    %6626 = vadd.xlane.f32.xlu0 %v6625
    %v6627 = vpop.xlane.xlu0 %6626
    %v6628 = vsel %vm893, %v6516, 0.0
    %6629 = vadd.xlane.f32.xlu0 %v6628
    %v6630 = vpop.xlane.xlu0 %6629
    %v6631 = vsel %vm893, %v6517, 0.0
    %6632 = vadd.xlane.f32.xlu0 %v6631
    %v6633 = vpop.xlane.xlu0 %6632
    %v6634 = vsel %vm893, %v6518, 0.0
    %6635 = vadd.xlane.f32.xlu0 %v6634
    %v6636 = vpop.xlane.xlu0 %6635
    %v6637 = vsel %vm893, %v6519, 0.0
    %6638 = vadd.xlane.f32.xlu0 %v6637
    %v6639 = vpop.xlane.xlu0 %6638
    %v6640 = vsel %vm893, %v6520, 0.0
    %6641 = vadd.xlane.f32.xlu0 %v6640
    %v6642 = vpop.xlane.xlu0 %6641
    %v6643 = vsel %vm893, %v6521, 0.0
    %6644 = vadd.xlane.f32.xlu0 %v6643
    %v6645 = vpop.xlane.xlu0 %6644
    %v6646 = vsel %vm893, %v6522, 0.0
    %6647 = vadd.xlane.f32.xlu0 %v6646
    %v6648 = vpop.xlane.xlu0 %6647
    %v6649 = vsel %vm893, %v6523, 0.0
    %6650 = vadd.xlane.f32.xlu0 %v6649
    %v6651 = vpop.xlane.xlu0 %6650
    %v6652 = vsel %vm893, %v6524, 0.0
    %6653 = vadd.xlane.f32.xlu0 %v6652
    %v6654 = vpop.xlane.xlu0 %6653
    %v6655 = vsel %vm893, %v6525, 0.0
    %6656 = vadd.xlane.f32.xlu0 %v6655
    %v6657 = vpop.xlane.xlu0 %6656
    %v6658 = vsel %vm893, %v6526, 0.0
    %6659 = vadd.xlane.f32.xlu0 %v6658
    %v6660 = vpop.xlane.xlu0 %6659
    %v6661 = vsel %vm893, %v6527, 0.0
    %6662 = vadd.xlane.f32.xlu0 %v6661
    %v6663 = vpop.xlane.xlu0 %6662
    %v6664 = vsel %vm893, %v6528, 0.0
    %6665 = vadd.xlane.f32.xlu0 %v6664
    %v6666 = vpop.xlane.xlu0 %6665
    %v6667 = vsel %vm893, %v6529, 0.0
    %6668 = vadd.xlane.f32.xlu0 %v6667
    %v6669 = vpop.xlane.xlu0 %6668
    %v6670 = vsel %vm893, %v6530, 0.0
    %6671 = vadd.xlane.f32.xlu0 %v6670
    %v6672 = vpop.xlane.xlu0 %6671
    %v6673 = vsel %vm893, %v6531, 0.0
    %6674 = vadd.xlane.f32.xlu0 %v6673
    %v6675 = vpop.xlane.xlu0 %6674
    %v6676 = vmul.f32 %v6534, %v1483
    %v6677 = vmul.f32 %v6537, %v1483
    %v6678 = vmul.f32 %v6540, %v1483
    %v6679 = vmul.f32 %v6543, %v1483
    %v6680 = vmul.f32 %v6546, %v1483
    %v6681 = vmul.f32 %v6549, %v1483
    %v6682 = vmul.f32 %v6552, %v1483
    %v6683 = vmul.f32 %v6555, %v1483
    %v6684 = vmul.f32 %v6558, %v1483
    %v6685 = vmul.f32 %v6561, %v1483
    %v6686 = vmul.f32 %v6564, %v1483
    %v6687 = vmul.f32 %v6567, %v1483
    %v6688 = vmul.f32 %v6570, %v1483
    %v6689 = vmul.f32 %v6573, %v1483
    %v6690 = vmul.f32 %v6576, %v1483
    %v6691 = vmul.f32 %v6579, %v1483
    %v6692 = vmul.f32 %v6582, %v1483
    %v6693 = vmul.f32 %v6585, %v1483
    %v6694 = vmul.f32 %v6588, %v1483
    %v6695 = vmul.f32 %v6591, %v1483
    %v6696 = vmul.f32 %v6594, %v1483
    %v6697 = vmul.f32 %v6597, %v1483
    %v6698 = vmul.f32 %v6600, %v1483
    %v6699 = vmul.f32 %v6603, %v1483
    %v6700 = vmul.f32 %v6606, %v1483
    %v6701 = vmul.f32 %v6609, %v1483
    %v6702 = vmul.f32 %v6612, %v1483
    %v6703 = vmul.f32 %v6615, %v1483
    %v6704 = vmul.f32 %v6618, %v1483
    %v6705 = vmul.f32 %v6621, %v1483
    %v6706 = vmul.f32 %v6624, %v1483
    %v6707 = vmul.f32 %v6627, %v1483
    %v6708 = vmul.f32 %v6630, %v1483
    %v6709 = vmul.f32 %v6633, %v1483
    %v6710 = vmul.f32 %v6636, %v1483
    %v6711 = vmul.f32 %v6639, %v1483
    %v6712 = vmul.f32 %v6642, %v1483
    %v6713 = vmul.f32 %v6645, %v1483
    %v6714 = vmul.f32 %v6648, %v1483
    %v6715 = vmul.f32 %v6651, %v1483
    %v6716 = vmul.f32 %v6654, %v1483
    %v6717 = vmul.f32 %v6657, %v1483
    %v6718 = vmul.f32 %v6660, %v1483
    %v6719 = vmul.f32 %v6663, %v1483
    %v6720 = vmul.f32 %v6666, %v1483
    %v6721 = vmul.f32 %v6669, %v1483
    %v6722 = vmul.f32 %v6672, %v1483
    %v6723 = vmul.f32 %v6675, %v1483
    %v6724 = vadd.f32 %v6676, 1e-05
    %v6725 = vadd.f32 %v6677, 1e-05
    %v6726 = vadd.f32 %v6678, 1e-05
    %v6727 = vadd.f32 %v6679, 1e-05
    %v6728 = vadd.f32 %v6680, 1e-05
    %v6729 = vadd.f32 %v6681, 1e-05
    %v6730 = vadd.f32 %v6682, 1e-05
    %v6731 = vadd.f32 %v6683, 1e-05
    %v6732 = vadd.f32 %v6684, 1e-05
    %v6733 = vadd.f32 %v6685, 1e-05
    %v6734 = vadd.f32 %v6686, 1e-05
    %v6735 = vadd.f32 %v6687, 1e-05
    %v6736 = vadd.f32 %v6688, 1e-05
    %v6737 = vadd.f32 %v6689, 1e-05
    %v6738 = vadd.f32 %v6690, 1e-05
    %v6739 = vadd.f32 %v6691, 1e-05
    %v6740 = vadd.f32 %v6692, 1e-05
    %v6741 = vadd.f32 %v6693, 1e-05
    %v6742 = vadd.f32 %v6694, 1e-05
    %v6743 = vadd.f32 %v6695, 1e-05
    %v6744 = vadd.f32 %v6696, 1e-05
    %v6745 = vadd.f32 %v6697, 1e-05
    %v6746 = vadd.f32 %v6698, 1e-05
    %v6747 = vadd.f32 %v6699, 1e-05
    %v6748 = vadd.f32 %v6700, 1e-05
    %v6749 = vadd.f32 %v6701, 1e-05
    %v6750 = vadd.f32 %v6702, 1e-05
    %v6751 = vadd.f32 %v6703, 1e-05
    %v6752 = vadd.f32 %v6704, 1e-05
    %v6753 = vadd.f32 %v6705, 1e-05
    %v6754 = vadd.f32 %v6706, 1e-05
    %v6755 = vadd.f32 %v6707, 1e-05
    %v6756 = vadd.f32 %v6708, 1e-05
    %v6757 = vadd.f32 %v6709, 1e-05
    %v6758 = vadd.f32 %v6710, 1e-05
    %v6759 = vadd.f32 %v6711, 1e-05
    %v6760 = vadd.f32 %v6712, 1e-05
    %v6761 = vadd.f32 %v6713, 1e-05
    %v6762 = vadd.f32 %v6714, 1e-05
    %v6763 = vadd.f32 %v6715, 1e-05
    %v6764 = vadd.f32 %v6716, 1e-05
    %v6765 = vadd.f32 %v6717, 1e-05
    %v6766 = vadd.f32 %v6718, 1e-05
    %v6767 = vadd.f32 %v6719, 1e-05
    %v6768 = vadd.f32 %v6720, 1e-05
    %v6769 = vadd.f32 %v6721, 1e-05
    %v6770 = vadd.f32 %v6722, 1e-05
    %v6771 = vadd.f32 %v6723, 1e-05
    %v6772 = vrsqrt.pop %v6724
    %v6773 = vmul.f32 %v6772, %v6724
    %v6774 = vmul.f32 %v6773, %v6772
    %v6775 = vmul.f32 0.5, %v6774
    %v6776 = vsub.f32 1.5, %v6775
    %v6777 = vmul.f32 %v6772, %v6776
    %vm6778 = vweird.f32 %v6724
    %vm6779 = vweird.f32 %v6772
    %vm6780 = vmor %vm6778, %vm6779
    %v6781 = vsel %vm6780, %v6772, %v6777
    %v6782 = vrsqrt.pop %v6725
    %v6783 = vmul.f32 %v6782, %v6725
    %v6784 = vmul.f32 %v6783, %v6782
    %v6785 = vmul.f32 0.5, %v6784
    %v6786 = vsub.f32 1.5, %v6785
    %v6787 = vmul.f32 %v6782, %v6786
    %vm6788 = vweird.f32 %v6725
    %vm6789 = vweird.f32 %v6782
    %vm6790 = vmor %vm6788, %vm6789
    %v6791 = vsel %vm6790, %v6782, %v6787
    %v6792 = vrsqrt.pop %v6726
    %v6793 = vmul.f32 %v6792, %v6726
    %v6794 = vmul.f32 %v6793, %v6792
    %v6795 = vmul.f32 0.5, %v6794
    %v6796 = vsub.f32 1.5, %v6795
    %v6797 = vmul.f32 %v6792, %v6796
    %vm6798 = vweird.f32 %v6726
    %vm6799 = vweird.f32 %v6792
    %vm6800 = vmor %vm6798, %vm6799
    %v6801 = vsel %vm6800, %v6792, %v6797
    %v6802 = vrsqrt.pop %v6727
    %v6803 = vmul.f32 %v6802, %v6727
    %v6804 = vmul.f32 %v6803, %v6802
    %v6805 = vmul.f32 0.5, %v6804
    %v6806 = vsub.f32 1.5, %v6805
    %v6807 = vmul.f32 %v6802, %v6806
    %vm6808 = vweird.f32 %v6727
    %vm6809 = vweird.f32 %v6802
    %vm6810 = vmor %vm6808, %vm6809
    %v6811 = vsel %vm6810, %v6802, %v6807
    %v6812 = vrsqrt.pop %v6728
    %v6813 = vmul.f32 %v6812, %v6728
    %v6814 = vmul.f32 %v6813, %v6812
    %v6815 = vmul.f32 0.5, %v6814
    %v6816 = vsub.f32 1.5, %v6815
    %v6817 = vmul.f32 %v6812, %v6816
    %vm6818 = vweird.f32 %v6728
    %vm6819 = vweird.f32 %v6812
    %vm6820 = vmor %vm6818, %vm6819
    %v6821 = vsel %vm6820, %v6812, %v6817
    %v6822 = vrsqrt.pop %v6729
    %v6823 = vmul.f32 %v6822, %v6729
    %v6824 = vmul.f32 %v6823, %v6822
    %v6825 = vmul.f32 0.5, %v6824
    %v6826 = vsub.f32 1.5, %v6825
    %v6827 = vmul.f32 %v6822, %v6826
    %vm6828 = vweird.f32 %v6729
    %vm6829 = vweird.f32 %v6822
    %vm6830 = vmor %vm6828, %vm6829
    %v6831 = vsel %vm6830, %v6822, %v6827
    %v6832 = vrsqrt.pop %v6730
    %v6833 = vmul.f32 %v6832, %v6730
    %v6834 = vmul.f32 %v6833, %v6832
    %v6835 = vmul.f32 0.5, %v6834
    %v6836 = vsub.f32 1.5, %v6835
    %v6837 = vmul.f32 %v6832, %v6836
    %vm6838 = vweird.f32 %v6730
    %vm6839 = vweird.f32 %v6832
    %vm6840 = vmor %vm6838, %vm6839
    %v6841 = vsel %vm6840, %v6832, %v6837
    %v6842 = vrsqrt.pop %v6731
    %v6843 = vmul.f32 %v6842, %v6731
    %v6844 = vmul.f32 %v6843, %v6842
    %v6845 = vmul.f32 0.5, %v6844
    %v6846 = vsub.f32 1.5, %v6845
    %v6847 = vmul.f32 %v6842, %v6846
    %vm6848 = vweird.f32 %v6731
    %vm6849 = vweird.f32 %v6842
    %vm6850 = vmor %vm6848, %vm6849
    %v6851 = vsel %vm6850, %v6842, %v6847
    %v6852 = vrsqrt.pop %v6732
    %v6853 = vmul.f32 %v6852, %v6732
    %v6854 = vmul.f32 %v6853, %v6852
    %v6855 = vmul.f32 0.5, %v6854
    %v6856 = vsub.f32 1.5, %v6855
    %v6857 = vmul.f32 %v6852, %v6856
    %vm6858 = vweird.f32 %v6732
    %vm6859 = vweird.f32 %v6852
    %vm6860 = vmor %vm6858, %vm6859
    %v6861 = vsel %vm6860, %v6852, %v6857
    %v6862 = vrsqrt.pop %v6733
    %v6863 = vmul.f32 %v6862, %v6733
    %v6864 = vmul.f32 %v6863, %v6862
    %v6865 = vmul.f32 0.5, %v6864
    %v6866 = vsub.f32 1.5, %v6865
    %v6867 = vmul.f32 %v6862, %v6866
    %vm6868 = vweird.f32 %v6733
    %vm6869 = vweird.f32 %v6862
    %vm6870 = vmor %vm6868, %vm6869
    %v6871 = vsel %vm6870, %v6862, %v6867
    %v6872 = vrsqrt.pop %v6734
    %v6873 = vmul.f32 %v6872, %v6734
    %v6874 = vmul.f32 %v6873, %v6872
    %v6875 = vmul.f32 0.5, %v6874
    %v6876 = vsub.f32 1.5, %v6875
    %v6877 = vmul.f32 %v6872, %v6876
    %vm6878 = vweird.f32 %v6734
    %vm6879 = vweird.f32 %v6872
    %vm6880 = vmor %vm6878, %vm6879
    %v6881 = vsel %vm6880, %v6872, %v6877
    %v6882 = vrsqrt.pop %v6735
    %v6883 = vmul.f32 %v6882, %v6735
    %v6884 = vmul.f32 %v6883, %v6882
    %v6885 = vmul.f32 0.5, %v6884
    %v6886 = vsub.f32 1.5, %v6885
    %v6887 = vmul.f32 %v6882, %v6886
    %vm6888 = vweird.f32 %v6735
    %vm6889 = vweird.f32 %v6882
    %vm6890 = vmor %vm6888, %vm6889
    %v6891 = vsel %vm6890, %v6882, %v6887
    %v6892 = vrsqrt.pop %v6736
    %v6893 = vmul.f32 %v6892, %v6736
    %v6894 = vmul.f32 %v6893, %v6892
    %v6895 = vmul.f32 0.5, %v6894
    %v6896 = vsub.f32 1.5, %v6895
    %v6897 = vmul.f32 %v6892, %v6896
    %vm6898 = vweird.f32 %v6736
    %vm6899 = vweird.f32 %v6892
    %vm6900 = vmor %vm6898, %vm6899
    %v6901 = vsel %vm6900, %v6892, %v6897
    %v6902 = vrsqrt.pop %v6737
    %v6903 = vmul.f32 %v6902, %v6737
    %v6904 = vmul.f32 %v6903, %v6902
    %v6905 = vmul.f32 0.5, %v6904
    %v6906 = vsub.f32 1.5, %v6905
    %v6907 = vmul.f32 %v6902, %v6906
    %vm6908 = vweird.f32 %v6737
    %vm6909 = vweird.f32 %v6902
    %vm6910 = vmor %vm6908, %vm6909
    %v6911 = vsel %vm6910, %v6902, %v6907
    %v6912 = vrsqrt.pop %v6738
    %v6913 = vmul.f32 %v6912, %v6738
    %v6914 = vmul.f32 %v6913, %v6912
    %v6915 = vmul.f32 0.5, %v6914
    %v6916 = vsub.f32 1.5, %v6915
    %v6917 = vmul.f32 %v6912, %v6916
    %vm6918 = vweird.f32 %v6738
    %vm6919 = vweird.f32 %v6912
    %vm6920 = vmor %vm6918, %vm6919
    %v6921 = vsel %vm6920, %v6912, %v6917
    %v6922 = vrsqrt.pop %v6739
    %v6923 = vmul.f32 %v6922, %v6739
    %v6924 = vmul.f32 %v6923, %v6922
    %v6925 = vmul.f32 0.5, %v6924
    %v6926 = vsub.f32 1.5, %v6925
    %v6927 = vmul.f32 %v6922, %v6926
    %vm6928 = vweird.f32 %v6739
    %vm6929 = vweird.f32 %v6922
    %vm6930 = vmor %vm6928, %vm6929
    %v6931 = vsel %vm6930, %v6922, %v6927
    %v6932 = vrsqrt.pop %v6740
    %v6933 = vmul.f32 %v6932, %v6740
    %v6934 = vmul.f32 %v6933, %v6932
    %v6935 = vmul.f32 0.5, %v6934
    %v6936 = vsub.f32 1.5, %v6935
    %v6937 = vmul.f32 %v6932, %v6936
    %vm6938 = vweird.f32 %v6740
    %vm6939 = vweird.f32 %v6932
    %vm6940 = vmor %vm6938, %vm6939
    %v6941 = vsel %vm6940, %v6932, %v6937
    %v6942 = vrsqrt.pop %v6741
    %v6943 = vmul.f32 %v6942, %v6741
    %v6944 = vmul.f32 %v6943, %v6942
    %v6945 = vmul.f32 0.5, %v6944
    %v6946 = vsub.f32 1.5, %v6945
    %v6947 = vmul.f32 %v6942, %v6946
    %vm6948 = vweird.f32 %v6741
    %vm6949 = vweird.f32 %v6942
    %vm6950 = vmor %vm6948, %vm6949
    %v6951 = vsel %vm6950, %v6942, %v6947
    %v6952 = vrsqrt.pop %v6742
    %v6953 = vmul.f32 %v6952, %v6742
    %v6954 = vmul.f32 %v6953, %v6952
    %v6955 = vmul.f32 0.5, %v6954
    %v6956 = vsub.f32 1.5, %v6955
    %v6957 = vmul.f32 %v6952, %v6956
    %vm6958 = vweird.f32 %v6742
    %vm6959 = vweird.f32 %v6952
    %vm6960 = vmor %vm6958, %vm6959
    %v6961 = vsel %vm6960, %v6952, %v6957
    %v6962 = vrsqrt.pop %v6743
    %v6963 = vmul.f32 %v6962, %v6743
    %v6964 = vmul.f32 %v6963, %v6962
    %v6965 = vmul.f32 0.5, %v6964
    %v6966 = vsub.f32 1.5, %v6965
    %v6967 = vmul.f32 %v6962, %v6966
    %vm6968 = vweird.f32 %v6743
    %vm6969 = vweird.f32 %v6962
    %vm6970 = vmor %vm6968, %vm6969
    %v6971 = vsel %vm6970, %v6962, %v6967
    %v6972 = vrsqrt.pop %v6744
    %v6973 = vmul.f32 %v6972, %v6744
    %v6974 = vmul.f32 %v6973, %v6972
    %v6975 = vmul.f32 0.5, %v6974
    %v6976 = vsub.f32 1.5, %v6975
    %v6977 = vmul.f32 %v6972, %v6976
    %vm6978 = vweird.f32 %v6744
    %vm6979 = vweird.f32 %v6972
    %vm6980 = vmor %vm6978, %vm6979
    %v6981 = vsel %vm6980, %v6972, %v6977
    %v6982 = vrsqrt.pop %v6745
    %v6983 = vmul.f32 %v6982, %v6745
    %v6984 = vmul.f32 %v6983, %v6982
    %v6985 = vmul.f32 0.5, %v6984
    %v6986 = vsub.f32 1.5, %v6985
    %v6987 = vmul.f32 %v6982, %v6986
    %vm6988 = vweird.f32 %v6745
    %vm6989 = vweird.f32 %v6982
    %vm6990 = vmor %vm6988, %vm6989
    %v6991 = vsel %vm6990, %v6982, %v6987
    %v6992 = vrsqrt.pop %v6746
    %v6993 = vmul.f32 %v6992, %v6746
    %v6994 = vmul.f32 %v6993, %v6992
    %v6995 = vmul.f32 0.5, %v6994
    %v6996 = vsub.f32 1.5, %v6995
    %v6997 = vmul.f32 %v6992, %v6996
    %vm6998 = vweird.f32 %v6746
    %vm6999 = vweird.f32 %v6992
    %vm7000 = vmor %vm6998, %vm6999
    %v7001 = vsel %vm7000, %v6992, %v6997
    %v7002 = vrsqrt.pop %v6747
    %v7003 = vmul.f32 %v7002, %v6747
    %v7004 = vmul.f32 %v7003, %v7002
    %v7005 = vmul.f32 0.5, %v7004
    %v7006 = vsub.f32 1.5, %v7005
    %v7007 = vmul.f32 %v7002, %v7006
    %vm7008 = vweird.f32 %v6747
    %vm7009 = vweird.f32 %v7002
    %vm7010 = vmor %vm7008, %vm7009
    %v7011 = vsel %vm7010, %v7002, %v7007
    %v7012 = vrsqrt.pop %v6748
    %v7013 = vmul.f32 %v7012, %v6748
    %v7014 = vmul.f32 %v7013, %v7012
    %v7015 = vmul.f32 0.5, %v7014
    %v7016 = vsub.f32 1.5, %v7015
    %v7017 = vmul.f32 %v7012, %v7016
    %vm7018 = vweird.f32 %v6748
    %vm7019 = vweird.f32 %v7012
    %vm7020 = vmor %vm7018, %vm7019
    %v7021 = vsel %vm7020, %v7012, %v7017
    %v7022 = vrsqrt.pop %v6749
    %v7023 = vmul.f32 %v7022, %v6749
    %v7024 = vmul.f32 %v7023, %v7022
    %v7025 = vmul.f32 0.5, %v7024
    %v7026 = vsub.f32 1.5, %v7025
    %v7027 = vmul.f32 %v7022, %v7026
    %vm7028 = vweird.f32 %v6749
    %vm7029 = vweird.f32 %v7022
    %vm7030 = vmor %vm7028, %vm7029
    %v7031 = vsel %vm7030, %v7022, %v7027
    %v7032 = vrsqrt.pop %v6750
    %v7033 = vmul.f32 %v7032, %v6750
    %v7034 = vmul.f32 %v7033, %v7032
    %v7035 = vmul.f32 0.5, %v7034
    %v7036 = vsub.f32 1.5, %v7035
    %v7037 = vmul.f32 %v7032, %v7036
    %vm7038 = vweird.f32 %v6750
    %vm7039 = vweird.f32 %v7032
    %vm7040 = vmor %vm7038, %vm7039
    %v7041 = vsel %vm7040, %v7032, %v7037
    %v7042 = vrsqrt.pop %v6751
    %v7043 = vmul.f32 %v7042, %v6751
    %v7044 = vmul.f32 %v7043, %v7042
    %v7045 = vmul.f32 0.5, %v7044
    %v7046 = vsub.f32 1.5, %v7045
    %v7047 = vmul.f32 %v7042, %v7046
    %vm7048 = vweird.f32 %v6751
    %vm7049 = vweird.f32 %v7042
    %vm7050 = vmor %vm7048, %vm7049
    %v7051 = vsel %vm7050, %v7042, %v7047
    %v7052 = vrsqrt.pop %v6752
    %v7053 = vmul.f32 %v7052, %v6752
    %v7054 = vmul.f32 %v7053, %v7052
    %v7055 = vmul.f32 0.5, %v7054
    %v7056 = vsub.f32 1.5, %v7055
    %v7057 = vmul.f32 %v7052, %v7056
    %vm7058 = vweird.f32 %v6752
    %vm7059 = vweird.f32 %v7052
    %vm7060 = vmor %vm7058, %vm7059
    %v7061 = vsel %vm7060, %v7052, %v7057
    %v7062 = vrsqrt.pop %v6753
    %v7063 = vmul.f32 %v7062, %v6753
    %v7064 = vmul.f32 %v7063, %v7062
    %v7065 = vmul.f32 0.5, %v7064
    %v7066 = vsub.f32 1.5, %v7065
    %v7067 = vmul.f32 %v7062, %v7066
    %vm7068 = vweird.f32 %v6753
    %vm7069 = vweird.f32 %v7062
    %vm7070 = vmor %vm7068, %vm7069
    %v7071 = vsel %vm7070, %v7062, %v7067
    %v7072 = vrsqrt.pop %v6754
    %v7073 = vmul.f32 %v7072, %v6754
    %v7074 = vmul.f32 %v7073, %v7072
    %v7075 = vmul.f32 0.5, %v7074
    %v7076 = vsub.f32 1.5, %v7075
    %v7077 = vmul.f32 %v7072, %v7076
    %vm7078 = vweird.f32 %v6754
    %vm7079 = vweird.f32 %v7072
    %vm7080 = vmor %vm7078, %vm7079
    %v7081 = vsel %vm7080, %v7072, %v7077
    %v7082 = vrsqrt.pop %v6755
    %v7083 = vmul.f32 %v7082, %v6755
    %v7084 = vmul.f32 %v7083, %v7082
    %v7085 = vmul.f32 0.5, %v7084
    %v7086 = vsub.f32 1.5, %v7085
    %v7087 = vmul.f32 %v7082, %v7086
    %vm7088 = vweird.f32 %v6755
    %vm7089 = vweird.f32 %v7082
    %vm7090 = vmor %vm7088, %vm7089
    %v7091 = vsel %vm7090, %v7082, %v7087
    %v7092 = vrsqrt.pop %v6756
    %v7093 = vmul.f32 %v7092, %v6756
    %v7094 = vmul.f32 %v7093, %v7092
    %v7095 = vmul.f32 0.5, %v7094
    %v7096 = vsub.f32 1.5, %v7095
    %v7097 = vmul.f32 %v7092, %v7096
    %vm7098 = vweird.f32 %v6756
    %vm7099 = vweird.f32 %v7092
    %vm7100 = vmor %vm7098, %vm7099
    %v7101 = vsel %vm7100, %v7092, %v7097
    %v7102 = vrsqrt.pop %v6757
    %v7103 = vmul.f32 %v7102, %v6757
    %v7104 = vmul.f32 %v7103, %v7102
    %v7105 = vmul.f32 0.5, %v7104
    %v7106 = vsub.f32 1.5, %v7105
    %v7107 = vmul.f32 %v7102, %v7106
    %vm7108 = vweird.f32 %v6757
    %vm7109 = vweird.f32 %v7102
    %vm7110 = vmor %vm7108, %vm7109
    %v7111 = vsel %vm7110, %v7102, %v7107
    %v7112 = vrsqrt.pop %v6758
    %v7113 = vmul.f32 %v7112, %v6758
    %v7114 = vmul.f32 %v7113, %v7112
    %v7115 = vmul.f32 0.5, %v7114
    %v7116 = vsub.f32 1.5, %v7115
    %v7117 = vmul.f32 %v7112, %v7116
    %vm7118 = vweird.f32 %v6758
    %vm7119 = vweird.f32 %v7112
    %vm7120 = vmor %vm7118, %vm7119
    %v7121 = vsel %vm7120, %v7112, %v7117
    %v7122 = vrsqrt.pop %v6759
    %v7123 = vmul.f32 %v7122, %v6759
    %v7124 = vmul.f32 %v7123, %v7122
    %v7125 = vmul.f32 0.5, %v7124
    %v7126 = vsub.f32 1.5, %v7125
    %v7127 = vmul.f32 %v7122, %v7126
    %vm7128 = vweird.f32 %v6759
    %vm7129 = vweird.f32 %v7122
    %vm7130 = vmor %vm7128, %vm7129
    %v7131 = vsel %vm7130, %v7122, %v7127
    %v7132 = vrsqrt.pop %v6760
    %v7133 = vmul.f32 %v7132, %v6760
    %v7134 = vmul.f32 %v7133, %v7132
    %v7135 = vmul.f32 0.5, %v7134
    %v7136 = vsub.f32 1.5, %v7135
    %v7137 = vmul.f32 %v7132, %v7136
    %vm7138 = vweird.f32 %v6760
    %vm7139 = vweird.f32 %v7132
    %vm7140 = vmor %vm7138, %vm7139
    %v7141 = vsel %vm7140, %v7132, %v7137
    %v7142 = vrsqrt.pop %v6761
    %v7143 = vmul.f32 %v7142, %v6761
    %v7144 = vmul.f32 %v7143, %v7142
    %v7145 = vmul.f32 0.5, %v7144
    %v7146 = vsub.f32 1.5, %v7145
    %v7147 = vmul.f32 %v7142, %v7146
    %vm7148 = vweird.f32 %v6761
    %vm7149 = vweird.f32 %v7142
    %vm7150 = vmor %vm7148, %vm7149
    %v7151 = vsel %vm7150, %v7142, %v7147
    %v7152 = vrsqrt.pop %v6762
    %v7153 = vmul.f32 %v7152, %v6762
    %v7154 = vmul.f32 %v7153, %v7152
    %v7155 = vmul.f32 0.5, %v7154
    %v7156 = vsub.f32 1.5, %v7155
    %v7157 = vmul.f32 %v7152, %v7156
    %vm7158 = vweird.f32 %v6762
    %vm7159 = vweird.f32 %v7152
    %vm7160 = vmor %vm7158, %vm7159
    %v7161 = vsel %vm7160, %v7152, %v7157
    %v7162 = vrsqrt.pop %v6763
    %v7163 = vmul.f32 %v7162, %v6763
    %v7164 = vmul.f32 %v7163, %v7162
    %v7165 = vmul.f32 0.5, %v7164
    %v7166 = vsub.f32 1.5, %v7165
    %v7167 = vmul.f32 %v7162, %v7166
    %vm7168 = vweird.f32 %v6763
    %vm7169 = vweird.f32 %v7162
    %vm7170 = vmor %vm7168, %vm7169
    %v7171 = vsel %vm7170, %v7162, %v7167
    %v7172 = vrsqrt.pop %v6764
    %v7173 = vmul.f32 %v7172, %v6764
    %v7174 = vmul.f32 %v7173, %v7172
    %v7175 = vmul.f32 0.5, %v7174
    %v7176 = vsub.f32 1.5, %v7175
    %v7177 = vmul.f32 %v7172, %v7176
    %vm7178 = vweird.f32 %v6764
    %vm7179 = vweird.f32 %v7172
    %vm7180 = vmor %vm7178, %vm7179
    %v7181 = vsel %vm7180, %v7172, %v7177
    %v7182 = vrsqrt.pop %v6765
    %v7183 = vmul.f32 %v7182, %v6765
    %v7184 = vmul.f32 %v7183, %v7182
    %v7185 = vmul.f32 0.5, %v7184
    %v7186 = vsub.f32 1.5, %v7185
    %v7187 = vmul.f32 %v7182, %v7186
    %vm7188 = vweird.f32 %v6765
    %vm7189 = vweird.f32 %v7182
    %vm7190 = vmor %vm7188, %vm7189
    %v7191 = vsel %vm7190, %v7182, %v7187
    %v7192 = vrsqrt.pop %v6766
    %v7193 = vmul.f32 %v7192, %v6766
    %v7194 = vmul.f32 %v7193, %v7192
    %v7195 = vmul.f32 0.5, %v7194
    %v7196 = vsub.f32 1.5, %v7195
    %v7197 = vmul.f32 %v7192, %v7196
    %vm7198 = vweird.f32 %v6766
    %vm7199 = vweird.f32 %v7192
    %vm7200 = vmor %vm7198, %vm7199
    %v7201 = vsel %vm7200, %v7192, %v7197
    %v7202 = vrsqrt.pop %v6767
    %v7203 = vmul.f32 %v7202, %v6767
    %v7204 = vmul.f32 %v7203, %v7202
    %v7205 = vmul.f32 0.5, %v7204
    %v7206 = vsub.f32 1.5, %v7205
    %v7207 = vmul.f32 %v7202, %v7206
    %vm7208 = vweird.f32 %v6767
    %vm7209 = vweird.f32 %v7202
    %vm7210 = vmor %vm7208, %vm7209
    %v7211 = vsel %vm7210, %v7202, %v7207
    %v7212 = vrsqrt.pop %v6768
    %v7213 = vmul.f32 %v7212, %v6768
    %v7214 = vmul.f32 %v7213, %v7212
    %v7215 = vmul.f32 0.5, %v7214
    %v7216 = vsub.f32 1.5, %v7215
    %v7217 = vmul.f32 %v7212, %v7216
    %vm7218 = vweird.f32 %v6768
    %vm7219 = vweird.f32 %v7212
    %vm7220 = vmor %vm7218, %vm7219
    %v7221 = vsel %vm7220, %v7212, %v7217
    %v7222 = vrsqrt.pop %v6769
    %v7223 = vmul.f32 %v7222, %v6769
    %v7224 = vmul.f32 %v7223, %v7222
    %v7225 = vmul.f32 0.5, %v7224
    %v7226 = vsub.f32 1.5, %v7225
    %v7227 = vmul.f32 %v7222, %v7226
    %vm7228 = vweird.f32 %v6769
    %vm7229 = vweird.f32 %v7222
    %vm7230 = vmor %vm7228, %vm7229
    %v7231 = vsel %vm7230, %v7222, %v7227
    %v7232 = vrsqrt.pop %v6770
    %v7233 = vmul.f32 %v7232, %v6770
    %v7234 = vmul.f32 %v7233, %v7232
    %v7235 = vmul.f32 0.5, %v7234
    %v7236 = vsub.f32 1.5, %v7235
    %v7237 = vmul.f32 %v7232, %v7236
    %vm7238 = vweird.f32 %v6770
    %vm7239 = vweird.f32 %v7232
    %vm7240 = vmor %vm7238, %vm7239
    %v7241 = vsel %vm7240, %v7232, %v7237
    %v7242 = vrsqrt.pop %v6771
    %v7243 = vmul.f32 %v7242, %v6771
    %v7244 = vmul.f32 %v7243, %v7242
    %v7245 = vmul.f32 0.5, %v7244
    %v7246 = vsub.f32 1.5, %v7245
    %v7247 = vmul.f32 %v7242, %v7246
    %vm7248 = vweird.f32 %v6771
    %vm7249 = vweird.f32 %v7242
    %vm7250 = vmor %vm7248, %vm7249
    %v7251 = vsel %vm7250, %v7242, %v7247
    %v7252 = vmul.f32 %v6436, %v6781
    %v7253 = vmul.f32 %v6437, %v6791
    %v7254 = vmul.f32 %v6438, %v6801
    %v7255 = vmul.f32 %v6439, %v6811
    %v7256 = vmul.f32 %v6440, %v6821
    %v7257 = vmul.f32 %v6441, %v6831
    %v7258 = vmul.f32 %v6442, %v6841
    %v7259 = vmul.f32 %v6443, %v6851
    %v7260 = vmul.f32 %v6444, %v6861
    %v7261 = vmul.f32 %v6445, %v6871
    %v7262 = vmul.f32 %v6446, %v6881
    %v7263 = vmul.f32 %v6447, %v6891
    %v7264 = vmul.f32 %v6448, %v6901
    %v7265 = vmul.f32 %v6449, %v6911
    %v7266 = vmul.f32 %v6450, %v6921
    %v7267 = vmul.f32 %v6451, %v6931
    %v7268 = vmul.f32 %v6452, %v6941
    %v7269 = vmul.f32 %v6453, %v6951
    %v7270 = vmul.f32 %v6454, %v6961
    %v7271 = vmul.f32 %v6455, %v6971
    %v7272 = vmul.f32 %v6456, %v6981
    %v7273 = vmul.f32 %v6457, %v6991
    %v7274 = vmul.f32 %v6458, %v7001
    %v7275 = vmul.f32 %v6459, %v7011
    %v7276 = vmul.f32 %v6460, %v7021
    %v7277 = vmul.f32 %v6461, %v7031
    %v7278 = vmul.f32 %v6462, %v7041
    %v7279 = vmul.f32 %v6463, %v7051
    %v7280 = vmul.f32 %v6464, %v7061
    %v7281 = vmul.f32 %v6465, %v7071
    %v7282 = vmul.f32 %v6466, %v7081
    %v7283 = vmul.f32 %v6467, %v7091
    %v7284 = vmul.f32 %v6468, %v7101
    %v7285 = vmul.f32 %v6469, %v7111
    %v7286 = vmul.f32 %v6470, %v7121
    %v7287 = vmul.f32 %v6471, %v7131
    %v7288 = vmul.f32 %v6472, %v7141
    %v7289 = vmul.f32 %v6473, %v7151
    %v7290 = vmul.f32 %v6474, %v7161
    %v7291 = vmul.f32 %v6475, %v7171
    %v7292 = vmul.f32 %v6476, %v7181
    %v7293 = vmul.f32 %v6477, %v7191
    %v7294 = vmul.f32 %v6478, %v7201
    %v7295 = vmul.f32 %v6479, %v7211
    %v7296 = vmul.f32 %v6480, %v7221
    %v7297 = vmul.f32 %v6481, %v7231
    %v7298 = vmul.f32 %v6482, %v7241
    %v7299 = vmul.f32 %v6483, %v7251
    %v7300 = vperm.slane %v4132, 0
    %v7301 = vmul.f32 %v7252, %v7300
    %v7302 = vmul.f32 %v7253, %v7300
    %v7303 = vmul.f32 %v7254, %v7300
    %v7304 = vmul.f32 %v7255, %v7300
    %v7305 = vmul.f32 %v7256, %v7300
    %v7306 = vmul.f32 %v7257, %v7300
    %v7307 = vmul.f32 %v7258, %v7300
    %v7308 = vmul.f32 %v7259, %v7300
    %v7309 = vmul.f32 %v7260, %v7300
    %v7310 = vmul.f32 %v7261, %v7300
    %v7311 = vmul.f32 %v7262, %v7300
    %v7312 = vmul.f32 %v7263, %v7300
    %v7313 = vmul.f32 %v7264, %v7300
    %v7314 = vmul.f32 %v7265, %v7300
    %v7315 = vmul.f32 %v7266, %v7300
    %v7316 = vmul.f32 %v7267, %v7300
    %v7317 = vmul.f32 %v7268, %v7300
    %v7318 = vmul.f32 %v7269, %v7300
    %v7319 = vmul.f32 %v7270, %v7300
    %v7320 = vmul.f32 %v7271, %v7300
    %v7321 = vmul.f32 %v7272, %v7300
    %v7322 = vmul.f32 %v7273, %v7300
    %v7323 = vmul.f32 %v7274, %v7300
    %v7324 = vmul.f32 %v7275, %v7300
    %v7325 = vmul.f32 %v7276, %v7300
    %v7326 = vmul.f32 %v7277, %v7300
    %v7327 = vmul.f32 %v7278, %v7300
    %v7328 = vmul.f32 %v7279, %v7300
    %v7329 = vmul.f32 %v7280, %v7300
    %v7330 = vmul.f32 %v7281, %v7300
    %v7331 = vmul.f32 %v7282, %v7300
    %v7332 = vmul.f32 %v7283, %v7300
    %v7333 = vmul.f32 %v7284, %v7300
    %v7334 = vmul.f32 %v7285, %v7300
    %v7335 = vmul.f32 %v7286, %v7300
    %v7336 = vmul.f32 %v7287, %v7300
    %v7337 = vmul.f32 %v7288, %v7300
    %v7338 = vmul.f32 %v7289, %v7300
    %v7339 = vmul.f32 %v7290, %v7300
    %v7340 = vmul.f32 %v7291, %v7300
    %v7341 = vmul.f32 %v7292, %v7300
    %v7342 = vmul.f32 %v7293, %v7300
    %v7343 = vmul.f32 %v7294, %v7300
    %v7344 = vmul.f32 %v7295, %v7300
    %v7345 = vmul.f32 %v7296, %v7300
    %v7346 = vmul.f32 %v7297, %v7300
    %v7347 = vmul.f32 %v7298, %v7300
    %v7348 = vmul.f32 %v7299, %v7300
    %v7349 = vperm.slane %v4133, 0
    %v7350 = vadd.f32 %v7301, %v7349
    %v7351 = vadd.f32 %v7302, %v7349
    %v7352 = vadd.f32 %v7303, %v7349
    %v7353 = vadd.f32 %v7304, %v7349
    %v7354 = vadd.f32 %v7305, %v7349
    %v7355 = vadd.f32 %v7306, %v7349
    %v7356 = vadd.f32 %v7307, %v7349
    %v7357 = vadd.f32 %v7308, %v7349
    %v7358 = vadd.f32 %v7309, %v7349
    %v7359 = vadd.f32 %v7310, %v7349
    %v7360 = vadd.f32 %v7311, %v7349
    %v7361 = vadd.f32 %v7312, %v7349
    %v7362 = vadd.f32 %v7313, %v7349
    %v7363 = vadd.f32 %v7314, %v7349
    %v7364 = vadd.f32 %v7315, %v7349
    %v7365 = vadd.f32 %v7316, %v7349
    %v7366 = vadd.f32 %v7317, %v7349
    %v7367 = vadd.f32 %v7318, %v7349
    %v7368 = vadd.f32 %v7319, %v7349
    %v7369 = vadd.f32 %v7320, %v7349
    %v7370 = vadd.f32 %v7321, %v7349
    %v7371 = vadd.f32 %v7322, %v7349
    %v7372 = vadd.f32 %v7323, %v7349
    %v7373 = vadd.f32 %v7324, %v7349
    %v7374 = vadd.f32 %v7325, %v7349
    %v7375 = vadd.f32 %v7326, %v7349
    %v7376 = vadd.f32 %v7327, %v7349
    %v7377 = vadd.f32 %v7328, %v7349
    %v7378 = vadd.f32 %v7329, %v7349
    %v7379 = vadd.f32 %v7330, %v7349
    %v7380 = vadd.f32 %v7331, %v7349
    %v7381 = vadd.f32 %v7332, %v7349
    %v7382 = vadd.f32 %v7333, %v7349
    %v7383 = vadd.f32 %v7334, %v7349
    %v7384 = vadd.f32 %v7335, %v7349
    %v7385 = vadd.f32 %v7336, %v7349
    %v7386 = vadd.f32 %v7337, %v7349
    %v7387 = vadd.f32 %v7338, %v7349
    %v7388 = vadd.f32 %v7339, %v7349
    %v7389 = vadd.f32 %v7340, %v7349
    %v7390 = vadd.f32 %v7341, %v7349
    %v7391 = vadd.f32 %v7342, %v7349
    %v7392 = vadd.f32 %v7343, %v7349
    %v7393 = vadd.f32 %v7344, %v7349
    %v7394 = vadd.f32 %v7345, %v7349
    %v7395 = vadd.f32 %v7346, %v7349
    %v7396 = vadd.f32 %v7347, %v7349
    %v7397 = vadd.f32 %v7348, %v7349
    %v7398 = vadd.f32 %v7350, %v7358
    %v7399 = vadd.f32 %v7351, %v7359
    %v7400 = vadd.f32 %v7352, %v7360
    %v7401 = vadd.f32 %v7353, %v7361
    %v7402 = vadd.f32 %v7354, %v7362
    %v7403 = vadd.f32 %v7355, %v7363
    %v7404 = vadd.f32 %v7356, %v7364
    %v7405 = vadd.f32 %v7357, %v7365
    %v7406 = vadd.f32 %v7398, %v7366
    %v7407 = vadd.f32 %v7399, %v7367
    %v7408 = vadd.f32 %v7400, %v7368
    %v7409 = vadd.f32 %v7401, %v7369
    %v7410 = vadd.f32 %v7402, %v7370
    %v7411 = vadd.f32 %v7403, %v7371
    %v7412 = vadd.f32 %v7404, %v7372
    %v7413 = vadd.f32 %v7405, %v7373
    %v7414 = vpack.c.bf16 %v7407, %v7406
    %v7415 = vpack.c.bf16 %v7409, %v7408
    %v7416 = vpack.c.bf16 %v7411, %v7410
    %v7417 = vpack.c.bf16 %v7413, %v7412
    %v7422 = vunpack.c.l.b16 %v76
    %v7423 = vunpack.c.l.b16 %v77
    %v7424 = vunpack.c.l.b16 %v78
    %v7425 = vunpack.c.l.b16 %v79
    %v7426 = vpack.c.b16 %v7423, %v7422
    %v7427 = vpack.c.b16 %v7425, %v7424
    %v7431 = vsel %vm893, %v7414, 0
    %v7434 = vsel %vm893, %v7415, 0
    %v7437 = vsel %vm893, %v7416, 0
    %v7440 = vsel %vm893, %v7417, 0
    %7442 = vmatpush.bf16.msra.mxu0 0
    %7443 = vmatpush.bf16.msra.mxu0 0
    %7444 = vmatpush.bf16.msra.mxu0 0
    %7445 = vmatpush.bf16.msra.mxu0 0
    %7446 = vmatpush.bf16.msra.mxu0 0
    %7447 = vmatpush.bf16.msra.mxu0 0
    %7448 = vmatpush.bf16.msra.mxu0 %v7427
    %7449 = vmatpush.bf16.msra.mxu0 %v7426
    %7450 = vmatmul.bf16.gmra.mxu0 %v7431
    %v7451 = vpop.f32.mrf.mxu0
    %v7452 = vadd.f32 0.0, %v7451
    %v7453 = vpop.f32.mrf.mxu0
    %v7454 = vadd.f32 0.0, %v7453
    %7455 = vmatmul.bf16.gmra.mxu0 %v7434
    %v7456 = vpop.f32.mrf.mxu0
    %v7457 = vadd.f32 0.0, %v7456
    %v7458 = vpop.f32.mrf.mxu0
    %v7459 = vadd.f32 0.0, %v7458
    %7460 = vmatmul.bf16.gmra.mxu0 %v7437
    %v7461 = vpop.f32.mrf.mxu0
    %v7462 = vadd.f32 0.0, %v7461
    %v7463 = vpop.f32.mrf.mxu0
    %v7464 = vadd.f32 0.0, %v7463
    %7465 = vmatmul.bf16.gmra.mxu0 %v7440
    %v7466 = vpop.f32.mrf.mxu0
    %v7467 = vadd.f32 0.0, %v7466
    %v7468 = vpop.f32.mrf.mxu0
    %v7469 = vadd.f32 0.0, %v7468
    %7470 = vdwg.mxu0
    %v7471 = vpack.c.bf16 %v7454, %v7452
    %v7472 = vpack.c.bf16 %v7459, %v7457
    %v7473 = vpack.c.bf16 %v7464, %v7462
    %v7474 = vpack.c.bf16 %v7469, %v7467
    %v7477 = vunpack.c.l.b16 %v82
    %v7478 = vunpack.c.l.b16 %v83
    %v7479 = vpack.c.b16 %v7478, %v7477
    %7484 = vrot.lane.b32.xlu0 %v300, 124
    %v7485 = vpop.permute.xlu0 %7484
    %7486 = vrot.lane.b32.xlu0 %v301, 124
    %v7487 = vpop.permute.xlu0 %7486
    %7488 = vrot.lane.b32.xlu0 %v302, 124
    %v7489 = vpop.permute.xlu0 %7488
    %7490 = vrot.lane.b32.xlu0 %v303, 124
    %v7491 = vpop.permute.xlu0 %7490
    %v7497 = vsel %vm603, %v7479, 0
    %7499 = vmatpush.bf16.msra.mxu0 0
    %7500 = vmatpush.bf16.msra.mxu0 0
    %7501 = vmatpush.bf16.msra.mxu0 0
    %7502 = vmatpush.bf16.msra.mxu0 0
    %7503 = vmatpush.bf16.msra.mxu0 %v7491
    %7504 = vmatpush.bf16.msra.mxu0 %v7489
    %7505 = vmatpush.bf16.msra.mxu0 %v7487
    %7506 = vmatpush.bf16.msra.mxu0 %v7485
    %7507 = vmatmul.bf16.gmra.mxu0 %v7497
    %v7508 = vpop.f32.mrf.mxu0
    %v7509 = vadd.f32 0.0, %v7508
    %v7510 = vpop.f32.mrf.mxu0
    %v7511 = vadd.f32 0.0, %v7510
    %7512 = vdwg.mxu0
    %v7515 = vunpack.c.l.b16 %v80
    %v7516 = vunpack.c.l.b16 %v81
    %v7517 = vpack.c.b16 %v7516, %v7515
    %v7519 = vsel %vm603, %v7517, 0
    %7521 = vmatpush.bf16.msra.mxu0 0
    %7522 = vmatpush.bf16.msra.mxu0 0
    %7523 = vmatpush.bf16.msra.mxu0 0
    %7524 = vmatpush.bf16.msra.mxu0 0
    %7525 = vmatpush.bf16.msra.mxu0 %v7474
    %7526 = vmatpush.bf16.msra.mxu0 %v7473
    %7527 = vmatpush.bf16.msra.mxu0 %v7472
    %7528 = vmatpush.bf16.msra.mxu0 %v7471
    %7529 = vmatmul.bf16.gmra.mxu0 %v7519
    %v7530 = vpop.f32.mrf.mxu0
    %v7531 = vadd.f32 %v7509, %v7530
    %v7532 = vpop.f32.mrf.mxu0
    %v7533 = vadd.f32 %v7511, %v7532
    %7534 = vdwg.mxu0
    %v7535 = vadd.f32 %v7531, %v92
    %v7536 = vadd.f32 %v7533, %v93
    %7538 = vrot.lane.b32.xlu0 %v271, 124
    %v7539 = vpop.permute.xlu0 %7538
    %v7541 = vmul.f32 %v7535, %v7539
    %v7542 = vmul.f32 %v7536, %v7539
    %7544 = vrot.lane.b32.xlu0 %v160, 124
    %v7545 = vpop.permute.xlu0 %7544
    %v7547 = vadd.f32 %v7541, %v7545
    %v7548 = vadd.f32 %v7542, %v7545
    %7549 = vst.msk [vmem:[%s4] sm:$0xff] %vm409, %v7547
    %7550 = vst.msk [vmem:[%s4 + $0x8] sm:$0xff] %vm409, %v7548
    %v7551 = vadd.f32 %v7374, %v7382
    %v7552 = vadd.f32 %v7375, %v7383
    %v7553 = vadd.f32 %v7376, %v7384
    %v7554 = vadd.f32 %v7377, %v7385
    %v7555 = vadd.f32 %v7378, %v7386
    %v7556 = vadd.f32 %v7379, %v7387
    %v7557 = vadd.f32 %v7380, %v7388
    %v7558 = vadd.f32 %v7381, %v7389
    %v7559 = vadd.f32 %v7551, %v7390
    %v7560 = vadd.f32 %v7552, %v7391
    %v7561 = vadd.f32 %v7553, %v7392
    %v7562 = vadd.f32 %v7554, %v7393
    %v7563 = vadd.f32 %v7555, %v7394
    %v7564 = vadd.f32 %v7556, %v7395
    %v7565 = vadd.f32 %v7557, %v7396
    %v7566 = vadd.f32 %v7558, %v7397
    %v7567 = vpack.c.bf16 %v7560, %v7559
    %v7568 = vpack.c.bf16 %v7562, %v7561
    %v7569 = vpack.c.bf16 %v7564, %v7563
    %v7570 = vpack.c.bf16 %v7566, %v7565
    %v7572 = vsel %vm893, %v7567, 0
    %v7575 = vsel %vm893, %v7568, 0
    %v7578 = vsel %vm893, %v7569, 0
    %v7581 = vsel %vm893, %v7570, 0
    %7583 = vmatpush.bf16.msra.mxu0 0
    %7584 = vmatpush.bf16.msra.mxu0 0
    %7585 = vmatpush.bf16.msra.mxu0 0
    %7586 = vmatpush.bf16.msra.mxu0 0
    %7587 = vmatpush.bf16.msra.mxu0 0
    %7588 = vmatpush.bf16.msra.mxu0 0
    %7589 = vmatpush.bf16.msra.mxu0 %v7427
    %7590 = vmatpush.bf16.msra.mxu0 %v7426
    %7591 = vmatmul.bf16.gmra.mxu0 %v7572
    %v7592 = vpop.f32.mrf.mxu0
    %v7593 = vadd.f32 0.0, %v7592
    %v7594 = vpop.f32.mrf.mxu0
    %v7595 = vadd.f32 0.0, %v7594
    %7596 = vmatmul.bf16.gmra.mxu0 %v7575
    %v7597 = vpop.f32.mrf.mxu0
    %v7598 = vadd.f32 0.0, %v7597
    %v7599 = vpop.f32.mrf.mxu0
    %v7600 = vadd.f32 0.0, %v7599
    %7601 = vmatmul.bf16.gmra.mxu0 %v7578
    %v7602 = vpop.f32.mrf.mxu0
    %v7603 = vadd.f32 0.0, %v7602
    %v7604 = vpop.f32.mrf.mxu0
    %v7605 = vadd.f32 0.0, %v7604
    %7606 = vmatmul.bf16.gmra.mxu0 %v7581
    %v7607 = vpop.f32.mrf.mxu0
    %v7608 = vadd.f32 0.0, %v7607
    %v7609 = vpop.f32.mrf.mxu0
    %v7610 = vadd.f32 0.0, %v7609
    %7611 = vdwg.mxu0
    %v7612 = vpack.c.bf16 %v7595, %v7593
    %v7613 = vpack.c.bf16 %v7600, %v7598
    %v7614 = vpack.c.bf16 %v7605, %v7603
    %v7615 = vpack.c.bf16 %v7610, %v7608
    %7620 = vrot.lane.b32.xlu0 %v304, 124
    %v7621 = vpop.permute.xlu0 %7620
    %7622 = vrot.lane.b32.xlu0 %v305, 124
    %v7623 = vpop.permute.xlu0 %7622
    %7624 = vrot.lane.b32.xlu0 %v306, 124
    %v7625 = vpop.permute.xlu0 %7624
    %7626 = vrot.lane.b32.xlu0 %v307, 124
    %v7627 = vpop.permute.xlu0 %7626
    %7632 = vmatpush.bf16.msra.mxu0 0
    %7633 = vmatpush.bf16.msra.mxu0 0
    %7634 = vmatpush.bf16.msra.mxu0 0
    %7635 = vmatpush.bf16.msra.mxu0 0
    %7636 = vmatpush.bf16.msra.mxu0 %v7627
    %7637 = vmatpush.bf16.msra.mxu0 %v7625
    %7638 = vmatpush.bf16.msra.mxu0 %v7623
    %7639 = vmatpush.bf16.msra.mxu0 %v7621
    %7640 = vmatmul.bf16.gmra.mxu0 %v7497
    %v7641 = vpop.f32.mrf.mxu0
    %v7642 = vadd.f32 0.0, %v7641
    %v7643 = vpop.f32.mrf.mxu0
    %v7644 = vadd.f32 0.0, %v7643
    %7645 = vdwg.mxu0
    %7646 = vmatpush.bf16.msra.mxu0 0
    %7647 = vmatpush.bf16.msra.mxu0 0
    %7648 = vmatpush.bf16.msra.mxu0 0
    %7649 = vmatpush.bf16.msra.mxu0 0
    %7650 = vmatpush.bf16.msra.mxu0 %v7615
    %7651 = vmatpush.bf16.msra.mxu0 %v7614
    %7652 = vmatpush.bf16.msra.mxu0 %v7613
    %7653 = vmatpush.bf16.msra.mxu0 %v7612
    %7654 = vmatmul.bf16.gmra.mxu0 %v7519
    %v7655 = vpop.f32.mrf.mxu0
    %v7656 = vadd.f32 %v7642, %v7655
    %v7657 = vpop.f32.mrf.mxu0
    %v7658 = vadd.f32 %v7644, %v7657
    %7659 = vdwg.mxu0
    %v7660 = vadd.f32 %v7656, %v92
    %v7661 = vadd.f32 %v7658, %v93
    %7663 = vrot.lane.b32.xlu0 %v283, 124
    %v7664 = vpop.permute.xlu0 %7663
    %v7666 = vmul.f32 %v7660, %v7664
    %v7667 = vmul.f32 %v7661, %v7664
    %7669 = vrot.lane.b32.xlu0 %v161, 124
    %v7670 = vpop.permute.xlu0 %7669
    %v7672 = vadd.f32 %v7666, %v7670
    %v7673 = vadd.f32 %v7667, %v7670
    %s7674 = scalar_lea.vmem %s4, 16
    %7675 = vst.msk [vmem:[%s7674] sm:$0xff] %vm409, %v7672
    %7676 = vst.msk [vmem:[%s7674 + $0x8] sm:$0xff] %vm409, %v7673
    // Predicated region
    $region22: #{model_forward.1} parent=1 // pred_check
      _
    $region23: #{model_forward.1} parent=1 // pred_check_branch
      %7678 = sbr.rel (0) target = $region25
    $region24: #{model_forward.1} parent=1 // pred_region
      _
    $region25: #{model_forward.1} parent=1 // pred_fallthru
      _
    // Predicated region
    $region26: #{model_forward.1} parent=1 // pred_check
      _
    $region27: #{model_forward.1} parent=1 // pred_check_branch
      %7680 = sbr.rel (0) target = $region29
    $region28: #{model_forward.1} parent=1 // pred_region
      _
    $region29: #{model_forward.1} parent=1 // pred_fallthru
      _
    %7681 = vsyncpa [#allocation3], 1

</llo_original>
